<compile_context>
chip_gen: v5e
topology: v5e:2x2
jax: 0.10.0
libtpu: 0.0.40
codegen_flags: <defaults>
</compile_context>

<pallas_src>
import functools

import numpy as np
import jax
import jax.numpy as jnp
from jax import lax
from jax.experimental import pallas as pl
from jax.experimental.pallas import tpu as pltpu


# ----------------------------------------------------------------------------
# parameter / constant preparation (one-time, outside the hot path)
# ----------------------------------------------------------------------------
def fold_batchnorm(gamma, beta, mean, var, eps=1e-5):
    # TODO(synk): BatchNorm uses inference-mode (running) statistics folded into
    # a per-channel scale/bias; training-mode batch statistics are not computed.
    scale = gamma / jnp.sqrt(var + eps)
    return scale, beta - mean * scale


def prepare_params(w1_oihw, g1, be1, m1, v1, w2_oihw, g2, be2, m2, v2, eps=1e-5):
    """Fold BN scale into the conv weights, transpose to (kh,kw,Cout,Cin), bf16."""
    s1, b1 = fold_batchnorm(g1, be1, m1, v1, eps)
    s2, b2 = fold_batchnorm(g2, be2, m2, v2, eps)
    w1 = jnp.transpose(w1_oihw * s1[:, None, None, None], (2, 3, 0, 1))
    w2 = jnp.transpose(w2_oihw * s2[:, None, None, None], (2, 3, 0, 1))
    return {
        "w1": w1.astype(jnp.bfloat16),                  # (3,3,Cmid,C2+C1)
        "w2": w2.astype(jnp.bfloat16),                  # (3,3,Cout,Cmid)
        "b1": b1.astype(jnp.float32).reshape(-1, 1),    # (Cmid,1)
        "b2": b2.astype(jnp.float32).reshape(-1, 1),    # (Cout,1)
    }


def _interp_matrix_np(n_in, n_out):
    """align_corners=True linear-resize matrix (n_out, n_in)."""
    a = np.zeros((n_out, n_in), np.float64)
    for i in range(n_out):
        src = 0.0 if (n_out <= 1 or n_in <= 1) else i * (n_in - 1) / (n_out - 1)
        i0 = min(int(np.floor(src)), n_in - 1)
        i1 = min(i0 + 1, n_in - 1)
        f = src - i0
        a[i, i0] += 1.0 - f
        a[i, i1] += f
    return a


def _upsample_pad_matrix(h1, w1, h_out, w_out):
    """(H1*W1, Ho*Wo) matrix folding bilinear x2 upsample (align_corners=True)
    and the F.pad spatial placement into one right-hand matmul.  Handles
    negative diffs (crop) as well as zero-padding."""
    h2, w2 = 2 * h1, 2 * w1
    ah = _interp_matrix_np(h1, h2)          # (h2, h1)
    aw = _interp_matrix_np(w1, w2)          # (w2, w1)
    pad_t = (h_out - h2) // 2
    pad_left = (w_out - w2) // 2
    a = np.zeros((h1 * w1, h_out * w_out), np.float32)
    for h in range(h_out):
        oh = h - pad_t
        if not 0 <= oh < h2:
            continue
        for w in range(w_out):
            ow = w - pad_left
            if not 0 <= ow < w2:
                continue
            a[:, h * w_out + w] = np.outer(ah[oh], aw[ow]).reshape(-1)
    return jnp.asarray(a)


def _border_masks(h, w):
    """(3,3,1,H*W) {0,1} masks: mask[dh,dw,0,p]=1 iff 3x3 tap (dh,dw) reads an
    in-bounds neighbour of output pixel p (implements the conv zero padding and
    kills lane-roll wrap-around)."""
    hh = np.arange(h)[:, None]
    ww = np.arange(w)[None, :]
    m = np.zeros((3, 3, 1, h * w), np.float32)
    for dh in range(3):
        for dw in range(3):
            valid = ((hh + dh - 1 >= 0) & (hh + dh - 1 < h) &
                     (ww + dw - 1 >= 0) & (ww + dw - 1 < w))
            m[dh, dw, 0] = valid.reshape(-1)
    return jnp.asarray(m)


def _vmem_budget_bytes(fixed_bytes):
    """Conservative VMEM budget for the per-image (double-buffered) blocks."""
    try:
        info = pltpu.get_tpu_info()
        vmem = int(getattr(info, "vmem_capacity_bytes", 64 << 20))
    except Exception:  # defensive: fall back to the smallest (v7x) VMEM
        vmem = 64 << 20
    vmem = min(vmem, 64 << 20)
    return max(1 << 20, (vmem // 4 - fixed_bytes) // 2)   # /2: double buffering


def _pick_batch_block(n, per_item_bytes, budget_bytes):
    tb = int(max(1, min(n, budget_bytes // max(per_item_bytes, 1))))
    if n >= 2:
        tb = min(tb, n // 2)     # keep >=2 grid steps so both v7x TCs get work
    while n % tb:
        tb -= 1
    return tb


# ----------------------------------------------------------------------------
# fused kernel: upsample + pad + concat + (conv3x3 + BN + ReLU) x 2
# ----------------------------------------------------------------------------
def _up_fused_kernel(x1_ref, x2_ref, up_mat_ref, mask_ref, w1_ref, w2_ref,
                     b1_ref, b2_ref, o_ref, *, W):
    """Whole Up block for a (TB, ...) batch slice, channel-major layout.

    x1_ref:   (TB, C1, H1*W1) f32   deep feature (to be upsampled)
    x2_ref:   (TB, C2, H*W)   f32   skip connection
    up_mat:   (H1*W1, H*W)    f32   fused bilinear-x2-upsample + F.pad matrix
    mask:     (3, 3, 1, H*W)  f32   conv zero-padding border masks
    w1:       (3, 3, Cmid, C2+C1) bf16   BN1 scale folded in
    w2:       (3, 3, Cout, Cmid)  bf16   BN2 scale folded in
    b1, b2:   (Cmid, 1) / (Cout, 1) f32  folded BN bias
    o_ref:    (TB, Cout, H*W) f32
    """
    P = o_ref.shape[-1]

    def conv3x3_bn_relu(x_bf16, w_ref, b_ref):
        # x: (Cin, P) bf16.  Each tap = one MXU matmul; the +-1 pixel tap
        # offsets are realigned on the matmul OUTPUT with a lane roll (XLU,
        # overlaps the MXU) + precomputed border masks -> no materialized
        # shifted-window copies and no in-kernel padding buffer.
        cout = w_ref.shape[2]
        acc = jnp.zeros((cout, P), jnp.float32)
        for dh in range(3):
            for dw in range(3):
                y = jnp.dot(w_ref[dh, dw], x_bf16,
                            preferred_element_type=jnp.float32)   # (Cout, P)
                off = (dh - 1) * W + (dw - 1)    # flat source-pixel offset
                if off != 0:
                    y = pltpu.roll(y, shift=(-off) % P, axis=1)
                if (dh, dw) != (1, 1):
                    y = y * mask_ref[dh, dw]     # zero out-of-image taps
                acc = acc + y
        return jnp.maximum(acc + b_ref[...], 0.0)  # folded-BN bias + ReLU

    for b in range(x1_ref.shape[0]):             # static TB unroll
        # bilinear x2 upsample + F.pad placement as ONE matmul (kept in f32)
        up = jnp.dot(x1_ref[b], up_mat_ref[...],
                     preferred_element_type=jnp.float32)           # (C1, P)
        # torch.cat([x2, x1], dim=1): tile-aligned VMEM concat, no HBM traffic
        xin = jnp.concatenate(
            [x2_ref[b].astype(jnp.bfloat16), up.astype(jnp.bfloat16)], axis=0)
        h1 = conv3x3_bn_relu(xin, w1_ref, b1_ref)                  # (Cmid, P)
        out = conv3x3_bn_relu(h1.astype(jnp.bfloat16), w2_ref, b2_ref)
        o_ref[b] = out.astype(o_ref.dtype)       # lane-dense (P-wide) store


# ----------------------------------------------------------------------------
# Up.forward
# ----------------------------------------------------------------------------
def up_forward(x1_nchw, x2_nchw, params):
    """Up.forward (bilinear path) as a single fused Pallas call, NCHW in/out."""
    # TODO(synk): only the bilinear=True branch (module default) is implemented;
    # the ConvTranspose2d path (bilinear=False) is not.
    n, c1, h1, w1 = x1_nchw.shape
    n2, c2, ho, wo = x2_nchw.shape
    assert n == n2
    w1k, w2k = params["w1"], params["w2"]
    cmid, cin1 = int(w1k.shape[2]), int(w1k.shape[3])
    cout = int(w2k.shape[2])
    assert cin1 == c1 + c2 and int(w2k.shape[3]) == cmid
    p1, p = h1 * w1, ho * wo

    up_mat = _upsample_pad_matrix(h1, w1, ho, wo)    # (P1, P) f32 constant
    masks = _border_masks(ho, wo)                    # (3,3,1,P) f32 constant

    # free, layout-preserving reshapes: NCHW with flattened spatial dim
    x1r = x1_nchw.reshape(n, c1, p1)
    x2r = x2_nchw.reshape(n, c2, p)

    per_item = 4 * (c1 * p1 + c2 * p + cout * p)     # per-image block bytes
    fixed = 2 * (w1k.size * 2 + w2k.size * 2 + up_mat.size * 4 + masks.size * 4)
    tb = _pick_batch_block(n, per_item, _vmem_budget_bytes(fixed))

    out = pl.pallas_call(
        functools.partial(_up_fused_kernel, W=wo),
        out_shape=jax.ShapeDtypeStruct((n, cout, p), x1_nchw.dtype),
        grid=(n // tb,),
        in_specs=[
            pl.BlockSpec((tb, c1, p1), lambda i: (i, 0, 0)),
            pl.BlockSpec((tb, c2, p), lambda i: (i, 0, 0)),
            pl.BlockSpec((p1, p), lambda i: (0, 0)),
            pl.BlockSpec((3, 3, 1, p), lambda i: (0, 0, 0, 0)),
            pl.BlockSpec((3, 3, cmid, cin1), lambda i: (0, 0, 0, 0)),
            pl.BlockSpec((3, 3, cout, cmid), lambda i: (0, 0, 0, 0)),
            pl.BlockSpec((cmid, 1), lambda i: (0, 0)),
            pl.BlockSpec((cout, 1), lambda i: (0, 0)),
        ],
        out_specs=pl.BlockSpec((tb, cout, p), lambda i: (i, 0, 0)),
        compiler_params=pltpu.CompilerParams(
            dimension_semantics=("parallel",),       # v7x: shard batch over TCs
            vmem_limit_bytes=32 * 1024 * 1024),
    )(x1r, x2r, up_mat, masks, w1k, w2k, params["b1"], params["b2"])
    return out.reshape(n, cout, ho, wo)


# ----------------------------------------------------------------------------
# pure-JAX reference (independent formulation, full f32)
# ----------------------------------------------------------------------------
def _ref_upsample_2x_align_corners_nchw(x):
    n, c, h, w = x.shape

    def coords(n_in, n_out):
        i = np.arange(n_out)
        src = (i * (n_in - 1) / (n_out - 1)
               if (n_out > 1 and n_in > 1) else np.zeros(n_out))
        i0 = np.minimum(np.floor(src).astype(np.int32), n_in - 1)
        i1 = np.minimum(i0 + 1, n_in - 1)
        f = (src - i0).astype(np.float32)
        return i0, i1, f

    hi0, hi1, hf = coords(h, 2 * h)
    wi0, wi1, wf = coords(w, 2 * w)
    xh = (x[:, :, hi0, :] * (1.0 - hf)[None, None, :, None]
          + x[:, :, hi1, :] * hf[None, None, :, None])
    return (xh[:, :, :, wi0] * (1.0 - wf)[None, None, None, :]
            + xh[:, :, :, wi1] * wf[None, None, None, :])


def _ref_up_forward_nchw(x1, x2, w1_oihw, s1, b1, w2_oihw, s2, b2):
    x1u = _ref_upsample_2x_align_corners_nchw(x1)
    dY = x2.shape[2] - x1u.shape[2]
    dX = x2.shape[3] - x1u.shape[3]
    x1u = jnp.pad(x1u, ((0, 0), (0, 0), (dY // 2, dY - dY // 2),
                        (dX // 2, dX - dX // 2)))
    x = jnp.concatenate([x2, x1u], axis=1)

    def conv_bn_relu(t, w, s, b):
        y = lax.conv_general_dilated(
            t, w, window_strides=(1, 1), padding=((1, 1), (1, 1)),
            dimension_numbers=("NCHW", "OIHW", "NCHW"),
            precision=lax.Precision.HIGHEST)
        y = y * s[None, :, None, None] + b[None, :, None, None]
        return jnp.maximum(y, 0.0)

    y = conv_bn_relu(x, w1_oihw, s1, b1)
    return conv_bn_relu(y, w2_oihw, s2, b2)


# ----------------------------------------------------------------------------
if __name__ == "__main__":
    # Up(in_channels=256, out_channels=128, bilinear=True):
    #   x1: (N, 128, 8, 8) deep feature, x2: (N, 128, 16, 16) skip connection.
    N = 2
    in_channels, out_channels = 256, 128
    c1 = in_channels // 2              # channels of x1
    c2 = in_channels - c1              # channels of x2
    c_mid = in_channels // 2           # DoubleConv mid_channels (bilinear path)
    H1 = W1 = 8

    key = jax.random.PRNGKey(0)
    ks = jax.random.split(key, 12)
    x1 = jax.random.normal(ks[0], (N, c1, H1, W1), jnp.float32)
    x2 = jax.random.normal(ks[1], (N, c2, 2 * H1, 2 * W1), jnp.float32)

    # Conv weights in PyTorch OIHW layout (~kaiming scale keeps activations O(1)).
    w1_oihw = jax.random.normal(ks[2], (c_mid, in_channels, 3, 3), jnp.float32)
    w1_oihw = w1_oihw / np.sqrt(9 * in_channels)
    w2_oihw = jax.random.normal(ks[3], (out_channels, c_mid, 3, 3), jnp.float32)
    w2_oihw = w2_oihw / np.sqrt(9 * c_mid)

    # BatchNorm parameters (inference mode; folded into the conv weights/bias).
    g1 = 1.0 + 0.1 * jax.random.normal(ks[4], (c_mid,), jnp.float32)
    be1 = 0.1 * jax.random.normal(ks[5], (c_mid,), jnp.float32)
    m1 = 0.1 * jax.random.normal(ks[6], (c_mid,), jnp.float32)
    v1 = 1.0 + 0.1 * jnp.abs(jax.random.normal(ks[7], (c_mid,), jnp.float32))
    g2 = 1.0 + 0.1 * jax.random.normal(ks[8], (out_channels,), jnp.float32)
    be2 = 0.1 * jax.random.normal(ks[9], (out_channels,), jnp.float32)
    m2 = 0.1 * jax.random.normal(ks[10], (out_channels,), jnp.float32)
    v2 = 1.0 + 0.1 * jnp.abs(jax.random.normal(ks[11], (out_channels,), jnp.float32))

    params = prepare_params(w1_oihw, g1, be1, m1, v1, w2_oihw, g2, be2, m2, v2)

    out = up_forward(x1, x2, params)
    out = jax.block_until_ready(out)

    s1, b1 = fold_batchnorm(g1, be1, m1, v1)
    s2, b2 = fold_batchnorm(g2, be2, m2, v2)
    ref = _ref_up_forward_nchw(x1, x2, w1_oihw, s1, b1, w2_oihw, s2, b2)
    assert out.shape == ref.shape == (N, out_channels, 2 * H1, 2 * W1), \
        (out.shape, ref.shape)
    max_err = float(jnp.max(jnp.abs(out - ref)))
    # bf16 MXU matmuls with f32 accumulation -> allow bf16-level tolerance.
    assert jnp.allclose(out, ref, atol=3e-2, rtol=3e-2), max_err

    print("KERNEL_OK")
</pallas_src>

<mosaic_0001>
module attributes {stable_mosaic.version = 11 : i64} {
  func.func @_up_fused_kernel(%arg0: i32, %arg1: memref<1x128x64xf32, #tpu.memory_space<vmem>>, %arg2: memref<1x128x256xf32, #tpu.memory_space<vmem>>, %arg3: memref<64x256xf32, #tpu.memory_space<vmem>>, %arg4: memref<3x3x1x256xf32, #tpu.memory_space<vmem>>, %arg5: memref<3x3x128x256xbf16, #tpu.memory_space<vmem>>, %arg6: memref<3x3x128x128xbf16, #tpu.memory_space<vmem>>, %arg7: memref<128x1xf32, #tpu.memory_space<vmem>>, %arg8: memref<128x1xf32, #tpu.memory_space<vmem>>, %arg9: memref<1x128x256xf32, #tpu.memory_space<vmem>>) attributes {dimension_semantics = [#tpu.dimension_semantics<parallel>], iteration_bounds = array<i64: 2>, scalar_prefetch = 0 : i64, scratch_operands = 0 : i64, tpu.core_type = #tpu.core_type<tc>, window_params = [{transform_indices = @transform_0, window_bounds = array<i64: 1, 128, 64>}, {transform_indices = @transform_1, window_bounds = array<i64: 1, 128, 256>}, {pipeline_mode = #tpu.pipeline_mode<synchronous>, transform_indices = @transform_2, window_bounds = array<i64: 64, 256>}, {pipeline_mode = #tpu.pipeline_mode<synchronous>, transform_indices = @transform_3, window_bounds = array<i64: 3, 3, 1, 256>}, {pipeline_mode = #tpu.pipeline_mode<synchronous>, transform_indices = @transform_4, window_bounds = array<i64: 3, 3, 128, 256>}, {pipeline_mode = #tpu.pipeline_mode<synchronous>, transform_indices = @transform_5, window_bounds = array<i64: 3, 3, 128, 128>}, {pipeline_mode = #tpu.pipeline_mode<synchronous>, transform_indices = @transform_6, window_bounds = array<i64: 128, 1>}, {pipeline_mode = #tpu.pipeline_mode<synchronous>, transform_indices = @transform_7, window_bounds = array<i64: 128, 1>}, {transform_indices = @transform_8, window_bounds = array<i64: 1, 128, 256>}]} {
    %c0 = arith.constant 0 : index
    %c0_0 = arith.constant 0 : index
    %c0_1 = arith.constant 0 : index
    %0 = vector.load %arg1[%c0, %c0_0, %c0_1] : memref<1x128x64xf32, #tpu.memory_space<vmem>>, vector<1x128x64xf32>
    %1 = vector.shape_cast %0 : vector<1x128x64xf32> to vector<128x64xf32>
    %c0_2 = arith.constant 0 : index
    %c0_3 = arith.constant 0 : index
    %2 = vector.load %arg3[%c0_2, %c0_3] : memref<64x256xf32, #tpu.memory_space<vmem>>, vector<64x256xf32>
    %cst = arith.constant dense<0.000000e+00> : vector<128x256xf32>
    %3 = tpu.matmul %1, %2, %cst {dimension_numbers = #tpu.dot_dimension_numbers<[1], [0], [0], [1], [0, 0, 1, 1], [], []>} : vector<128x64xf32>, vector<64x256xf32>, vector<128x256xf32> -> vector<128x256xf32>
    %c0_4 = arith.constant 0 : index
    %c0_5 = arith.constant 0 : index
    %c0_6 = arith.constant 0 : index
    %4 = vector.load %arg2[%c0_4, %c0_5, %c0_6] : memref<1x128x256xf32, #tpu.memory_space<vmem>>, vector<1x128x256xf32>
    %5 = vector.shape_cast %4 : vector<1x128x256xf32> to vector<128x256xf32>
    %6 = arith.truncf %5 : vector<128x256xf32> to vector<128x256xbf16>
    %7 = arith.truncf %3 : vector<128x256xf32> to vector<128x256xbf16>
    %8 = tpu.concatenate %6, %7 in 0 : vector<128x256xbf16>, vector<128x256xbf16> -> vector<256x256xbf16>
    %cst_7 = arith.constant 0.000000e+00 : f32
    %9 = vector.broadcast %cst_7 : f32 to vector<128x256xf32>
    %c0_8 = arith.constant 0 : index
    %c0_9 = arith.constant 0 : index
    %c0_10 = arith.constant 0 : index
    %c0_11 = arith.constant 0 : index
    %10 = vector.load %arg5[%c0_8, %c0_9, %c0_10, %c0_11] : memref<3x3x128x256xbf16, #tpu.memory_space<vmem>>, vector<1x1x128x256xbf16>
    %11 = vector.shape_cast %10 : vector<1x1x128x256xbf16> to vector<128x256xbf16>
    %cst_12 = arith.constant dense<0.000000e+00> : vector<128x256xf32>
    %12 = tpu.matmul %11, %8, %cst_12 {dimension_numbers = #tpu.dot_dimension_numbers<[1], [0], [0], [1], [0, 0, 1, 1], [], []>} : vector<128x256xbf16>, vector<256x256xbf16>, vector<128x256xf32> -> vector<128x256xf32>
    %c17_i32 = arith.constant 17 : i32
    %13 = tpu.dynamic_rotate %12 by %c17_i32 dim 1 : vector<128x256xf32>, i32 -> vector<128x256xf32>
    %c0_13 = arith.constant 0 : index
    %c0_14 = arith.constant 0 : index
    %c0_15 = arith.constant 0 : index
    %c0_16 = arith.constant 0 : index
    %14 = vector.load %arg4[%c0_13, %c0_14, %c0_15, %c0_16] : memref<3x3x1x256xf32, #tpu.memory_space<vmem>>, vector<1x1x1x256xf32>
    %15 = vector.shape_cast %14 : vector<1x1x1x256xf32> to vector<1x256xf32>
    %16 = vector.broadcast %15 : vector<1x256xf32> to vector<128x256xf32>
    %17 = arith.mulf %13, %16 : vector<128x256xf32>
    %18 = arith.addf %9, %17 : vector<128x256xf32>
    %c0_17 = arith.constant 0 : index
    %c1 = arith.constant 1 : index
    %c0_18 = arith.constant 0 : index
    %c0_19 = arith.constant 0 : index
    %19 = vector.load %arg5[%c0_17, %c1, %c0_18, %c0_19] : memref<3x3x128x256xbf16, #tpu.memory_space<vmem>>, vector<1x1x128x256xbf16>
    %20 = vector.shape_cast %19 : vector<1x1x128x256xbf16> to vector<128x256xbf16>
    %cst_20 = arith.constant dense<0.000000e+00> : vector<128x256xf32>
    %21 = tpu.matmul %20, %8, %cst_20 {dimension_numbers = #tpu.dot_dimension_numbers<[1], [0], [0], [1], [0, 0, 1, 1], [], []>} : vector<128x256xbf16>, vector<256x256xbf16>, vector<128x256xf32> -> vector<128x256xf32>
    %c16_i32 = arith.constant 16 : i32
    %22 = tpu.dynamic_rotate %21 by %c16_i32 dim 1 : vector<128x256xf32>, i32 -> vector<128x256xf32>
    %c0_21 = arith.constant 0 : index
    %c1_22 = arith.constant 1 : index
    %c0_23 = arith.constant 0 : index
    %c0_24 = arith.constant 0 : index
    %23 = vector.load %arg4[%c0_21, %c1_22, %c0_23, %c0_24] : memref<3x3x1x256xf32, #tpu.memory_space<vmem>>, vector<1x1x1x256xf32>
    %24 = vector.shape_cast %23 : vector<1x1x1x256xf32> to vector<1x256xf32>
    %25 = vector.broadcast %24 : vector<1x256xf32> to vector<128x256xf32>
    %26 = arith.mulf %22, %25 : vector<128x256xf32>
    %27 = arith.addf %18, %26 : vector<128x256xf32>
    %c0_25 = arith.constant 0 : index
    %c2 = arith.constant 2 : index
    %c0_26 = arith.constant 0 : index
    %c0_27 = arith.constant 0 : index
    %28 = vector.load %arg5[%c0_25, %c2, %c0_26, %c0_27] : memref<3x3x128x256xbf16, #tpu.memory_space<vmem>>, vector<1x1x128x256xbf16>
    %29 = vector.shape_cast %28 : vector<1x1x128x256xbf16> to vector<128x256xbf16>
    %cst_28 = arith.constant dense<0.000000e+00> : vector<128x256xf32>
    %30 = tpu.matmul %29, %8, %cst_28 {dimension_numbers = #tpu.dot_dimension_numbers<[1], [0], [0], [1], [0, 0, 1, 1], [], []>} : vector<128x256xbf16>, vector<256x256xbf16>, vector<128x256xf32> -> vector<128x256xf32>
    %c15_i32 = arith.constant 15 : i32
    %31 = tpu.dynamic_rotate %30 by %c15_i32 dim 1 : vector<128x256xf32>, i32 -> vector<128x256xf32>
    %c0_29 = arith.constant 0 : index
    %c2_30 = arith.constant 2 : index
    %c0_31 = arith.constant 0 : index
    %c0_32 = arith.constant 0 : index
    %32 = vector.load %arg4[%c0_29, %c2_30, %c0_31, %c0_32] : memref<3x3x1x256xf32, #tpu.memory_space<vmem>>, vector<1x1x1x256xf32>
    %33 = vector.shape_cast %32 : vector<1x1x1x256xf32> to vector<1x256xf32>
    %34 = vector.broadcast %33 : vector<1x256xf32> to vector<128x256xf32>
    %35 = arith.mulf %31, %34 : vector<128x256xf32>
    %36 = arith.addf %27, %35 : vector<128x256xf32>
    %c1_33 = arith.constant 1 : index
    %c0_34 = arith.constant 0 : index
    %c0_35 = arith.constant 0 : index
    %c0_36 = arith.constant 0 : index
    %37 = vector.load %arg5[%c1_33, %c0_34, %c0_35, %c0_36] : memref<3x3x128x256xbf16, #tpu.memory_space<vmem>>, vector<1x1x128x256xbf16>
    %38 = vector.shape_cast %37 : vector<1x1x128x256xbf16> to vector<128x256xbf16>
    %cst_37 = arith.constant dense<0.000000e+00> : vector<128x256xf32>
    %39 = tpu.matmul %38, %8, %cst_37 {dimension_numbers = #tpu.dot_dimension_numbers<[1], [0], [0], [1], [0, 0, 1, 1], [], []>} : vector<128x256xbf16>, vector<256x256xbf16>, vector<128x256xf32> -> vector<128x256xf32>
    %c1_i32 = arith.constant 1 : i32
    %40 = tpu.dynamic_rotate %39 by %c1_i32 dim 1 : vector<128x256xf32>, i32 -> vector<128x256xf32>
    %c1_38 = arith.constant 1 : index
    %c0_39 = arith.constant 0 : index
    %c0_40 = arith.constant 0 : index
    %c0_41 = arith.constant 0 : index
    %41 = vector.load %arg4[%c1_38, %c0_39, %c0_40, %c0_41] : memref<3x3x1x256xf32, #tpu.memory_space<vmem>>, vector<1x1x1x256xf32>
    %42 = vector.shape_cast %41 : vector<1x1x1x256xf32> to vector<1x256xf32>
    %43 = vector.broadcast %42 : vector<1x256xf32> to vector<128x256xf32>
    %44 = arith.mulf %40, %43 : vector<128x256xf32>
    %45 = arith.addf %36, %44 : vector<128x256xf32>
    %c1_42 = arith.constant 1 : index
    %c1_43 = arith.constant 1 : index
    %c0_44 = arith.constant 0 : index
    %c0_45 = arith.constant 0 : index
    %46 = vector.load %arg5[%c1_42, %c1_43, %c0_44, %c0_45] : memref<3x3x128x256xbf16, #tpu.memory_space<vmem>>, vector<1x1x128x256xbf16>
    %47 = vector.shape_cast %46 : vector<1x1x128x256xbf16> to vector<128x256xbf16>
    %cst_46 = arith.constant dense<0.000000e+00> : vector<128x256xf32>
    %48 = tpu.matmul %47, %8, %cst_46 {dimension_numbers = #tpu.dot_dimension_numbers<[1], [0], [0], [1], [0, 0, 1, 1], [], []>} : vector<128x256xbf16>, vector<256x256xbf16>, vector<128x256xf32> -> vector<128x256xf32>
    %49 = arith.addf %45, %48 : vector<128x256xf32>
    %c1_47 = arith.constant 1 : index
    %c2_48 = arith.constant 2 : index
    %c0_49 = arith.constant 0 : index
    %c0_50 = arith.constant 0 : index
    %50 = vector.load %arg5[%c1_47, %c2_48, %c0_49, %c0_50] : memref<3x3x128x256xbf16, #tpu.memory_space<vmem>>, vector<1x1x128x256xbf16>
    %51 = vector.shape_cast %50 : vector<1x1x128x256xbf16> to vector<128x256xbf16>
    %cst_51 = arith.constant dense<0.000000e+00> : vector<128x256xf32>
    %52 = tpu.matmul %51, %8, %cst_51 {dimension_numbers = #tpu.dot_dimension_numbers<[1], [0], [0], [1], [0, 0, 1, 1], [], []>} : vector<128x256xbf16>, vector<256x256xbf16>, vector<128x256xf32> -> vector<128x256xf32>
    %c255_i32 = arith.constant 255 : i32
    %53 = tpu.dynamic_rotate %52 by %c255_i32 dim 1 : vector<128x256xf32>, i32 -> vector<128x256xf32>
    %c1_52 = arith.constant 1 : index
    %c2_53 = arith.constant 2 : index
    %c0_54 = arith.constant 0 : index
    %c0_55 = arith.constant 0 : index
    %54 = vector.load %arg4[%c1_52, %c2_53, %c0_54, %c0_55] : memref<3x3x1x256xf32, #tpu.memory_space<vmem>>, vector<1x1x1x256xf32>
    %55 = vector.shape_cast %54 : vector<1x1x1x256xf32> to vector<1x256xf32>
    %56 = vector.broadcast %55 : vector<1x256xf32> to vector<128x256xf32>
    %57 = arith.mulf %53, %56 : vector<128x256xf32>
    %58 = arith.addf %49, %57 : vector<128x256xf32>
    %c2_56 = arith.constant 2 : index
    %c0_57 = arith.constant 0 : index
    %c0_58 = arith.constant 0 : index
    %c0_59 = arith.constant 0 : index
    %59 = vector.load %arg5[%c2_56, %c0_57, %c0_58, %c0_59] : memref<3x3x128x256xbf16, #tpu.memory_space<vmem>>, vector<1x1x128x256xbf16>
    %60 = vector.shape_cast %59 : vector<1x1x128x256xbf16> to vector<128x256xbf16>
    %cst_60 = arith.constant dense<0.000000e+00> : vector<128x256xf32>
    %61 = tpu.matmul %60, %8, %cst_60 {dimension_numbers = #tpu.dot_dimension_numbers<[1], [0], [0], [1], [0, 0, 1, 1], [], []>} : vector<128x256xbf16>, vector<256x256xbf16>, vector<128x256xf32> -> vector<128x256xf32>
    %c241_i32 = arith.constant 241 : i32
    %62 = tpu.dynamic_rotate %61 by %c241_i32 dim 1 : vector<128x256xf32>, i32 -> vector<128x256xf32>
    %c2_61 = arith.constant 2 : index
    %c0_62 = arith.constant 0 : index
    %c0_63 = arith.constant 0 : index
    %c0_64 = arith.constant 0 : index
    %63 = vector.load %arg4[%c2_61, %c0_62, %c0_63, %c0_64] : memref<3x3x1x256xf32, #tpu.memory_space<vmem>>, vector<1x1x1x256xf32>
    %64 = vector.shape_cast %63 : vector<1x1x1x256xf32> to vector<1x256xf32>
    %65 = vector.broadcast %64 : vector<1x256xf32> to vector<128x256xf32>
    %66 = arith.mulf %62, %65 : vector<128x256xf32>
    %67 = arith.addf %58, %66 : vector<128x256xf32>
    %c2_65 = arith.constant 2 : index
    %c1_66 = arith.constant 1 : index
    %c0_67 = arith.constant 0 : index
    %c0_68 = arith.constant 0 : index
    %68 = vector.load %arg5[%c2_65, %c1_66, %c0_67, %c0_68] : memref<3x3x128x256xbf16, #tpu.memory_space<vmem>>, vector<1x1x128x256xbf16>
    %69 = vector.shape_cast %68 : vector<1x1x128x256xbf16> to vector<128x256xbf16>
    %cst_69 = arith.constant dense<0.000000e+00> : vector<128x256xf32>
    %70 = tpu.matmul %69, %8, %cst_69 {dimension_numbers = #tpu.dot_dimension_numbers<[1], [0], [0], [1], [0, 0, 1, 1], [], []>} : vector<128x256xbf16>, vector<256x256xbf16>, vector<128x256xf32> -> vector<128x256xf32>
    %c240_i32 = arith.constant 240 : i32
    %71 = tpu.dynamic_rotate %70 by %c240_i32 dim 1 : vector<128x256xf32>, i32 -> vector<128x256xf32>
    %c2_70 = arith.constant 2 : index
    %c1_71 = arith.constant 1 : index
    %c0_72 = arith.constant 0 : index
    %c0_73 = arith.constant 0 : index
    %72 = vector.load %arg4[%c2_70, %c1_71, %c0_72, %c0_73] : memref<3x3x1x256xf32, #tpu.memory_space<vmem>>, vector<1x1x1x256xf32>
    %73 = vector.shape_cast %72 : vector<1x1x1x256xf32> to vector<1x256xf32>
    %74 = vector.broadcast %73 : vector<1x256xf32> to vector<128x256xf32>
    %75 = arith.mulf %71, %74 : vector<128x256xf32>
    %76 = arith.addf %67, %75 : vector<128x256xf32>
    %c2_74 = arith.constant 2 : index
    %c2_75 = arith.constant 2 : index
    %c0_76 = arith.constant 0 : index
    %c0_77 = arith.constant 0 : index
    %77 = vector.load %arg5[%c2_74, %c2_75, %c0_76, %c0_77] : memref<3x3x128x256xbf16, #tpu.memory_space<vmem>>, vector<1x1x128x256xbf16>
    %78 = vector.shape_cast %77 : vector<1x1x128x256xbf16> to vector<128x256xbf16>
    %cst_78 = arith.constant dense<0.000000e+00> : vector<128x256xf32>
    %79 = tpu.matmul %78, %8, %cst_78 {dimension_numbers = #tpu.dot_dimension_numbers<[1], [0], [0], [1], [0, 0, 1, 1], [], []>} : vector<128x256xbf16>, vector<256x256xbf16>, vector<128x256xf32> -> vector<128x256xf32>
    %c239_i32 = arith.constant 239 : i32
    %80 = tpu.dynamic_rotate %79 by %c239_i32 dim 1 : vector<128x256xf32>, i32 -> vector<128x256xf32>
    %c2_79 = arith.constant 2 : index
    %c2_80 = arith.constant 2 : index
    %c0_81 = arith.constant 0 : index
    %c0_82 = arith.constant 0 : index
    %81 = vector.load %arg4[%c2_79, %c2_80, %c0_81, %c0_82] : memref<3x3x1x256xf32, #tpu.memory_space<vmem>>, vector<1x1x1x256xf32>
    %82 = vector.shape_cast %81 : vector<1x1x1x256xf32> to vector<1x256xf32>
    %83 = vector.broadcast %82 : vector<1x256xf32> to vector<128x256xf32>
    %84 = arith.mulf %80, %83 : vector<128x256xf32>
    %85 = arith.addf %76, %84 : vector<128x256xf32>
    %c0_83 = arith.constant 0 : index
    %c0_84 = arith.constant 0 : index
    %86 = vector.load %arg7[%c0_83, %c0_84] : memref<128x1xf32, #tpu.memory_space<vmem>>, vector<128x1xf32>
    %87 = vector.broadcast %86 : vector<128x1xf32> to vector<128x256xf32>
    %88 = arith.addf %85, %87 : vector<128x256xf32>
    %cst_85 = arith.constant 0.000000e+00 : f32
    %89 = vector.broadcast %cst_85 : f32 to vector<128x256xf32>
    %90 = arith.maximumf %88, %89 : vector<128x256xf32>
    %91 = arith.truncf %90 : vector<128x256xf32> to vector<128x256xbf16>
    %cst_86 = arith.constant 0.000000e+00 : f32
    %92 = vector.broadcast %cst_86 : f32 to vector<128x256xf32>
    %c0_87 = arith.constant 0 : index
    %c0_88 = arith.constant 0 : index
    %c0_89 = arith.constant 0 : index
    %c0_90 = arith.constant 0 : index
    %93 = vector.load %arg6[%c0_87, %c0_88, %c0_89, %c0_90] : memref<3x3x128x128xbf16, #tpu.memory_space<vmem>>, vector<1x1x128x128xbf16>
    %94 = vector.shape_cast %93 : vector<1x1x128x128xbf16> to vector<128x128xbf16>
    %cst_91 = arith.constant dense<0.000000e+00> : vector<128x256xf32>
    %95 = tpu.matmul %94, %91, %cst_91 {dimension_numbers = #tpu.dot_dimension_numbers<[1], [0], [0], [1], [0, 0, 1, 1], [], []>} : vector<128x128xbf16>, vector<128x256xbf16>, vector<128x256xf32> -> vector<128x256xf32>
    %c17_i32_92 = arith.constant 17 : i32
    %96 = tpu.dynamic_rotate %95 by %c17_i32_92 dim 1 : vector<128x256xf32>, i32 -> vector<128x256xf32>
    %c0_93 = arith.constant 0 : index
    %c0_94 = arith.constant 0 : index
    %c0_95 = arith.constant 0 : index
    %c0_96 = arith.constant 0 : index
    %97 = vector.load %arg4[%c0_93, %c0_94, %c0_95, %c0_96] : memref<3x3x1x256xf32, #tpu.memory_space<vmem>>, vector<1x1x1x256xf32>
    %98 = vector.shape_cast %97 : vector<1x1x1x256xf32> to vector<1x256xf32>
    %99 = vector.broadcast %98 : vector<1x256xf32> to vector<128x256xf32>
    %100 = arith.mulf %96, %99 : vector<128x256xf32>
    %101 = arith.addf %92, %100 : vector<128x256xf32>
    %c0_97 = arith.constant 0 : index
    %c1_98 = arith.constant 1 : index
    %c0_99 = arith.constant 0 : index
    %c0_100 = arith.constant 0 : index
    %102 = vector.load %arg6[%c0_97, %c1_98, %c0_99, %c0_100] : memref<3x3x128x128xbf16, #tpu.memory_space<vmem>>, vector<1x1x128x128xbf16>
    %103 = vector.shape_cast %102 : vector<1x1x128x128xbf16> to vector<128x128xbf16>
    %cst_101 = arith.constant dense<0.000000e+00> : vector<128x256xf32>
    %104 = tpu.matmul %103, %91, %cst_101 {dimension_numbers = #tpu.dot_dimension_numbers<[1], [0], [0], [1], [0, 0, 1, 1], [], []>} : vector<128x128xbf16>, vector<128x256xbf16>, vector<128x256xf32> -> vector<128x256xf32>
    %c16_i32_102 = arith.constant 16 : i32
    %105 = tpu.dynamic_rotate %104 by %c16_i32_102 dim 1 : vector<128x256xf32>, i32 -> vector<128x256xf32>
    %c0_103 = arith.constant 0 : index
    %c1_104 = arith.constant 1 : index
    %c0_105 = arith.constant 0 : index
    %c0_106 = arith.constant 0 : index
    %106 = vector.load %arg4[%c0_103, %c1_104, %c0_105, %c0_106] : memref<3x3x1x256xf32, #tpu.memory_space<vmem>>, vector<1x1x1x256xf32>
    %107 = vector.shape_cast %106 : vector<1x1x1x256xf32> to vector<1x256xf32>
    %108 = vector.broadcast %107 : vector<1x256xf32> to vector<128x256xf32>
    %109 = arith.mulf %105, %108 : vector<128x256xf32>
    %110 = arith.addf %101, %109 : vector<128x256xf32>
    %c0_107 = arith.constant 0 : index
    %c2_108 = arith.constant 2 : index
    %c0_109 = arith.constant 0 : index
    %c0_110 = arith.constant 0 : index
    %111 = vector.load %arg6[%c0_107, %c2_108, %c0_109, %c0_110] : memref<3x3x128x128xbf16, #tpu.memory_space<vmem>>, vector<1x1x128x128xbf16>
    %112 = vector.shape_cast %111 : vector<1x1x128x128xbf16> to vector<128x128xbf16>
    %cst_111 = arith.constant dense<0.000000e+00> : vector<128x256xf32>
    %113 = tpu.matmul %112, %91, %cst_111 {dimension_numbers = #tpu.dot_dimension_numbers<[1], [0], [0], [1], [0, 0, 1, 1], [], []>} : vector<128x128xbf16>, vector<128x256xbf16>, vector<128x256xf32> -> vector<128x256xf32>
    %c15_i32_112 = arith.constant 15 : i32
    %114 = tpu.dynamic_rotate %113 by %c15_i32_112 dim 1 : vector<128x256xf32>, i32 -> vector<128x256xf32>
    %c0_113 = arith.constant 0 : index
    %c2_114 = arith.constant 2 : index
    %c0_115 = arith.constant 0 : index
    %c0_116 = arith.constant 0 : index
    %115 = vector.load %arg4[%c0_113, %c2_114, %c0_115, %c0_116] : memref<3x3x1x256xf32, #tpu.memory_space<vmem>>, vector<1x1x1x256xf32>
    %116 = vector.shape_cast %115 : vector<1x1x1x256xf32> to vector<1x256xf32>
    %117 = vector.broadcast %116 : vector<1x256xf32> to vector<128x256xf32>
    %118 = arith.mulf %114, %117 : vector<128x256xf32>
    %119 = arith.addf %110, %118 : vector<128x256xf32>
    %c1_117 = arith.constant 1 : index
    %c0_118 = arith.constant 0 : index
    %c0_119 = arith.constant 0 : index
    %c0_120 = arith.constant 0 : index
    %120 = vector.load %arg6[%c1_117, %c0_118, %c0_119, %c0_120] : memref<3x3x128x128xbf16, #tpu.memory_space<vmem>>, vector<1x1x128x128xbf16>
    %121 = vector.shape_cast %120 : vector<1x1x128x128xbf16> to vector<128x128xbf16>
    %cst_121 = arith.constant dense<0.000000e+00> : vector<128x256xf32>
    %122 = tpu.matmul %121, %91, %cst_121 {dimension_numbers = #tpu.dot_dimension_numbers<[1], [0], [0], [1], [0, 0, 1, 1], [], []>} : vector<128x128xbf16>, vector<128x256xbf16>, vector<128x256xf32> -> vector<128x256xf32>
    %c1_i32_122 = arith.constant 1 : i32
    %123 = tpu.dynamic_rotate %122 by %c1_i32_122 dim 1 : vector<128x256xf32>, i32 -> vector<128x256xf32>
    %c1_123 = arith.constant 1 : index
    %c0_124 = arith.constant 0 : index
    %c0_125 = arith.constant 0 : index
    %c0_126 = arith.constant 0 : index
    %124 = vector.load %arg4[%c1_123, %c0_124, %c0_125, %c0_126] : memref<3x3x1x256xf32, #tpu.memory_space<vmem>>, vector<1x1x1x256xf32>
    %125 = vector.shape_cast %124 : vector<1x1x1x256xf32> to vector<1x256xf32>
    %126 = vector.broadcast %125 : vector<1x256xf32> to vector<128x256xf32>
    %127 = arith.mulf %123, %126 : vector<128x256xf32>
    %128 = arith.addf %119, %127 : vector<128x256xf32>
    %c1_127 = arith.constant 1 : index
    %c1_128 = arith.constant 1 : index
    %c0_129 = arith.constant 0 : index
    %c0_130 = arith.constant 0 : index
    %129 = vector.load %arg6[%c1_127, %c1_128, %c0_129, %c0_130] : memref<3x3x128x128xbf16, #tpu.memory_space<vmem>>, vector<1x1x128x128xbf16>
    %130 = vector.shape_cast %129 : vector<1x1x128x128xbf16> to vector<128x128xbf16>
    %cst_131 = arith.constant dense<0.000000e+00> : vector<128x256xf32>
    %131 = tpu.matmul %130, %91, %cst_131 {dimension_numbers = #tpu.dot_dimension_numbers<[1], [0], [0], [1], [0, 0, 1, 1], [], []>} : vector<128x128xbf16>, vector<128x256xbf16>, vector<128x256xf32> -> vector<128x256xf32>
    %132 = arith.addf %128, %131 : vector<128x256xf32>
    %c1_132 = arith.constant 1 : index
    %c2_133 = arith.constant 2 : index
    %c0_134 = arith.constant 0 : index
    %c0_135 = arith.constant 0 : index
    %133 = vector.load %arg6[%c1_132, %c2_133, %c0_134, %c0_135] : memref<3x3x128x128xbf16, #tpu.memory_space<vmem>>, vector<1x1x128x128xbf16>
    %134 = vector.shape_cast %133 : vector<1x1x128x128xbf16> to vector<128x128xbf16>
    %cst_136 = arith.constant dense<0.000000e+00> : vector<128x256xf32>
    %135 = tpu.matmul %134, %91, %cst_136 {dimension_numbers = #tpu.dot_dimension_numbers<[1], [0], [0], [1], [0, 0, 1, 1], [], []>} : vector<128x128xbf16>, vector<128x256xbf16>, vector<128x256xf32> -> vector<128x256xf32>
    %c255_i32_137 = arith.constant 255 : i32
    %136 = tpu.dynamic_rotate %135 by %c255_i32_137 dim 1 : vector<128x256xf32>, i32 -> vector<128x256xf32>
    %c1_138 = arith.constant 1 : index
    %c2_139 = arith.constant 2 : index
    %c0_140 = arith.constant 0 : index
    %c0_141 = arith.constant 0 : index
    %137 = vector.load %arg4[%c1_138, %c2_139, %c0_140, %c0_141] : memref<3x3x1x256xf32, #tpu.memory_space<vmem>>, vector<1x1x1x256xf32>
    %138 = vector.shape_cast %137 : vector<1x1x1x256xf32> to vector<1x256xf32>
    %139 = vector.broadcast %138 : vector<1x256xf32> to vector<128x256xf32>
    %140 = arith.mulf %136, %139 : vector<128x256xf32>
    %141 = arith.addf %132, %140 : vector<128x256xf32>
    %c2_142 = arith.constant 2 : index
    %c0_143 = arith.constant 0 : index
    %c0_144 = arith.constant 0 : index
    %c0_145 = arith.constant 0 : index
    %142 = vector.load %arg6[%c2_142, %c0_143, %c0_144, %c0_145] : memref<3x3x128x128xbf16, #tpu.memory_space<vmem>>, vector<1x1x128x128xbf16>
    %143 = vector.shape_cast %142 : vector<1x1x128x128xbf16> to vector<128x128xbf16>
    %cst_146 = arith.constant dense<0.000000e+00> : vector<128x256xf32>
    %144 = tpu.matmul %143, %91, %cst_146 {dimension_numbers = #tpu.dot_dimension_numbers<[1], [0], [0], [1], [0, 0, 1, 1], [], []>} : vector<128x128xbf16>, vector<128x256xbf16>, vector<128x256xf32> -> vector<128x256xf32>
    %c241_i32_147 = arith.constant 241 : i32
    %145 = tpu.dynamic_rotate %144 by %c241_i32_147 dim 1 : vector<128x256xf32>, i32 -> vector<128x256xf32>
    %c2_148 = arith.constant 2 : index
    %c0_149 = arith.constant 0 : index
    %c0_150 = arith.constant 0 : index
    %c0_151 = arith.constant 0 : index
    %146 = vector.load %arg4[%c2_148, %c0_149, %c0_150, %c0_151] : memref<3x3x1x256xf32, #tpu.memory_space<vmem>>, vector<1x1x1x256xf32>
    %147 = vector.shape_cast %146 : vector<1x1x1x256xf32> to vector<1x256xf32>
    %148 = vector.broadcast %147 : vector<1x256xf32> to vector<128x256xf32>
    %149 = arith.mulf %145, %148 : vector<128x256xf32>
    %150 = arith.addf %141, %149 : vector<128x256xf32>
    %c2_152 = arith.constant 2 : index
    %c1_153 = arith.constant 1 : index
    %c0_154 = arith.constant 0 : index
    %c0_155 = arith.constant 0 : index
    %151 = vector.load %arg6[%c2_152, %c1_153, %c0_154, %c0_155] : memref<3x3x128x128xbf16, #tpu.memory_space<vmem>>, vector<1x1x128x128xbf16>
    %152 = vector.shape_cast %151 : vector<1x1x128x128xbf16> to vector<128x128xbf16>
    %cst_156 = arith.constant dense<0.000000e+00> : vector<128x256xf32>
    %153 = tpu.matmul %152, %91, %cst_156 {dimension_numbers = #tpu.dot_dimension_numbers<[1], [0], [0], [1], [0, 0, 1, 1], [], []>} : vector<128x128xbf16>, vector<128x256xbf16>, vector<128x256xf32> -> vector<128x256xf32>
    %c240_i32_157 = arith.constant 240 : i32
    %154 = tpu.dynamic_rotate %153 by %c240_i32_157 dim 1 : vector<128x256xf32>, i32 -> vector<128x256xf32>
    %c2_158 = arith.constant 2 : index
    %c1_159 = arith.constant 1 : index
    %c0_160 = arith.constant 0 : index
    %c0_161 = arith.constant 0 : index
    %155 = vector.load %arg4[%c2_158, %c1_159, %c0_160, %c0_161] : memref<3x3x1x256xf32, #tpu.memory_space<vmem>>, vector<1x1x1x256xf32>
    %156 = vector.shape_cast %155 : vector<1x1x1x256xf32> to vector<1x256xf32>
    %157 = vector.broadcast %156 : vector<1x256xf32> to vector<128x256xf32>
    %158 = arith.mulf %154, %157 : vector<128x256xf32>
    %159 = arith.addf %150, %158 : vector<128x256xf32>
    %c2_162 = arith.constant 2 : index
    %c2_163 = arith.constant 2 : index
    %c0_164 = arith.constant 0 : index
    %c0_165 = arith.constant 0 : index
    %160 = vector.load %arg6[%c2_162, %c2_163, %c0_164, %c0_165] : memref<3x3x128x128xbf16, #tpu.memory_space<vmem>>, vector<1x1x128x128xbf16>
    %161 = vector.shape_cast %160 : vector<1x1x128x128xbf16> to vector<128x128xbf16>
    %cst_166 = arith.constant dense<0.000000e+00> : vector<128x256xf32>
    %162 = tpu.matmul %161, %91, %cst_166 {dimension_numbers = #tpu.dot_dimension_numbers<[1], [0], [0], [1], [0, 0, 1, 1], [], []>} : vector<128x128xbf16>, vector<128x256xbf16>, vector<128x256xf32> -> vector<128x256xf32>
    %c239_i32_167 = arith.constant 239 : i32
    %163 = tpu.dynamic_rotate %162 by %c239_i32_167 dim 1 : vector<128x256xf32>, i32 -> vector<128x256xf32>
    %c2_168 = arith.constant 2 : index
    %c2_169 = arith.constant 2 : index
    %c0_170 = arith.constant 0 : index
    %c0_171 = arith.constant 0 : index
    %164 = vector.load %arg4[%c2_168, %c2_169, %c0_170, %c0_171] : memref<3x3x1x256xf32, #tpu.memory_space<vmem>>, vector<1x1x1x256xf32>
    %165 = vector.shape_cast %164 : vector<1x1x1x256xf32> to vector<1x256xf32>
    %166 = vector.broadcast %165 : vector<1x256xf32> to vector<128x256xf32>
    %167 = arith.mulf %163, %166 : vector<128x256xf32>
    %168 = arith.addf %159, %167 : vector<128x256xf32>
    %c0_172 = arith.constant 0 : index
    %c0_173 = arith.constant 0 : index
    %169 = vector.load %arg8[%c0_172, %c0_173] : memref<128x1xf32, #tpu.memory_space<vmem>>, vector<128x1xf32>
    %170 = vector.broadcast %169 : vector<128x1xf32> to vector<128x256xf32>
    %171 = arith.addf %168, %170 : vector<128x256xf32>
    %cst_174 = arith.constant 0.000000e+00 : f32
    %172 = vector.broadcast %cst_174 : f32 to vector<128x256xf32>
    %173 = arith.maximumf %171, %172 : vector<128x256xf32>
    %c0_175 = arith.constant 0 : index
    %c0_176 = arith.constant 0 : index
    %c0_177 = arith.constant 0 : index
    %174 = vector.load %arg9[%c0_175, %c0_176, %c0_177] : memref<1x128x256xf32, #tpu.memory_space<vmem>>, vector<1x128x256xf32>
    %175 = vector.shape_cast %174 : vector<1x128x256xf32> to vector<128x256xf32>
    %176 = vector.shape_cast %173 : vector<128x256xf32> to vector<1x128x256xf32>
    tpu.vector_store %arg9[%c0_175, %c0_176, %c0_177], %176 {strides = array<i32>} : memref<1x128x256xf32, #tpu.memory_space<vmem>>, vector<1x128x256xf32>,
    return
  }
  func.func @transform_0(%arg0: i32) -> (i32, i32, i32) {
    %c0_i32 = arith.constant 0 : i32
    %c0_i32_0 = arith.constant 0 : i32
    %c0_i32_1 = arith.constant 0 : i32
    return %arg0, %c0_i32, %c0_i32_0 : i32, i32, i32
  }
  func.func @transform_1(%arg0: i32) -> (i32, i32, i32) {
    %c0_i32 = arith.constant 0 : i32
    %c0_i32_0 = arith.constant 0 : i32
    %c0_i32_1 = arith.constant 0 : i32
    return %arg0, %c0_i32, %c0_i32_0 : i32, i32, i32
  }
  func.func @transform_2(%arg0: i32) -> (i32, i32) {
    %c0_i32 = arith.constant 0 : i32
    %c0_i32_0 = arith.constant 0 : i32
    %c0_i32_1 = arith.constant 0 : i32
    return %c0_i32, %c0_i32_0 : i32, i32
  }
  func.func @transform_3(%arg0: i32) -> (i32, i32, i32, i32) {
    %c0_i32 = arith.constant 0 : i32
    %c0_i32_0 = arith.constant 0 : i32
    %c0_i32_1 = arith.constant 0 : i32
    %c0_i32_2 = arith.constant 0 : i32
    %c0_i32_3 = arith.constant 0 : i32
    return %c0_i32, %c0_i32_0, %c0_i32_1, %c0_i32_2 : i32, i32, i32, i32
  }
  func.func @transform_4(%arg0: i32) -> (i32, i32, i32, i32) {
    %c0_i32 = arith.constant 0 : i32
    %c0_i32_0 = arith.constant 0 : i32
    %c0_i32_1 = arith.constant 0 : i32
    %c0_i32_2 = arith.constant 0 : i32
    %c0_i32_3 = arith.constant 0 : i32
    return %c0_i32, %c0_i32_0, %c0_i32_1, %c0_i32_2 : i32, i32, i32, i32
  }
  func.func @transform_5(%arg0: i32) -> (i32, i32, i32, i32) {
    %c0_i32 = arith.constant 0 : i32
    %c0_i32_0 = arith.constant 0 : i32
    %c0_i32_1 = arith.constant 0 : i32
    %c0_i32_2 = arith.constant 0 : i32
    %c0_i32_3 = arith.constant 0 : i32
    return %c0_i32, %c0_i32_0, %c0_i32_1, %c0_i32_2 : i32, i32, i32, i32
  }
  func.func @transform_6(%arg0: i32) -> (i32, i32) {
    %c0_i32 = arith.constant 0 : i32
    %c0_i32_0 = arith.constant 0 : i32
    %c0_i32_1 = arith.constant 0 : i32
    return %c0_i32, %c0_i32_0 : i32, i32
  }
  func.func @transform_7(%arg0: i32) -> (i32, i32) {
    %c0_i32 = arith.constant 0 : i32
    %c0_i32_0 = arith.constant 0 : i32
    %c0_i32_1 = arith.constant 0 : i32
    return %c0_i32, %c0_i32_0 : i32, i32
  }
  func.func @transform_8(%arg0: i32) -> (i32, i32, i32) {
    %c0_i32 = arith.constant 0 : i32
    %c0_i32_0 = arith.constant 0 : i32
    %c0_i32_1 = arith.constant 0 : i32
    return %arg0, %c0_i32, %c0_i32_0 : i32, i32, i32
  }
}

</mosaic_0001>

<llo_original>
// kernel: tpu_custom_call.1
$region0: #{tpu_custom_call.1}
  #allocation0 [shape = 'u32[]', space=smem, size = 0x4, offset = 0x4, fixed_abs, tag = 'smem constant byte address 0x4 - core index']
  #allocation1 [shape = 'u32[72,128]{1,0:T(1,128)}', space=vmem, size = 0x9000, scoped, tag = 'internal scratch']
  %s0 = inlined_call_operand.vmem [shape: f32[2,128,64], index: 0, kind: input, shape index: {}]
  %s1 = inlined_call_operand.vmem [shape: f32[2,128,256], index: 1, kind: input, shape index: {}]
  %s2 = inlined_call_operand.hbm [shape: f32[64,256], index: 2, kind: input, shape index: {}]
  %s3 = inlined_call_operand.hbm [shape: f32[3,3,1,256], index: 3, kind: input, shape index: {}]
  %s4 = inlined_call_operand.hbm [shape: bf16[3,3,128,256], index: 4, kind: input, shape index: {}]
  %s5 = inlined_call_operand.hbm [shape: bf16[3,3,128,128], index: 5, kind: input, shape index: {}]
  %s6 = inlined_call_operand.vmem [shape: f32[128,1], index: 6, kind: input, shape index: {}]
  %s7 = inlined_call_operand.vmem [shape: f32[128,1], index: 7, kind: input, shape index: {}]
  %s8 = inlined_call_operand.hbm [shape: f32[2,128,256], index: 8, kind: output, shape index: {}]
  %s9 = sld [smem:[#allocation0]]
  $region81: #{tpu_custom_call.1} parent=0
    _
  %s11 = ssub.s32 1, %s9
  %s12 = scalar_select 0, %s11, %s9
  $region1: #{tpu_custom_call.1} parent=0
    #allocation2 [shape = 'u8[65536]{0}', space=vmem, size = 0x10000, scoped, tag = 'input window, operand 2, single buffered']
    #allocation3 [shape = 's32[2]{0}', space=sflag, size = 0x8, scoped, tag = 'scoped memory for tpu_custom_call.1']
    #allocation4 [shape = 's32[2]{0}', space=sflag, size = 0x8, scoped, tag = 'scoped memory for tpu_custom_call.1']
    #allocation5 [shape = 'u8[9216]{0}', space=vmem, size = 0x2400, scoped, tag = 'input window, operand 3, single buffered']
    #allocation6 [shape = 's32[1]{0}', space=sflag, size = 0x4, scoped, tag = 'scoped memory for tpu_custom_call.1']
    #allocation7 [shape = 'u8[589824]{0}', space=vmem, size = 0x90000, scoped, tag = 'input window, operand 4, single buffered']
    #allocation8 [shape = 'u8[294912]{0}', space=vmem, size = 0x48000, scoped, tag = 'input window, operand 5, single buffered']
    #allocation9 [shape = 's32[1]{0}', space=sflag, size = 0x4, scoped, tag = 'scoped memory for tpu_custom_call.1']
    #allocation10 [shape = 'u8[262144]{0}', space=vmem, size = 0x40000, scoped, tag = 'output window, operand 0']
    %13 = vsyncpa [#allocation3], 0
    %14 = vsyncpa [#allocation6], 0
    %15 = vsyncpa [#allocation9], 0
    %16 = vsyncpa [#allocation4], 0
    %s17 = scalar_lea.sflag [#allocation4], 1
    %18 = vsyncpa %s17, 0
    loop: start=0, step=1, limit=4
    $region2: #{tpu_custom_call.1} parent=1 // loop_pre_header
      _
    $region3: #{tpu_custom_call.1} parent=1 // loop_header
      %s20 = sphi 0, %s24
      %p21 = scmp.ge.s32.totalorder %s20, 4
      %s30 = sphi 0, %s32
      %s33 = sphi 0, %s30
      %s34 = sphi 0, %s33
      %s50 = sphi 0, %s34
      %s56 = sphi 0, %s58
      %s59 = sphi 0, %s56
      %s60 = sphi 0, %s59
      %s76 = sphi 0, %s60
      %s80 = sphi 0, %s80
      %s82 = sphi 0, %s80
      %s83 = sphi 0, %s82
      %s97 = sphi 0, %s83
      %s101 = sphi 0, %s101
      %s103 = sphi 0, %s101
      %s104 = sphi 0, %s103
      %s118 = sphi 0, %s104
      %s122 = sphi 0, %s122
      %s124 = sphi 0, %s122
      %s125 = sphi 0, %s124
      %s139 = sphi 0, %s125
      %s143 = sphi 0, %s143
      %s145 = sphi 0, %s143
      %s146 = sphi 0, %s145
      %s160 = sphi 0, %s146
      %s164 = sphi 0, %s164
      %s166 = sphi 0, %s164
      %s167 = sphi 0, %s166
      %s181 = sphi 0, %s167
      %s185 = sphi 0, %s185
      %s187 = sphi 0, %s185
      %s188 = sphi 0, %s187
      %s202 = sphi 0, %s188
      %s208 = sphi 0, %s210
      %s211 = sphi 0, %s208
      %s212 = sphi 0, %s211
      %s228 = sphi 0, %s212
    $region4: #{tpu_custom_call.1} parent=1 // loop_header_branch
      %23 = sbr.rel (%p21) target = $region8
    $region5: #{tpu_custom_call.1} parent=1 // loop_body
      %s25 = ssub.s32 %s20, 1
      %s26 = ssub.s32 %s20, 2
      %s27 = sadd.s32 %s20, 1
      %s28 = ssub.s32 %s20, %s27
      %p29 = scmp.eq.s32.totalorder %s28, 0
      %s31 = sadd.s32 %s30, 1
      %s32 = scalar_select %p29, %s30, %s31
      %p35 = pneg %p29
      %p36 = scmp.eq.s32.totalorder %s20, 1
      %p37 = por %p35, %p36
      %p38 = scmp.ne.s32.totalorder %s30, %s33
      %p39 = scmp.eq.s32.totalorder %s20, 0
      %p40 = por %p38, %p39
      %p41 = scmp.ne.s32.totalorder %s30, %s33
      %p42 = scmp.eq.s32.totalorder %s25, 1
      %p43 = por %p41, %p42
      %p44 = scmp.ne.s32.totalorder %s33, %s34
      %p45 = scmp.eq.s32.totalorder %s25, 0
      %p46 = por %p44, %p45
      %p47 = scmp.ne.s32.totalorder %s33, %s34
      %p48 = scmp.eq.s32.totalorder %s26, 1
      %p49 = por %p47, %p48
      %p51 = scmp.ne.s32.totalorder %s34, %s50
      %p52 = scmp.eq.s32.totalorder %s26, 0
      %p53 = por %p51, %p52
      %s54 = ssub.s32 %s20, %s27
      %p55 = scmp.eq.s32.totalorder %s54, 0
      %s57 = sadd.s32 %s56, 1
      %s58 = scalar_select %p55, %s56, %s57
      %p61 = pneg %p55
      %p62 = scmp.eq.s32.totalorder %s20, 1
      %p63 = por %p61, %p62
      %p64 = scmp.ne.s32.totalorder %s56, %s59
      %p65 = scmp.eq.s32.totalorder %s20, 0
      %p66 = por %p64, %p65
      %p67 = scmp.ne.s32.totalorder %s56, %s59
      %p68 = scmp.eq.s32.totalorder %s25, 1
      %p69 = por %p67, %p68
      %p70 = scmp.ne.s32.totalorder %s59, %s60
      %p71 = scmp.eq.s32.totalorder %s25, 0
      %p72 = por %p70, %p71
      %p73 = scmp.ne.s32.totalorder %s59, %s60
      %p74 = scmp.eq.s32.totalorder %s26, 1
      %p75 = por %p73, %p74
      %p77 = scmp.ne.s32.totalorder %s60, %s76
      %p78 = scmp.eq.s32.totalorder %s26, 0
      %p79 = por %p77, %p78
      %s81 = sadd.s32 %s80, 1
      %p84 = scmp.eq.s32.totalorder %s20, 1
      %p85 = scmp.ne.s32.totalorder %s80, %s82
      %p86 = scmp.eq.s32.totalorder %s20, 0
      %p87 = por %p85, %p86
      %p88 = scmp.ne.s32.totalorder %s80, %s82
      %p89 = scmp.eq.s32.totalorder %s25, 1
      %p90 = por %p88, %p89
      %p91 = scmp.ne.s32.totalorder %s82, %s83
      %p92 = scmp.eq.s32.totalorder %s25, 0
      %p93 = por %p91, %p92
      %p94 = scmp.ne.s32.totalorder %s82, %s83
      %p95 = scmp.eq.s32.totalorder %s26, 1
      %p96 = por %p94, %p95
      %p98 = scmp.ne.s32.totalorder %s83, %s97
      %p99 = scmp.eq.s32.totalorder %s26, 0
      %p100 = por %p98, %p99
      %s102 = sadd.s32 %s101, 1
      %p105 = scmp.eq.s32.totalorder %s20, 1
      %p106 = scmp.ne.s32.totalorder %s101, %s103
      %p107 = scmp.eq.s32.totalorder %s20, 0
      %p108 = por %p106, %p107
      %p109 = scmp.ne.s32.totalorder %s101, %s103
      %p110 = scmp.eq.s32.totalorder %s25, 1
      %p111 = por %p109, %p110
      %p112 = scmp.ne.s32.totalorder %s103, %s104
      %p113 = scmp.eq.s32.totalorder %s25, 0
      %p114 = por %p112, %p113
      %p115 = scmp.ne.s32.totalorder %s103, %s104
      %p116 = scmp.eq.s32.totalorder %s26, 1
      %p117 = por %p115, %p116
      %p119 = scmp.ne.s32.totalorder %s104, %s118
      %p120 = scmp.eq.s32.totalorder %s26, 0
      %p121 = por %p119, %p120
      %s123 = sadd.s32 %s122, 1
      %p126 = scmp.eq.s32.totalorder %s20, 1
      %p127 = scmp.ne.s32.totalorder %s122, %s124
      %p128 = scmp.eq.s32.totalorder %s20, 0
      %p129 = por %p127, %p128
      %p130 = scmp.ne.s32.totalorder %s122, %s124
      %p131 = scmp.eq.s32.totalorder %s25, 1
      %p132 = por %p130, %p131
      %p133 = scmp.ne.s32.totalorder %s124, %s125
      %p134 = scmp.eq.s32.totalorder %s25, 0
      %p135 = por %p133, %p134
      %p136 = scmp.ne.s32.totalorder %s124, %s125
      %p137 = scmp.eq.s32.totalorder %s26, 1
      %p138 = por %p136, %p137
      %p140 = scmp.ne.s32.totalorder %s125, %s139
      %p141 = scmp.eq.s32.totalorder %s26, 0
      %p142 = por %p140, %p141
      %s144 = sadd.s32 %s143, 1
      %p147 = scmp.eq.s32.totalorder %s20, 1
      %p148 = scmp.ne.s32.totalorder %s143, %s145
      %p149 = scmp.eq.s32.totalorder %s20, 0
      %p150 = por %p148, %p149
      %p151 = scmp.ne.s32.totalorder %s143, %s145
      %p152 = scmp.eq.s32.totalorder %s25, 1
      %p153 = por %p151, %p152
      %p154 = scmp.ne.s32.totalorder %s145, %s146
      %p155 = scmp.eq.s32.totalorder %s25, 0
      %p156 = por %p154, %p155
      %p157 = scmp.ne.s32.totalorder %s145, %s146
      %p158 = scmp.eq.s32.totalorder %s26, 1
      %p159 = por %p157, %p158
      %p161 = scmp.ne.s32.totalorder %s146, %s160
      %p162 = scmp.eq.s32.totalorder %s26, 0
      %p163 = por %p161, %p162
      %s165 = sadd.s32 %s164, 1
      %p168 = scmp.eq.s32.totalorder %s20, 1
      %p169 = scmp.ne.s32.totalorder %s164, %s166
      %p170 = scmp.eq.s32.totalorder %s20, 0
      %p171 = por %p169, %p170
      %p172 = scmp.ne.s32.totalorder %s164, %s166
      %p173 = scmp.eq.s32.totalorder %s25, 1
      %p174 = por %p172, %p173
      %p175 = scmp.ne.s32.totalorder %s166, %s167
      %p176 = scmp.eq.s32.totalorder %s25, 0
      %p177 = por %p175, %p176
      %p178 = scmp.ne.s32.totalorder %s166, %s167
      %p179 = scmp.eq.s32.totalorder %s26, 1
      %p180 = por %p178, %p179
      %p182 = scmp.ne.s32.totalorder %s167, %s181
      %p183 = scmp.eq.s32.totalorder %s26, 0
      %p184 = por %p182, %p183
      %s186 = sadd.s32 %s185, 1
      %p189 = scmp.eq.s32.totalorder %s20, 1
      %p190 = scmp.ne.s32.totalorder %s185, %s187
      %p191 = scmp.eq.s32.totalorder %s20, 0
      %p192 = por %p190, %p191
      %p193 = scmp.ne.s32.totalorder %s185, %s187
      %p194 = scmp.eq.s32.totalorder %s25, 1
      %p195 = por %p193, %p194
      %p196 = scmp.ne.s32.totalorder %s187, %s188
      %p197 = scmp.eq.s32.totalorder %s25, 0
      %p198 = por %p196, %p197
      %p199 = scmp.ne.s32.totalorder %s187, %s188
      %p200 = scmp.eq.s32.totalorder %s26, 1
      %p201 = por %p199, %p200
      %p203 = scmp.ne.s32.totalorder %s188, %s202
      %p204 = scmp.eq.s32.totalorder %s26, 0
      %p205 = por %p203, %p204
      %s206 = ssub.s32 %s20, %s27
      %p207 = scmp.eq.s32.totalorder %s206, 0
      %s209 = sadd.s32 %s208, 1
      %s210 = scalar_select %p207, %s208, %s209
      %p213 = pneg %p207
      %p214 = scmp.eq.s32.totalorder %s20, 1
      %p215 = por %p213, %p214
      %p216 = scmp.ne.s32.totalorder %s208, %s211
      %p217 = scmp.eq.s32.totalorder %s20, 0
      %p218 = por %p216, %p217
      %p219 = scmp.ne.s32.totalorder %s208, %s211
      %p220 = scmp.eq.s32.totalorder %s25, 1
      %p221 = por %p219, %p220
      %p222 = scmp.ne.s32.totalorder %s211, %s212
      %p223 = scmp.eq.s32.totalorder %s25, 0
      %p224 = por %p222, %p223
      %p225 = scmp.ne.s32.totalorder %s211, %s212
      %p226 = scmp.eq.s32.totalorder %s26, 1
      %p227 = por %p225, %p226
      %p229 = scmp.ne.s32.totalorder %s212, %s228
      %p230 = scmp.eq.s32.totalorder %s26, 0
      %p231 = por %p229, %p230
      %p232 = scmp.le.s32.totalorder 1, %s20
      %p233 = scmp.lt.s32.totalorder %s20, 3
      %p234 = pnand %p232, %p233
      %p235 = pneg %p234
      // Predicated region
      $region9: #{tpu_custom_call.1} parent=5 // pred_check
        _
      $region10: #{tpu_custom_call.1} parent=5 // pred_check_branch
        %237 = sbr.rel (%p234) target = $region12
      $region11: #{tpu_custom_call.1} parent=5 // pred_region
        %s238 = ssub.s32 %s20, 1
        // Predicated region
        $region13: #{tpu_custom_call.1} parent=11 // pred_check
          %p239 = pneg %p93
        $region14: #{tpu_custom_call.1} parent=11 // pred_check_branch
          %241 = sbr.rel (%p239) target = $region16
        $region15: #{tpu_custom_call.1} parent=11 // pred_region
          %243 = vsyncadd [#allocation3], 0
          %s244 = sshll.u32 %s2, 4
          %s245 = int_to_ptr.hbm [resolvable:$true] %s244
          %s246 = sshll.u32 [#allocation2], 4
          %s247 = int_to_ptr.vmem [resolvable:$true] %s246
          %252 = dma.hbm_to_vmem [thread:$0]  %s245, 2048, %s247, [#allocation3], 256, 256, 16
        $region16: #{tpu_custom_call.1} parent=11 // pred_fallthru
          _
        // Predicated region
        $region17: #{tpu_custom_call.1} parent=11 // pred_check
          %p253 = pneg %p114
        $region18: #{tpu_custom_call.1} parent=11 // pred_check_branch
          %255 = sbr.rel (%p253) target = $region20
        $region19: #{tpu_custom_call.1} parent=11 // pred_region
          %257 = vsyncadd [#allocation6], 0
          %s258 = sshll.u32 %s3, 4
          %s259 = int_to_ptr.hbm [resolvable:$true] %s258
          %s260 = sshll.u32 [#allocation5], 4
          %s261 = int_to_ptr.vmem [resolvable:$true] %s260
          %266 = dma.hbm_to_vmem [thread:$0]  %s259, 288, %s261, [#allocation6], 32, 32, 2
        $region20: #{tpu_custom_call.1} parent=11 // pred_fallthru
          _
        // Predicated region
        $region21: #{tpu_custom_call.1} parent=11 // pred_check
          %p267 = pneg %p135
        $region22: #{tpu_custom_call.1} parent=11 // pred_check_branch
          %269 = sbr.rel (%p267) target = $region24
        $region23: #{tpu_custom_call.1} parent=11 // pred_region
          %271 = vsyncadd [#allocation6], 0
          %s272 = sshll.u32 %s4, 4
          %s273 = int_to_ptr.hbm [resolvable:$true] %s272
          %s274 = sshll.u32 [#allocation7], 4
          %s275 = int_to_ptr.vmem [resolvable:$true] %s274
          %280 = dma.hbm_to_vmem [thread:$0]  %s273, 18432, %s275, [#allocation6], 128, 128, 8
        $region24: #{tpu_custom_call.1} parent=11 // pred_fallthru
          _
        // Predicated region
        $region25: #{tpu_custom_call.1} parent=11 // pred_check
          %p281 = pneg %p156
        $region26: #{tpu_custom_call.1} parent=11 // pred_check_branch
          %283 = sbr.rel (%p281) target = $region28
        $region27: #{tpu_custom_call.1} parent=11 // pred_region
          %285 = vsyncadd [#allocation9], 0
          %s286 = sshll.u32 %s5, 4
          %s287 = int_to_ptr.hbm [resolvable:$true] %s286
          %s288 = sshll.u32 [#allocation8], 4
          %s289 = int_to_ptr.vmem [resolvable:$true] %s288
          %294 = dma.hbm_to_vmem [thread:$0]  %s287, 9216, %s289, [#allocation9], 64, 64, 4
        $region28: #{tpu_custom_call.1} parent=11 // pred_fallthru
          _
        // Predicated region
        $region29: #{tpu_custom_call.1} parent=11 // pred_check
          %p295 = pneg %p177
        $region30: #{tpu_custom_call.1} parent=11 // pred_check_branch
          %297 = sbr.rel (%p295) target = $region32
        $region31: #{tpu_custom_call.1} parent=11 // pred_region
          _
        $region32: #{tpu_custom_call.1} parent=11 // pred_fallthru
          _
        // Predicated region
        $region33: #{tpu_custom_call.1} parent=11 // pred_check
          %p298 = pneg %p198
        $region34: #{tpu_custom_call.1} parent=11 // pred_check_branch
          %300 = sbr.rel (%p298) target = $region36
        $region35: #{tpu_custom_call.1} parent=11 // pred_region
          _
        $region36: #{tpu_custom_call.1} parent=11 // pred_fallthru
          _
      $region12: #{tpu_custom_call.1} parent=5 // pred_fallthru
        _
      %p301 = scmp.lt.s32.totalorder %s20, 2
      // Predicated region
      $region37: #{tpu_custom_call.1} parent=5 // pred_check
        %p302 = pneg %p301
      $region38: #{tpu_custom_call.1} parent=5 // pred_check_branch
        %304 = sbr.rel (%p302) target = $region40
      $region39: #{tpu_custom_call.1} parent=5 // pred_region
        // Predicated region
        $region41: #{tpu_custom_call.1} parent=39 // pred_check
          %p305 = pneg %p40
        $region42: #{tpu_custom_call.1} parent=39 // pred_check_branch
          %307 = sbr.rel (%p305) target = $region44
        $region43: #{tpu_custom_call.1} parent=39 // pred_region
          %p308 = scmp.lt.s32.totalorder %s20, 1
          %s309 = scalar_select %p308, %s20, 1
          %s310 = smul.addr %s309, 16
          %s311 = smul.addr %s310, 8
          %s312 = scalar_lea.vmem %s0, %s311
        $region44: #{tpu_custom_call.1} parent=39 // pred_fallthru
          _
        // Predicated region
        $region45: #{tpu_custom_call.1} parent=39 // pred_check
          %p313 = pneg %p66
        $region46: #{tpu_custom_call.1} parent=39 // pred_check_branch
          %315 = sbr.rel (%p313) target = $region48
        $region47: #{tpu_custom_call.1} parent=39 // pred_region
          %p316 = scmp.lt.s32.totalorder %s20, 1
          %s317 = scalar_select %p316, %s20, 1
          %s318 = smul.addr %s317, 32
          %s319 = smul.addr %s318, 8
          %s320 = scalar_lea.vmem %s1, %s319
        $region48: #{tpu_custom_call.1} parent=39 // pred_fallthru
          _
      $region40: #{tpu_custom_call.1} parent=5 // pred_fallthru
        _
      %p321 = scmp.le.s32.totalorder 1, %s20
      %p322 = scmp.lt.s32.totalorder %s20, 3
      %p323 = pnand %p321, %p322
      %p324 = pneg %p323
      // Predicated region
      $region49: #{tpu_custom_call.1} parent=5 // pred_check
        _
      $region50: #{tpu_custom_call.1} parent=5 // pred_check_branch
        %326 = sbr.rel (%p323) target = $region52
      $region51: #{tpu_custom_call.1} parent=5 // pred_region
        %s327 = ssub.s32 %s20, 1
        // Predicated region
        $region53: #{tpu_custom_call.1} parent=51 // pred_check
          %p328 = pneg %p93
        $region54: #{tpu_custom_call.1} parent=51 // pred_check_branch
          %330 = sbr.rel (%p328) target = $region56
        $region55: #{tpu_custom_call.1} parent=51 // pred_region
          %332 = dma.done [#allocation3], 2048
        $region56: #{tpu_custom_call.1} parent=51 // pred_fallthru
          _
        // Predicated region
        $region57: #{tpu_custom_call.1} parent=51 // pred_check
          %p333 = pneg %p114
        $region58: #{tpu_custom_call.1} parent=51 // pred_check_branch
          %335 = sbr.rel (%p333) target = $region60
        $region59: #{tpu_custom_call.1} parent=51 // pred_region
          %337 = dma.done [#allocation6], 288
        $region60: #{tpu_custom_call.1} parent=51 // pred_fallthru
          _
        // Predicated region
        $region61: #{tpu_custom_call.1} parent=51 // pred_check
          %p338 = pneg %p135
        $region62: #{tpu_custom_call.1} parent=51 // pred_check_branch
          %340 = sbr.rel (%p338) target = $region64
        $region63: #{tpu_custom_call.1} parent=51 // pred_region
          %342 = dma.done [#allocation6], 18432
        $region64: #{tpu_custom_call.1} parent=51 // pred_fallthru
          _
        // Predicated region
        $region65: #{tpu_custom_call.1} parent=51 // pred_check
          %p343 = pneg %p156
        $region66: #{tpu_custom_call.1} parent=51 // pred_check_branch
          %345 = sbr.rel (%p343) target = $region68
        $region67: #{tpu_custom_call.1} parent=51 // pred_region
          %347 = dma.done [#allocation9], 9216
        $region68: #{tpu_custom_call.1} parent=51 // pred_fallthru
          _
        %p348 = scmp.lt.s32.totalorder %s25, 1
        %s349 = scalar_select %p348, %s25, 1
        %s350 = smul.addr %s349, 16
        %s351 = smul.addr %s350, 8
        %s352 = scalar_lea.vmem %s0, %s351
        %p353 = pneg %p46
        %p354 = pneg %p43
        %p355 = scmp.lt.s32.totalorder %s25, 1
        %s356 = scalar_select %p355, %s25, 1
        %s357 = smul.addr %s356, 32
        %s358 = smul.addr %s357, 8
        %s359 = scalar_lea.vmem %s1, %s358
        %p360 = pneg %p72
        %p361 = pneg %p69
        %p362 = pneg %p93
        %p363 = pneg %p90
        %p364 = pneg %p114
        %p365 = pneg %p111
        %p366 = pneg %p135
        %p367 = pneg %p132
        %p368 = pneg %p156
        %p369 = pneg %p153
        %p370 = pneg %p177
        %p371 = pneg %p174
        %p372 = pneg %p198
        %p373 = pneg %p195
        %p374 = pneg %p224
        %p375 = pneg %p221
        %s376 = sand.u32 %s211, 1
        %s377 = scalar_lea.sflag [#allocation4], %s376
        %s378 = sand.u32 %s211, 1
        %s379 = smul.addr %s378, 256
        %s380 = scalar_lea.vmem [#allocation10], %s379
        %p381 = scmp.lt.s32.totalorder %s25, 1
        %s382 = scalar_select %p381, %s25, 1
        %s383 = smul.addr %s382, 16
        %s384 = smul.addr %s383, 8
        %s385 = scalar_lea.vmem %s0, %s384
        %p386 = scmp.lt.s32.totalorder %s25, 1
        %s387 = scalar_select %p386, %s25, 1
        %s388 = smul.addr %s387, 32
        %s389 = smul.addr %s388, 8
        %s390 = scalar_lea.vmem %s1, %s389
        %v391 = vld [vmem:[%s385] sm:$0xff]
        %v392 = vld [vmem:[%s385 + $0x8] sm:$0xff]
        %v393 = vld [vmem:[%s385 + $0x10] sm:$0xff]
        %v394 = vld [vmem:[%s385 + $0x18] sm:$0xff]
        %v395 = vld [vmem:[%s385 + $0x20] sm:$0xff]
        %v396 = vld [vmem:[%s385 + $0x28] sm:$0xff]
        %v397 = vld [vmem:[%s385 + $0x30] sm:$0xff]
        %v398 = vld [vmem:[%s385 + $0x38] sm:$0xff]
        %v399 = vld [vmem:[%s385 + $0x40] sm:$0xff]
        %v400 = vld [vmem:[%s385 + $0x48] sm:$0xff]
        %v401 = vld [vmem:[%s385 + $0x50] sm:$0xff]
        %v402 = vld [vmem:[%s385 + $0x58] sm:$0xff]
        %v403 = vld [vmem:[%s385 + $0x60] sm:$0xff]
        %v404 = vld [vmem:[%s385 + $0x68] sm:$0xff]
        %v405 = vld [vmem:[%s385 + $0x70] sm:$0xff]
        %v406 = vld [vmem:[%s385 + $0x78] sm:$0xff]
        %v407 = vld [vmem:[#allocation2] sm:$0xff]
        %v408 = vld [vmem:[#allocation2 + $0x8] sm:$0xff]
        %v409 = vld [vmem:[#allocation2 + $0x10] sm:$0xff]
        %v410 = vld [vmem:[#allocation2 + $0x18] sm:$0xff]
        %v411 = vld [vmem:[#allocation2 + $0x20] sm:$0xff]
        %v412 = vld [vmem:[#allocation2 + $0x28] sm:$0xff]
        %v413 = vld [vmem:[#allocation2 + $0x30] sm:$0xff]
        %v414 = vld [vmem:[#allocation2 + $0x38] sm:$0xff]
        %v415 = vld [vmem:[#allocation2 + $0x40] sm:$0xff]
        %v416 = vld [vmem:[#allocation2 + $0x48] sm:$0xff]
        %v417 = vld [vmem:[#allocation2 + $0x50] sm:$0xff]
        %v418 = vld [vmem:[#allocation2 + $0x58] sm:$0xff]
        %v419 = vld [vmem:[#allocation2 + $0x60] sm:$0xff]
        %v420 = vld [vmem:[#allocation2 + $0x68] sm:$0xff]
        %v421 = vld [vmem:[#allocation2 + $0x70] sm:$0xff]
        %v422 = vld [vmem:[#allocation2 + $0x78] sm:$0xff]
        %vm423 = vcmask 523264
        %v425 = vsel %vm423, %v391, 0
        %v428 = vsel %vm423, %v392, 0
        %v431 = vsel %vm423, %v393, 0
        %v434 = vsel %vm423, %v394, 0
        %v437 = vsel %vm423, %v395, 0
        %v440 = vsel %vm423, %v396, 0
        %v443 = vsel %vm423, %v397, 0
        %v446 = vsel %vm423, %v398, 0
        %v449 = vsel %vm423, %v399, 0
        %v452 = vsel %vm423, %v400, 0
        %v455 = vsel %vm423, %v401, 0
        %v458 = vsel %vm423, %v402, 0
        %v461 = vsel %vm423, %v403, 0
        %v464 = vsel %vm423, %v404, 0
        %v467 = vsel %vm423, %v405, 0
        %v470 = vsel %vm423, %v406, 0
        %472 = vmatpush.msra.mxu0 0.0
        %473 = vmatpush.msra.mxu0 0.0
        %474 = vmatpush.msra.mxu0 0.0
        %475 = vmatpush.msra.mxu0 0.0
        %476 = vmatpush.msra.mxu0 0.0
        %477 = vmatpush.msra.mxu0 0.0
        %478 = vmatpush.msra.mxu0 0.0
        %479 = vmatpush.msra.mxu0 0.0
        %480 = vmatpush.msra.mxu0 %v421
        %481 = vmatpush.msra.mxu0 %v419
        %482 = vmatpush.msra.mxu0 %v417
        %483 = vmatpush.msra.mxu0 %v415
        %484 = vmatpush.msra.mxu0 %v413
        %485 = vmatpush.msra.mxu0 %v411
        %486 = vmatpush.msra.mxu0 %v409
        %487 = vmatpush.msra.mxu0 %v407
        %488 = vmatmul.f32.gmra.mxu0 %v425
        %v489 = vpop.f32.mrf.mxu0
        %v490 = vadd.f32 0.0, %v489
        %491 = vmatmul.f32.gmra.mxu0 %v428
        %v492 = vpop.f32.mrf.mxu0
        %v493 = vadd.f32 0.0, %v492
        %494 = vmatmul.f32.gmra.mxu0 %v431
        %v495 = vpop.f32.mrf.mxu0
        %v496 = vadd.f32 0.0, %v495
        %497 = vmatmul.f32.gmra.mxu0 %v434
        %v498 = vpop.f32.mrf.mxu0
        %v499 = vadd.f32 0.0, %v498
        %500 = vmatmul.f32.gmra.mxu0 %v437
        %v501 = vpop.f32.mrf.mxu0
        %v502 = vadd.f32 0.0, %v501
        %503 = vmatmul.f32.gmra.mxu0 %v440
        %v504 = vpop.f32.mrf.mxu0
        %v505 = vadd.f32 0.0, %v504
        %506 = vmatmul.f32.gmra.mxu0 %v443
        %v507 = vpop.f32.mrf.mxu0
        %v508 = vadd.f32 0.0, %v507
        %509 = vmatmul.f32.gmra.mxu0 %v446
        %v510 = vpop.f32.mrf.mxu0
        %v511 = vadd.f32 0.0, %v510
        %512 = vmatmul.f32.gmra.mxu0 %v449
        %v513 = vpop.f32.mrf.mxu0
        %v514 = vadd.f32 0.0, %v513
        %515 = vmatmul.f32.gmra.mxu0 %v452
        %v516 = vpop.f32.mrf.mxu0
        %v517 = vadd.f32 0.0, %v516
        %518 = vmatmul.f32.gmra.mxu0 %v455
        %v519 = vpop.f32.mrf.mxu0
        %v520 = vadd.f32 0.0, %v519
        %521 = vmatmul.f32.gmra.mxu0 %v458
        %v522 = vpop.f32.mrf.mxu0
        %v523 = vadd.f32 0.0, %v522
        %524 = vmatmul.f32.gmra.mxu0 %v461
        %v525 = vpop.f32.mrf.mxu0
        %v526 = vadd.f32 0.0, %v525
        %527 = vmatmul.f32.gmra.mxu0 %v464
        %v528 = vpop.f32.mrf.mxu0
        %v529 = vadd.f32 0.0, %v528
        %530 = vmatmul.f32.gmra.mxu0 %v467
        %v531 = vpop.f32.mrf.mxu0
        %v532 = vadd.f32 0.0, %v531
        %533 = vmatmul.f32.gmra.mxu0 %v470
        %v534 = vpop.f32.mrf.mxu0
        %v535 = vadd.f32 0.0, %v534
        %536 = vdwg.mxu0
        %537 = vmatpush.msra.mxu0 0.0
        %538 = vmatpush.msra.mxu0 0.0
        %539 = vmatpush.msra.mxu0 0.0
        %540 = vmatpush.msra.mxu0 0.0
        %541 = vmatpush.msra.mxu0 0.0
        %542 = vmatpush.msra.mxu0 0.0
        %543 = vmatpush.msra.mxu0 0.0
        %544 = vmatpush.msra.mxu0 0.0
        %545 = vmatpush.msra.mxu0 %v422
        %546 = vmatpush.msra.mxu0 %v420
        %547 = vmatpush.msra.mxu0 %v418
        %548 = vmatpush.msra.mxu0 %v416
        %549 = vmatpush.msra.mxu0 %v414
        %550 = vmatpush.msra.mxu0 %v412
        %551 = vmatpush.msra.mxu0 %v410
        %552 = vmatpush.msra.mxu0 %v408
        %553 = vmatmul.f32.gmra.mxu0 %v425
        %v554 = vpop.f32.mrf.mxu0
        %v555 = vadd.f32 0.0, %v554
        %556 = vmatmul.f32.gmra.mxu0 %v428
        %v557 = vpop.f32.mrf.mxu0
        %v558 = vadd.f32 0.0, %v557
        %559 = vmatmul.f32.gmra.mxu0 %v431
        %v560 = vpop.f32.mrf.mxu0
        %v561 = vadd.f32 0.0, %v560
        %562 = vmatmul.f32.gmra.mxu0 %v434
        %v563 = vpop.f32.mrf.mxu0
        %v564 = vadd.f32 0.0, %v563
        %565 = vmatmul.f32.gmra.mxu0 %v437
        %v566 = vpop.f32.mrf.mxu0
        %v567 = vadd.f32 0.0, %v566
        %568 = vmatmul.f32.gmra.mxu0 %v440
        %v569 = vpop.f32.mrf.mxu0
        %v570 = vadd.f32 0.0, %v569
        %571 = vmatmul.f32.gmra.mxu0 %v443
        %v572 = vpop.f32.mrf.mxu0
        %v573 = vadd.f32 0.0, %v572
        %574 = vmatmul.f32.gmra.mxu0 %v446
        %v575 = vpop.f32.mrf.mxu0
        %v576 = vadd.f32 0.0, %v575
        %577 = vmatmul.f32.gmra.mxu0 %v449
        %v578 = vpop.f32.mrf.mxu0
        %v579 = vadd.f32 0.0, %v578
        %580 = vmatmul.f32.gmra.mxu0 %v452
        %v581 = vpop.f32.mrf.mxu0
        %v582 = vadd.f32 0.0, %v581
        %583 = vmatmul.f32.gmra.mxu0 %v455
        %v584 = vpop.f32.mrf.mxu0
        %v585 = vadd.f32 0.0, %v584
        %586 = vmatmul.f32.gmra.mxu0 %v458
        %v587 = vpop.f32.mrf.mxu0
        %v588 = vadd.f32 0.0, %v587
        %589 = vmatmul.f32.gmra.mxu0 %v461
        %v590 = vpop.f32.mrf.mxu0
        %v591 = vadd.f32 0.0, %v590
        %592 = vmatmul.f32.gmra.mxu0 %v464
        %v593 = vpop.f32.mrf.mxu0
        %v594 = vadd.f32 0.0, %v593
        %595 = vmatmul.f32.gmra.mxu0 %v467
        %v596 = vpop.f32.mrf.mxu0
        %v597 = vadd.f32 0.0, %v596
        %598 = vmatmul.f32.gmra.mxu0 %v470
        %v599 = vpop.f32.mrf.mxu0
        %v600 = vadd.f32 0.0, %v599
        %601 = vdwg.mxu0
        %v602 = vld [vmem:[%s390] sm:$0xff]
        %v603 = vld [vmem:[%s390 + $0x8] sm:$0xff]
        %v604 = vld [vmem:[%s390 + $0x10] sm:$0xff]
        %v605 = vld [vmem:[%s390 + $0x18] sm:$0xff]
        %v606 = vld [vmem:[%s390 + $0x20] sm:$0xff]
        %v607 = vld [vmem:[%s390 + $0x28] sm:$0xff]
        %v608 = vld [vmem:[%s390 + $0x30] sm:$0xff]
        %v609 = vld [vmem:[%s390 + $0x38] sm:$0xff]
        %v610 = vld [vmem:[%s390 + $0x40] sm:$0xff]
        %v611 = vld [vmem:[%s390 + $0x48] sm:$0xff]
        %v612 = vld [vmem:[%s390 + $0x50] sm:$0xff]
        %v613 = vld [vmem:[%s390 + $0x58] sm:$0xff]
        %v614 = vld [vmem:[%s390 + $0x60] sm:$0xff]
        %v615 = vld [vmem:[%s390 + $0x68] sm:$0xff]
        %v616 = vld [vmem:[%s390 + $0x70] sm:$0xff]
        %v617 = vld [vmem:[%s390 + $0x78] sm:$0xff]
        %v618 = vld [vmem:[%s390 + $0x80] sm:$0xff]
        %v619 = vld [vmem:[%s390 + $0x88] sm:$0xff]
        %v620 = vld [vmem:[%s390 + $0x90] sm:$0xff]
        %v621 = vld [vmem:[%s390 + $0x98] sm:$0xff]
        %v622 = vld [vmem:[%s390 + $0xa0] sm:$0xff]
        %v623 = vld [vmem:[%s390 + $0xa8] sm:$0xff]
        %v624 = vld [vmem:[%s390 + $0xb0] sm:$0xff]
        %v625 = vld [vmem:[%s390 + $0xb8] sm:$0xff]
        %v626 = vld [vmem:[%s390 + $0xc0] sm:$0xff]
        %v627 = vld [vmem:[%s390 + $0xc8] sm:$0xff]
        %v628 = vld [vmem:[%s390 + $0xd0] sm:$0xff]
        %v629 = vld [vmem:[%s390 + $0xd8] sm:$0xff]
        %v630 = vld [vmem:[%s390 + $0xe0] sm:$0xff]
        %v631 = vld [vmem:[%s390 + $0xe8] sm:$0xff]
        %v632 = vld [vmem:[%s390 + $0xf0] sm:$0xff]
        %v633 = vld [vmem:[%s390 + $0xf8] sm:$0xff]
        %v634 = vpack.c.bf16 %v603, %v602
        %v635 = vpack.c.bf16 %v605, %v604
        %v636 = vpack.c.bf16 %v607, %v606
        %v637 = vpack.c.bf16 %v609, %v608
        %v638 = vpack.c.bf16 %v611, %v610
        %v639 = vpack.c.bf16 %v613, %v612
        %v640 = vpack.c.bf16 %v615, %v614
        %v641 = vpack.c.bf16 %v617, %v616
        %v642 = vpack.c.bf16 %v619, %v618
        %v643 = vpack.c.bf16 %v621, %v620
        %v644 = vpack.c.bf16 %v623, %v622
        %v645 = vpack.c.bf16 %v625, %v624
        %v646 = vpack.c.bf16 %v627, %v626
        %v647 = vpack.c.bf16 %v629, %v628
        %v648 = vpack.c.bf16 %v631, %v630
        %v649 = vpack.c.bf16 %v633, %v632
        %v650 = vpack.c.bf16 %v555, %v490
        %v651 = vpack.c.bf16 %v558, %v493
        %v652 = vpack.c.bf16 %v561, %v496
        %v653 = vpack.c.bf16 %v564, %v499
        %v654 = vpack.c.bf16 %v567, %v502
        %v655 = vpack.c.bf16 %v570, %v505
        %v656 = vpack.c.bf16 %v573, %v508
        %v657 = vpack.c.bf16 %v576, %v511
        %v658 = vpack.c.bf16 %v579, %v514
        %v659 = vpack.c.bf16 %v582, %v517
        %v660 = vpack.c.bf16 %v585, %v520
        %v661 = vpack.c.bf16 %v588, %v523
        %v662 = vpack.c.bf16 %v591, %v526
        %v663 = vpack.c.bf16 %v594, %v529
        %v664 = vpack.c.bf16 %v597, %v532
        %v665 = vpack.c.bf16 %v600, %v535
        %v682 = vunpack.c.l.b16 %v634
        %v683 = vunpack.c.h.b16 %v634
        %v684 = vunpack.c.l.b16 %v635
        %v685 = vunpack.c.h.b16 %v635
        %v686 = vunpack.c.l.b16 %v636
        %v687 = vunpack.c.h.b16 %v636
        %v688 = vunpack.c.l.b16 %v637
        %v689 = vunpack.c.h.b16 %v637
        %v690 = vunpack.c.l.b16 %v638
        %v691 = vunpack.c.h.b16 %v638
        %v692 = vunpack.c.l.b16 %v639
        %v693 = vunpack.c.h.b16 %v639
        %v694 = vunpack.c.l.b16 %v640
        %v695 = vunpack.c.h.b16 %v640
        %v696 = vunpack.c.l.b16 %v641
        %v697 = vunpack.c.h.b16 %v641
        %v698 = vunpack.c.l.b16 %v642
        %v699 = vunpack.c.h.b16 %v642
        %v700 = vunpack.c.l.b16 %v643
        %v701 = vunpack.c.h.b16 %v643
        %v702 = vunpack.c.l.b16 %v644
        %v703 = vunpack.c.h.b16 %v644
        %v704 = vunpack.c.l.b16 %v645
        %v705 = vunpack.c.h.b16 %v645
        %v706 = vunpack.c.l.b16 %v646
        %v707 = vunpack.c.h.b16 %v646
        %v708 = vunpack.c.l.b16 %v647
        %v709 = vunpack.c.h.b16 %v647
        %v710 = vunpack.c.l.b16 %v648
        %v711 = vunpack.c.h.b16 %v648
        %v712 = vunpack.c.l.b16 %v649
        %v713 = vunpack.c.h.b16 %v649
        %v714 = vpack.c.b16 %v684, %v682
        %v715 = vpack.c.b16 %v685, %v683
        %v716 = vpack.c.b16 %v688, %v686
        %v717 = vpack.c.b16 %v689, %v687
        %v718 = vpack.c.b16 %v692, %v690
        %v719 = vpack.c.b16 %v693, %v691
        %v720 = vpack.c.b16 %v696, %v694
        %v721 = vpack.c.b16 %v697, %v695
        %v722 = vpack.c.b16 %v700, %v698
        %v723 = vpack.c.b16 %v701, %v699
        %v724 = vpack.c.b16 %v704, %v702
        %v725 = vpack.c.b16 %v705, %v703
        %v726 = vpack.c.b16 %v708, %v706
        %v727 = vpack.c.b16 %v709, %v707
        %v728 = vpack.c.b16 %v712, %v710
        %v729 = vpack.c.b16 %v713, %v711
        %v762 = vunpack.c.l.b16 %v650
        %v763 = vunpack.c.h.b16 %v650
        %v764 = vunpack.c.l.b16 %v651
        %v765 = vunpack.c.h.b16 %v651
        %v766 = vunpack.c.l.b16 %v652
        %v767 = vunpack.c.h.b16 %v652
        %v768 = vunpack.c.l.b16 %v653
        %v769 = vunpack.c.h.b16 %v653
        %v770 = vunpack.c.l.b16 %v654
        %v771 = vunpack.c.h.b16 %v654
        %v772 = vunpack.c.l.b16 %v655
        %v773 = vunpack.c.h.b16 %v655
        %v774 = vunpack.c.l.b16 %v656
        %v775 = vunpack.c.h.b16 %v656
        %v776 = vunpack.c.l.b16 %v657
        %v777 = vunpack.c.h.b16 %v657
        %v778 = vunpack.c.l.b16 %v658
        %v779 = vunpack.c.h.b16 %v658
        %v780 = vunpack.c.l.b16 %v659
        %v781 = vunpack.c.h.b16 %v659
        %v782 = vunpack.c.l.b16 %v660
        %v783 = vunpack.c.h.b16 %v660
        %v784 = vunpack.c.l.b16 %v661
        %v785 = vunpack.c.h.b16 %v661
        %v786 = vunpack.c.l.b16 %v662
        %v787 = vunpack.c.h.b16 %v662
        %v788 = vunpack.c.l.b16 %v663
        %v789 = vunpack.c.h.b16 %v663
        %v790 = vunpack.c.l.b16 %v664
        %v791 = vunpack.c.h.b16 %v664
        %v792 = vunpack.c.l.b16 %v665
        %v793 = vunpack.c.h.b16 %v665
        %v794 = vpack.c.b16 %v764, %v762
        %v795 = vpack.c.b16 %v765, %v763
        %v796 = vpack.c.b16 %v768, %v766
        %v797 = vpack.c.b16 %v769, %v767
        %v798 = vpack.c.b16 %v772, %v770
        %v799 = vpack.c.b16 %v773, %v771
        %v800 = vpack.c.b16 %v776, %v774
        %v801 = vpack.c.b16 %v777, %v775
        %v802 = vpack.c.b16 %v780, %v778
        %v803 = vpack.c.b16 %v781, %v779
        %v804 = vpack.c.b16 %v784, %v782
        %v805 = vpack.c.b16 %v785, %v783
        %v806 = vpack.c.b16 %v788, %v786
        %v807 = vpack.c.b16 %v789, %v787
        %v808 = vpack.c.b16 %v792, %v790
        %v809 = vpack.c.b16 %v793, %v791
        %v826 = vld [vmem:[#allocation7] sm:$0xff]
        %v827 = vld [vmem:[#allocation7 + $0x8] sm:$0xff]
        %v828 = vld [vmem:[#allocation7 + $0x10] sm:$0xff]
        %v829 = vld [vmem:[#allocation7 + $0x18] sm:$0xff]
        %v830 = vld [vmem:[#allocation7 + $0x20] sm:$0xff]
        %v831 = vld [vmem:[#allocation7 + $0x28] sm:$0xff]
        %v832 = vld [vmem:[#allocation7 + $0x30] sm:$0xff]
        %v833 = vld [vmem:[#allocation7 + $0x38] sm:$0xff]
        %v834 = vld [vmem:[#allocation7 + $0x40] sm:$0xff]
        %v835 = vld [vmem:[#allocation7 + $0x48] sm:$0xff]
        %v836 = vld [vmem:[#allocation7 + $0x50] sm:$0xff]
        %v837 = vld [vmem:[#allocation7 + $0x58] sm:$0xff]
        %v838 = vld [vmem:[#allocation7 + $0x60] sm:$0xff]
        %v839 = vld [vmem:[#allocation7 + $0x68] sm:$0xff]
        %v840 = vld [vmem:[#allocation7 + $0x70] sm:$0xff]
        %v841 = vld [vmem:[#allocation7 + $0x78] sm:$0xff]
        %v858 = vunpack.c.l.b16 %v826
        %v859 = vunpack.c.h.b16 %v826
        %v860 = vunpack.c.l.b16 %v827
        %v861 = vunpack.c.h.b16 %v827
        %v862 = vunpack.c.l.b16 %v828
        %v863 = vunpack.c.h.b16 %v828
        %v864 = vunpack.c.l.b16 %v829
        %v865 = vunpack.c.h.b16 %v829
        %v866 = vunpack.c.l.b16 %v830
        %v867 = vunpack.c.h.b16 %v830
        %v868 = vunpack.c.l.b16 %v831
        %v869 = vunpack.c.h.b16 %v831
        %v870 = vunpack.c.l.b16 %v832
        %v871 = vunpack.c.h.b16 %v832
        %v872 = vunpack.c.l.b16 %v833
        %v873 = vunpack.c.h.b16 %v833
        %v874 = vunpack.c.l.b16 %v834
        %v875 = vunpack.c.h.b16 %v834
        %v876 = vunpack.c.l.b16 %v835
        %v877 = vunpack.c.h.b16 %v835
        %v878 = vunpack.c.l.b16 %v836
        %v879 = vunpack.c.h.b16 %v836
        %v880 = vunpack.c.l.b16 %v837
        %v881 = vunpack.c.h.b16 %v837
        %v882 = vunpack.c.l.b16 %v838
        %v883 = vunpack.c.h.b16 %v838
        %v884 = vunpack.c.l.b16 %v839
        %v885 = vunpack.c.h.b16 %v839
        %v886 = vunpack.c.l.b16 %v840
        %v887 = vunpack.c.h.b16 %v840
        %v888 = vunpack.c.l.b16 %v841
        %v889 = vunpack.c.h.b16 %v841
        %v890 = vpack.c.b16 %v860, %v858
        %v891 = vpack.c.b16 %v861, %v859
        %v892 = vpack.c.b16 %v864, %v862
        %v893 = vpack.c.b16 %v865, %v863
        %v894 = vpack.c.b16 %v868, %v866
        %v895 = vpack.c.b16 %v869, %v867
        %v896 = vpack.c.b16 %v872, %v870
        %v897 = vpack.c.b16 %v873, %v871
        %v898 = vpack.c.b16 %v876, %v874
        %v899 = vpack.c.b16 %v877, %v875
        %v900 = vpack.c.b16 %v880, %v878
        %v901 = vpack.c.b16 %v881, %v879
        %v902 = vpack.c.b16 %v884, %v882
        %v903 = vpack.c.b16 %v885, %v883
        %v904 = vpack.c.b16 %v888, %v886
        %v905 = vpack.c.b16 %v889, %v887
        %922 = vmatpush.bf16.msra.mxu0 %v728
        %923 = vmatpush.bf16.msra.mxu0 %v726
        %924 = vmatpush.bf16.msra.mxu0 %v724
        %925 = vmatpush.bf16.msra.mxu0 %v722
        %926 = vmatpush.bf16.msra.mxu0 %v720
        %927 = vmatpush.bf16.msra.mxu0 %v718
        %928 = vmatpush.bf16.msra.mxu0 %v716
        %929 = vmatpush.bf16.msra.mxu0 %v714
        %930 = vmatmul.bf16.gmra.mxu0 %v890
        %v931 = vpop.f32.mrf.mxu0
        %v932 = vadd.f32 0.0, %v931
        %v933 = vpop.f32.mrf.mxu0
        %v934 = vadd.f32 0.0, %v933
        %935 = vmatmul.bf16.gmra.mxu0 %v892
        %v936 = vpop.f32.mrf.mxu0
        %v937 = vadd.f32 0.0, %v936
        %v938 = vpop.f32.mrf.mxu0
        %v939 = vadd.f32 0.0, %v938
        %940 = vmatmul.bf16.gmra.mxu0 %v894
        %v941 = vpop.f32.mrf.mxu0
        %v942 = vadd.f32 0.0, %v941
        %v943 = vpop.f32.mrf.mxu0
        %v944 = vadd.f32 0.0, %v943
        %945 = vmatmul.bf16.gmra.mxu0 %v896
        %v946 = vpop.f32.mrf.mxu0
        %v947 = vadd.f32 0.0, %v946
        %v948 = vpop.f32.mrf.mxu0
        %v949 = vadd.f32 0.0, %v948
        %950 = vmatmul.bf16.gmra.mxu0 %v898
        %v951 = vpop.f32.mrf.mxu0
        %v952 = vadd.f32 0.0, %v951
        %v953 = vpop.f32.mrf.mxu0
        %v954 = vadd.f32 0.0, %v953
        %955 = vmatmul.bf16.gmra.mxu0 %v900
        %v956 = vpop.f32.mrf.mxu0
        %v957 = vadd.f32 0.0, %v956
        %v958 = vpop.f32.mrf.mxu0
        %v959 = vadd.f32 0.0, %v958
        %960 = vmatmul.bf16.gmra.mxu0 %v902
        %v961 = vpop.f32.mrf.mxu0
        %v962 = vadd.f32 0.0, %v961
        %v963 = vpop.f32.mrf.mxu0
        %v964 = vadd.f32 0.0, %v963
        %965 = vmatmul.bf16.gmra.mxu0 %v904
        %v966 = vpop.f32.mrf.mxu0
        %v967 = vadd.f32 0.0, %v966
        %v968 = vpop.f32.mrf.mxu0
        %v969 = vadd.f32 0.0, %v968
        %970 = vdwg.mxu0
        %971 = vmatpush.bf16.msra.mxu0 %v808
        %972 = vmatpush.bf16.msra.mxu0 %v806
        %973 = vmatpush.bf16.msra.mxu0 %v804
        %974 = vmatpush.bf16.msra.mxu0 %v802
        %975 = vmatpush.bf16.msra.mxu0 %v800
        %976 = vmatpush.bf16.msra.mxu0 %v798
        %977 = vmatpush.bf16.msra.mxu0 %v796
        %978 = vmatpush.bf16.msra.mxu0 %v794
        %979 = vmatmul.bf16.gmra.mxu0 %v891
        %v980 = vpop.f32.mrf.mxu0
        %v981 = vadd.f32 %v932, %v980
        %v982 = vpop.f32.mrf.mxu0
        %v983 = vadd.f32 %v934, %v982
        %984 = vmatmul.bf16.gmra.mxu0 %v893
        %v985 = vpop.f32.mrf.mxu0
        %v986 = vadd.f32 %v937, %v985
        %v987 = vpop.f32.mrf.mxu0
        %v988 = vadd.f32 %v939, %v987
        %989 = vmatmul.bf16.gmra.mxu0 %v895
        %v990 = vpop.f32.mrf.mxu0
        %v991 = vadd.f32 %v942, %v990
        %v992 = vpop.f32.mrf.mxu0
        %v993 = vadd.f32 %v944, %v992
        %994 = vmatmul.bf16.gmra.mxu0 %v897
        %v995 = vpop.f32.mrf.mxu0
        %v996 = vadd.f32 %v947, %v995
        %v997 = vpop.f32.mrf.mxu0
        %v998 = vadd.f32 %v949, %v997
        %999 = vmatmul.bf16.gmra.mxu0 %v899
        %v1000 = vpop.f32.mrf.mxu0
        %v1001 = vadd.f32 %v952, %v1000
        %v1002 = vpop.f32.mrf.mxu0
        %v1003 = vadd.f32 %v954, %v1002
        %1004 = vmatmul.bf16.gmra.mxu0 %v901
        %v1005 = vpop.f32.mrf.mxu0
        %v1006 = vadd.f32 %v957, %v1005
        %v1007 = vpop.f32.mrf.mxu0
        %v1008 = vadd.f32 %v959, %v1007
        %1009 = vmatmul.bf16.gmra.mxu0 %v903
        %v1010 = vpop.f32.mrf.mxu0
        %v1011 = vadd.f32 %v962, %v1010
        %v1012 = vpop.f32.mrf.mxu0
        %v1013 = vadd.f32 %v964, %v1012
        %1014 = vmatmul.bf16.gmra.mxu0 %v905
        %v1015 = vpop.f32.mrf.mxu0
        %v1016 = vadd.f32 %v967, %v1015
        %v1017 = vpop.f32.mrf.mxu0
        %v1018 = vadd.f32 %v969, %v1017
        %1019 = vdwg.mxu0
        %1020 = vmatpush.bf16.msra.mxu0 %v729
        %1021 = vmatpush.bf16.msra.mxu0 %v727
        %1022 = vmatpush.bf16.msra.mxu0 %v725
        %1023 = vmatpush.bf16.msra.mxu0 %v723
        %1024 = vmatpush.bf16.msra.mxu0 %v721
        %1025 = vmatpush.bf16.msra.mxu0 %v719
        %1026 = vmatpush.bf16.msra.mxu0 %v717
        %1027 = vmatpush.bf16.msra.mxu0 %v715
        %1028 = vmatmul.bf16.gmra.mxu0 %v890
        %v1029 = vpop.f32.mrf.mxu0
        %v1030 = vadd.f32 0.0, %v1029
        %v1031 = vpop.f32.mrf.mxu0
        %v1032 = vadd.f32 0.0, %v1031
        %1033 = vmatmul.bf16.gmra.mxu0 %v892
        %v1034 = vpop.f32.mrf.mxu0
        %v1035 = vadd.f32 0.0, %v1034
        %v1036 = vpop.f32.mrf.mxu0
        %v1037 = vadd.f32 0.0, %v1036
        %1038 = vmatmul.bf16.gmra.mxu0 %v894
        %v1039 = vpop.f32.mrf.mxu0
        %v1040 = vadd.f32 0.0, %v1039
        %v1041 = vpop.f32.mrf.mxu0
        %v1042 = vadd.f32 0.0, %v1041
        %1043 = vmatmul.bf16.gmra.mxu0 %v896
        %v1044 = vpop.f32.mrf.mxu0
        %v1045 = vadd.f32 0.0, %v1044
        %v1046 = vpop.f32.mrf.mxu0
        %v1047 = vadd.f32 0.0, %v1046
        %1048 = vmatmul.bf16.gmra.mxu0 %v898
        %v1049 = vpop.f32.mrf.mxu0
        %v1050 = vadd.f32 0.0, %v1049
        %v1051 = vpop.f32.mrf.mxu0
        %v1052 = vadd.f32 0.0, %v1051
        %1053 = vmatmul.bf16.gmra.mxu0 %v900
        %v1054 = vpop.f32.mrf.mxu0
        %v1055 = vadd.f32 0.0, %v1054
        %v1056 = vpop.f32.mrf.mxu0
        %v1057 = vadd.f32 0.0, %v1056
        %1058 = vmatmul.bf16.gmra.mxu0 %v902
        %v1059 = vpop.f32.mrf.mxu0
        %v1060 = vadd.f32 0.0, %v1059
        %v1061 = vpop.f32.mrf.mxu0
        %v1062 = vadd.f32 0.0, %v1061
        %1063 = vmatmul.bf16.gmra.mxu0 %v904
        %v1064 = vpop.f32.mrf.mxu0
        %v1065 = vadd.f32 0.0, %v1064
        %v1066 = vpop.f32.mrf.mxu0
        %v1067 = vadd.f32 0.0, %v1066
        %1068 = vdwg.mxu0
        %1069 = vmatpush.bf16.msra.mxu0 %v809
        %1070 = vmatpush.bf16.msra.mxu0 %v807
        %1071 = vmatpush.bf16.msra.mxu0 %v805
        %1072 = vmatpush.bf16.msra.mxu0 %v803
        %1073 = vmatpush.bf16.msra.mxu0 %v801
        %1074 = vmatpush.bf16.msra.mxu0 %v799
        %1075 = vmatpush.bf16.msra.mxu0 %v797
        %1076 = vmatpush.bf16.msra.mxu0 %v795
        %1077 = vmatmul.bf16.gmra.mxu0 %v891
        %v1078 = vpop.f32.mrf.mxu0
        %v1079 = vadd.f32 %v1030, %v1078
        %v1080 = vpop.f32.mrf.mxu0
        %v1081 = vadd.f32 %v1032, %v1080
        %1082 = vmatmul.bf16.gmra.mxu0 %v893
        %v1083 = vpop.f32.mrf.mxu0
        %v1084 = vadd.f32 %v1035, %v1083
        %v1085 = vpop.f32.mrf.mxu0
        %v1086 = vadd.f32 %v1037, %v1085
        %1087 = vmatmul.bf16.gmra.mxu0 %v895
        %v1088 = vpop.f32.mrf.mxu0
        %v1089 = vadd.f32 %v1040, %v1088
        %v1090 = vpop.f32.mrf.mxu0
        %v1091 = vadd.f32 %v1042, %v1090
        %1092 = vmatmul.bf16.gmra.mxu0 %v897
        %v1093 = vpop.f32.mrf.mxu0
        %v1094 = vadd.f32 %v1045, %v1093
        %v1095 = vpop.f32.mrf.mxu0
        %v1096 = vadd.f32 %v1047, %v1095
        %1097 = vmatmul.bf16.gmra.mxu0 %v899
        %v1098 = vpop.f32.mrf.mxu0
        %v1099 = vadd.f32 %v1050, %v1098
        %v1100 = vpop.f32.mrf.mxu0
        %v1101 = vadd.f32 %v1052, %v1100
        %1102 = vmatmul.bf16.gmra.mxu0 %v901
        %v1103 = vpop.f32.mrf.mxu0
        %v1104 = vadd.f32 %v1055, %v1103
        %v1105 = vpop.f32.mrf.mxu0
        %v1106 = vadd.f32 %v1057, %v1105
        %1107 = vmatmul.bf16.gmra.mxu0 %v903
        %v1108 = vpop.f32.mrf.mxu0
        %v1109 = vadd.f32 %v1060, %v1108
        %v1110 = vpop.f32.mrf.mxu0
        %v1111 = vadd.f32 %v1062, %v1110
        %1112 = vmatmul.bf16.gmra.mxu0 %v905
        %v1113 = vpop.f32.mrf.mxu0
        %v1114 = vadd.f32 %v1065, %v1113
        %v1115 = vpop.f32.mrf.mxu0
        %v1116 = vadd.f32 %v1067, %v1115
        %1117 = vdwg.mxu0
        %1118 = vrot.lane.b32.xlu0 %v981, 17
        %v1119 = vpop.permute.xlu0 %1118
        %1120 = vrot.lane.b32.xlu0 %v983, 17
        %v1121 = vpop.permute.xlu0 %1120
        %1122 = vrot.lane.b32.xlu0 %v986, 17
        %v1123 = vpop.permute.xlu0 %1122
        %1124 = vrot.lane.b32.xlu0 %v988, 17
        %v1125 = vpop.permute.xlu0 %1124
        %1126 = vrot.lane.b32.xlu0 %v991, 17
        %v1127 = vpop.permute.xlu0 %1126
        %1128 = vrot.lane.b32.xlu0 %v993, 17
        %v1129 = vpop.permute.xlu0 %1128
        %1130 = vrot.lane.b32.xlu0 %v996, 17
        %v1131 = vpop.permute.xlu0 %1130
        %1132 = vrot.lane.b32.xlu0 %v998, 17
        %v1133 = vpop.permute.xlu0 %1132
        %1134 = vrot.lane.b32.xlu0 %v1001, 17
        %v1135 = vpop.permute.xlu0 %1134
        %1136 = vrot.lane.b32.xlu0 %v1003, 17
        %v1137 = vpop.permute.xlu0 %1136
        %1138 = vrot.lane.b32.xlu0 %v1006, 17
        %v1139 = vpop.permute.xlu0 %1138
        %1140 = vrot.lane.b32.xlu0 %v1008, 17
        %v1141 = vpop.permute.xlu0 %1140
        %1142 = vrot.lane.b32.xlu0 %v1011, 17
        %v1143 = vpop.permute.xlu0 %1142
        %1144 = vrot.lane.b32.xlu0 %v1013, 17
        %v1145 = vpop.permute.xlu0 %1144
        %1146 = vrot.lane.b32.xlu0 %v1016, 17
        %v1147 = vpop.permute.xlu0 %1146
        %1148 = vrot.lane.b32.xlu0 %v1018, 17
        %v1149 = vpop.permute.xlu0 %1148
        %1150 = vrot.lane.b32.xlu0 %v1079, 17
        %v1151 = vpop.permute.xlu0 %1150
        %1152 = vrot.lane.b32.xlu0 %v1081, 17
        %v1153 = vpop.permute.xlu0 %1152
        %1154 = vrot.lane.b32.xlu0 %v1084, 17
        %v1155 = vpop.permute.xlu0 %1154
        %1156 = vrot.lane.b32.xlu0 %v1086, 17
        %v1157 = vpop.permute.xlu0 %1156
        %1158 = vrot.lane.b32.xlu0 %v1089, 17
        %v1159 = vpop.permute.xlu0 %1158
        %1160 = vrot.lane.b32.xlu0 %v1091, 17
        %v1161 = vpop.permute.xlu0 %1160
        %1162 = vrot.lane.b32.xlu0 %v1094, 17
        %v1163 = vpop.permute.xlu0 %1162
        %1164 = vrot.lane.b32.xlu0 %v1096, 17
        %v1165 = vpop.permute.xlu0 %1164
        %1166 = vrot.lane.b32.xlu0 %v1099, 17
        %v1167 = vpop.permute.xlu0 %1166
        %1168 = vrot.lane.b32.xlu0 %v1101, 17
        %v1169 = vpop.permute.xlu0 %1168
        %1170 = vrot.lane.b32.xlu0 %v1104, 17
        %v1171 = vpop.permute.xlu0 %1170
        %1172 = vrot.lane.b32.xlu0 %v1106, 17
        %v1173 = vpop.permute.xlu0 %1172
        %1174 = vrot.lane.b32.xlu0 %v1109, 17
        %v1175 = vpop.permute.xlu0 %1174
        %1176 = vrot.lane.b32.xlu0 %v1111, 17
        %v1177 = vpop.permute.xlu0 %1176
        %1178 = vrot.lane.b32.xlu0 %v1114, 17
        %v1179 = vpop.permute.xlu0 %1178
        %1180 = vrot.lane.b32.xlu0 %v1116, 17
        %v1181 = vpop.permute.xlu0 %1180
        %v1182 = vlaneseq
        %v1183 = vand.u32 %v1182, 127
        %vm1184 = vcmp.lt.s32.totalorder %v1183, 17
        %v1185 = vsel %vm1184, %v1119, %v1151
        %v1186 = vsel %vm1184, %v1121, %v1153
        %v1187 = vsel %vm1184, %v1123, %v1155
        %v1188 = vsel %vm1184, %v1125, %v1157
        %v1189 = vsel %vm1184, %v1127, %v1159
        %v1190 = vsel %vm1184, %v1129, %v1161
        %v1191 = vsel %vm1184, %v1131, %v1163
        %v1192 = vsel %vm1184, %v1133, %v1165
        %v1193 = vsel %vm1184, %v1135, %v1167
        %v1194 = vsel %vm1184, %v1137, %v1169
        %v1195 = vsel %vm1184, %v1139, %v1171
        %v1196 = vsel %vm1184, %v1141, %v1173
        %v1197 = vsel %vm1184, %v1143, %v1175
        %v1198 = vsel %vm1184, %v1145, %v1177
        %v1199 = vsel %vm1184, %v1147, %v1179
        %v1200 = vsel %vm1184, %v1149, %v1181
        %v1201 = vsel %vm1184, %v1151, %v1119
        %v1202 = vsel %vm1184, %v1153, %v1121
        %v1203 = vsel %vm1184, %v1155, %v1123
        %v1204 = vsel %vm1184, %v1157, %v1125
        %v1205 = vsel %vm1184, %v1159, %v1127
        %v1206 = vsel %vm1184, %v1161, %v1129
        %v1207 = vsel %vm1184, %v1163, %v1131
        %v1208 = vsel %vm1184, %v1165, %v1133
        %v1209 = vsel %vm1184, %v1167, %v1135
        %v1210 = vsel %vm1184, %v1169, %v1137
        %v1211 = vsel %vm1184, %v1171, %v1139
        %v1212 = vsel %vm1184, %v1173, %v1141
        %v1213 = vsel %vm1184, %v1175, %v1143
        %v1214 = vsel %vm1184, %v1177, %v1145
        %v1215 = vsel %vm1184, %v1179, %v1147
        %v1216 = vsel %vm1184, %v1181, %v1149
        %v1217 = vld [vmem:[#allocation5] sm:$0x3]
        %v1219 = vperm.slane %v1217, 0
        %v1220 = vperm.slane %v1217, 1
        %v1223 = vmul.f32 %v1201, %v1219
        %v1224 = vmul.f32 %v1185, %v1220
        %v1225 = vmul.f32 %v1202, %v1219
        %v1226 = vmul.f32 %v1186, %v1220
        %v1227 = vmul.f32 %v1203, %v1219
        %v1228 = vmul.f32 %v1187, %v1220
        %v1229 = vmul.f32 %v1204, %v1219
        %v1230 = vmul.f32 %v1188, %v1220
        %v1231 = vmul.f32 %v1205, %v1219
        %v1232 = vmul.f32 %v1189, %v1220
        %v1233 = vmul.f32 %v1206, %v1219
        %v1234 = vmul.f32 %v1190, %v1220
        %v1235 = vmul.f32 %v1207, %v1219
        %v1236 = vmul.f32 %v1191, %v1220
        %v1237 = vmul.f32 %v1208, %v1219
        %v1238 = vmul.f32 %v1192, %v1220
        %v1239 = vmul.f32 %v1209, %v1219
        %v1240 = vmul.f32 %v1193, %v1220
        %v1241 = vmul.f32 %v1210, %v1219
        %v1242 = vmul.f32 %v1194, %v1220
        %v1243 = vmul.f32 %v1211, %v1219
        %v1244 = vmul.f32 %v1195, %v1220
        %v1245 = vmul.f32 %v1212, %v1219
        %v1246 = vmul.f32 %v1196, %v1220
        %v1247 = vmul.f32 %v1213, %v1219
        %v1248 = vmul.f32 %v1197, %v1220
        %v1249 = vmul.f32 %v1214, %v1219
        %v1250 = vmul.f32 %v1198, %v1220
        %v1251 = vmul.f32 %v1215, %v1219
        %v1252 = vmul.f32 %v1199, %v1220
        %v1253 = vmul.f32 %v1216, %v1219
        %v1254 = vmul.f32 %v1200, %v1220
        %v1255 = vadd.f32 %v1223, 0.0
        %v1256 = vadd.f32 %v1224, 0.0
        %v1257 = vadd.f32 %v1225, 0.0
        %v1258 = vadd.f32 %v1226, 0.0
        %v1259 = vadd.f32 %v1227, 0.0
        %v1260 = vadd.f32 %v1228, 0.0
        %v1261 = vadd.f32 %v1229, 0.0
        %v1262 = vadd.f32 %v1230, 0.0
        %v1263 = vadd.f32 %v1231, 0.0
        %v1264 = vadd.f32 %v1232, 0.0
        %v1265 = vadd.f32 %v1233, 0.0
        %v1266 = vadd.f32 %v1234, 0.0
        %v1267 = vadd.f32 %v1235, 0.0
        %v1268 = vadd.f32 %v1236, 0.0
        %v1269 = vadd.f32 %v1237, 0.0
        %v1270 = vadd.f32 %v1238, 0.0
        %v1271 = vadd.f32 %v1239, 0.0
        %v1272 = vadd.f32 %v1240, 0.0
        %v1273 = vadd.f32 %v1241, 0.0
        %v1274 = vadd.f32 %v1242, 0.0
        %v1275 = vadd.f32 %v1243, 0.0
        %v1276 = vadd.f32 %v1244, 0.0
        %v1277 = vadd.f32 %v1245, 0.0
        %v1278 = vadd.f32 %v1246, 0.0
        %v1279 = vadd.f32 %v1247, 0.0
        %v1280 = vadd.f32 %v1248, 0.0
        %v1281 = vadd.f32 %v1249, 0.0
        %v1282 = vadd.f32 %v1250, 0.0
        %v1283 = vadd.f32 %v1251, 0.0
        %v1284 = vadd.f32 %v1252, 0.0
        %v1285 = vadd.f32 %v1253, 0.0
        %v1286 = vadd.f32 %v1254, 0.0
        %s1287 = scalar_lea.vmem [#allocation7], 128
        %v1288 = vld [vmem:[%s1287] sm:$0xff]
        %v1289 = vld [vmem:[%s1287 + $0x8] sm:$0xff]
        %v1290 = vld [vmem:[%s1287 + $0x10] sm:$0xff]
        %v1291 = vld [vmem:[%s1287 + $0x18] sm:$0xff]
        %v1292 = vld [vmem:[%s1287 + $0x20] sm:$0xff]
        %v1293 = vld [vmem:[%s1287 + $0x28] sm:$0xff]
        %v1294 = vld [vmem:[%s1287 + $0x30] sm:$0xff]
        %v1295 = vld [vmem:[%s1287 + $0x38] sm:$0xff]
        %v1296 = vld [vmem:[%s1287 + $0x40] sm:$0xff]
        %v1297 = vld [vmem:[%s1287 + $0x48] sm:$0xff]
        %v1298 = vld [vmem:[%s1287 + $0x50] sm:$0xff]
        %v1299 = vld [vmem:[%s1287 + $0x58] sm:$0xff]
        %v1300 = vld [vmem:[%s1287 + $0x60] sm:$0xff]
        %v1301 = vld [vmem:[%s1287 + $0x68] sm:$0xff]
        %v1302 = vld [vmem:[%s1287 + $0x70] sm:$0xff]
        %v1303 = vld [vmem:[%s1287 + $0x78] sm:$0xff]
        %v1320 = vunpack.c.l.b16 %v1288
        %v1321 = vunpack.c.h.b16 %v1288
        %v1322 = vunpack.c.l.b16 %v1289
        %v1323 = vunpack.c.h.b16 %v1289
        %v1324 = vunpack.c.l.b16 %v1290
        %v1325 = vunpack.c.h.b16 %v1290
        %v1326 = vunpack.c.l.b16 %v1291
        %v1327 = vunpack.c.h.b16 %v1291
        %v1328 = vunpack.c.l.b16 %v1292
        %v1329 = vunpack.c.h.b16 %v1292
        %v1330 = vunpack.c.l.b16 %v1293
        %v1331 = vunpack.c.h.b16 %v1293
        %v1332 = vunpack.c.l.b16 %v1294
        %v1333 = vunpack.c.h.b16 %v1294
        %v1334 = vunpack.c.l.b16 %v1295
        %v1335 = vunpack.c.h.b16 %v1295
        %v1336 = vunpack.c.l.b16 %v1296
        %v1337 = vunpack.c.h.b16 %v1296
        %v1338 = vunpack.c.l.b16 %v1297
        %v1339 = vunpack.c.h.b16 %v1297
        %v1340 = vunpack.c.l.b16 %v1298
        %v1341 = vunpack.c.h.b16 %v1298
        %v1342 = vunpack.c.l.b16 %v1299
        %v1343 = vunpack.c.h.b16 %v1299
        %v1344 = vunpack.c.l.b16 %v1300
        %v1345 = vunpack.c.h.b16 %v1300
        %v1346 = vunpack.c.l.b16 %v1301
        %v1347 = vunpack.c.h.b16 %v1301
        %v1348 = vunpack.c.l.b16 %v1302
        %v1349 = vunpack.c.h.b16 %v1302
        %v1350 = vunpack.c.l.b16 %v1303
        %v1351 = vunpack.c.h.b16 %v1303
        %v1352 = vpack.c.b16 %v1322, %v1320
        %v1353 = vpack.c.b16 %v1323, %v1321
        %v1354 = vpack.c.b16 %v1326, %v1324
        %v1355 = vpack.c.b16 %v1327, %v1325
        %v1356 = vpack.c.b16 %v1330, %v1328
        %v1357 = vpack.c.b16 %v1331, %v1329
        %v1358 = vpack.c.b16 %v1334, %v1332
        %v1359 = vpack.c.b16 %v1335, %v1333
        %v1360 = vpack.c.b16 %v1338, %v1336
        %v1361 = vpack.c.b16 %v1339, %v1337
        %v1362 = vpack.c.b16 %v1342, %v1340
        %v1363 = vpack.c.b16 %v1343, %v1341
        %v1364 = vpack.c.b16 %v1346, %v1344
        %v1365 = vpack.c.b16 %v1347, %v1345
        %v1366 = vpack.c.b16 %v1350, %v1348
        %v1367 = vpack.c.b16 %v1351, %v1349
        %1384 = vmatpush.bf16.msra.mxu0 %v728
        %1385 = vmatpush.bf16.msra.mxu0 %v726
        %1386 = vmatpush.bf16.msra.mxu0 %v724
        %1387 = vmatpush.bf16.msra.mxu0 %v722
        %1388 = vmatpush.bf16.msra.mxu0 %v720
        %1389 = vmatpush.bf16.msra.mxu0 %v718
        %1390 = vmatpush.bf16.msra.mxu0 %v716
        %1391 = vmatpush.bf16.msra.mxu0 %v714
        %1392 = vmatmul.bf16.gmra.mxu0 %v1352
        %v1393 = vpop.f32.mrf.mxu0
        %v1394 = vadd.f32 0.0, %v1393
        %v1395 = vpop.f32.mrf.mxu0
        %v1396 = vadd.f32 0.0, %v1395
        %1397 = vmatmul.bf16.gmra.mxu0 %v1354
        %v1398 = vpop.f32.mrf.mxu0
        %v1399 = vadd.f32 0.0, %v1398
        %v1400 = vpop.f32.mrf.mxu0
        %v1401 = vadd.f32 0.0, %v1400
        %1402 = vmatmul.bf16.gmra.mxu0 %v1356
        %v1403 = vpop.f32.mrf.mxu0
        %v1404 = vadd.f32 0.0, %v1403
        %v1405 = vpop.f32.mrf.mxu0
        %v1406 = vadd.f32 0.0, %v1405
        %1407 = vmatmul.bf16.gmra.mxu0 %v1358
        %v1408 = vpop.f32.mrf.mxu0
        %v1409 = vadd.f32 0.0, %v1408
        %v1410 = vpop.f32.mrf.mxu0
        %v1411 = vadd.f32 0.0, %v1410
        %1412 = vmatmul.bf16.gmra.mxu0 %v1360
        %v1413 = vpop.f32.mrf.mxu0
        %v1414 = vadd.f32 0.0, %v1413
        %v1415 = vpop.f32.mrf.mxu0
        %v1416 = vadd.f32 0.0, %v1415
        %1417 = vmatmul.bf16.gmra.mxu0 %v1362
        %v1418 = vpop.f32.mrf.mxu0
        %v1419 = vadd.f32 0.0, %v1418
        %v1420 = vpop.f32.mrf.mxu0
        %v1421 = vadd.f32 0.0, %v1420
        %1422 = vmatmul.bf16.gmra.mxu0 %v1364
        %v1423 = vpop.f32.mrf.mxu0
        %v1424 = vadd.f32 0.0, %v1423
        %v1425 = vpop.f32.mrf.mxu0
        %v1426 = vadd.f32 0.0, %v1425
        %1427 = vmatmul.bf16.gmra.mxu0 %v1366
        %v1428 = vpop.f32.mrf.mxu0
        %v1429 = vadd.f32 0.0, %v1428
        %v1430 = vpop.f32.mrf.mxu0
        %v1431 = vadd.f32 0.0, %v1430
        %1432 = vdwg.mxu0
        %1433 = vmatpush.bf16.msra.mxu0 %v808
        %1434 = vmatpush.bf16.msra.mxu0 %v806
        %1435 = vmatpush.bf16.msra.mxu0 %v804
        %1436 = vmatpush.bf16.msra.mxu0 %v802
        %1437 = vmatpush.bf16.msra.mxu0 %v800
        %1438 = vmatpush.bf16.msra.mxu0 %v798
        %1439 = vmatpush.bf16.msra.mxu0 %v796
        %1440 = vmatpush.bf16.msra.mxu0 %v794
        %1441 = vmatmul.bf16.gmra.mxu0 %v1353
        %v1442 = vpop.f32.mrf.mxu0
        %v1443 = vadd.f32 %v1394, %v1442
        %v1444 = vpop.f32.mrf.mxu0
        %v1445 = vadd.f32 %v1396, %v1444
        %1446 = vmatmul.bf16.gmra.mxu0 %v1355
        %v1447 = vpop.f32.mrf.mxu0
        %v1448 = vadd.f32 %v1399, %v1447
        %v1449 = vpop.f32.mrf.mxu0
        %v1450 = vadd.f32 %v1401, %v1449
        %1451 = vmatmul.bf16.gmra.mxu0 %v1357
        %v1452 = vpop.f32.mrf.mxu0
        %v1453 = vadd.f32 %v1404, %v1452
        %v1454 = vpop.f32.mrf.mxu0
        %v1455 = vadd.f32 %v1406, %v1454
        %1456 = vmatmul.bf16.gmra.mxu0 %v1359
        %v1457 = vpop.f32.mrf.mxu0
        %v1458 = vadd.f32 %v1409, %v1457
        %v1459 = vpop.f32.mrf.mxu0
        %v1460 = vadd.f32 %v1411, %v1459
        %1461 = vmatmul.bf16.gmra.mxu0 %v1361
        %v1462 = vpop.f32.mrf.mxu0
        %v1463 = vadd.f32 %v1414, %v1462
        %v1464 = vpop.f32.mrf.mxu0
        %v1465 = vadd.f32 %v1416, %v1464
        %1466 = vmatmul.bf16.gmra.mxu0 %v1363
        %v1467 = vpop.f32.mrf.mxu0
        %v1468 = vadd.f32 %v1419, %v1467
        %v1469 = vpop.f32.mrf.mxu0
        %v1470 = vadd.f32 %v1421, %v1469
        %1471 = vmatmul.bf16.gmra.mxu0 %v1365
        %v1472 = vpop.f32.mrf.mxu0
        %v1473 = vadd.f32 %v1424, %v1472
        %v1474 = vpop.f32.mrf.mxu0
        %v1475 = vadd.f32 %v1426, %v1474
        %1476 = vmatmul.bf16.gmra.mxu0 %v1367
        %v1477 = vpop.f32.mrf.mxu0
        %v1478 = vadd.f32 %v1429, %v1477
        %v1479 = vpop.f32.mrf.mxu0
        %v1480 = vadd.f32 %v1431, %v1479
        %1481 = vdwg.mxu0
        %1482 = vmatpush.bf16.msra.mxu0 %v729
        %1483 = vmatpush.bf16.msra.mxu0 %v727
        %1484 = vmatpush.bf16.msra.mxu0 %v725
        %1485 = vmatpush.bf16.msra.mxu0 %v723
        %1486 = vmatpush.bf16.msra.mxu0 %v721
        %1487 = vmatpush.bf16.msra.mxu0 %v719
        %1488 = vmatpush.bf16.msra.mxu0 %v717
        %1489 = vmatpush.bf16.msra.mxu0 %v715
        %1490 = vmatmul.bf16.gmra.mxu0 %v1352
        %v1491 = vpop.f32.mrf.mxu0
        %v1492 = vadd.f32 0.0, %v1491
        %v1493 = vpop.f32.mrf.mxu0
        %v1494 = vadd.f32 0.0, %v1493
        %1495 = vmatmul.bf16.gmra.mxu0 %v1354
        %v1496 = vpop.f32.mrf.mxu0
        %v1497 = vadd.f32 0.0, %v1496
        %v1498 = vpop.f32.mrf.mxu0
        %v1499 = vadd.f32 0.0, %v1498
        %1500 = vmatmul.bf16.gmra.mxu0 %v1356
        %v1501 = vpop.f32.mrf.mxu0
        %v1502 = vadd.f32 0.0, %v1501
        %v1503 = vpop.f32.mrf.mxu0
        %v1504 = vadd.f32 0.0, %v1503
        %1505 = vmatmul.bf16.gmra.mxu0 %v1358
        %v1506 = vpop.f32.mrf.mxu0
        %v1507 = vadd.f32 0.0, %v1506
        %v1508 = vpop.f32.mrf.mxu0
        %v1509 = vadd.f32 0.0, %v1508
        %1510 = vmatmul.bf16.gmra.mxu0 %v1360
        %v1511 = vpop.f32.mrf.mxu0
        %v1512 = vadd.f32 0.0, %v1511
        %v1513 = vpop.f32.mrf.mxu0
        %v1514 = vadd.f32 0.0, %v1513
        %1515 = vmatmul.bf16.gmra.mxu0 %v1362
        %v1516 = vpop.f32.mrf.mxu0
        %v1517 = vadd.f32 0.0, %v1516
        %v1518 = vpop.f32.mrf.mxu0
        %v1519 = vadd.f32 0.0, %v1518
        %1520 = vmatmul.bf16.gmra.mxu0 %v1364
        %v1521 = vpop.f32.mrf.mxu0
        %v1522 = vadd.f32 0.0, %v1521
        %v1523 = vpop.f32.mrf.mxu0
        %v1524 = vadd.f32 0.0, %v1523
        %1525 = vmatmul.bf16.gmra.mxu0 %v1366
        %v1526 = vpop.f32.mrf.mxu0
        %v1527 = vadd.f32 0.0, %v1526
        %v1528 = vpop.f32.mrf.mxu0
        %v1529 = vadd.f32 0.0, %v1528
        %1530 = vdwg.mxu0
        %1531 = vmatpush.bf16.msra.mxu0 %v809
        %1532 = vmatpush.bf16.msra.mxu0 %v807
        %1533 = vmatpush.bf16.msra.mxu0 %v805
        %1534 = vmatpush.bf16.msra.mxu0 %v803
        %1535 = vmatpush.bf16.msra.mxu0 %v801
        %1536 = vmatpush.bf16.msra.mxu0 %v799
        %1537 = vmatpush.bf16.msra.mxu0 %v797
        %1538 = vmatpush.bf16.msra.mxu0 %v795
        %1539 = vmatmul.bf16.gmra.mxu0 %v1353
        %v1540 = vpop.f32.mrf.mxu0
        %v1541 = vadd.f32 %v1492, %v1540
        %v1542 = vpop.f32.mrf.mxu0
        %v1543 = vadd.f32 %v1494, %v1542
        %1544 = vmatmul.bf16.gmra.mxu0 %v1355
        %v1545 = vpop.f32.mrf.mxu0
        %v1546 = vadd.f32 %v1497, %v1545
        %v1547 = vpop.f32.mrf.mxu0
        %v1548 = vadd.f32 %v1499, %v1547
        %1549 = vmatmul.bf16.gmra.mxu0 %v1357
        %v1550 = vpop.f32.mrf.mxu0
        %v1551 = vadd.f32 %v1502, %v1550
        %v1552 = vpop.f32.mrf.mxu0
        %v1553 = vadd.f32 %v1504, %v1552
        %1554 = vmatmul.bf16.gmra.mxu0 %v1359
        %v1555 = vpop.f32.mrf.mxu0
        %v1556 = vadd.f32 %v1507, %v1555
        %v1557 = vpop.f32.mrf.mxu0
        %v1558 = vadd.f32 %v1509, %v1557
        %1559 = vmatmul.bf16.gmra.mxu0 %v1361
        %v1560 = vpop.f32.mrf.mxu0
        %v1561 = vadd.f32 %v1512, %v1560
        %v1562 = vpop.f32.mrf.mxu0
        %v1563 = vadd.f32 %v1514, %v1562
        %1564 = vmatmul.bf16.gmra.mxu0 %v1363
        %v1565 = vpop.f32.mrf.mxu0
        %v1566 = vadd.f32 %v1517, %v1565
        %v1567 = vpop.f32.mrf.mxu0
        %v1568 = vadd.f32 %v1519, %v1567
        %1569 = vmatmul.bf16.gmra.mxu0 %v1365
        %v1570 = vpop.f32.mrf.mxu0
        %v1571 = vadd.f32 %v1522, %v1570
        %v1572 = vpop.f32.mrf.mxu0
        %v1573 = vadd.f32 %v1524, %v1572
        %1574 = vmatmul.bf16.gmra.mxu0 %v1367
        %v1575 = vpop.f32.mrf.mxu0
        %v1576 = vadd.f32 %v1527, %v1575
        %v1577 = vpop.f32.mrf.mxu0
        %v1578 = vadd.f32 %v1529, %v1577
        %1579 = vdwg.mxu0
        %1580 = vrot.lane.b32.xlu0 %v1443, 16
        %v1581 = vpop.permute.xlu0 %1580
        %1582 = vrot.lane.b32.xlu0 %v1445, 16
        %v1583 = vpop.permute.xlu0 %1582
        %1584 = vrot.lane.b32.xlu0 %v1448, 16
        %v1585 = vpop.permute.xlu0 %1584
        %1586 = vrot.lane.b32.xlu0 %v1450, 16
        %v1587 = vpop.permute.xlu0 %1586
        %1588 = vrot.lane.b32.xlu0 %v1453, 16
        %v1589 = vpop.permute.xlu0 %1588
        %1590 = vrot.lane.b32.xlu0 %v1455, 16
        %v1591 = vpop.permute.xlu0 %1590
        %1592 = vrot.lane.b32.xlu0 %v1458, 16
        %v1593 = vpop.permute.xlu0 %1592
        %1594 = vrot.lane.b32.xlu0 %v1460, 16
        %v1595 = vpop.permute.xlu0 %1594
        %1596 = vrot.lane.b32.xlu0 %v1463, 16
        %v1597 = vpop.permute.xlu0 %1596
        %1598 = vrot.lane.b32.xlu0 %v1465, 16
        %v1599 = vpop.permute.xlu0 %1598
        %1600 = vrot.lane.b32.xlu0 %v1468, 16
        %v1601 = vpop.permute.xlu0 %1600
        %1602 = vrot.lane.b32.xlu0 %v1470, 16
        %v1603 = vpop.permute.xlu0 %1602
        %1604 = vrot.lane.b32.xlu0 %v1473, 16
        %v1605 = vpop.permute.xlu0 %1604
        %1606 = vrot.lane.b32.xlu0 %v1475, 16
        %v1607 = vpop.permute.xlu0 %1606
        %1608 = vrot.lane.b32.xlu0 %v1478, 16
        %v1609 = vpop.permute.xlu0 %1608
        %1610 = vrot.lane.b32.xlu0 %v1480, 16
        %v1611 = vpop.permute.xlu0 %1610
        %1612 = vrot.lane.b32.xlu0 %v1541, 16
        %v1613 = vpop.permute.xlu0 %1612
        %1614 = vrot.lane.b32.xlu0 %v1543, 16
        %v1615 = vpop.permute.xlu0 %1614
        %1616 = vrot.lane.b32.xlu0 %v1546, 16
        %v1617 = vpop.permute.xlu0 %1616
        %1618 = vrot.lane.b32.xlu0 %v1548, 16
        %v1619 = vpop.permute.xlu0 %1618
        %1620 = vrot.lane.b32.xlu0 %v1551, 16
        %v1621 = vpop.permute.xlu0 %1620
        %1622 = vrot.lane.b32.xlu0 %v1553, 16
        %v1623 = vpop.permute.xlu0 %1622
        %1624 = vrot.lane.b32.xlu0 %v1556, 16
        %v1625 = vpop.permute.xlu0 %1624
        %1626 = vrot.lane.b32.xlu0 %v1558, 16
        %v1627 = vpop.permute.xlu0 %1626
        %1628 = vrot.lane.b32.xlu0 %v1561, 16
        %v1629 = vpop.permute.xlu0 %1628
        %1630 = vrot.lane.b32.xlu0 %v1563, 16
        %v1631 = vpop.permute.xlu0 %1630
        %1632 = vrot.lane.b32.xlu0 %v1566, 16
        %v1633 = vpop.permute.xlu0 %1632
        %1634 = vrot.lane.b32.xlu0 %v1568, 16
        %v1635 = vpop.permute.xlu0 %1634
        %1636 = vrot.lane.b32.xlu0 %v1571, 16
        %v1637 = vpop.permute.xlu0 %1636
        %1638 = vrot.lane.b32.xlu0 %v1573, 16
        %v1639 = vpop.permute.xlu0 %1638
        %1640 = vrot.lane.b32.xlu0 %v1576, 16
        %v1641 = vpop.permute.xlu0 %1640
        %1642 = vrot.lane.b32.xlu0 %v1578, 16
        %v1643 = vpop.permute.xlu0 %1642
        %vm1644 = vcmp.lt.s32.totalorder %v1183, 16
        %v1645 = vsel %vm1644, %v1581, %v1613
        %v1646 = vsel %vm1644, %v1583, %v1615
        %v1647 = vsel %vm1644, %v1585, %v1617
        %v1648 = vsel %vm1644, %v1587, %v1619
        %v1649 = vsel %vm1644, %v1589, %v1621
        %v1650 = vsel %vm1644, %v1591, %v1623
        %v1651 = vsel %vm1644, %v1593, %v1625
        %v1652 = vsel %vm1644, %v1595, %v1627
        %v1653 = vsel %vm1644, %v1597, %v1629
        %v1654 = vsel %vm1644, %v1599, %v1631
        %v1655 = vsel %vm1644, %v1601, %v1633
        %v1656 = vsel %vm1644, %v1603, %v1635
        %v1657 = vsel %vm1644, %v1605, %v1637
        %v1658 = vsel %vm1644, %v1607, %v1639
        %v1659 = vsel %vm1644, %v1609, %v1641
        %v1660 = vsel %vm1644, %v1611, %v1643
        %v1661 = vsel %vm1644, %v1613, %v1581
        %v1662 = vsel %vm1644, %v1615, %v1583
        %v1663 = vsel %vm1644, %v1617, %v1585
        %v1664 = vsel %vm1644, %v1619, %v1587
        %v1665 = vsel %vm1644, %v1621, %v1589
        %v1666 = vsel %vm1644, %v1623, %v1591
        %v1667 = vsel %vm1644, %v1625, %v1593
        %v1668 = vsel %vm1644, %v1627, %v1595
        %v1669 = vsel %vm1644, %v1629, %v1597
        %v1670 = vsel %vm1644, %v1631, %v1599
        %v1671 = vsel %vm1644, %v1633, %v1601
        %v1672 = vsel %vm1644, %v1635, %v1603
        %v1673 = vsel %vm1644, %v1637, %v1605
        %v1674 = vsel %vm1644, %v1639, %v1607
        %v1675 = vsel %vm1644, %v1641, %v1609
        %v1676 = vsel %vm1644, %v1643, %v1611
        %s1677 = scalar_lea.vmem [#allocation5], 2
        %v1678 = vld [vmem:[%s1677] sm:$0x3]
        %v1680 = vperm.slane %v1678, 0
        %v1681 = vperm.slane %v1678, 1
        %v1684 = vmul.f32 %v1661, %v1680
        %v1685 = vmul.f32 %v1645, %v1681
        %v1686 = vmul.f32 %v1662, %v1680
        %v1687 = vmul.f32 %v1646, %v1681
        %v1688 = vmul.f32 %v1663, %v1680
        %v1689 = vmul.f32 %v1647, %v1681
        %v1690 = vmul.f32 %v1664, %v1680
        %v1691 = vmul.f32 %v1648, %v1681
        %v1692 = vmul.f32 %v1665, %v1680
        %v1693 = vmul.f32 %v1649, %v1681
        %v1694 = vmul.f32 %v1666, %v1680
        %v1695 = vmul.f32 %v1650, %v1681
        %v1696 = vmul.f32 %v1667, %v1680
        %v1697 = vmul.f32 %v1651, %v1681
        %v1698 = vmul.f32 %v1668, %v1680
        %v1699 = vmul.f32 %v1652, %v1681
        %v1700 = vmul.f32 %v1669, %v1680
        %v1701 = vmul.f32 %v1653, %v1681
        %v1702 = vmul.f32 %v1670, %v1680
        %v1703 = vmul.f32 %v1654, %v1681
        %v1704 = vmul.f32 %v1671, %v1680
        %v1705 = vmul.f32 %v1655, %v1681
        %v1706 = vmul.f32 %v1672, %v1680
        %v1707 = vmul.f32 %v1656, %v1681
        %v1708 = vmul.f32 %v1673, %v1680
        %v1709 = vmul.f32 %v1657, %v1681
        %v1710 = vmul.f32 %v1674, %v1680
        %v1711 = vmul.f32 %v1658, %v1681
        %v1712 = vmul.f32 %v1675, %v1680
        %v1713 = vmul.f32 %v1659, %v1681
        %v1714 = vmul.f32 %v1676, %v1680
        %v1715 = vmul.f32 %v1660, %v1681
        %v1716 = vadd.f32 %v1255, %v1684
        %v1717 = vadd.f32 %v1256, %v1685
        %v1718 = vadd.f32 %v1257, %v1686
        %v1719 = vadd.f32 %v1258, %v1687
        %v1720 = vadd.f32 %v1259, %v1688
        %v1721 = vadd.f32 %v1260, %v1689
        %v1722 = vadd.f32 %v1261, %v1690
        %v1723 = vadd.f32 %v1262, %v1691
        %v1724 = vadd.f32 %v1263, %v1692
        %v1725 = vadd.f32 %v1264, %v1693
        %v1726 = vadd.f32 %v1265, %v1694
        %v1727 = vadd.f32 %v1266, %v1695
        %v1728 = vadd.f32 %v1267, %v1696
        %v1729 = vadd.f32 %v1268, %v1697
        %v1730 = vadd.f32 %v1269, %v1698
        %v1731 = vadd.f32 %v1270, %v1699
        %v1732 = vadd.f32 %v1271, %v1700
        %v1733 = vadd.f32 %v1272, %v1701
        %v1734 = vadd.f32 %v1273, %v1702
        %v1735 = vadd.f32 %v1274, %v1703
        %v1736 = vadd.f32 %v1275, %v1704
        %v1737 = vadd.f32 %v1276, %v1705
        %v1738 = vadd.f32 %v1277, %v1706
        %v1739 = vadd.f32 %v1278, %v1707
        %v1740 = vadd.f32 %v1279, %v1708
        %v1741 = vadd.f32 %v1280, %v1709
        %v1742 = vadd.f32 %v1281, %v1710
        %v1743 = vadd.f32 %v1282, %v1711
        %v1744 = vadd.f32 %v1283, %v1712
        %v1745 = vadd.f32 %v1284, %v1713
        %v1746 = vadd.f32 %v1285, %v1714
        %v1747 = vadd.f32 %v1286, %v1715
        %s1748 = scalar_lea.vmem [#allocation7], 256
        %v1749 = vld [vmem:[%s1748] sm:$0xff]
        %v1750 = vld [vmem:[%s1748 + $0x8] sm:$0xff]
        %v1751 = vld [vmem:[%s1748 + $0x10] sm:$0xff]
        %v1752 = vld [vmem:[%s1748 + $0x18] sm:$0xff]
        %v1753 = vld [vmem:[%s1748 + $0x20] sm:$0xff]
        %v1754 = vld [vmem:[%s1748 + $0x28] sm:$0xff]
        %v1755 = vld [vmem:[%s1748 + $0x30] sm:$0xff]
        %v1756 = vld [vmem:[%s1748 + $0x38] sm:$0xff]
        %v1757 = vld [vmem:[%s1748 + $0x40] sm:$0xff]
        %v1758 = vld [vmem:[%s1748 + $0x48] sm:$0xff]
        %v1759 = vld [vmem:[%s1748 + $0x50] sm:$0xff]
        %v1760 = vld [vmem:[%s1748 + $0x58] sm:$0xff]
        %v1761 = vld [vmem:[%s1748 + $0x60] sm:$0xff]
        %v1762 = vld [vmem:[%s1748 + $0x68] sm:$0xff]
        %v1763 = vld [vmem:[%s1748 + $0x70] sm:$0xff]
        %v1764 = vld [vmem:[%s1748 + $0x78] sm:$0xff]
        %v1781 = vunpack.c.l.b16 %v1749
        %v1782 = vunpack.c.h.b16 %v1749
        %v1783 = vunpack.c.l.b16 %v1750
        %v1784 = vunpack.c.h.b16 %v1750
        %v1785 = vunpack.c.l.b16 %v1751
        %v1786 = vunpack.c.h.b16 %v1751
        %v1787 = vunpack.c.l.b16 %v1752
        %v1788 = vunpack.c.h.b16 %v1752
        %v1789 = vunpack.c.l.b16 %v1753
        %v1790 = vunpack.c.h.b16 %v1753
        %v1791 = vunpack.c.l.b16 %v1754
        %v1792 = vunpack.c.h.b16 %v1754
        %v1793 = vunpack.c.l.b16 %v1755
        %v1794 = vunpack.c.h.b16 %v1755
        %v1795 = vunpack.c.l.b16 %v1756
        %v1796 = vunpack.c.h.b16 %v1756
        %v1797 = vunpack.c.l.b16 %v1757
        %v1798 = vunpack.c.h.b16 %v1757
        %v1799 = vunpack.c.l.b16 %v1758
        %v1800 = vunpack.c.h.b16 %v1758
        %v1801 = vunpack.c.l.b16 %v1759
        %v1802 = vunpack.c.h.b16 %v1759
        %v1803 = vunpack.c.l.b16 %v1760
        %v1804 = vunpack.c.h.b16 %v1760
        %v1805 = vunpack.c.l.b16 %v1761
        %v1806 = vunpack.c.h.b16 %v1761
        %v1807 = vunpack.c.l.b16 %v1762
        %v1808 = vunpack.c.h.b16 %v1762
        %v1809 = vunpack.c.l.b16 %v1763
        %v1810 = vunpack.c.h.b16 %v1763
        %v1811 = vunpack.c.l.b16 %v1764
        %v1812 = vunpack.c.h.b16 %v1764
        %v1813 = vpack.c.b16 %v1783, %v1781
        %v1814 = vpack.c.b16 %v1784, %v1782
        %v1815 = vpack.c.b16 %v1787, %v1785
        %v1816 = vpack.c.b16 %v1788, %v1786
        %v1817 = vpack.c.b16 %v1791, %v1789
        %v1818 = vpack.c.b16 %v1792, %v1790
        %v1819 = vpack.c.b16 %v1795, %v1793
        %v1820 = vpack.c.b16 %v1796, %v1794
        %v1821 = vpack.c.b16 %v1799, %v1797
        %v1822 = vpack.c.b16 %v1800, %v1798
        %v1823 = vpack.c.b16 %v1803, %v1801
        %v1824 = vpack.c.b16 %v1804, %v1802
        %v1825 = vpack.c.b16 %v1807, %v1805
        %v1826 = vpack.c.b16 %v1808, %v1806
        %v1827 = vpack.c.b16 %v1811, %v1809
        %v1828 = vpack.c.b16 %v1812, %v1810
        %1845 = vmatpush.bf16.msra.mxu0 %v728
        %1846 = vmatpush.bf16.msra.mxu0 %v726
        %1847 = vmatpush.bf16.msra.mxu0 %v724
        %1848 = vmatpush.bf16.msra.mxu0 %v722
        %1849 = vmatpush.bf16.msra.mxu0 %v720
        %1850 = vmatpush.bf16.msra.mxu0 %v718
        %1851 = vmatpush.bf16.msra.mxu0 %v716
        %1852 = vmatpush.bf16.msra.mxu0 %v714
        %1853 = vmatmul.bf16.gmra.mxu0 %v1813
        %v1854 = vpop.f32.mrf.mxu0
        %v1855 = vadd.f32 0.0, %v1854
        %v1856 = vpop.f32.mrf.mxu0
        %v1857 = vadd.f32 0.0, %v1856
        %1858 = vmatmul.bf16.gmra.mxu0 %v1815
        %v1859 = vpop.f32.mrf.mxu0
        %v1860 = vadd.f32 0.0, %v1859
        %v1861 = vpop.f32.mrf.mxu0
        %v1862 = vadd.f32 0.0, %v1861
        %1863 = vmatmul.bf16.gmra.mxu0 %v1817
        %v1864 = vpop.f32.mrf.mxu0
        %v1865 = vadd.f32 0.0, %v1864
        %v1866 = vpop.f32.mrf.mxu0
        %v1867 = vadd.f32 0.0, %v1866
        %1868 = vmatmul.bf16.gmra.mxu0 %v1819
        %v1869 = vpop.f32.mrf.mxu0
        %v1870 = vadd.f32 0.0, %v1869
        %v1871 = vpop.f32.mrf.mxu0
        %v1872 = vadd.f32 0.0, %v1871
        %1873 = vmatmul.bf16.gmra.mxu0 %v1821
        %v1874 = vpop.f32.mrf.mxu0
        %v1875 = vadd.f32 0.0, %v1874
        %v1876 = vpop.f32.mrf.mxu0
        %v1877 = vadd.f32 0.0, %v1876
        %1878 = vmatmul.bf16.gmra.mxu0 %v1823
        %v1879 = vpop.f32.mrf.mxu0
        %v1880 = vadd.f32 0.0, %v1879
        %v1881 = vpop.f32.mrf.mxu0
        %v1882 = vadd.f32 0.0, %v1881
        %1883 = vmatmul.bf16.gmra.mxu0 %v1825
        %v1884 = vpop.f32.mrf.mxu0
        %v1885 = vadd.f32 0.0, %v1884
        %v1886 = vpop.f32.mrf.mxu0
        %v1887 = vadd.f32 0.0, %v1886
        %1888 = vmatmul.bf16.gmra.mxu0 %v1827
        %v1889 = vpop.f32.mrf.mxu0
        %v1890 = vadd.f32 0.0, %v1889
        %v1891 = vpop.f32.mrf.mxu0
        %v1892 = vadd.f32 0.0, %v1891
        %1893 = vdwg.mxu0
        %1894 = vmatpush.bf16.msra.mxu0 %v808
        %1895 = vmatpush.bf16.msra.mxu0 %v806
        %1896 = vmatpush.bf16.msra.mxu0 %v804
        %1897 = vmatpush.bf16.msra.mxu0 %v802
        %1898 = vmatpush.bf16.msra.mxu0 %v800
        %1899 = vmatpush.bf16.msra.mxu0 %v798
        %1900 = vmatpush.bf16.msra.mxu0 %v796
        %1901 = vmatpush.bf16.msra.mxu0 %v794
        %1902 = vmatmul.bf16.gmra.mxu0 %v1814
        %v1903 = vpop.f32.mrf.mxu0
        %v1904 = vadd.f32 %v1855, %v1903
        %v1905 = vpop.f32.mrf.mxu0
        %v1906 = vadd.f32 %v1857, %v1905
        %1907 = vmatmul.bf16.gmra.mxu0 %v1816
        %v1908 = vpop.f32.mrf.mxu0
        %v1909 = vadd.f32 %v1860, %v1908
        %v1910 = vpop.f32.mrf.mxu0
        %v1911 = vadd.f32 %v1862, %v1910
        %1912 = vmatmul.bf16.gmra.mxu0 %v1818
        %v1913 = vpop.f32.mrf.mxu0
        %v1914 = vadd.f32 %v1865, %v1913
        %v1915 = vpop.f32.mrf.mxu0
        %v1916 = vadd.f32 %v1867, %v1915
        %1917 = vmatmul.bf16.gmra.mxu0 %v1820
        %v1918 = vpop.f32.mrf.mxu0
        %v1919 = vadd.f32 %v1870, %v1918
        %v1920 = vpop.f32.mrf.mxu0
        %v1921 = vadd.f32 %v1872, %v1920
        %1922 = vmatmul.bf16.gmra.mxu0 %v1822
        %v1923 = vpop.f32.mrf.mxu0
        %v1924 = vadd.f32 %v1875, %v1923
        %v1925 = vpop.f32.mrf.mxu0
        %v1926 = vadd.f32 %v1877, %v1925
        %1927 = vmatmul.bf16.gmra.mxu0 %v1824
        %v1928 = vpop.f32.mrf.mxu0
        %v1929 = vadd.f32 %v1880, %v1928
        %v1930 = vpop.f32.mrf.mxu0
        %v1931 = vadd.f32 %v1882, %v1930
        %1932 = vmatmul.bf16.gmra.mxu0 %v1826
        %v1933 = vpop.f32.mrf.mxu0
        %v1934 = vadd.f32 %v1885, %v1933
        %v1935 = vpop.f32.mrf.mxu0
        %v1936 = vadd.f32 %v1887, %v1935
        %1937 = vmatmul.bf16.gmra.mxu0 %v1828
        %v1938 = vpop.f32.mrf.mxu0
        %v1939 = vadd.f32 %v1890, %v1938
        %v1940 = vpop.f32.mrf.mxu0
        %v1941 = vadd.f32 %v1892, %v1940
        %1942 = vdwg.mxu0
        %1943 = vmatpush.bf16.msra.mxu0 %v729
        %1944 = vmatpush.bf16.msra.mxu0 %v727
        %1945 = vmatpush.bf16.msra.mxu0 %v725
        %1946 = vmatpush.bf16.msra.mxu0 %v723
        %1947 = vmatpush.bf16.msra.mxu0 %v721
        %1948 = vmatpush.bf16.msra.mxu0 %v719
        %1949 = vmatpush.bf16.msra.mxu0 %v717
        %1950 = vmatpush.bf16.msra.mxu0 %v715
        %1951 = vmatmul.bf16.gmra.mxu0 %v1813
        %v1952 = vpop.f32.mrf.mxu0
        %v1953 = vadd.f32 0.0, %v1952
        %v1954 = vpop.f32.mrf.mxu0
        %v1955 = vadd.f32 0.0, %v1954
        %1956 = vmatmul.bf16.gmra.mxu0 %v1815
        %v1957 = vpop.f32.mrf.mxu0
        %v1958 = vadd.f32 0.0, %v1957
        %v1959 = vpop.f32.mrf.mxu0
        %v1960 = vadd.f32 0.0, %v1959
        %1961 = vmatmul.bf16.gmra.mxu0 %v1817
        %v1962 = vpop.f32.mrf.mxu0
        %v1963 = vadd.f32 0.0, %v1962
        %v1964 = vpop.f32.mrf.mxu0
        %v1965 = vadd.f32 0.0, %v1964
        %1966 = vmatmul.bf16.gmra.mxu0 %v1819
        %v1967 = vpop.f32.mrf.mxu0
        %v1968 = vadd.f32 0.0, %v1967
        %v1969 = vpop.f32.mrf.mxu0
        %v1970 = vadd.f32 0.0, %v1969
        %1971 = vmatmul.bf16.gmra.mxu0 %v1821
        %v1972 = vpop.f32.mrf.mxu0
        %v1973 = vadd.f32 0.0, %v1972
        %v1974 = vpop.f32.mrf.mxu0
        %v1975 = vadd.f32 0.0, %v1974
        %1976 = vmatmul.bf16.gmra.mxu0 %v1823
        %v1977 = vpop.f32.mrf.mxu0
        %v1978 = vadd.f32 0.0, %v1977
        %v1979 = vpop.f32.mrf.mxu0
        %v1980 = vadd.f32 0.0, %v1979
        %1981 = vmatmul.bf16.gmra.mxu0 %v1825
        %v1982 = vpop.f32.mrf.mxu0
        %v1983 = vadd.f32 0.0, %v1982
        %v1984 = vpop.f32.mrf.mxu0
        %v1985 = vadd.f32 0.0, %v1984
        %1986 = vmatmul.bf16.gmra.mxu0 %v1827
        %v1987 = vpop.f32.mrf.mxu0
        %v1988 = vadd.f32 0.0, %v1987
        %v1989 = vpop.f32.mrf.mxu0
        %v1990 = vadd.f32 0.0, %v1989
        %1991 = vdwg.mxu0
        %1992 = vmatpush.bf16.msra.mxu0 %v809
        %1993 = vmatpush.bf16.msra.mxu0 %v807
        %1994 = vmatpush.bf16.msra.mxu0 %v805
        %1995 = vmatpush.bf16.msra.mxu0 %v803
        %1996 = vmatpush.bf16.msra.mxu0 %v801
        %1997 = vmatpush.bf16.msra.mxu0 %v799
        %1998 = vmatpush.bf16.msra.mxu0 %v797
        %1999 = vmatpush.bf16.msra.mxu0 %v795
        %2000 = vmatmul.bf16.gmra.mxu0 %v1814
        %v2001 = vpop.f32.mrf.mxu0
        %v2002 = vadd.f32 %v1953, %v2001
        %v2003 = vpop.f32.mrf.mxu0
        %v2004 = vadd.f32 %v1955, %v2003
        %2005 = vmatmul.bf16.gmra.mxu0 %v1816
        %v2006 = vpop.f32.mrf.mxu0
        %v2007 = vadd.f32 %v1958, %v2006
        %v2008 = vpop.f32.mrf.mxu0
        %v2009 = vadd.f32 %v1960, %v2008
        %2010 = vmatmul.bf16.gmra.mxu0 %v1818
        %v2011 = vpop.f32.mrf.mxu0
        %v2012 = vadd.f32 %v1963, %v2011
        %v2013 = vpop.f32.mrf.mxu0
        %v2014 = vadd.f32 %v1965, %v2013
        %2015 = vmatmul.bf16.gmra.mxu0 %v1820
        %v2016 = vpop.f32.mrf.mxu0
        %v2017 = vadd.f32 %v1968, %v2016
        %v2018 = vpop.f32.mrf.mxu0
        %v2019 = vadd.f32 %v1970, %v2018
        %2020 = vmatmul.bf16.gmra.mxu0 %v1822
        %v2021 = vpop.f32.mrf.mxu0
        %v2022 = vadd.f32 %v1973, %v2021
        %v2023 = vpop.f32.mrf.mxu0
        %v2024 = vadd.f32 %v1975, %v2023
        %2025 = vmatmul.bf16.gmra.mxu0 %v1824
        %v2026 = vpop.f32.mrf.mxu0
        %v2027 = vadd.f32 %v1978, %v2026
        %v2028 = vpop.f32.mrf.mxu0
        %v2029 = vadd.f32 %v1980, %v2028
        %2030 = vmatmul.bf16.gmra.mxu0 %v1826
        %v2031 = vpop.f32.mrf.mxu0
        %v2032 = vadd.f32 %v1983, %v2031
        %v2033 = vpop.f32.mrf.mxu0
        %v2034 = vadd.f32 %v1985, %v2033
        %2035 = vmatmul.bf16.gmra.mxu0 %v1828
        %v2036 = vpop.f32.mrf.mxu0
        %v2037 = vadd.f32 %v1988, %v2036
        %v2038 = vpop.f32.mrf.mxu0
        %v2039 = vadd.f32 %v1990, %v2038
        %2040 = vdwg.mxu0
        %2041 = vrot.lane.b32.xlu0 %v1904, 15
        %v2042 = vpop.permute.xlu0 %2041
        %2043 = vrot.lane.b32.xlu0 %v1906, 15
        %v2044 = vpop.permute.xlu0 %2043
        %2045 = vrot.lane.b32.xlu0 %v1909, 15
        %v2046 = vpop.permute.xlu0 %2045
        %2047 = vrot.lane.b32.xlu0 %v1911, 15
        %v2048 = vpop.permute.xlu0 %2047
        %2049 = vrot.lane.b32.xlu0 %v1914, 15
        %v2050 = vpop.permute.xlu0 %2049
        %2051 = vrot.lane.b32.xlu0 %v1916, 15
        %v2052 = vpop.permute.xlu0 %2051
        %2053 = vrot.lane.b32.xlu0 %v1919, 15
        %v2054 = vpop.permute.xlu0 %2053
        %2055 = vrot.lane.b32.xlu0 %v1921, 15
        %v2056 = vpop.permute.xlu0 %2055
        %2057 = vrot.lane.b32.xlu0 %v1924, 15
        %v2058 = vpop.permute.xlu0 %2057
        %2059 = vrot.lane.b32.xlu0 %v1926, 15
        %v2060 = vpop.permute.xlu0 %2059
        %2061 = vrot.lane.b32.xlu0 %v1929, 15
        %v2062 = vpop.permute.xlu0 %2061
        %2063 = vrot.lane.b32.xlu0 %v1931, 15
        %v2064 = vpop.permute.xlu0 %2063
        %2065 = vrot.lane.b32.xlu0 %v1934, 15
        %v2066 = vpop.permute.xlu0 %2065
        %2067 = vrot.lane.b32.xlu0 %v1936, 15
        %v2068 = vpop.permute.xlu0 %2067
        %2069 = vrot.lane.b32.xlu0 %v1939, 15
        %v2070 = vpop.permute.xlu0 %2069
        %2071 = vrot.lane.b32.xlu0 %v1941, 15
        %v2072 = vpop.permute.xlu0 %2071
        %2073 = vrot.lane.b32.xlu0 %v2002, 15
        %v2074 = vpop.permute.xlu0 %2073
        %2075 = vrot.lane.b32.xlu0 %v2004, 15
        %v2076 = vpop.permute.xlu0 %2075
        %2077 = vrot.lane.b32.xlu0 %v2007, 15
        %v2078 = vpop.permute.xlu0 %2077
        %2079 = vrot.lane.b32.xlu0 %v2009, 15
        %v2080 = vpop.permute.xlu0 %2079
        %2081 = vrot.lane.b32.xlu0 %v2012, 15
        %v2082 = vpop.permute.xlu0 %2081
        %2083 = vrot.lane.b32.xlu0 %v2014, 15
        %v2084 = vpop.permute.xlu0 %2083
        %2085 = vrot.lane.b32.xlu0 %v2017, 15
        %v2086 = vpop.permute.xlu0 %2085
        %2087 = vrot.lane.b32.xlu0 %v2019, 15
        %v2088 = vpop.permute.xlu0 %2087
        %2089 = vrot.lane.b32.xlu0 %v2022, 15
        %v2090 = vpop.permute.xlu0 %2089
        %2091 = vrot.lane.b32.xlu0 %v2024, 15
        %v2092 = vpop.permute.xlu0 %2091
        %2093 = vrot.lane.b32.xlu0 %v2027, 15
        %v2094 = vpop.permute.xlu0 %2093
        %2095 = vrot.lane.b32.xlu0 %v2029, 15
        %v2096 = vpop.permute.xlu0 %2095
        %2097 = vrot.lane.b32.xlu0 %v2032, 15
        %v2098 = vpop.permute.xlu0 %2097
        %2099 = vrot.lane.b32.xlu0 %v2034, 15
        %v2100 = vpop.permute.xlu0 %2099
        %2101 = vrot.lane.b32.xlu0 %v2037, 15
        %v2102 = vpop.permute.xlu0 %2101
        %2103 = vrot.lane.b32.xlu0 %v2039, 15
        %v2104 = vpop.permute.xlu0 %2103
        %vm2105 = vcmp.lt.s32.totalorder %v1183, 15
        %v2106 = vsel %vm2105, %v2042, %v2074
        %v2107 = vsel %vm2105, %v2044, %v2076
        %v2108 = vsel %vm2105, %v2046, %v2078
        %v2109 = vsel %vm2105, %v2048, %v2080
        %v2110 = vsel %vm2105, %v2050, %v2082
        %v2111 = vsel %vm2105, %v2052, %v2084
        %v2112 = vsel %vm2105, %v2054, %v2086
        %v2113 = vsel %vm2105, %v2056, %v2088
        %v2114 = vsel %vm2105, %v2058, %v2090
        %v2115 = vsel %vm2105, %v2060, %v2092
        %v2116 = vsel %vm2105, %v2062, %v2094
        %v2117 = vsel %vm2105, %v2064, %v2096
        %v2118 = vsel %vm2105, %v2066, %v2098
        %v2119 = vsel %vm2105, %v2068, %v2100
        %v2120 = vsel %vm2105, %v2070, %v2102
        %v2121 = vsel %vm2105, %v2072, %v2104
        %v2122 = vsel %vm2105, %v2074, %v2042
        %v2123 = vsel %vm2105, %v2076, %v2044
        %v2124 = vsel %vm2105, %v2078, %v2046
        %v2125 = vsel %vm2105, %v2080, %v2048
        %v2126 = vsel %vm2105, %v2082, %v2050
        %v2127 = vsel %vm2105, %v2084, %v2052
        %v2128 = vsel %vm2105, %v2086, %v2054
        %v2129 = vsel %vm2105, %v2088, %v2056
        %v2130 = vsel %vm2105, %v2090, %v2058
        %v2131 = vsel %vm2105, %v2092, %v2060
        %v2132 = vsel %vm2105, %v2094, %v2062
        %v2133 = vsel %vm2105, %v2096, %v2064
        %v2134 = vsel %vm2105, %v2098, %v2066
        %v2135 = vsel %vm2105, %v2100, %v2068
        %v2136 = vsel %vm2105, %v2102, %v2070
        %v2137 = vsel %vm2105, %v2104, %v2072
        %s2138 = scalar_lea.vmem [#allocation5], 4
        %v2139 = vld [vmem:[%s2138] sm:$0x3]
        %v2141 = vperm.slane %v2139, 0
        %v2142 = vperm.slane %v2139, 1
        %v2145 = vmul.f32 %v2122, %v2141
        %v2146 = vmul.f32 %v2106, %v2142
        %v2147 = vmul.f32 %v2123, %v2141
        %v2148 = vmul.f32 %v2107, %v2142
        %v2149 = vmul.f32 %v2124, %v2141
        %v2150 = vmul.f32 %v2108, %v2142
        %v2151 = vmul.f32 %v2125, %v2141
        %v2152 = vmul.f32 %v2109, %v2142
        %v2153 = vmul.f32 %v2126, %v2141
        %v2154 = vmul.f32 %v2110, %v2142
        %v2155 = vmul.f32 %v2127, %v2141
        %v2156 = vmul.f32 %v2111, %v2142
        %v2157 = vmul.f32 %v2128, %v2141
        %v2158 = vmul.f32 %v2112, %v2142
        %v2159 = vmul.f32 %v2129, %v2141
        %v2160 = vmul.f32 %v2113, %v2142
        %v2161 = vmul.f32 %v2130, %v2141
        %v2162 = vmul.f32 %v2114, %v2142
        %v2163 = vmul.f32 %v2131, %v2141
        %v2164 = vmul.f32 %v2115, %v2142
        %v2165 = vmul.f32 %v2132, %v2141
        %v2166 = vmul.f32 %v2116, %v2142
        %v2167 = vmul.f32 %v2133, %v2141
        %v2168 = vmul.f32 %v2117, %v2142
        %v2169 = vmul.f32 %v2134, %v2141
        %v2170 = vmul.f32 %v2118, %v2142
        %v2171 = vmul.f32 %v2135, %v2141
        %v2172 = vmul.f32 %v2119, %v2142
        %v2173 = vmul.f32 %v2136, %v2141
        %v2174 = vmul.f32 %v2120, %v2142
        %v2175 = vmul.f32 %v2137, %v2141
        %v2176 = vmul.f32 %v2121, %v2142
        %v2177 = vadd.f32 %v1716, %v2145
        %v2178 = vadd.f32 %v1717, %v2146
        %v2179 = vadd.f32 %v1718, %v2147
        %v2180 = vadd.f32 %v1719, %v2148
        %v2181 = vadd.f32 %v1720, %v2149
        %v2182 = vadd.f32 %v1721, %v2150
        %v2183 = vadd.f32 %v1722, %v2151
        %v2184 = vadd.f32 %v1723, %v2152
        %v2185 = vadd.f32 %v1724, %v2153
        %v2186 = vadd.f32 %v1725, %v2154
        %v2187 = vadd.f32 %v1726, %v2155
        %v2188 = vadd.f32 %v1727, %v2156
        %v2189 = vadd.f32 %v1728, %v2157
        %v2190 = vadd.f32 %v1729, %v2158
        %v2191 = vadd.f32 %v1730, %v2159
        %v2192 = vadd.f32 %v1731, %v2160
        %v2193 = vadd.f32 %v1732, %v2161
        %v2194 = vadd.f32 %v1733, %v2162
        %v2195 = vadd.f32 %v1734, %v2163
        %v2196 = vadd.f32 %v1735, %v2164
        %v2197 = vadd.f32 %v1736, %v2165
        %v2198 = vadd.f32 %v1737, %v2166
        %v2199 = vadd.f32 %v1738, %v2167
        %v2200 = vadd.f32 %v1739, %v2168
        %v2201 = vadd.f32 %v1740, %v2169
        %v2202 = vadd.f32 %v1741, %v2170
        %v2203 = vadd.f32 %v1742, %v2171
        %v2204 = vadd.f32 %v1743, %v2172
        %v2205 = vadd.f32 %v1744, %v2173
        %v2206 = vadd.f32 %v1745, %v2174
        %v2207 = vadd.f32 %v1746, %v2175
        %v2208 = vadd.f32 %v1747, %v2176
        %s2209 = scalar_lea.vmem [#allocation7], 384
        %v2210 = vld [vmem:[%s2209] sm:$0xff]
        %v2211 = vld [vmem:[%s2209 + $0x8] sm:$0xff]
        %v2212 = vld [vmem:[%s2209 + $0x10] sm:$0xff]
        %v2213 = vld [vmem:[%s2209 + $0x18] sm:$0xff]
        %v2214 = vld [vmem:[%s2209 + $0x20] sm:$0xff]
        %v2215 = vld [vmem:[%s2209 + $0x28] sm:$0xff]
        %v2216 = vld [vmem:[%s2209 + $0x30] sm:$0xff]
        %v2217 = vld [vmem:[%s2209 + $0x38] sm:$0xff]
        %v2218 = vld [vmem:[%s2209 + $0x40] sm:$0xff]
        %v2219 = vld [vmem:[%s2209 + $0x48] sm:$0xff]
        %v2220 = vld [vmem:[%s2209 + $0x50] sm:$0xff]
        %v2221 = vld [vmem:[%s2209 + $0x58] sm:$0xff]
        %v2222 = vld [vmem:[%s2209 + $0x60] sm:$0xff]
        %v2223 = vld [vmem:[%s2209 + $0x68] sm:$0xff]
        %v2224 = vld [vmem:[%s2209 + $0x70] sm:$0xff]
        %v2225 = vld [vmem:[%s2209 + $0x78] sm:$0xff]
        %v2242 = vunpack.c.l.b16 %v2210
        %v2243 = vunpack.c.h.b16 %v2210
        %v2244 = vunpack.c.l.b16 %v2211
        %v2245 = vunpack.c.h.b16 %v2211
        %v2246 = vunpack.c.l.b16 %v2212
        %v2247 = vunpack.c.h.b16 %v2212
        %v2248 = vunpack.c.l.b16 %v2213
        %v2249 = vunpack.c.h.b16 %v2213
        %v2250 = vunpack.c.l.b16 %v2214
        %v2251 = vunpack.c.h.b16 %v2214
        %v2252 = vunpack.c.l.b16 %v2215
        %v2253 = vunpack.c.h.b16 %v2215
        %v2254 = vunpack.c.l.b16 %v2216
        %v2255 = vunpack.c.h.b16 %v2216
        %v2256 = vunpack.c.l.b16 %v2217
        %v2257 = vunpack.c.h.b16 %v2217
        %v2258 = vunpack.c.l.b16 %v2218
        %v2259 = vunpack.c.h.b16 %v2218
        %v2260 = vunpack.c.l.b16 %v2219
        %v2261 = vunpack.c.h.b16 %v2219
        %v2262 = vunpack.c.l.b16 %v2220
        %v2263 = vunpack.c.h.b16 %v2220
        %v2264 = vunpack.c.l.b16 %v2221
        %v2265 = vunpack.c.h.b16 %v2221
        %v2266 = vunpack.c.l.b16 %v2222
        %v2267 = vunpack.c.h.b16 %v2222
        %v2268 = vunpack.c.l.b16 %v2223
        %v2269 = vunpack.c.h.b16 %v2223
        %v2270 = vunpack.c.l.b16 %v2224
        %v2271 = vunpack.c.h.b16 %v2224
        %v2272 = vunpack.c.l.b16 %v2225
        %v2273 = vunpack.c.h.b16 %v2225
        %v2274 = vpack.c.b16 %v2244, %v2242
        %v2275 = vpack.c.b16 %v2245, %v2243
        %v2276 = vpack.c.b16 %v2248, %v2246
        %v2277 = vpack.c.b16 %v2249, %v2247
        %v2278 = vpack.c.b16 %v2252, %v2250
        %v2279 = vpack.c.b16 %v2253, %v2251
        %v2280 = vpack.c.b16 %v2256, %v2254
        %v2281 = vpack.c.b16 %v2257, %v2255
        %v2282 = vpack.c.b16 %v2260, %v2258
        %v2283 = vpack.c.b16 %v2261, %v2259
        %v2284 = vpack.c.b16 %v2264, %v2262
        %v2285 = vpack.c.b16 %v2265, %v2263
        %v2286 = vpack.c.b16 %v2268, %v2266
        %v2287 = vpack.c.b16 %v2269, %v2267
        %v2288 = vpack.c.b16 %v2272, %v2270
        %v2289 = vpack.c.b16 %v2273, %v2271
        %2306 = vmatpush.bf16.msra.mxu0 %v728
        %2307 = vmatpush.bf16.msra.mxu0 %v726
        %2308 = vmatpush.bf16.msra.mxu0 %v724
        %2309 = vmatpush.bf16.msra.mxu0 %v722
        %2310 = vmatpush.bf16.msra.mxu0 %v720
        %2311 = vmatpush.bf16.msra.mxu0 %v718
        %2312 = vmatpush.bf16.msra.mxu0 %v716
        %2313 = vmatpush.bf16.msra.mxu0 %v714
        %2314 = vmatmul.bf16.gmra.mxu0 %v2274
        %v2315 = vpop.f32.mrf.mxu0
        %v2316 = vadd.f32 0.0, %v2315
        %v2317 = vpop.f32.mrf.mxu0
        %v2318 = vadd.f32 0.0, %v2317
        %2319 = vmatmul.bf16.gmra.mxu0 %v2276
        %v2320 = vpop.f32.mrf.mxu0
        %v2321 = vadd.f32 0.0, %v2320
        %v2322 = vpop.f32.mrf.mxu0
        %v2323 = vadd.f32 0.0, %v2322
        %2324 = vmatmul.bf16.gmra.mxu0 %v2278
        %v2325 = vpop.f32.mrf.mxu0
        %v2326 = vadd.f32 0.0, %v2325
        %v2327 = vpop.f32.mrf.mxu0
        %v2328 = vadd.f32 0.0, %v2327
        %2329 = vmatmul.bf16.gmra.mxu0 %v2280
        %v2330 = vpop.f32.mrf.mxu0
        %v2331 = vadd.f32 0.0, %v2330
        %v2332 = vpop.f32.mrf.mxu0
        %v2333 = vadd.f32 0.0, %v2332
        %2334 = vmatmul.bf16.gmra.mxu0 %v2282
        %v2335 = vpop.f32.mrf.mxu0
        %v2336 = vadd.f32 0.0, %v2335
        %v2337 = vpop.f32.mrf.mxu0
        %v2338 = vadd.f32 0.0, %v2337
        %2339 = vmatmul.bf16.gmra.mxu0 %v2284
        %v2340 = vpop.f32.mrf.mxu0
        %v2341 = vadd.f32 0.0, %v2340
        %v2342 = vpop.f32.mrf.mxu0
        %v2343 = vadd.f32 0.0, %v2342
        %2344 = vmatmul.bf16.gmra.mxu0 %v2286
        %v2345 = vpop.f32.mrf.mxu0
        %v2346 = vadd.f32 0.0, %v2345
        %v2347 = vpop.f32.mrf.mxu0
        %v2348 = vadd.f32 0.0, %v2347
        %2349 = vmatmul.bf16.gmra.mxu0 %v2288
        %v2350 = vpop.f32.mrf.mxu0
        %v2351 = vadd.f32 0.0, %v2350
        %v2352 = vpop.f32.mrf.mxu0
        %v2353 = vadd.f32 0.0, %v2352
        %2354 = vdwg.mxu0
        %2355 = vmatpush.bf16.msra.mxu0 %v808
        %2356 = vmatpush.bf16.msra.mxu0 %v806
        %2357 = vmatpush.bf16.msra.mxu0 %v804
        %2358 = vmatpush.bf16.msra.mxu0 %v802
        %2359 = vmatpush.bf16.msra.mxu0 %v800
        %2360 = vmatpush.bf16.msra.mxu0 %v798
        %2361 = vmatpush.bf16.msra.mxu0 %v796
        %2362 = vmatpush.bf16.msra.mxu0 %v794
        %2363 = vmatmul.bf16.gmra.mxu0 %v2275
        %v2364 = vpop.f32.mrf.mxu0
        %v2365 = vadd.f32 %v2316, %v2364
        %v2366 = vpop.f32.mrf.mxu0
        %v2367 = vadd.f32 %v2318, %v2366
        %2368 = vmatmul.bf16.gmra.mxu0 %v2277
        %v2369 = vpop.f32.mrf.mxu0
        %v2370 = vadd.f32 %v2321, %v2369
        %v2371 = vpop.f32.mrf.mxu0
        %v2372 = vadd.f32 %v2323, %v2371
        %2373 = vmatmul.bf16.gmra.mxu0 %v2279
        %v2374 = vpop.f32.mrf.mxu0
        %v2375 = vadd.f32 %v2326, %v2374
        %v2376 = vpop.f32.mrf.mxu0
        %v2377 = vadd.f32 %v2328, %v2376
        %2378 = vmatmul.bf16.gmra.mxu0 %v2281
        %v2379 = vpop.f32.mrf.mxu0
        %v2380 = vadd.f32 %v2331, %v2379
        %v2381 = vpop.f32.mrf.mxu0
        %v2382 = vadd.f32 %v2333, %v2381
        %2383 = vmatmul.bf16.gmra.mxu0 %v2283
        %v2384 = vpop.f32.mrf.mxu0
        %v2385 = vadd.f32 %v2336, %v2384
        %v2386 = vpop.f32.mrf.mxu0
        %v2387 = vadd.f32 %v2338, %v2386
        %2388 = vmatmul.bf16.gmra.mxu0 %v2285
        %v2389 = vpop.f32.mrf.mxu0
        %v2390 = vadd.f32 %v2341, %v2389
        %v2391 = vpop.f32.mrf.mxu0
        %v2392 = vadd.f32 %v2343, %v2391
        %2393 = vmatmul.bf16.gmra.mxu0 %v2287
        %v2394 = vpop.f32.mrf.mxu0
        %v2395 = vadd.f32 %v2346, %v2394
        %v2396 = vpop.f32.mrf.mxu0
        %v2397 = vadd.f32 %v2348, %v2396
        %2398 = vmatmul.bf16.gmra.mxu0 %v2289
        %v2399 = vpop.f32.mrf.mxu0
        %v2400 = vadd.f32 %v2351, %v2399
        %v2401 = vpop.f32.mrf.mxu0
        %v2402 = vadd.f32 %v2353, %v2401
        %2403 = vdwg.mxu0
        %2404 = vmatpush.bf16.msra.mxu0 %v729
        %2405 = vmatpush.bf16.msra.mxu0 %v727
        %2406 = vmatpush.bf16.msra.mxu0 %v725
        %2407 = vmatpush.bf16.msra.mxu0 %v723
        %2408 = vmatpush.bf16.msra.mxu0 %v721
        %2409 = vmatpush.bf16.msra.mxu0 %v719
        %2410 = vmatpush.bf16.msra.mxu0 %v717
        %2411 = vmatpush.bf16.msra.mxu0 %v715
        %2412 = vmatmul.bf16.gmra.mxu0 %v2274
        %v2413 = vpop.f32.mrf.mxu0
        %v2414 = vadd.f32 0.0, %v2413
        %v2415 = vpop.f32.mrf.mxu0
        %v2416 = vadd.f32 0.0, %v2415
        %2417 = vmatmul.bf16.gmra.mxu0 %v2276
        %v2418 = vpop.f32.mrf.mxu0
        %v2419 = vadd.f32 0.0, %v2418
        %v2420 = vpop.f32.mrf.mxu0
        %v2421 = vadd.f32 0.0, %v2420
        %2422 = vmatmul.bf16.gmra.mxu0 %v2278
        %v2423 = vpop.f32.mrf.mxu0
        %v2424 = vadd.f32 0.0, %v2423
        %v2425 = vpop.f32.mrf.mxu0
        %v2426 = vadd.f32 0.0, %v2425
        %2427 = vmatmul.bf16.gmra.mxu0 %v2280
        %v2428 = vpop.f32.mrf.mxu0
        %v2429 = vadd.f32 0.0, %v2428
        %v2430 = vpop.f32.mrf.mxu0
        %v2431 = vadd.f32 0.0, %v2430
        %2432 = vmatmul.bf16.gmra.mxu0 %v2282
        %v2433 = vpop.f32.mrf.mxu0
        %v2434 = vadd.f32 0.0, %v2433
        %v2435 = vpop.f32.mrf.mxu0
        %v2436 = vadd.f32 0.0, %v2435
        %2437 = vmatmul.bf16.gmra.mxu0 %v2284
        %v2438 = vpop.f32.mrf.mxu0
        %v2439 = vadd.f32 0.0, %v2438
        %v2440 = vpop.f32.mrf.mxu0
        %v2441 = vadd.f32 0.0, %v2440
        %2442 = vmatmul.bf16.gmra.mxu0 %v2286
        %v2443 = vpop.f32.mrf.mxu0
        %v2444 = vadd.f32 0.0, %v2443
        %v2445 = vpop.f32.mrf.mxu0
        %v2446 = vadd.f32 0.0, %v2445
        %2447 = vmatmul.bf16.gmra.mxu0 %v2288
        %v2448 = vpop.f32.mrf.mxu0
        %v2449 = vadd.f32 0.0, %v2448
        %v2450 = vpop.f32.mrf.mxu0
        %v2451 = vadd.f32 0.0, %v2450
        %2452 = vdwg.mxu0
        %2453 = vmatpush.bf16.msra.mxu0 %v809
        %2454 = vmatpush.bf16.msra.mxu0 %v807
        %2455 = vmatpush.bf16.msra.mxu0 %v805
        %2456 = vmatpush.bf16.msra.mxu0 %v803
        %2457 = vmatpush.bf16.msra.mxu0 %v801
        %2458 = vmatpush.bf16.msra.mxu0 %v799
        %2459 = vmatpush.bf16.msra.mxu0 %v797
        %2460 = vmatpush.bf16.msra.mxu0 %v795
        %2461 = vmatmul.bf16.gmra.mxu0 %v2275
        %v2462 = vpop.f32.mrf.mxu0
        %v2463 = vadd.f32 %v2414, %v2462
        %v2464 = vpop.f32.mrf.mxu0
        %v2465 = vadd.f32 %v2416, %v2464
        %2466 = vmatmul.bf16.gmra.mxu0 %v2277
        %v2467 = vpop.f32.mrf.mxu0
        %v2468 = vadd.f32 %v2419, %v2467
        %v2469 = vpop.f32.mrf.mxu0
        %v2470 = vadd.f32 %v2421, %v2469
        %2471 = vmatmul.bf16.gmra.mxu0 %v2279
        %v2472 = vpop.f32.mrf.mxu0
        %v2473 = vadd.f32 %v2424, %v2472
        %v2474 = vpop.f32.mrf.mxu0
        %v2475 = vadd.f32 %v2426, %v2474
        %2476 = vmatmul.bf16.gmra.mxu0 %v2281
        %v2477 = vpop.f32.mrf.mxu0
        %v2478 = vadd.f32 %v2429, %v2477
        %v2479 = vpop.f32.mrf.mxu0
        %v2480 = vadd.f32 %v2431, %v2479
        %2481 = vmatmul.bf16.gmra.mxu0 %v2283
        %v2482 = vpop.f32.mrf.mxu0
        %v2483 = vadd.f32 %v2434, %v2482
        %v2484 = vpop.f32.mrf.mxu0
        %v2485 = vadd.f32 %v2436, %v2484
        %2486 = vmatmul.bf16.gmra.mxu0 %v2285
        %v2487 = vpop.f32.mrf.mxu0
        %v2488 = vadd.f32 %v2439, %v2487
        %v2489 = vpop.f32.mrf.mxu0
        %v2490 = vadd.f32 %v2441, %v2489
        %2491 = vmatmul.bf16.gmra.mxu0 %v2287
        %v2492 = vpop.f32.mrf.mxu0
        %v2493 = vadd.f32 %v2444, %v2492
        %v2494 = vpop.f32.mrf.mxu0
        %v2495 = vadd.f32 %v2446, %v2494
        %2496 = vmatmul.bf16.gmra.mxu0 %v2289
        %v2497 = vpop.f32.mrf.mxu0
        %v2498 = vadd.f32 %v2449, %v2497
        %v2499 = vpop.f32.mrf.mxu0
        %v2500 = vadd.f32 %v2451, %v2499
        %2501 = vdwg.mxu0
        %2502 = vrot.lane.b32.xlu0 %v2365, 1
        %v2503 = vpop.permute.xlu0 %2502
        %2504 = vrot.lane.b32.xlu0 %v2367, 1
        %v2505 = vpop.permute.xlu0 %2504
        %2506 = vrot.lane.b32.xlu0 %v2370, 1
        %v2507 = vpop.permute.xlu0 %2506
        %2508 = vrot.lane.b32.xlu0 %v2372, 1
        %v2509 = vpop.permute.xlu0 %2508
        %2510 = vrot.lane.b32.xlu0 %v2375, 1
        %v2511 = vpop.permute.xlu0 %2510
        %2512 = vrot.lane.b32.xlu0 %v2377, 1
        %v2513 = vpop.permute.xlu0 %2512
        %2514 = vrot.lane.b32.xlu0 %v2380, 1
        %v2515 = vpop.permute.xlu0 %2514
        %2516 = vrot.lane.b32.xlu0 %v2382, 1
        %v2517 = vpop.permute.xlu0 %2516
        %2518 = vrot.lane.b32.xlu0 %v2385, 1
        %v2519 = vpop.permute.xlu0 %2518
        %2520 = vrot.lane.b32.xlu0 %v2387, 1
        %v2521 = vpop.permute.xlu0 %2520
        %2522 = vrot.lane.b32.xlu0 %v2390, 1
        %v2523 = vpop.permute.xlu0 %2522
        %2524 = vrot.lane.b32.xlu0 %v2392, 1
        %v2525 = vpop.permute.xlu0 %2524
        %2526 = vrot.lane.b32.xlu0 %v2395, 1
        %v2527 = vpop.permute.xlu0 %2526
        %2528 = vrot.lane.b32.xlu0 %v2397, 1
        %v2529 = vpop.permute.xlu0 %2528
        %2530 = vrot.lane.b32.xlu0 %v2400, 1
        %v2531 = vpop.permute.xlu0 %2530
        %2532 = vrot.lane.b32.xlu0 %v2402, 1
        %v2533 = vpop.permute.xlu0 %2532
        %2534 = vrot.lane.b32.xlu0 %v2463, 1
        %v2535 = vpop.permute.xlu0 %2534
        %2536 = vrot.lane.b32.xlu0 %v2465, 1
        %v2537 = vpop.permute.xlu0 %2536
        %2538 = vrot.lane.b32.xlu0 %v2468, 1
        %v2539 = vpop.permute.xlu0 %2538
        %2540 = vrot.lane.b32.xlu0 %v2470, 1
        %v2541 = vpop.permute.xlu0 %2540
        %2542 = vrot.lane.b32.xlu0 %v2473, 1
        %v2543 = vpop.permute.xlu0 %2542
        %2544 = vrot.lane.b32.xlu0 %v2475, 1
        %v2545 = vpop.permute.xlu0 %2544
        %2546 = vrot.lane.b32.xlu0 %v2478, 1
        %v2547 = vpop.permute.xlu0 %2546
        %2548 = vrot.lane.b32.xlu0 %v2480, 1
        %v2549 = vpop.permute.xlu0 %2548
        %2550 = vrot.lane.b32.xlu0 %v2483, 1
        %v2551 = vpop.permute.xlu0 %2550
        %2552 = vrot.lane.b32.xlu0 %v2485, 1
        %v2553 = vpop.permute.xlu0 %2552
        %2554 = vrot.lane.b32.xlu0 %v2488, 1
        %v2555 = vpop.permute.xlu0 %2554
        %2556 = vrot.lane.b32.xlu0 %v2490, 1
        %v2557 = vpop.permute.xlu0 %2556
        %2558 = vrot.lane.b32.xlu0 %v2493, 1
        %v2559 = vpop.permute.xlu0 %2558
        %2560 = vrot.lane.b32.xlu0 %v2495, 1
        %v2561 = vpop.permute.xlu0 %2560
        %2562 = vrot.lane.b32.xlu0 %v2498, 1
        %v2563 = vpop.permute.xlu0 %2562
        %2564 = vrot.lane.b32.xlu0 %v2500, 1
        %v2565 = vpop.permute.xlu0 %2564
        %vm2566 = vcmp.lt.s32.totalorder %v1183, 1
        %v2567 = vsel %vm2566, %v2503, %v2535
        %v2568 = vsel %vm2566, %v2505, %v2537
        %v2569 = vsel %vm2566, %v2507, %v2539
        %v2570 = vsel %vm2566, %v2509, %v2541
        %v2571 = vsel %vm2566, %v2511, %v2543
        %v2572 = vsel %vm2566, %v2513, %v2545
        %v2573 = vsel %vm2566, %v2515, %v2547
        %v2574 = vsel %vm2566, %v2517, %v2549
        %v2575 = vsel %vm2566, %v2519, %v2551
        %v2576 = vsel %vm2566, %v2521, %v2553
        %v2577 = vsel %vm2566, %v2523, %v2555
        %v2578 = vsel %vm2566, %v2525, %v2557
        %v2579 = vsel %vm2566, %v2527, %v2559
        %v2580 = vsel %vm2566, %v2529, %v2561
        %v2581 = vsel %vm2566, %v2531, %v2563
        %v2582 = vsel %vm2566, %v2533, %v2565
        %v2583 = vsel %vm2566, %v2535, %v2503
        %v2584 = vsel %vm2566, %v2537, %v2505
        %v2585 = vsel %vm2566, %v2539, %v2507
        %v2586 = vsel %vm2566, %v2541, %v2509
        %v2587 = vsel %vm2566, %v2543, %v2511
        %v2588 = vsel %vm2566, %v2545, %v2513
        %v2589 = vsel %vm2566, %v2547, %v2515
        %v2590 = vsel %vm2566, %v2549, %v2517
        %v2591 = vsel %vm2566, %v2551, %v2519
        %v2592 = vsel %vm2566, %v2553, %v2521
        %v2593 = vsel %vm2566, %v2555, %v2523
        %v2594 = vsel %vm2566, %v2557, %v2525
        %v2595 = vsel %vm2566, %v2559, %v2527
        %v2596 = vsel %vm2566, %v2561, %v2529
        %v2597 = vsel %vm2566, %v2563, %v2531
        %v2598 = vsel %vm2566, %v2565, %v2533
        %s2599 = scalar_lea.vmem [#allocation5], 6
        %v2600 = vld [vmem:[%s2599] sm:$0x3]
        %v2602 = vperm.slane %v2600, 0
        %v2603 = vperm.slane %v2600, 1
        %v2606 = vmul.f32 %v2583, %v2602
        %v2607 = vmul.f32 %v2567, %v2603
        %v2608 = vmul.f32 %v2584, %v2602
        %v2609 = vmul.f32 %v2568, %v2603
        %v2610 = vmul.f32 %v2585, %v2602
        %v2611 = vmul.f32 %v2569, %v2603
        %v2612 = vmul.f32 %v2586, %v2602
        %v2613 = vmul.f32 %v2570, %v2603
        %v2614 = vmul.f32 %v2587, %v2602
        %v2615 = vmul.f32 %v2571, %v2603
        %v2616 = vmul.f32 %v2588, %v2602
        %v2617 = vmul.f32 %v2572, %v2603
        %v2618 = vmul.f32 %v2589, %v2602
        %v2619 = vmul.f32 %v2573, %v2603
        %v2620 = vmul.f32 %v2590, %v2602
        %v2621 = vmul.f32 %v2574, %v2603
        %v2622 = vmul.f32 %v2591, %v2602
        %v2623 = vmul.f32 %v2575, %v2603
        %v2624 = vmul.f32 %v2592, %v2602
        %v2625 = vmul.f32 %v2576, %v2603
        %v2626 = vmul.f32 %v2593, %v2602
        %v2627 = vmul.f32 %v2577, %v2603
        %v2628 = vmul.f32 %v2594, %v2602
        %v2629 = vmul.f32 %v2578, %v2603
        %v2630 = vmul.f32 %v2595, %v2602
        %v2631 = vmul.f32 %v2579, %v2603
        %v2632 = vmul.f32 %v2596, %v2602
        %v2633 = vmul.f32 %v2580, %v2603
        %v2634 = vmul.f32 %v2597, %v2602
        %v2635 = vmul.f32 %v2581, %v2603
        %v2636 = vmul.f32 %v2598, %v2602
        %v2637 = vmul.f32 %v2582, %v2603
        %v2638 = vadd.f32 %v2177, %v2606
        %v2639 = vadd.f32 %v2178, %v2607
        %v2640 = vadd.f32 %v2179, %v2608
        %v2641 = vadd.f32 %v2180, %v2609
        %v2642 = vadd.f32 %v2181, %v2610
        %v2643 = vadd.f32 %v2182, %v2611
        %v2644 = vadd.f32 %v2183, %v2612
        %v2645 = vadd.f32 %v2184, %v2613
        %v2646 = vadd.f32 %v2185, %v2614
        %v2647 = vadd.f32 %v2186, %v2615
        %v2648 = vadd.f32 %v2187, %v2616
        %v2649 = vadd.f32 %v2188, %v2617
        %v2650 = vadd.f32 %v2189, %v2618
        %v2651 = vadd.f32 %v2190, %v2619
        %v2652 = vadd.f32 %v2191, %v2620
        %v2653 = vadd.f32 %v2192, %v2621
        %v2654 = vadd.f32 %v2193, %v2622
        %v2655 = vadd.f32 %v2194, %v2623
        %v2656 = vadd.f32 %v2195, %v2624
        %v2657 = vadd.f32 %v2196, %v2625
        %v2658 = vadd.f32 %v2197, %v2626
        %v2659 = vadd.f32 %v2198, %v2627
        %v2660 = vadd.f32 %v2199, %v2628
        %v2661 = vadd.f32 %v2200, %v2629
        %v2662 = vadd.f32 %v2201, %v2630
        %v2663 = vadd.f32 %v2202, %v2631
        %v2664 = vadd.f32 %v2203, %v2632
        %v2665 = vadd.f32 %v2204, %v2633
        %v2666 = vadd.f32 %v2205, %v2634
        %v2667 = vadd.f32 %v2206, %v2635
        %v2668 = vadd.f32 %v2207, %v2636
        %v2669 = vadd.f32 %v2208, %v2637
        %s2670 = scalar_lea.vmem [#allocation7], 512
        %v2671 = vld [vmem:[%s2670] sm:$0xff]
        %v2672 = vld [vmem:[%s2670 + $0x8] sm:$0xff]
        %v2673 = vld [vmem:[%s2670 + $0x10] sm:$0xff]
        %v2674 = vld [vmem:[%s2670 + $0x18] sm:$0xff]
        %v2675 = vld [vmem:[%s2670 + $0x20] sm:$0xff]
        %v2676 = vld [vmem:[%s2670 + $0x28] sm:$0xff]
        %v2677 = vld [vmem:[%s2670 + $0x30] sm:$0xff]
        %v2678 = vld [vmem:[%s2670 + $0x38] sm:$0xff]
        %v2679 = vld [vmem:[%s2670 + $0x40] sm:$0xff]
        %v2680 = vld [vmem:[%s2670 + $0x48] sm:$0xff]
        %v2681 = vld [vmem:[%s2670 + $0x50] sm:$0xff]
        %v2682 = vld [vmem:[%s2670 + $0x58] sm:$0xff]
        %v2683 = vld [vmem:[%s2670 + $0x60] sm:$0xff]
        %v2684 = vld [vmem:[%s2670 + $0x68] sm:$0xff]
        %v2685 = vld [vmem:[%s2670 + $0x70] sm:$0xff]
        %v2686 = vld [vmem:[%s2670 + $0x78] sm:$0xff]
        %v2703 = vunpack.c.l.b16 %v2671
        %v2704 = vunpack.c.h.b16 %v2671
        %v2705 = vunpack.c.l.b16 %v2672
        %v2706 = vunpack.c.h.b16 %v2672
        %v2707 = vunpack.c.l.b16 %v2673
        %v2708 = vunpack.c.h.b16 %v2673
        %v2709 = vunpack.c.l.b16 %v2674
        %v2710 = vunpack.c.h.b16 %v2674
        %v2711 = vunpack.c.l.b16 %v2675
        %v2712 = vunpack.c.h.b16 %v2675
        %v2713 = vunpack.c.l.b16 %v2676
        %v2714 = vunpack.c.h.b16 %v2676
        %v2715 = vunpack.c.l.b16 %v2677
        %v2716 = vunpack.c.h.b16 %v2677
        %v2717 = vunpack.c.l.b16 %v2678
        %v2718 = vunpack.c.h.b16 %v2678
        %v2719 = vunpack.c.l.b16 %v2679
        %v2720 = vunpack.c.h.b16 %v2679
        %v2721 = vunpack.c.l.b16 %v2680
        %v2722 = vunpack.c.h.b16 %v2680
        %v2723 = vunpack.c.l.b16 %v2681
        %v2724 = vunpack.c.h.b16 %v2681
        %v2725 = vunpack.c.l.b16 %v2682
        %v2726 = vunpack.c.h.b16 %v2682
        %v2727 = vunpack.c.l.b16 %v2683
        %v2728 = vunpack.c.h.b16 %v2683
        %v2729 = vunpack.c.l.b16 %v2684
        %v2730 = vunpack.c.h.b16 %v2684
        %v2731 = vunpack.c.l.b16 %v2685
        %v2732 = vunpack.c.h.b16 %v2685
        %v2733 = vunpack.c.l.b16 %v2686
        %v2734 = vunpack.c.h.b16 %v2686
        %v2735 = vpack.c.b16 %v2705, %v2703
        %v2736 = vpack.c.b16 %v2706, %v2704
        %v2737 = vpack.c.b16 %v2709, %v2707
        %v2738 = vpack.c.b16 %v2710, %v2708
        %v2739 = vpack.c.b16 %v2713, %v2711
        %v2740 = vpack.c.b16 %v2714, %v2712
        %v2741 = vpack.c.b16 %v2717, %v2715
        %v2742 = vpack.c.b16 %v2718, %v2716
        %v2743 = vpack.c.b16 %v2721, %v2719
        %v2744 = vpack.c.b16 %v2722, %v2720
        %v2745 = vpack.c.b16 %v2725, %v2723
        %v2746 = vpack.c.b16 %v2726, %v2724
        %v2747 = vpack.c.b16 %v2729, %v2727
        %v2748 = vpack.c.b16 %v2730, %v2728
        %v2749 = vpack.c.b16 %v2733, %v2731
        %v2750 = vpack.c.b16 %v2734, %v2732
        %2767 = vmatpush.bf16.msra.mxu0 %v728
        %2768 = vmatpush.bf16.msra.mxu0 %v726
        %2769 = vmatpush.bf16.msra.mxu0 %v724
        %2770 = vmatpush.bf16.msra.mxu0 %v722
        %2771 = vmatpush.bf16.msra.mxu0 %v720
        %2772 = vmatpush.bf16.msra.mxu0 %v718
        %2773 = vmatpush.bf16.msra.mxu0 %v716
        %2774 = vmatpush.bf16.msra.mxu0 %v714
        %2775 = vmatmul.bf16.gmra.mxu0 %v2735
        %v2776 = vpop.f32.mrf.mxu0
        %v2777 = vadd.f32 0.0, %v2776
        %v2778 = vpop.f32.mrf.mxu0
        %v2779 = vadd.f32 0.0, %v2778
        %2780 = vmatmul.bf16.gmra.mxu0 %v2737
        %v2781 = vpop.f32.mrf.mxu0
        %v2782 = vadd.f32 0.0, %v2781
        %v2783 = vpop.f32.mrf.mxu0
        %v2784 = vadd.f32 0.0, %v2783
        %2785 = vmatmul.bf16.gmra.mxu0 %v2739
        %v2786 = vpop.f32.mrf.mxu0
        %v2787 = vadd.f32 0.0, %v2786
        %v2788 = vpop.f32.mrf.mxu0
        %v2789 = vadd.f32 0.0, %v2788
        %2790 = vmatmul.bf16.gmra.mxu0 %v2741
        %v2791 = vpop.f32.mrf.mxu0
        %v2792 = vadd.f32 0.0, %v2791
        %v2793 = vpop.f32.mrf.mxu0
        %v2794 = vadd.f32 0.0, %v2793
        %2795 = vmatmul.bf16.gmra.mxu0 %v2743
        %v2796 = vpop.f32.mrf.mxu0
        %v2797 = vadd.f32 0.0, %v2796
        %v2798 = vpop.f32.mrf.mxu0
        %v2799 = vadd.f32 0.0, %v2798
        %2800 = vmatmul.bf16.gmra.mxu0 %v2745
        %v2801 = vpop.f32.mrf.mxu0
        %v2802 = vadd.f32 0.0, %v2801
        %v2803 = vpop.f32.mrf.mxu0
        %v2804 = vadd.f32 0.0, %v2803
        %2805 = vmatmul.bf16.gmra.mxu0 %v2747
        %v2806 = vpop.f32.mrf.mxu0
        %v2807 = vadd.f32 0.0, %v2806
        %v2808 = vpop.f32.mrf.mxu0
        %v2809 = vadd.f32 0.0, %v2808
        %2810 = vmatmul.bf16.gmra.mxu0 %v2749
        %v2811 = vpop.f32.mrf.mxu0
        %v2812 = vadd.f32 0.0, %v2811
        %v2813 = vpop.f32.mrf.mxu0
        %v2814 = vadd.f32 0.0, %v2813
        %2815 = vdwg.mxu0
        %2816 = vmatpush.bf16.msra.mxu0 %v808
        %2817 = vmatpush.bf16.msra.mxu0 %v806
        %2818 = vmatpush.bf16.msra.mxu0 %v804
        %2819 = vmatpush.bf16.msra.mxu0 %v802
        %2820 = vmatpush.bf16.msra.mxu0 %v800
        %2821 = vmatpush.bf16.msra.mxu0 %v798
        %2822 = vmatpush.bf16.msra.mxu0 %v796
        %2823 = vmatpush.bf16.msra.mxu0 %v794
        %2824 = vmatmul.bf16.gmra.mxu0 %v2736
        %v2825 = vpop.f32.mrf.mxu0
        %v2826 = vadd.f32 %v2777, %v2825
        %v2827 = vpop.f32.mrf.mxu0
        %v2828 = vadd.f32 %v2779, %v2827
        %2829 = vmatmul.bf16.gmra.mxu0 %v2738
        %v2830 = vpop.f32.mrf.mxu0
        %v2831 = vadd.f32 %v2782, %v2830
        %v2832 = vpop.f32.mrf.mxu0
        %v2833 = vadd.f32 %v2784, %v2832
        %2834 = vmatmul.bf16.gmra.mxu0 %v2740
        %v2835 = vpop.f32.mrf.mxu0
        %v2836 = vadd.f32 %v2787, %v2835
        %v2837 = vpop.f32.mrf.mxu0
        %v2838 = vadd.f32 %v2789, %v2837
        %2839 = vmatmul.bf16.gmra.mxu0 %v2742
        %v2840 = vpop.f32.mrf.mxu0
        %v2841 = vadd.f32 %v2792, %v2840
        %v2842 = vpop.f32.mrf.mxu0
        %v2843 = vadd.f32 %v2794, %v2842
        %2844 = vmatmul.bf16.gmra.mxu0 %v2744
        %v2845 = vpop.f32.mrf.mxu0
        %v2846 = vadd.f32 %v2797, %v2845
        %v2847 = vpop.f32.mrf.mxu0
        %v2848 = vadd.f32 %v2799, %v2847
        %2849 = vmatmul.bf16.gmra.mxu0 %v2746
        %v2850 = vpop.f32.mrf.mxu0
        %v2851 = vadd.f32 %v2802, %v2850
        %v2852 = vpop.f32.mrf.mxu0
        %v2853 = vadd.f32 %v2804, %v2852
        %2854 = vmatmul.bf16.gmra.mxu0 %v2748
        %v2855 = vpop.f32.mrf.mxu0
        %v2856 = vadd.f32 %v2807, %v2855
        %v2857 = vpop.f32.mrf.mxu0
        %v2858 = vadd.f32 %v2809, %v2857
        %2859 = vmatmul.bf16.gmra.mxu0 %v2750
        %v2860 = vpop.f32.mrf.mxu0
        %v2861 = vadd.f32 %v2812, %v2860
        %v2862 = vpop.f32.mrf.mxu0
        %v2863 = vadd.f32 %v2814, %v2862
        %2864 = vdwg.mxu0
        %2865 = vmatpush.bf16.msra.mxu0 %v729
        %2866 = vmatpush.bf16.msra.mxu0 %v727
        %2867 = vmatpush.bf16.msra.mxu0 %v725
        %2868 = vmatpush.bf16.msra.mxu0 %v723
        %2869 = vmatpush.bf16.msra.mxu0 %v721
        %2870 = vmatpush.bf16.msra.mxu0 %v719
        %2871 = vmatpush.bf16.msra.mxu0 %v717
        %2872 = vmatpush.bf16.msra.mxu0 %v715
        %2873 = vmatmul.bf16.gmra.mxu0 %v2735
        %v2874 = vpop.f32.mrf.mxu0
        %v2875 = vadd.f32 0.0, %v2874
        %v2876 = vpop.f32.mrf.mxu0
        %v2877 = vadd.f32 0.0, %v2876
        %2878 = vmatmul.bf16.gmra.mxu0 %v2737
        %v2879 = vpop.f32.mrf.mxu0
        %v2880 = vadd.f32 0.0, %v2879
        %v2881 = vpop.f32.mrf.mxu0
        %v2882 = vadd.f32 0.0, %v2881
        %2883 = vmatmul.bf16.gmra.mxu0 %v2739
        %v2884 = vpop.f32.mrf.mxu0
        %v2885 = vadd.f32 0.0, %v2884
        %v2886 = vpop.f32.mrf.mxu0
        %v2887 = vadd.f32 0.0, %v2886
        %2888 = vmatmul.bf16.gmra.mxu0 %v2741
        %v2889 = vpop.f32.mrf.mxu0
        %v2890 = vadd.f32 0.0, %v2889
        %v2891 = vpop.f32.mrf.mxu0
        %v2892 = vadd.f32 0.0, %v2891
        %2893 = vmatmul.bf16.gmra.mxu0 %v2743
        %v2894 = vpop.f32.mrf.mxu0
        %v2895 = vadd.f32 0.0, %v2894
        %v2896 = vpop.f32.mrf.mxu0
        %v2897 = vadd.f32 0.0, %v2896
        %2898 = vmatmul.bf16.gmra.mxu0 %v2745
        %v2899 = vpop.f32.mrf.mxu0
        %v2900 = vadd.f32 0.0, %v2899
        %v2901 = vpop.f32.mrf.mxu0
        %v2902 = vadd.f32 0.0, %v2901
        %2903 = vmatmul.bf16.gmra.mxu0 %v2747
        %v2904 = vpop.f32.mrf.mxu0
        %v2905 = vadd.f32 0.0, %v2904
        %v2906 = vpop.f32.mrf.mxu0
        %v2907 = vadd.f32 0.0, %v2906
        %2908 = vmatmul.bf16.gmra.mxu0 %v2749
        %v2909 = vpop.f32.mrf.mxu0
        %v2910 = vadd.f32 0.0, %v2909
        %v2911 = vpop.f32.mrf.mxu0
        %v2912 = vadd.f32 0.0, %v2911
        %2913 = vdwg.mxu0
        %2914 = vmatpush.bf16.msra.mxu0 %v809
        %2915 = vmatpush.bf16.msra.mxu0 %v807
        %2916 = vmatpush.bf16.msra.mxu0 %v805
        %2917 = vmatpush.bf16.msra.mxu0 %v803
        %2918 = vmatpush.bf16.msra.mxu0 %v801
        %2919 = vmatpush.bf16.msra.mxu0 %v799
        %2920 = vmatpush.bf16.msra.mxu0 %v797
        %2921 = vmatpush.bf16.msra.mxu0 %v795
        %2922 = vmatmul.bf16.gmra.mxu0 %v2736
        %v2923 = vpop.f32.mrf.mxu0
        %v2924 = vadd.f32 %v2875, %v2923
        %v2925 = vpop.f32.mrf.mxu0
        %v2926 = vadd.f32 %v2877, %v2925
        %2927 = vmatmul.bf16.gmra.mxu0 %v2738
        %v2928 = vpop.f32.mrf.mxu0
        %v2929 = vadd.f32 %v2880, %v2928
        %v2930 = vpop.f32.mrf.mxu0
        %v2931 = vadd.f32 %v2882, %v2930
        %2932 = vmatmul.bf16.gmra.mxu0 %v2740
        %v2933 = vpop.f32.mrf.mxu0
        %v2934 = vadd.f32 %v2885, %v2933
        %v2935 = vpop.f32.mrf.mxu0
        %v2936 = vadd.f32 %v2887, %v2935
        %2937 = vmatmul.bf16.gmra.mxu0 %v2742
        %v2938 = vpop.f32.mrf.mxu0
        %v2939 = vadd.f32 %v2890, %v2938
        %v2940 = vpop.f32.mrf.mxu0
        %v2941 = vadd.f32 %v2892, %v2940
        %2942 = vmatmul.bf16.gmra.mxu0 %v2744
        %v2943 = vpop.f32.mrf.mxu0
        %v2944 = vadd.f32 %v2895, %v2943
        %v2945 = vpop.f32.mrf.mxu0
        %v2946 = vadd.f32 %v2897, %v2945
        %2947 = vmatmul.bf16.gmra.mxu0 %v2746
        %v2948 = vpop.f32.mrf.mxu0
        %v2949 = vadd.f32 %v2900, %v2948
        %v2950 = vpop.f32.mrf.mxu0
        %v2951 = vadd.f32 %v2902, %v2950
        %2952 = vmatmul.bf16.gmra.mxu0 %v2748
        %v2953 = vpop.f32.mrf.mxu0
        %v2954 = vadd.f32 %v2905, %v2953
        %v2955 = vpop.f32.mrf.mxu0
        %v2956 = vadd.f32 %v2907, %v2955
        %2957 = vmatmul.bf16.gmra.mxu0 %v2750
        %v2958 = vpop.f32.mrf.mxu0
        %v2959 = vadd.f32 %v2910, %v2958
        %v2960 = vpop.f32.mrf.mxu0
        %v2961 = vadd.f32 %v2912, %v2960
        %2962 = vdwg.mxu0
        %v2963 = vadd.f32 %v2638, %v2826
        %v2964 = vadd.f32 %v2639, %v2924
        %v2965 = vadd.f32 %v2640, %v2828
        %v2966 = vadd.f32 %v2641, %v2926
        %v2967 = vadd.f32 %v2642, %v2831
        %v2968 = vadd.f32 %v2643, %v2929
        %v2969 = vadd.f32 %v2644, %v2833
        %v2970 = vadd.f32 %v2645, %v2931
        %v2971 = vadd.f32 %v2646, %v2836
        %v2972 = vadd.f32 %v2647, %v2934
        %v2973 = vadd.f32 %v2648, %v2838
        %v2974 = vadd.f32 %v2649, %v2936
        %v2975 = vadd.f32 %v2650, %v2841
        %v2976 = vadd.f32 %v2651, %v2939
        %v2977 = vadd.f32 %v2652, %v2843
        %v2978 = vadd.f32 %v2653, %v2941
        %v2979 = vadd.f32 %v2654, %v2846
        %v2980 = vadd.f32 %v2655, %v2944
        %v2981 = vadd.f32 %v2656, %v2848
        %v2982 = vadd.f32 %v2657, %v2946
        %v2983 = vadd.f32 %v2658, %v2851
        %v2984 = vadd.f32 %v2659, %v2949
        %v2985 = vadd.f32 %v2660, %v2853
        %v2986 = vadd.f32 %v2661, %v2951
        %v2987 = vadd.f32 %v2662, %v2856
        %v2988 = vadd.f32 %v2663, %v2954
        %v2989 = vadd.f32 %v2664, %v2858
        %v2990 = vadd.f32 %v2665, %v2956
        %v2991 = vadd.f32 %v2666, %v2861
        %v2992 = vadd.f32 %v2667, %v2959
        %v2993 = vadd.f32 %v2668, %v2863
        %v2994 = vadd.f32 %v2669, %v2961
        %s2995 = scalar_lea.vmem [#allocation7], 640
        %v2996 = vld [vmem:[%s2995] sm:$0xff]
        %v2997 = vld [vmem:[%s2995 + $0x8] sm:$0xff]
        %v2998 = vld [vmem:[%s2995 + $0x10] sm:$0xff]
        %v2999 = vld [vmem:[%s2995 + $0x18] sm:$0xff]
        %v3000 = vld [vmem:[%s2995 + $0x20] sm:$0xff]
        %v3001 = vld [vmem:[%s2995 + $0x28] sm:$0xff]
        %v3002 = vld [vmem:[%s2995 + $0x30] sm:$0xff]
        %v3003 = vld [vmem:[%s2995 + $0x38] sm:$0xff]
        %v3004 = vld [vmem:[%s2995 + $0x40] sm:$0xff]
        %v3005 = vld [vmem:[%s2995 + $0x48] sm:$0xff]
        %v3006 = vld [vmem:[%s2995 + $0x50] sm:$0xff]
        %v3007 = vld [vmem:[%s2995 + $0x58] sm:$0xff]
        %v3008 = vld [vmem:[%s2995 + $0x60] sm:$0xff]
        %v3009 = vld [vmem:[%s2995 + $0x68] sm:$0xff]
        %v3010 = vld [vmem:[%s2995 + $0x70] sm:$0xff]
        %v3011 = vld [vmem:[%s2995 + $0x78] sm:$0xff]
        %v3028 = vunpack.c.l.b16 %v2996
        %v3029 = vunpack.c.h.b16 %v2996
        %v3030 = vunpack.c.l.b16 %v2997
        %v3031 = vunpack.c.h.b16 %v2997
        %v3032 = vunpack.c.l.b16 %v2998
        %v3033 = vunpack.c.h.b16 %v2998
        %v3034 = vunpack.c.l.b16 %v2999
        %v3035 = vunpack.c.h.b16 %v2999
        %v3036 = vunpack.c.l.b16 %v3000
        %v3037 = vunpack.c.h.b16 %v3000
        %v3038 = vunpack.c.l.b16 %v3001
        %v3039 = vunpack.c.h.b16 %v3001
        %v3040 = vunpack.c.l.b16 %v3002
        %v3041 = vunpack.c.h.b16 %v3002
        %v3042 = vunpack.c.l.b16 %v3003
        %v3043 = vunpack.c.h.b16 %v3003
        %v3044 = vunpack.c.l.b16 %v3004
        %v3045 = vunpack.c.h.b16 %v3004
        %v3046 = vunpack.c.l.b16 %v3005
        %v3047 = vunpack.c.h.b16 %v3005
        %v3048 = vunpack.c.l.b16 %v3006
        %v3049 = vunpack.c.h.b16 %v3006
        %v3050 = vunpack.c.l.b16 %v3007
        %v3051 = vunpack.c.h.b16 %v3007
        %v3052 = vunpack.c.l.b16 %v3008
        %v3053 = vunpack.c.h.b16 %v3008
        %v3054 = vunpack.c.l.b16 %v3009
        %v3055 = vunpack.c.h.b16 %v3009
        %v3056 = vunpack.c.l.b16 %v3010
        %v3057 = vunpack.c.h.b16 %v3010
        %v3058 = vunpack.c.l.b16 %v3011
        %v3059 = vunpack.c.h.b16 %v3011
        %v3060 = vpack.c.b16 %v3030, %v3028
        %v3061 = vpack.c.b16 %v3031, %v3029
        %v3062 = vpack.c.b16 %v3034, %v3032
        %v3063 = vpack.c.b16 %v3035, %v3033
        %v3064 = vpack.c.b16 %v3038, %v3036
        %v3065 = vpack.c.b16 %v3039, %v3037
        %v3066 = vpack.c.b16 %v3042, %v3040
        %v3067 = vpack.c.b16 %v3043, %v3041
        %v3068 = vpack.c.b16 %v3046, %v3044
        %v3069 = vpack.c.b16 %v3047, %v3045
        %v3070 = vpack.c.b16 %v3050, %v3048
        %v3071 = vpack.c.b16 %v3051, %v3049
        %v3072 = vpack.c.b16 %v3054, %v3052
        %v3073 = vpack.c.b16 %v3055, %v3053
        %v3074 = vpack.c.b16 %v3058, %v3056
        %v3075 = vpack.c.b16 %v3059, %v3057
        %3092 = vmatpush.bf16.msra.mxu0 %v728
        %3093 = vmatpush.bf16.msra.mxu0 %v726
        %3094 = vmatpush.bf16.msra.mxu0 %v724
        %3095 = vmatpush.bf16.msra.mxu0 %v722
        %3096 = vmatpush.bf16.msra.mxu0 %v720
        %3097 = vmatpush.bf16.msra.mxu0 %v718
        %3098 = vmatpush.bf16.msra.mxu0 %v716
        %3099 = vmatpush.bf16.msra.mxu0 %v714
        %3100 = vmatmul.bf16.gmra.mxu0 %v3060
        %v3101 = vpop.f32.mrf.mxu0
        %v3102 = vadd.f32 0.0, %v3101
        %v3103 = vpop.f32.mrf.mxu0
        %v3104 = vadd.f32 0.0, %v3103
        %3105 = vmatmul.bf16.gmra.mxu0 %v3062
        %v3106 = vpop.f32.mrf.mxu0
        %v3107 = vadd.f32 0.0, %v3106
        %v3108 = vpop.f32.mrf.mxu0
        %v3109 = vadd.f32 0.0, %v3108
        %3110 = vmatmul.bf16.gmra.mxu0 %v3064
        %v3111 = vpop.f32.mrf.mxu0
        %v3112 = vadd.f32 0.0, %v3111
        %v3113 = vpop.f32.mrf.mxu0
        %v3114 = vadd.f32 0.0, %v3113
        %3115 = vmatmul.bf16.gmra.mxu0 %v3066
        %v3116 = vpop.f32.mrf.mxu0
        %v3117 = vadd.f32 0.0, %v3116
        %v3118 = vpop.f32.mrf.mxu0
        %v3119 = vadd.f32 0.0, %v3118
        %3120 = vmatmul.bf16.gmra.mxu0 %v3068
        %v3121 = vpop.f32.mrf.mxu0
        %v3122 = vadd.f32 0.0, %v3121
        %v3123 = vpop.f32.mrf.mxu0
        %v3124 = vadd.f32 0.0, %v3123
        %3125 = vmatmul.bf16.gmra.mxu0 %v3070
        %v3126 = vpop.f32.mrf.mxu0
        %v3127 = vadd.f32 0.0, %v3126
        %v3128 = vpop.f32.mrf.mxu0
        %v3129 = vadd.f32 0.0, %v3128
        %3130 = vmatmul.bf16.gmra.mxu0 %v3072
        %v3131 = vpop.f32.mrf.mxu0
        %v3132 = vadd.f32 0.0, %v3131
        %v3133 = vpop.f32.mrf.mxu0
        %v3134 = vadd.f32 0.0, %v3133
        %3135 = vmatmul.bf16.gmra.mxu0 %v3074
        %v3136 = vpop.f32.mrf.mxu0
        %v3137 = vadd.f32 0.0, %v3136
        %v3138 = vpop.f32.mrf.mxu0
        %v3139 = vadd.f32 0.0, %v3138
        %3140 = vdwg.mxu0
        %3141 = vmatpush.bf16.msra.mxu0 %v808
        %3142 = vmatpush.bf16.msra.mxu0 %v806
        %3143 = vmatpush.bf16.msra.mxu0 %v804
        %3144 = vmatpush.bf16.msra.mxu0 %v802
        %3145 = vmatpush.bf16.msra.mxu0 %v800
        %3146 = vmatpush.bf16.msra.mxu0 %v798
        %3147 = vmatpush.bf16.msra.mxu0 %v796
        %3148 = vmatpush.bf16.msra.mxu0 %v794
        %3149 = vmatmul.bf16.gmra.mxu0 %v3061
        %v3150 = vpop.f32.mrf.mxu0
        %v3151 = vadd.f32 %v3102, %v3150
        %v3152 = vpop.f32.mrf.mxu0
        %v3153 = vadd.f32 %v3104, %v3152
        %3154 = vmatmul.bf16.gmra.mxu0 %v3063
        %v3155 = vpop.f32.mrf.mxu0
        %v3156 = vadd.f32 %v3107, %v3155
        %v3157 = vpop.f32.mrf.mxu0
        %v3158 = vadd.f32 %v3109, %v3157
        %3159 = vmatmul.bf16.gmra.mxu0 %v3065
        %v3160 = vpop.f32.mrf.mxu0
        %v3161 = vadd.f32 %v3112, %v3160
        %v3162 = vpop.f32.mrf.mxu0
        %v3163 = vadd.f32 %v3114, %v3162
        %3164 = vmatmul.bf16.gmra.mxu0 %v3067
        %v3165 = vpop.f32.mrf.mxu0
        %v3166 = vadd.f32 %v3117, %v3165
        %v3167 = vpop.f32.mrf.mxu0
        %v3168 = vadd.f32 %v3119, %v3167
        %3169 = vmatmul.bf16.gmra.mxu0 %v3069
        %v3170 = vpop.f32.mrf.mxu0
        %v3171 = vadd.f32 %v3122, %v3170
        %v3172 = vpop.f32.mrf.mxu0
        %v3173 = vadd.f32 %v3124, %v3172
        %3174 = vmatmul.bf16.gmra.mxu0 %v3071
        %v3175 = vpop.f32.mrf.mxu0
        %v3176 = vadd.f32 %v3127, %v3175
        %v3177 = vpop.f32.mrf.mxu0
        %v3178 = vadd.f32 %v3129, %v3177
        %3179 = vmatmul.bf16.gmra.mxu0 %v3073
        %v3180 = vpop.f32.mrf.mxu0
        %v3181 = vadd.f32 %v3132, %v3180
        %v3182 = vpop.f32.mrf.mxu0
        %v3183 = vadd.f32 %v3134, %v3182
        %3184 = vmatmul.bf16.gmra.mxu0 %v3075
        %v3185 = vpop.f32.mrf.mxu0
        %v3186 = vadd.f32 %v3137, %v3185
        %v3187 = vpop.f32.mrf.mxu0
        %v3188 = vadd.f32 %v3139, %v3187
        %3189 = vdwg.mxu0
        %3190 = vmatpush.bf16.msra.mxu0 %v729
        %3191 = vmatpush.bf16.msra.mxu0 %v727
        %3192 = vmatpush.bf16.msra.mxu0 %v725
        %3193 = vmatpush.bf16.msra.mxu0 %v723
        %3194 = vmatpush.bf16.msra.mxu0 %v721
        %3195 = vmatpush.bf16.msra.mxu0 %v719
        %3196 = vmatpush.bf16.msra.mxu0 %v717
        %3197 = vmatpush.bf16.msra.mxu0 %v715
        %3198 = vmatmul.bf16.gmra.mxu0 %v3060
        %v3199 = vpop.f32.mrf.mxu0
        %v3200 = vadd.f32 0.0, %v3199
        %v3201 = vpop.f32.mrf.mxu0
        %v3202 = vadd.f32 0.0, %v3201
        %3203 = vmatmul.bf16.gmra.mxu0 %v3062
        %v3204 = vpop.f32.mrf.mxu0
        %v3205 = vadd.f32 0.0, %v3204
        %v3206 = vpop.f32.mrf.mxu0
        %v3207 = vadd.f32 0.0, %v3206
        %3208 = vmatmul.bf16.gmra.mxu0 %v3064
        %v3209 = vpop.f32.mrf.mxu0
        %v3210 = vadd.f32 0.0, %v3209
        %v3211 = vpop.f32.mrf.mxu0
        %v3212 = vadd.f32 0.0, %v3211
        %3213 = vmatmul.bf16.gmra.mxu0 %v3066
        %v3214 = vpop.f32.mrf.mxu0
        %v3215 = vadd.f32 0.0, %v3214
        %v3216 = vpop.f32.mrf.mxu0
        %v3217 = vadd.f32 0.0, %v3216
        %3218 = vmatmul.bf16.gmra.mxu0 %v3068
        %v3219 = vpop.f32.mrf.mxu0
        %v3220 = vadd.f32 0.0, %v3219
        %v3221 = vpop.f32.mrf.mxu0
        %v3222 = vadd.f32 0.0, %v3221
        %3223 = vmatmul.bf16.gmra.mxu0 %v3070
        %v3224 = vpop.f32.mrf.mxu0
        %v3225 = vadd.f32 0.0, %v3224
        %v3226 = vpop.f32.mrf.mxu0
        %v3227 = vadd.f32 0.0, %v3226
        %3228 = vmatmul.bf16.gmra.mxu0 %v3072
        %v3229 = vpop.f32.mrf.mxu0
        %v3230 = vadd.f32 0.0, %v3229
        %v3231 = vpop.f32.mrf.mxu0
        %v3232 = vadd.f32 0.0, %v3231
        %3233 = vmatmul.bf16.gmra.mxu0 %v3074
        %v3234 = vpop.f32.mrf.mxu0
        %v3235 = vadd.f32 0.0, %v3234
        %v3236 = vpop.f32.mrf.mxu0
        %v3237 = vadd.f32 0.0, %v3236
        %3238 = vdwg.mxu0
        %3239 = vmatpush.bf16.msra.mxu0 %v809
        %3240 = vmatpush.bf16.msra.mxu0 %v807
        %3241 = vmatpush.bf16.msra.mxu0 %v805
        %3242 = vmatpush.bf16.msra.mxu0 %v803
        %3243 = vmatpush.bf16.msra.mxu0 %v801
        %3244 = vmatpush.bf16.msra.mxu0 %v799
        %3245 = vmatpush.bf16.msra.mxu0 %v797
        %3246 = vmatpush.bf16.msra.mxu0 %v795
        %3247 = vmatmul.bf16.gmra.mxu0 %v3061
        %v3248 = vpop.f32.mrf.mxu0
        %v3249 = vadd.f32 %v3200, %v3248
        %v3250 = vpop.f32.mrf.mxu0
        %v3251 = vadd.f32 %v3202, %v3250
        %3252 = vmatmul.bf16.gmra.mxu0 %v3063
        %v3253 = vpop.f32.mrf.mxu0
        %v3254 = vadd.f32 %v3205, %v3253
        %v3255 = vpop.f32.mrf.mxu0
        %v3256 = vadd.f32 %v3207, %v3255
        %3257 = vmatmul.bf16.gmra.mxu0 %v3065
        %v3258 = vpop.f32.mrf.mxu0
        %v3259 = vadd.f32 %v3210, %v3258
        %v3260 = vpop.f32.mrf.mxu0
        %v3261 = vadd.f32 %v3212, %v3260
        %3262 = vmatmul.bf16.gmra.mxu0 %v3067
        %v3263 = vpop.f32.mrf.mxu0
        %v3264 = vadd.f32 %v3215, %v3263
        %v3265 = vpop.f32.mrf.mxu0
        %v3266 = vadd.f32 %v3217, %v3265
        %3267 = vmatmul.bf16.gmra.mxu0 %v3069
        %v3268 = vpop.f32.mrf.mxu0
        %v3269 = vadd.f32 %v3220, %v3268
        %v3270 = vpop.f32.mrf.mxu0
        %v3271 = vadd.f32 %v3222, %v3270
        %3272 = vmatmul.bf16.gmra.mxu0 %v3071
        %v3273 = vpop.f32.mrf.mxu0
        %v3274 = vadd.f32 %v3225, %v3273
        %v3275 = vpop.f32.mrf.mxu0
        %v3276 = vadd.f32 %v3227, %v3275
        %3277 = vmatmul.bf16.gmra.mxu0 %v3073
        %v3278 = vpop.f32.mrf.mxu0
        %v3279 = vadd.f32 %v3230, %v3278
        %v3280 = vpop.f32.mrf.mxu0
        %v3281 = vadd.f32 %v3232, %v3280
        %3282 = vmatmul.bf16.gmra.mxu0 %v3075
        %v3283 = vpop.f32.mrf.mxu0
        %v3284 = vadd.f32 %v3235, %v3283
        %v3285 = vpop.f32.mrf.mxu0
        %v3286 = vadd.f32 %v3237, %v3285
        %3287 = vdwg.mxu0
        %3288 = vrot.lane.b32.xlu0 %v3151, 127
        %v3289 = vpop.permute.xlu0 %3288
        %3290 = vrot.lane.b32.xlu0 %v3153, 127
        %v3291 = vpop.permute.xlu0 %3290
        %3292 = vrot.lane.b32.xlu0 %v3156, 127
        %v3293 = vpop.permute.xlu0 %3292
        %3294 = vrot.lane.b32.xlu0 %v3158, 127
        %v3295 = vpop.permute.xlu0 %3294
        %3296 = vrot.lane.b32.xlu0 %v3161, 127
        %v3297 = vpop.permute.xlu0 %3296
        %3298 = vrot.lane.b32.xlu0 %v3163, 127
        %v3299 = vpop.permute.xlu0 %3298
        %3300 = vrot.lane.b32.xlu0 %v3166, 127
        %v3301 = vpop.permute.xlu0 %3300
        %3302 = vrot.lane.b32.xlu0 %v3168, 127
        %v3303 = vpop.permute.xlu0 %3302
        %3304 = vrot.lane.b32.xlu0 %v3171, 127
        %v3305 = vpop.permute.xlu0 %3304
        %3306 = vrot.lane.b32.xlu0 %v3173, 127
        %v3307 = vpop.permute.xlu0 %3306
        %3308 = vrot.lane.b32.xlu0 %v3176, 127
        %v3309 = vpop.permute.xlu0 %3308
        %3310 = vrot.lane.b32.xlu0 %v3178, 127
        %v3311 = vpop.permute.xlu0 %3310
        %3312 = vrot.lane.b32.xlu0 %v3181, 127
        %v3313 = vpop.permute.xlu0 %3312
        %3314 = vrot.lane.b32.xlu0 %v3183, 127
        %v3315 = vpop.permute.xlu0 %3314
        %3316 = vrot.lane.b32.xlu0 %v3186, 127
        %v3317 = vpop.permute.xlu0 %3316
        %3318 = vrot.lane.b32.xlu0 %v3188, 127
        %v3319 = vpop.permute.xlu0 %3318
        %3320 = vrot.lane.b32.xlu0 %v3249, 127
        %v3321 = vpop.permute.xlu0 %3320
        %3322 = vrot.lane.b32.xlu0 %v3251, 127
        %v3323 = vpop.permute.xlu0 %3322
        %3324 = vrot.lane.b32.xlu0 %v3254, 127
        %v3325 = vpop.permute.xlu0 %3324
        %3326 = vrot.lane.b32.xlu0 %v3256, 127
        %v3327 = vpop.permute.xlu0 %3326
        %3328 = vrot.lane.b32.xlu0 %v3259, 127
        %v3329 = vpop.permute.xlu0 %3328
        %3330 = vrot.lane.b32.xlu0 %v3261, 127
        %v3331 = vpop.permute.xlu0 %3330
        %3332 = vrot.lane.b32.xlu0 %v3264, 127
        %v3333 = vpop.permute.xlu0 %3332
        %3334 = vrot.lane.b32.xlu0 %v3266, 127
        %v3335 = vpop.permute.xlu0 %3334
        %3336 = vrot.lane.b32.xlu0 %v3269, 127
        %v3337 = vpop.permute.xlu0 %3336
        %3338 = vrot.lane.b32.xlu0 %v3271, 127
        %v3339 = vpop.permute.xlu0 %3338
        %3340 = vrot.lane.b32.xlu0 %v3274, 127
        %v3341 = vpop.permute.xlu0 %3340
        %3342 = vrot.lane.b32.xlu0 %v3276, 127
        %v3343 = vpop.permute.xlu0 %3342
        %3344 = vrot.lane.b32.xlu0 %v3279, 127
        %v3345 = vpop.permute.xlu0 %3344
        %3346 = vrot.lane.b32.xlu0 %v3281, 127
        %v3347 = vpop.permute.xlu0 %3346
        %3348 = vrot.lane.b32.xlu0 %v3284, 127
        %v3349 = vpop.permute.xlu0 %3348
        %3350 = vrot.lane.b32.xlu0 %v3286, 127
        %v3351 = vpop.permute.xlu0 %3350
        %vm3352 = vcmp.lt.s32.totalorder %v1183, 127
        %v3353 = vsel %vm3352, %v3289, %v3321
        %v3354 = vsel %vm3352, %v3291, %v3323
        %v3355 = vsel %vm3352, %v3293, %v3325
        %v3356 = vsel %vm3352, %v3295, %v3327
        %v3357 = vsel %vm3352, %v3297, %v3329
        %v3358 = vsel %vm3352, %v3299, %v3331
        %v3359 = vsel %vm3352, %v3301, %v3333
        %v3360 = vsel %vm3352, %v3303, %v3335
        %v3361 = vsel %vm3352, %v3305, %v3337
        %v3362 = vsel %vm3352, %v3307, %v3339
        %v3363 = vsel %vm3352, %v3309, %v3341
        %v3364 = vsel %vm3352, %v3311, %v3343
        %v3365 = vsel %vm3352, %v3313, %v3345
        %v3366 = vsel %vm3352, %v3315, %v3347
        %v3367 = vsel %vm3352, %v3317, %v3349
        %v3368 = vsel %vm3352, %v3319, %v3351
        %v3369 = vsel %vm3352, %v3321, %v3289
        %v3370 = vsel %vm3352, %v3323, %v3291
        %v3371 = vsel %vm3352, %v3325, %v3293
        %v3372 = vsel %vm3352, %v3327, %v3295
        %v3373 = vsel %vm3352, %v3329, %v3297
        %v3374 = vsel %vm3352, %v3331, %v3299
        %v3375 = vsel %vm3352, %v3333, %v3301
        %v3376 = vsel %vm3352, %v3335, %v3303
        %v3377 = vsel %vm3352, %v3337, %v3305
        %v3378 = vsel %vm3352, %v3339, %v3307
        %v3379 = vsel %vm3352, %v3341, %v3309
        %v3380 = vsel %vm3352, %v3343, %v3311
        %v3381 = vsel %vm3352, %v3345, %v3313
        %v3382 = vsel %vm3352, %v3347, %v3315
        %v3383 = vsel %vm3352, %v3349, %v3317
        %v3384 = vsel %vm3352, %v3351, %v3319
        %s3385 = scalar_lea.vmem [#allocation5], 10
        %v3386 = vld [vmem:[%s3385] sm:$0x3]
        %v3388 = vperm.slane %v3386, 0
        %v3389 = vperm.slane %v3386, 1
        %v3392 = vmul.f32 %v3353, %v3388
        %v3393 = vmul.f32 %v3369, %v3389
        %v3394 = vmul.f32 %v3354, %v3388
        %v3395 = vmul.f32 %v3370, %v3389
        %v3396 = vmul.f32 %v3355, %v3388
        %v3397 = vmul.f32 %v3371, %v3389
        %v3398 = vmul.f32 %v3356, %v3388
        %v3399 = vmul.f32 %v3372, %v3389
        %v3400 = vmul.f32 %v3357, %v3388
        %v3401 = vmul.f32 %v3373, %v3389
        %v3402 = vmul.f32 %v3358, %v3388
        %v3403 = vmul.f32 %v3374, %v3389
        %v3404 = vmul.f32 %v3359, %v3388
        %v3405 = vmul.f32 %v3375, %v3389
        %v3406 = vmul.f32 %v3360, %v3388
        %v3407 = vmul.f32 %v3376, %v3389
        %v3408 = vmul.f32 %v3361, %v3388
        %v3409 = vmul.f32 %v3377, %v3389
        %v3410 = vmul.f32 %v3362, %v3388
        %v3411 = vmul.f32 %v3378, %v3389
        %v3412 = vmul.f32 %v3363, %v3388
        %v3413 = vmul.f32 %v3379, %v3389
        %v3414 = vmul.f32 %v3364, %v3388
        %v3415 = vmul.f32 %v3380, %v3389
        %v3416 = vmul.f32 %v3365, %v3388
        %v3417 = vmul.f32 %v3381, %v3389
        %v3418 = vmul.f32 %v3366, %v3388
        %v3419 = vmul.f32 %v3382, %v3389
        %v3420 = vmul.f32 %v3367, %v3388
        %v3421 = vmul.f32 %v3383, %v3389
        %v3422 = vmul.f32 %v3368, %v3388
        %v3423 = vmul.f32 %v3384, %v3389
        %v3424 = vadd.f32 %v2963, %v3392
        %v3425 = vadd.f32 %v2964, %v3393
        %v3426 = vadd.f32 %v2965, %v3394
        %v3427 = vadd.f32 %v2966, %v3395
        %v3428 = vadd.f32 %v2967, %v3396
        %v3429 = vadd.f32 %v2968, %v3397
        %v3430 = vadd.f32 %v2969, %v3398
        %v3431 = vadd.f32 %v2970, %v3399
        %v3432 = vadd.f32 %v2971, %v3400
        %v3433 = vadd.f32 %v2972, %v3401
        %v3434 = vadd.f32 %v2973, %v3402
        %v3435 = vadd.f32 %v2974, %v3403
        %v3436 = vadd.f32 %v2975, %v3404
        %v3437 = vadd.f32 %v2976, %v3405
        %v3438 = vadd.f32 %v2977, %v3406
        %v3439 = vadd.f32 %v2978, %v3407
        %v3440 = vadd.f32 %v2979, %v3408
        %v3441 = vadd.f32 %v2980, %v3409
        %v3442 = vadd.f32 %v2981, %v3410
        %v3443 = vadd.f32 %v2982, %v3411
        %v3444 = vadd.f32 %v2983, %v3412
        %v3445 = vadd.f32 %v2984, %v3413
        %v3446 = vadd.f32 %v2985, %v3414
        %v3447 = vadd.f32 %v2986, %v3415
        %v3448 = vadd.f32 %v2987, %v3416
        %v3449 = vadd.f32 %v2988, %v3417
        %v3450 = vadd.f32 %v2989, %v3418
        %v3451 = vadd.f32 %v2990, %v3419
        %v3452 = vadd.f32 %v2991, %v3420
        %v3453 = vadd.f32 %v2992, %v3421
        %v3454 = vadd.f32 %v2993, %v3422
        %v3455 = vadd.f32 %v2994, %v3423
        %s3456 = scalar_lea.vmem [#allocation7], 768
        %v3457 = vld [vmem:[%s3456] sm:$0xff]
        %v3458 = vld [vmem:[%s3456 + $0x8] sm:$0xff]
        %v3459 = vld [vmem:[%s3456 + $0x10] sm:$0xff]
        %v3460 = vld [vmem:[%s3456 + $0x18] sm:$0xff]
        %v3461 = vld [vmem:[%s3456 + $0x20] sm:$0xff]
        %v3462 = vld [vmem:[%s3456 + $0x28] sm:$0xff]
        %v3463 = vld [vmem:[%s3456 + $0x30] sm:$0xff]
        %v3464 = vld [vmem:[%s3456 + $0x38] sm:$0xff]
        %v3465 = vld [vmem:[%s3456 + $0x40] sm:$0xff]
        %v3466 = vld [vmem:[%s3456 + $0x48] sm:$0xff]
        %v3467 = vld [vmem:[%s3456 + $0x50] sm:$0xff]
        %v3468 = vld [vmem:[%s3456 + $0x58] sm:$0xff]
        %v3469 = vld [vmem:[%s3456 + $0x60] sm:$0xff]
        %v3470 = vld [vmem:[%s3456 + $0x68] sm:$0xff]
        %v3471 = vld [vmem:[%s3456 + $0x70] sm:$0xff]
        %v3472 = vld [vmem:[%s3456 + $0x78] sm:$0xff]
        %v3489 = vunpack.c.l.b16 %v3457
        %v3490 = vunpack.c.h.b16 %v3457
        %v3491 = vunpack.c.l.b16 %v3458
        %v3492 = vunpack.c.h.b16 %v3458
        %v3493 = vunpack.c.l.b16 %v3459
        %v3494 = vunpack.c.h.b16 %v3459
        %v3495 = vunpack.c.l.b16 %v3460
        %v3496 = vunpack.c.h.b16 %v3460
        %v3497 = vunpack.c.l.b16 %v3461
        %v3498 = vunpack.c.h.b16 %v3461
        %v3499 = vunpack.c.l.b16 %v3462
        %v3500 = vunpack.c.h.b16 %v3462
        %v3501 = vunpack.c.l.b16 %v3463
        %v3502 = vunpack.c.h.b16 %v3463
        %v3503 = vunpack.c.l.b16 %v3464
        %v3504 = vunpack.c.h.b16 %v3464
        %v3505 = vunpack.c.l.b16 %v3465
        %v3506 = vunpack.c.h.b16 %v3465
        %v3507 = vunpack.c.l.b16 %v3466
        %v3508 = vunpack.c.h.b16 %v3466
        %v3509 = vunpack.c.l.b16 %v3467
        %v3510 = vunpack.c.h.b16 %v3467
        %v3511 = vunpack.c.l.b16 %v3468
        %v3512 = vunpack.c.h.b16 %v3468
        %v3513 = vunpack.c.l.b16 %v3469
        %v3514 = vunpack.c.h.b16 %v3469
        %v3515 = vunpack.c.l.b16 %v3470
        %v3516 = vunpack.c.h.b16 %v3470
        %v3517 = vunpack.c.l.b16 %v3471
        %v3518 = vunpack.c.h.b16 %v3471
        %v3519 = vunpack.c.l.b16 %v3472
        %v3520 = vunpack.c.h.b16 %v3472
        %v3521 = vpack.c.b16 %v3491, %v3489
        %v3522 = vpack.c.b16 %v3492, %v3490
        %v3523 = vpack.c.b16 %v3495, %v3493
        %v3524 = vpack.c.b16 %v3496, %v3494
        %v3525 = vpack.c.b16 %v3499, %v3497
        %v3526 = vpack.c.b16 %v3500, %v3498
        %v3527 = vpack.c.b16 %v3503, %v3501
        %v3528 = vpack.c.b16 %v3504, %v3502
        %v3529 = vpack.c.b16 %v3507, %v3505
        %v3530 = vpack.c.b16 %v3508, %v3506
        %v3531 = vpack.c.b16 %v3511, %v3509
        %v3532 = vpack.c.b16 %v3512, %v3510
        %v3533 = vpack.c.b16 %v3515, %v3513
        %v3534 = vpack.c.b16 %v3516, %v3514
        %v3535 = vpack.c.b16 %v3519, %v3517
        %v3536 = vpack.c.b16 %v3520, %v3518
        %3553 = vmatpush.bf16.msra.mxu0 %v728
        %3554 = vmatpush.bf16.msra.mxu0 %v726
        %3555 = vmatpush.bf16.msra.mxu0 %v724
        %3556 = vmatpush.bf16.msra.mxu0 %v722
        %3557 = vmatpush.bf16.msra.mxu0 %v720
        %3558 = vmatpush.bf16.msra.mxu0 %v718
        %3559 = vmatpush.bf16.msra.mxu0 %v716
        %3560 = vmatpush.bf16.msra.mxu0 %v714
        %3561 = vmatmul.bf16.gmra.mxu0 %v3521
        %v3562 = vpop.f32.mrf.mxu0
        %v3563 = vadd.f32 0.0, %v3562
        %v3564 = vpop.f32.mrf.mxu0
        %v3565 = vadd.f32 0.0, %v3564
        %3566 = vmatmul.bf16.gmra.mxu0 %v3523
        %v3567 = vpop.f32.mrf.mxu0
        %v3568 = vadd.f32 0.0, %v3567
        %v3569 = vpop.f32.mrf.mxu0
        %v3570 = vadd.f32 0.0, %v3569
        %3571 = vmatmul.bf16.gmra.mxu0 %v3525
        %v3572 = vpop.f32.mrf.mxu0
        %v3573 = vadd.f32 0.0, %v3572
        %v3574 = vpop.f32.mrf.mxu0
        %v3575 = vadd.f32 0.0, %v3574
        %3576 = vmatmul.bf16.gmra.mxu0 %v3527
        %v3577 = vpop.f32.mrf.mxu0
        %v3578 = vadd.f32 0.0, %v3577
        %v3579 = vpop.f32.mrf.mxu0
        %v3580 = vadd.f32 0.0, %v3579
        %3581 = vmatmul.bf16.gmra.mxu0 %v3529
        %v3582 = vpop.f32.mrf.mxu0
        %v3583 = vadd.f32 0.0, %v3582
        %v3584 = vpop.f32.mrf.mxu0
        %v3585 = vadd.f32 0.0, %v3584
        %3586 = vmatmul.bf16.gmra.mxu0 %v3531
        %v3587 = vpop.f32.mrf.mxu0
        %v3588 = vadd.f32 0.0, %v3587
        %v3589 = vpop.f32.mrf.mxu0
        %v3590 = vadd.f32 0.0, %v3589
        %3591 = vmatmul.bf16.gmra.mxu0 %v3533
        %v3592 = vpop.f32.mrf.mxu0
        %v3593 = vadd.f32 0.0, %v3592
        %v3594 = vpop.f32.mrf.mxu0
        %v3595 = vadd.f32 0.0, %v3594
        %3596 = vmatmul.bf16.gmra.mxu0 %v3535
        %v3597 = vpop.f32.mrf.mxu0
        %v3598 = vadd.f32 0.0, %v3597
        %v3599 = vpop.f32.mrf.mxu0
        %v3600 = vadd.f32 0.0, %v3599
        %3601 = vdwg.mxu0
        %3602 = vmatpush.bf16.msra.mxu0 %v808
        %3603 = vmatpush.bf16.msra.mxu0 %v806
        %3604 = vmatpush.bf16.msra.mxu0 %v804
        %3605 = vmatpush.bf16.msra.mxu0 %v802
        %3606 = vmatpush.bf16.msra.mxu0 %v800
        %3607 = vmatpush.bf16.msra.mxu0 %v798
        %3608 = vmatpush.bf16.msra.mxu0 %v796
        %3609 = vmatpush.bf16.msra.mxu0 %v794
        %3610 = vmatmul.bf16.gmra.mxu0 %v3522
        %v3611 = vpop.f32.mrf.mxu0
        %v3612 = vadd.f32 %v3563, %v3611
        %v3613 = vpop.f32.mrf.mxu0
        %v3614 = vadd.f32 %v3565, %v3613
        %3615 = vmatmul.bf16.gmra.mxu0 %v3524
        %v3616 = vpop.f32.mrf.mxu0
        %v3617 = vadd.f32 %v3568, %v3616
        %v3618 = vpop.f32.mrf.mxu0
        %v3619 = vadd.f32 %v3570, %v3618
        %3620 = vmatmul.bf16.gmra.mxu0 %v3526
        %v3621 = vpop.f32.mrf.mxu0
        %v3622 = vadd.f32 %v3573, %v3621
        %v3623 = vpop.f32.mrf.mxu0
        %v3624 = vadd.f32 %v3575, %v3623
        %3625 = vmatmul.bf16.gmra.mxu0 %v3528
        %v3626 = vpop.f32.mrf.mxu0
        %v3627 = vadd.f32 %v3578, %v3626
        %v3628 = vpop.f32.mrf.mxu0
        %v3629 = vadd.f32 %v3580, %v3628
        %3630 = vmatmul.bf16.gmra.mxu0 %v3530
        %v3631 = vpop.f32.mrf.mxu0
        %v3632 = vadd.f32 %v3583, %v3631
        %v3633 = vpop.f32.mrf.mxu0
        %v3634 = vadd.f32 %v3585, %v3633
        %3635 = vmatmul.bf16.gmra.mxu0 %v3532
        %v3636 = vpop.f32.mrf.mxu0
        %v3637 = vadd.f32 %v3588, %v3636
        %v3638 = vpop.f32.mrf.mxu0
        %v3639 = vadd.f32 %v3590, %v3638
        %3640 = vmatmul.bf16.gmra.mxu0 %v3534
        %v3641 = vpop.f32.mrf.mxu0
        %v3642 = vadd.f32 %v3593, %v3641
        %v3643 = vpop.f32.mrf.mxu0
        %v3644 = vadd.f32 %v3595, %v3643
        %3645 = vmatmul.bf16.gmra.mxu0 %v3536
        %v3646 = vpop.f32.mrf.mxu0
        %v3647 = vadd.f32 %v3598, %v3646
        %v3648 = vpop.f32.mrf.mxu0
        %v3649 = vadd.f32 %v3600, %v3648
        %3650 = vdwg.mxu0
        %3651 = vmatpush.bf16.msra.mxu0 %v729
        %3652 = vmatpush.bf16.msra.mxu0 %v727
        %3653 = vmatpush.bf16.msra.mxu0 %v725
        %3654 = vmatpush.bf16.msra.mxu0 %v723
        %3655 = vmatpush.bf16.msra.mxu0 %v721
        %3656 = vmatpush.bf16.msra.mxu0 %v719
        %3657 = vmatpush.bf16.msra.mxu0 %v717
        %3658 = vmatpush.bf16.msra.mxu0 %v715
        %3659 = vmatmul.bf16.gmra.mxu0 %v3521
        %v3660 = vpop.f32.mrf.mxu0
        %v3661 = vadd.f32 0.0, %v3660
        %v3662 = vpop.f32.mrf.mxu0
        %v3663 = vadd.f32 0.0, %v3662
        %3664 = vmatmul.bf16.gmra.mxu0 %v3523
        %v3665 = vpop.f32.mrf.mxu0
        %v3666 = vadd.f32 0.0, %v3665
        %v3667 = vpop.f32.mrf.mxu0
        %v3668 = vadd.f32 0.0, %v3667
        %3669 = vmatmul.bf16.gmra.mxu0 %v3525
        %v3670 = vpop.f32.mrf.mxu0
        %v3671 = vadd.f32 0.0, %v3670
        %v3672 = vpop.f32.mrf.mxu0
        %v3673 = vadd.f32 0.0, %v3672
        %3674 = vmatmul.bf16.gmra.mxu0 %v3527
        %v3675 = vpop.f32.mrf.mxu0
        %v3676 = vadd.f32 0.0, %v3675
        %v3677 = vpop.f32.mrf.mxu0
        %v3678 = vadd.f32 0.0, %v3677
        %3679 = vmatmul.bf16.gmra.mxu0 %v3529
        %v3680 = vpop.f32.mrf.mxu0
        %v3681 = vadd.f32 0.0, %v3680
        %v3682 = vpop.f32.mrf.mxu0
        %v3683 = vadd.f32 0.0, %v3682
        %3684 = vmatmul.bf16.gmra.mxu0 %v3531
        %v3685 = vpop.f32.mrf.mxu0
        %v3686 = vadd.f32 0.0, %v3685
        %v3687 = vpop.f32.mrf.mxu0
        %v3688 = vadd.f32 0.0, %v3687
        %3689 = vmatmul.bf16.gmra.mxu0 %v3533
        %v3690 = vpop.f32.mrf.mxu0
        %v3691 = vadd.f32 0.0, %v3690
        %v3692 = vpop.f32.mrf.mxu0
        %v3693 = vadd.f32 0.0, %v3692
        %3694 = vmatmul.bf16.gmra.mxu0 %v3535
        %v3695 = vpop.f32.mrf.mxu0
        %v3696 = vadd.f32 0.0, %v3695
        %v3697 = vpop.f32.mrf.mxu0
        %v3698 = vadd.f32 0.0, %v3697
        %3699 = vdwg.mxu0
        %3700 = vmatpush.bf16.msra.mxu0 %v809
        %3701 = vmatpush.bf16.msra.mxu0 %v807
        %3702 = vmatpush.bf16.msra.mxu0 %v805
        %3703 = vmatpush.bf16.msra.mxu0 %v803
        %3704 = vmatpush.bf16.msra.mxu0 %v801
        %3705 = vmatpush.bf16.msra.mxu0 %v799
        %3706 = vmatpush.bf16.msra.mxu0 %v797
        %3707 = vmatpush.bf16.msra.mxu0 %v795
        %3708 = vmatmul.bf16.gmra.mxu0 %v3522
        %v3709 = vpop.f32.mrf.mxu0
        %v3710 = vadd.f32 %v3661, %v3709
        %v3711 = vpop.f32.mrf.mxu0
        %v3712 = vadd.f32 %v3663, %v3711
        %3713 = vmatmul.bf16.gmra.mxu0 %v3524
        %v3714 = vpop.f32.mrf.mxu0
        %v3715 = vadd.f32 %v3666, %v3714
        %v3716 = vpop.f32.mrf.mxu0
        %v3717 = vadd.f32 %v3668, %v3716
        %3718 = vmatmul.bf16.gmra.mxu0 %v3526
        %v3719 = vpop.f32.mrf.mxu0
        %v3720 = vadd.f32 %v3671, %v3719
        %v3721 = vpop.f32.mrf.mxu0
        %v3722 = vadd.f32 %v3673, %v3721
        %3723 = vmatmul.bf16.gmra.mxu0 %v3528
        %v3724 = vpop.f32.mrf.mxu0
        %v3725 = vadd.f32 %v3676, %v3724
        %v3726 = vpop.f32.mrf.mxu0
        %v3727 = vadd.f32 %v3678, %v3726
        %3728 = vmatmul.bf16.gmra.mxu0 %v3530
        %v3729 = vpop.f32.mrf.mxu0
        %v3730 = vadd.f32 %v3681, %v3729
        %v3731 = vpop.f32.mrf.mxu0
        %v3732 = vadd.f32 %v3683, %v3731
        %3733 = vmatmul.bf16.gmra.mxu0 %v3532
        %v3734 = vpop.f32.mrf.mxu0
        %v3735 = vadd.f32 %v3686, %v3734
        %v3736 = vpop.f32.mrf.mxu0
        %v3737 = vadd.f32 %v3688, %v3736
        %3738 = vmatmul.bf16.gmra.mxu0 %v3534
        %v3739 = vpop.f32.mrf.mxu0
        %v3740 = vadd.f32 %v3691, %v3739
        %v3741 = vpop.f32.mrf.mxu0
        %v3742 = vadd.f32 %v3693, %v3741
        %3743 = vmatmul.bf16.gmra.mxu0 %v3536
        %v3744 = vpop.f32.mrf.mxu0
        %v3745 = vadd.f32 %v3696, %v3744
        %v3746 = vpop.f32.mrf.mxu0
        %v3747 = vadd.f32 %v3698, %v3746
        %3748 = vdwg.mxu0
        %3749 = vrot.lane.b32.xlu0 %v3612, 113
        %v3750 = vpop.permute.xlu0 %3749
        %3751 = vrot.lane.b32.xlu0 %v3614, 113
        %v3752 = vpop.permute.xlu0 %3751
        %3753 = vrot.lane.b32.xlu0 %v3617, 113
        %v3754 = vpop.permute.xlu0 %3753
        %3755 = vrot.lane.b32.xlu0 %v3619, 113
        %v3756 = vpop.permute.xlu0 %3755
        %3757 = vrot.lane.b32.xlu0 %v3622, 113
        %v3758 = vpop.permute.xlu0 %3757
        %3759 = vrot.lane.b32.xlu0 %v3624, 113
        %v3760 = vpop.permute.xlu0 %3759
        %3761 = vrot.lane.b32.xlu0 %v3627, 113
        %v3762 = vpop.permute.xlu0 %3761
        %3763 = vrot.lane.b32.xlu0 %v3629, 113
        %v3764 = vpop.permute.xlu0 %3763
        %3765 = vrot.lane.b32.xlu0 %v3632, 113
        %v3766 = vpop.permute.xlu0 %3765
        %3767 = vrot.lane.b32.xlu0 %v3634, 113
        %v3768 = vpop.permute.xlu0 %3767
        %3769 = vrot.lane.b32.xlu0 %v3637, 113
        %v3770 = vpop.permute.xlu0 %3769
        %3771 = vrot.lane.b32.xlu0 %v3639, 113
        %v3772 = vpop.permute.xlu0 %3771
        %3773 = vrot.lane.b32.xlu0 %v3642, 113
        %v3774 = vpop.permute.xlu0 %3773
        %3775 = vrot.lane.b32.xlu0 %v3644, 113
        %v3776 = vpop.permute.xlu0 %3775
        %3777 = vrot.lane.b32.xlu0 %v3647, 113
        %v3778 = vpop.permute.xlu0 %3777
        %3779 = vrot.lane.b32.xlu0 %v3649, 113
        %v3780 = vpop.permute.xlu0 %3779
        %3781 = vrot.lane.b32.xlu0 %v3710, 113
        %v3782 = vpop.permute.xlu0 %3781
        %3783 = vrot.lane.b32.xlu0 %v3712, 113
        %v3784 = vpop.permute.xlu0 %3783
        %3785 = vrot.lane.b32.xlu0 %v3715, 113
        %v3786 = vpop.permute.xlu0 %3785
        %3787 = vrot.lane.b32.xlu0 %v3717, 113
        %v3788 = vpop.permute.xlu0 %3787
        %3789 = vrot.lane.b32.xlu0 %v3720, 113
        %v3790 = vpop.permute.xlu0 %3789
        %3791 = vrot.lane.b32.xlu0 %v3722, 113
        %v3792 = vpop.permute.xlu0 %3791
        %3793 = vrot.lane.b32.xlu0 %v3725, 113
        %v3794 = vpop.permute.xlu0 %3793
        %3795 = vrot.lane.b32.xlu0 %v3727, 113
        %v3796 = vpop.permute.xlu0 %3795
        %3797 = vrot.lane.b32.xlu0 %v3730, 113
        %v3798 = vpop.permute.xlu0 %3797
        %3799 = vrot.lane.b32.xlu0 %v3732, 113
        %v3800 = vpop.permute.xlu0 %3799
        %3801 = vrot.lane.b32.xlu0 %v3735, 113
        %v3802 = vpop.permute.xlu0 %3801
        %3803 = vrot.lane.b32.xlu0 %v3737, 113
        %v3804 = vpop.permute.xlu0 %3803
        %3805 = vrot.lane.b32.xlu0 %v3740, 113
        %v3806 = vpop.permute.xlu0 %3805
        %3807 = vrot.lane.b32.xlu0 %v3742, 113
        %v3808 = vpop.permute.xlu0 %3807
        %3809 = vrot.lane.b32.xlu0 %v3745, 113
        %v3810 = vpop.permute.xlu0 %3809
        %3811 = vrot.lane.b32.xlu0 %v3747, 113
        %v3812 = vpop.permute.xlu0 %3811
        %vm3813 = vcmp.lt.s32.totalorder %v1183, 113
        %v3814 = vsel %vm3813, %v3750, %v3782
        %v3815 = vsel %vm3813, %v3752, %v3784
        %v3816 = vsel %vm3813, %v3754, %v3786
        %v3817 = vsel %vm3813, %v3756, %v3788
        %v3818 = vsel %vm3813, %v3758, %v3790
        %v3819 = vsel %vm3813, %v3760, %v3792
        %v3820 = vsel %vm3813, %v3762, %v3794
        %v3821 = vsel %vm3813, %v3764, %v3796
        %v3822 = vsel %vm3813, %v3766, %v3798
        %v3823 = vsel %vm3813, %v3768, %v3800
        %v3824 = vsel %vm3813, %v3770, %v3802
        %v3825 = vsel %vm3813, %v3772, %v3804
        %v3826 = vsel %vm3813, %v3774, %v3806
        %v3827 = vsel %vm3813, %v3776, %v3808
        %v3828 = vsel %vm3813, %v3778, %v3810
        %v3829 = vsel %vm3813, %v3780, %v3812
        %v3830 = vsel %vm3813, %v3782, %v3750
        %v3831 = vsel %vm3813, %v3784, %v3752
        %v3832 = vsel %vm3813, %v3786, %v3754
        %v3833 = vsel %vm3813, %v3788, %v3756
        %v3834 = vsel %vm3813, %v3790, %v3758
        %v3835 = vsel %vm3813, %v3792, %v3760
        %v3836 = vsel %vm3813, %v3794, %v3762
        %v3837 = vsel %vm3813, %v3796, %v3764
        %v3838 = vsel %vm3813, %v3798, %v3766
        %v3839 = vsel %vm3813, %v3800, %v3768
        %v3840 = vsel %vm3813, %v3802, %v3770
        %v3841 = vsel %vm3813, %v3804, %v3772
        %v3842 = vsel %vm3813, %v3806, %v3774
        %v3843 = vsel %vm3813, %v3808, %v3776
        %v3844 = vsel %vm3813, %v3810, %v3778
        %v3845 = vsel %vm3813, %v3812, %v3780
        %s3846 = scalar_lea.vmem [#allocation5], 12
        %v3847 = vld [vmem:[%s3846] sm:$0x3]
        %v3849 = vperm.slane %v3847, 0
        %v3850 = vperm.slane %v3847, 1
        %v3853 = vmul.f32 %v3814, %v3849
        %v3854 = vmul.f32 %v3830, %v3850
        %v3855 = vmul.f32 %v3815, %v3849
        %v3856 = vmul.f32 %v3831, %v3850
        %v3857 = vmul.f32 %v3816, %v3849
        %v3858 = vmul.f32 %v3832, %v3850
        %v3859 = vmul.f32 %v3817, %v3849
        %v3860 = vmul.f32 %v3833, %v3850
        %v3861 = vmul.f32 %v3818, %v3849
        %v3862 = vmul.f32 %v3834, %v3850
        %v3863 = vmul.f32 %v3819, %v3849
        %v3864 = vmul.f32 %v3835, %v3850
        %v3865 = vmul.f32 %v3820, %v3849
        %v3866 = vmul.f32 %v3836, %v3850
        %v3867 = vmul.f32 %v3821, %v3849
        %v3868 = vmul.f32 %v3837, %v3850
        %v3869 = vmul.f32 %v3822, %v3849
        %v3870 = vmul.f32 %v3838, %v3850
        %v3871 = vmul.f32 %v3823, %v3849
        %v3872 = vmul.f32 %v3839, %v3850
        %v3873 = vmul.f32 %v3824, %v3849
        %v3874 = vmul.f32 %v3840, %v3850
        %v3875 = vmul.f32 %v3825, %v3849
        %v3876 = vmul.f32 %v3841, %v3850
        %v3877 = vmul.f32 %v3826, %v3849
        %v3878 = vmul.f32 %v3842, %v3850
        %v3879 = vmul.f32 %v3827, %v3849
        %v3880 = vmul.f32 %v3843, %v3850
        %v3881 = vmul.f32 %v3828, %v3849
        %v3882 = vmul.f32 %v3844, %v3850
        %v3883 = vmul.f32 %v3829, %v3849
        %v3884 = vmul.f32 %v3845, %v3850
        %v3885 = vadd.f32 %v3424, %v3853
        %v3886 = vadd.f32 %v3425, %v3854
        %v3887 = vadd.f32 %v3426, %v3855
        %v3888 = vadd.f32 %v3427, %v3856
        %v3889 = vadd.f32 %v3428, %v3857
        %v3890 = vadd.f32 %v3429, %v3858
        %v3891 = vadd.f32 %v3430, %v3859
        %v3892 = vadd.f32 %v3431, %v3860
        %v3893 = vadd.f32 %v3432, %v3861
        %v3894 = vadd.f32 %v3433, %v3862
        %v3895 = vadd.f32 %v3434, %v3863
        %v3896 = vadd.f32 %v3435, %v3864
        %v3897 = vadd.f32 %v3436, %v3865
        %v3898 = vadd.f32 %v3437, %v3866
        %v3899 = vadd.f32 %v3438, %v3867
        %v3900 = vadd.f32 %v3439, %v3868
        %v3901 = vadd.f32 %v3440, %v3869
        %v3902 = vadd.f32 %v3441, %v3870
        %v3903 = vadd.f32 %v3442, %v3871
        %v3904 = vadd.f32 %v3443, %v3872
        %v3905 = vadd.f32 %v3444, %v3873
        %v3906 = vadd.f32 %v3445, %v3874
        %v3907 = vadd.f32 %v3446, %v3875
        %v3908 = vadd.f32 %v3447, %v3876
        %v3909 = vadd.f32 %v3448, %v3877
        %v3910 = vadd.f32 %v3449, %v3878
        %v3911 = vadd.f32 %v3450, %v3879
        %v3912 = vadd.f32 %v3451, %v3880
        %v3913 = vadd.f32 %v3452, %v3881
        %v3914 = vadd.f32 %v3453, %v3882
        %v3915 = vadd.f32 %v3454, %v3883
        %v3916 = vadd.f32 %v3455, %v3884
        %s3917 = scalar_lea.vmem [#allocation7], 896
        %v3918 = vld [vmem:[%s3917] sm:$0xff]
        %v3919 = vld [vmem:[%s3917 + $0x8] sm:$0xff]
        %v3920 = vld [vmem:[%s3917 + $0x10] sm:$0xff]
        %v3921 = vld [vmem:[%s3917 + $0x18] sm:$0xff]
        %v3922 = vld [vmem:[%s3917 + $0x20] sm:$0xff]
        %v3923 = vld [vmem:[%s3917 + $0x28] sm:$0xff]
        %v3924 = vld [vmem:[%s3917 + $0x30] sm:$0xff]
        %v3925 = vld [vmem:[%s3917 + $0x38] sm:$0xff]
        %v3926 = vld [vmem:[%s3917 + $0x40] sm:$0xff]
        %v3927 = vld [vmem:[%s3917 + $0x48] sm:$0xff]
        %v3928 = vld [vmem:[%s3917 + $0x50] sm:$0xff]
        %v3929 = vld [vmem:[%s3917 + $0x58] sm:$0xff]
        %v3930 = vld [vmem:[%s3917 + $0x60] sm:$0xff]
        %v3931 = vld [vmem:[%s3917 + $0x68] sm:$0xff]
        %v3932 = vld [vmem:[%s3917 + $0x70] sm:$0xff]
        %v3933 = vld [vmem:[%s3917 + $0x78] sm:$0xff]
        %v3950 = vunpack.c.l.b16 %v3918
        %v3951 = vunpack.c.h.b16 %v3918
        %v3952 = vunpack.c.l.b16 %v3919
        %v3953 = vunpack.c.h.b16 %v3919
        %v3954 = vunpack.c.l.b16 %v3920
        %v3955 = vunpack.c.h.b16 %v3920
        %v3956 = vunpack.c.l.b16 %v3921
        %v3957 = vunpack.c.h.b16 %v3921
        %v3958 = vunpack.c.l.b16 %v3922
        %v3959 = vunpack.c.h.b16 %v3922
        %v3960 = vunpack.c.l.b16 %v3923
        %v3961 = vunpack.c.h.b16 %v3923
        %v3962 = vunpack.c.l.b16 %v3924
        %v3963 = vunpack.c.h.b16 %v3924
        %v3964 = vunpack.c.l.b16 %v3925
        %v3965 = vunpack.c.h.b16 %v3925
        %v3966 = vunpack.c.l.b16 %v3926
        %v3967 = vunpack.c.h.b16 %v3926
        %v3968 = vunpack.c.l.b16 %v3927
        %v3969 = vunpack.c.h.b16 %v3927
        %v3970 = vunpack.c.l.b16 %v3928
        %v3971 = vunpack.c.h.b16 %v3928
        %v3972 = vunpack.c.l.b16 %v3929
        %v3973 = vunpack.c.h.b16 %v3929
        %v3974 = vunpack.c.l.b16 %v3930
        %v3975 = vunpack.c.h.b16 %v3930
        %v3976 = vunpack.c.l.b16 %v3931
        %v3977 = vunpack.c.h.b16 %v3931
        %v3978 = vunpack.c.l.b16 %v3932
        %v3979 = vunpack.c.h.b16 %v3932
        %v3980 = vunpack.c.l.b16 %v3933
        %v3981 = vunpack.c.h.b16 %v3933
        %v3982 = vpack.c.b16 %v3952, %v3950
        %v3983 = vpack.c.b16 %v3953, %v3951
        %v3984 = vpack.c.b16 %v3956, %v3954
        %v3985 = vpack.c.b16 %v3957, %v3955
        %v3986 = vpack.c.b16 %v3960, %v3958
        %v3987 = vpack.c.b16 %v3961, %v3959
        %v3988 = vpack.c.b16 %v3964, %v3962
        %v3989 = vpack.c.b16 %v3965, %v3963
        %v3990 = vpack.c.b16 %v3968, %v3966
        %v3991 = vpack.c.b16 %v3969, %v3967
        %v3992 = vpack.c.b16 %v3972, %v3970
        %v3993 = vpack.c.b16 %v3973, %v3971
        %v3994 = vpack.c.b16 %v3976, %v3974
        %v3995 = vpack.c.b16 %v3977, %v3975
        %v3996 = vpack.c.b16 %v3980, %v3978
        %v3997 = vpack.c.b16 %v3981, %v3979
        %4014 = vmatpush.bf16.msra.mxu0 %v728
        %4015 = vmatpush.bf16.msra.mxu0 %v726
        %4016 = vmatpush.bf16.msra.mxu0 %v724
        %4017 = vmatpush.bf16.msra.mxu0 %v722
        %4018 = vmatpush.bf16.msra.mxu0 %v720
        %4019 = vmatpush.bf16.msra.mxu0 %v718
        %4020 = vmatpush.bf16.msra.mxu0 %v716
        %4021 = vmatpush.bf16.msra.mxu0 %v714
        %4022 = vmatmul.bf16.gmra.mxu0 %v3982
        %v4023 = vpop.f32.mrf.mxu0
        %v4024 = vadd.f32 0.0, %v4023
        %v4025 = vpop.f32.mrf.mxu0
        %v4026 = vadd.f32 0.0, %v4025
        %4027 = vmatmul.bf16.gmra.mxu0 %v3984
        %v4028 = vpop.f32.mrf.mxu0
        %v4029 = vadd.f32 0.0, %v4028
        %v4030 = vpop.f32.mrf.mxu0
        %v4031 = vadd.f32 0.0, %v4030
        %4032 = vmatmul.bf16.gmra.mxu0 %v3986
        %v4033 = vpop.f32.mrf.mxu0
        %v4034 = vadd.f32 0.0, %v4033
        %v4035 = vpop.f32.mrf.mxu0
        %v4036 = vadd.f32 0.0, %v4035
        %4037 = vmatmul.bf16.gmra.mxu0 %v3988
        %v4038 = vpop.f32.mrf.mxu0
        %v4039 = vadd.f32 0.0, %v4038
        %v4040 = vpop.f32.mrf.mxu0
        %v4041 = vadd.f32 0.0, %v4040
        %4042 = vmatmul.bf16.gmra.mxu0 %v3990
        %v4043 = vpop.f32.mrf.mxu0
        %v4044 = vadd.f32 0.0, %v4043
        %v4045 = vpop.f32.mrf.mxu0
        %v4046 = vadd.f32 0.0, %v4045
        %4047 = vmatmul.bf16.gmra.mxu0 %v3992
        %v4048 = vpop.f32.mrf.mxu0
        %v4049 = vadd.f32 0.0, %v4048
        %v4050 = vpop.f32.mrf.mxu0
        %v4051 = vadd.f32 0.0, %v4050
        %4052 = vmatmul.bf16.gmra.mxu0 %v3994
        %v4053 = vpop.f32.mrf.mxu0
        %v4054 = vadd.f32 0.0, %v4053
        %v4055 = vpop.f32.mrf.mxu0
        %v4056 = vadd.f32 0.0, %v4055
        %4057 = vmatmul.bf16.gmra.mxu0 %v3996
        %v4058 = vpop.f32.mrf.mxu0
        %v4059 = vadd.f32 0.0, %v4058
        %v4060 = vpop.f32.mrf.mxu0
        %v4061 = vadd.f32 0.0, %v4060
        %4062 = vdwg.mxu0
        %4063 = vmatpush.bf16.msra.mxu0 %v808
        %4064 = vmatpush.bf16.msra.mxu0 %v806
        %4065 = vmatpush.bf16.msra.mxu0 %v804
        %4066 = vmatpush.bf16.msra.mxu0 %v802
        %4067 = vmatpush.bf16.msra.mxu0 %v800
        %4068 = vmatpush.bf16.msra.mxu0 %v798
        %4069 = vmatpush.bf16.msra.mxu0 %v796
        %4070 = vmatpush.bf16.msra.mxu0 %v794
        %4071 = vmatmul.bf16.gmra.mxu0 %v3983
        %v4072 = vpop.f32.mrf.mxu0
        %v4073 = vadd.f32 %v4024, %v4072
        %v4074 = vpop.f32.mrf.mxu0
        %v4075 = vadd.f32 %v4026, %v4074
        %4076 = vmatmul.bf16.gmra.mxu0 %v3985
        %v4077 = vpop.f32.mrf.mxu0
        %v4078 = vadd.f32 %v4029, %v4077
        %v4079 = vpop.f32.mrf.mxu0
        %v4080 = vadd.f32 %v4031, %v4079
        %4081 = vmatmul.bf16.gmra.mxu0 %v3987
        %v4082 = vpop.f32.mrf.mxu0
        %v4083 = vadd.f32 %v4034, %v4082
        %v4084 = vpop.f32.mrf.mxu0
        %v4085 = vadd.f32 %v4036, %v4084
        %4086 = vmatmul.bf16.gmra.mxu0 %v3989
        %v4087 = vpop.f32.mrf.mxu0
        %v4088 = vadd.f32 %v4039, %v4087
        %v4089 = vpop.f32.mrf.mxu0
        %v4090 = vadd.f32 %v4041, %v4089
        %4091 = vmatmul.bf16.gmra.mxu0 %v3991
        %v4092 = vpop.f32.mrf.mxu0
        %v4093 = vadd.f32 %v4044, %v4092
        %v4094 = vpop.f32.mrf.mxu0
        %v4095 = vadd.f32 %v4046, %v4094
        %4096 = vmatmul.bf16.gmra.mxu0 %v3993
        %v4097 = vpop.f32.mrf.mxu0
        %v4098 = vadd.f32 %v4049, %v4097
        %v4099 = vpop.f32.mrf.mxu0
        %v4100 = vadd.f32 %v4051, %v4099
        %4101 = vmatmul.bf16.gmra.mxu0 %v3995
        %v4102 = vpop.f32.mrf.mxu0
        %v4103 = vadd.f32 %v4054, %v4102
        %v4104 = vpop.f32.mrf.mxu0
        %v4105 = vadd.f32 %v4056, %v4104
        %4106 = vmatmul.bf16.gmra.mxu0 %v3997
        %v4107 = vpop.f32.mrf.mxu0
        %v4108 = vadd.f32 %v4059, %v4107
        %v4109 = vpop.f32.mrf.mxu0
        %v4110 = vadd.f32 %v4061, %v4109
        %4111 = vdwg.mxu0
        %4112 = vmatpush.bf16.msra.mxu0 %v729
        %4113 = vmatpush.bf16.msra.mxu0 %v727
        %4114 = vmatpush.bf16.msra.mxu0 %v725
        %4115 = vmatpush.bf16.msra.mxu0 %v723
        %4116 = vmatpush.bf16.msra.mxu0 %v721
        %4117 = vmatpush.bf16.msra.mxu0 %v719
        %4118 = vmatpush.bf16.msra.mxu0 %v717
        %4119 = vmatpush.bf16.msra.mxu0 %v715
        %4120 = vmatmul.bf16.gmra.mxu0 %v3982
        %v4121 = vpop.f32.mrf.mxu0
        %v4122 = vadd.f32 0.0, %v4121
        %v4123 = vpop.f32.mrf.mxu0
        %v4124 = vadd.f32 0.0, %v4123
        %4125 = vmatmul.bf16.gmra.mxu0 %v3984
        %v4126 = vpop.f32.mrf.mxu0
        %v4127 = vadd.f32 0.0, %v4126
        %v4128 = vpop.f32.mrf.mxu0
        %v4129 = vadd.f32 0.0, %v4128
        %4130 = vmatmul.bf16.gmra.mxu0 %v3986
        %v4131 = vpop.f32.mrf.mxu0
        %v4132 = vadd.f32 0.0, %v4131
        %v4133 = vpop.f32.mrf.mxu0
        %v4134 = vadd.f32 0.0, %v4133
        %4135 = vmatmul.bf16.gmra.mxu0 %v3988
        %v4136 = vpop.f32.mrf.mxu0
        %v4137 = vadd.f32 0.0, %v4136
        %v4138 = vpop.f32.mrf.mxu0
        %v4139 = vadd.f32 0.0, %v4138
        %4140 = vmatmul.bf16.gmra.mxu0 %v3990
        %v4141 = vpop.f32.mrf.mxu0
        %v4142 = vadd.f32 0.0, %v4141
        %v4143 = vpop.f32.mrf.mxu0
        %v4144 = vadd.f32 0.0, %v4143
        %4145 = vmatmul.bf16.gmra.mxu0 %v3992
        %v4146 = vpop.f32.mrf.mxu0
        %v4147 = vadd.f32 0.0, %v4146
        %v4148 = vpop.f32.mrf.mxu0
        %v4149 = vadd.f32 0.0, %v4148
        %4150 = vmatmul.bf16.gmra.mxu0 %v3994
        %v4151 = vpop.f32.mrf.mxu0
        %v4152 = vadd.f32 0.0, %v4151
        %v4153 = vpop.f32.mrf.mxu0
        %v4154 = vadd.f32 0.0, %v4153
        %4155 = vmatmul.bf16.gmra.mxu0 %v3996
        %v4156 = vpop.f32.mrf.mxu0
        %v4157 = vadd.f32 0.0, %v4156
        %v4158 = vpop.f32.mrf.mxu0
        %v4159 = vadd.f32 0.0, %v4158
        %4160 = vdwg.mxu0
        %4161 = vmatpush.bf16.msra.mxu0 %v809
        %4162 = vmatpush.bf16.msra.mxu0 %v807
        %4163 = vmatpush.bf16.msra.mxu0 %v805
        %4164 = vmatpush.bf16.msra.mxu0 %v803
        %4165 = vmatpush.bf16.msra.mxu0 %v801
        %4166 = vmatpush.bf16.msra.mxu0 %v799
        %4167 = vmatpush.bf16.msra.mxu0 %v797
        %4168 = vmatpush.bf16.msra.mxu0 %v795
        %4169 = vmatmul.bf16.gmra.mxu0 %v3983
        %v4170 = vpop.f32.mrf.mxu0
        %v4171 = vadd.f32 %v4122, %v4170
        %v4172 = vpop.f32.mrf.mxu0
        %v4173 = vadd.f32 %v4124, %v4172
        %4174 = vmatmul.bf16.gmra.mxu0 %v3985
        %v4175 = vpop.f32.mrf.mxu0
        %v4176 = vadd.f32 %v4127, %v4175
        %v4177 = vpop.f32.mrf.mxu0
        %v4178 = vadd.f32 %v4129, %v4177
        %4179 = vmatmul.bf16.gmra.mxu0 %v3987
        %v4180 = vpop.f32.mrf.mxu0
        %v4181 = vadd.f32 %v4132, %v4180
        %v4182 = vpop.f32.mrf.mxu0
        %v4183 = vadd.f32 %v4134, %v4182
        %4184 = vmatmul.bf16.gmra.mxu0 %v3989
        %v4185 = vpop.f32.mrf.mxu0
        %v4186 = vadd.f32 %v4137, %v4185
        %v4187 = vpop.f32.mrf.mxu0
        %v4188 = vadd.f32 %v4139, %v4187
        %4189 = vmatmul.bf16.gmra.mxu0 %v3991
        %v4190 = vpop.f32.mrf.mxu0
        %v4191 = vadd.f32 %v4142, %v4190
        %v4192 = vpop.f32.mrf.mxu0
        %v4193 = vadd.f32 %v4144, %v4192
        %4194 = vmatmul.bf16.gmra.mxu0 %v3993
        %v4195 = vpop.f32.mrf.mxu0
        %v4196 = vadd.f32 %v4147, %v4195
        %v4197 = vpop.f32.mrf.mxu0
        %v4198 = vadd.f32 %v4149, %v4197
        %4199 = vmatmul.bf16.gmra.mxu0 %v3995
        %v4200 = vpop.f32.mrf.mxu0
        %v4201 = vadd.f32 %v4152, %v4200
        %v4202 = vpop.f32.mrf.mxu0
        %v4203 = vadd.f32 %v4154, %v4202
        %4204 = vmatmul.bf16.gmra.mxu0 %v3997
        %v4205 = vpop.f32.mrf.mxu0
        %v4206 = vadd.f32 %v4157, %v4205
        %v4207 = vpop.f32.mrf.mxu0
        %v4208 = vadd.f32 %v4159, %v4207
        %4209 = vdwg.mxu0
        %4210 = vrot.lane.b32.xlu0 %v4073, 112
        %v4211 = vpop.permute.xlu0 %4210
        %4212 = vrot.lane.b32.xlu0 %v4075, 112
        %v4213 = vpop.permute.xlu0 %4212
        %4214 = vrot.lane.b32.xlu0 %v4078, 112
        %v4215 = vpop.permute.xlu0 %4214
        %4216 = vrot.lane.b32.xlu0 %v4080, 112
        %v4217 = vpop.permute.xlu0 %4216
        %4218 = vrot.lane.b32.xlu0 %v4083, 112
        %v4219 = vpop.permute.xlu0 %4218
        %4220 = vrot.lane.b32.xlu0 %v4085, 112
        %v4221 = vpop.permute.xlu0 %4220
        %4222 = vrot.lane.b32.xlu0 %v4088, 112
        %v4223 = vpop.permute.xlu0 %4222
        %4224 = vrot.lane.b32.xlu0 %v4090, 112
        %v4225 = vpop.permute.xlu0 %4224
        %4226 = vrot.lane.b32.xlu0 %v4093, 112
        %v4227 = vpop.permute.xlu0 %4226
        %4228 = vrot.lane.b32.xlu0 %v4095, 112
        %v4229 = vpop.permute.xlu0 %4228
        %4230 = vrot.lane.b32.xlu0 %v4098, 112
        %v4231 = vpop.permute.xlu0 %4230
        %4232 = vrot.lane.b32.xlu0 %v4100, 112
        %v4233 = vpop.permute.xlu0 %4232
        %4234 = vrot.lane.b32.xlu0 %v4103, 112
        %v4235 = vpop.permute.xlu0 %4234
        %4236 = vrot.lane.b32.xlu0 %v4105, 112
        %v4237 = vpop.permute.xlu0 %4236
        %4238 = vrot.lane.b32.xlu0 %v4108, 112
        %v4239 = vpop.permute.xlu0 %4238
        %4240 = vrot.lane.b32.xlu0 %v4110, 112
        %v4241 = vpop.permute.xlu0 %4240
        %4242 = vrot.lane.b32.xlu0 %v4171, 112
        %v4243 = vpop.permute.xlu0 %4242
        %4244 = vrot.lane.b32.xlu0 %v4173, 112
        %v4245 = vpop.permute.xlu0 %4244
        %4246 = vrot.lane.b32.xlu0 %v4176, 112
        %v4247 = vpop.permute.xlu0 %4246
        %4248 = vrot.lane.b32.xlu0 %v4178, 112
        %v4249 = vpop.permute.xlu0 %4248
        %4250 = vrot.lane.b32.xlu0 %v4181, 112
        %v4251 = vpop.permute.xlu0 %4250
        %4252 = vrot.lane.b32.xlu0 %v4183, 112
        %v4253 = vpop.permute.xlu0 %4252
        %4254 = vrot.lane.b32.xlu0 %v4186, 112
        %v4255 = vpop.permute.xlu0 %4254
        %4256 = vrot.lane.b32.xlu0 %v4188, 112
        %v4257 = vpop.permute.xlu0 %4256
        %4258 = vrot.lane.b32.xlu0 %v4191, 112
        %v4259 = vpop.permute.xlu0 %4258
        %4260 = vrot.lane.b32.xlu0 %v4193, 112
        %v4261 = vpop.permute.xlu0 %4260
        %4262 = vrot.lane.b32.xlu0 %v4196, 112
        %v4263 = vpop.permute.xlu0 %4262
        %4264 = vrot.lane.b32.xlu0 %v4198, 112
        %v4265 = vpop.permute.xlu0 %4264
        %4266 = vrot.lane.b32.xlu0 %v4201, 112
        %v4267 = vpop.permute.xlu0 %4266
        %4268 = vrot.lane.b32.xlu0 %v4203, 112
        %v4269 = vpop.permute.xlu0 %4268
        %4270 = vrot.lane.b32.xlu0 %v4206, 112
        %v4271 = vpop.permute.xlu0 %4270
        %4272 = vrot.lane.b32.xlu0 %v4208, 112
        %v4273 = vpop.permute.xlu0 %4272
        %vm4274 = vcmp.lt.s32.totalorder %v1183, 112
        %v4275 = vsel %vm4274, %v4211, %v4243
        %v4276 = vsel %vm4274, %v4213, %v4245
        %v4277 = vsel %vm4274, %v4215, %v4247
        %v4278 = vsel %vm4274, %v4217, %v4249
        %v4279 = vsel %vm4274, %v4219, %v4251
        %v4280 = vsel %vm4274, %v4221, %v4253
        %v4281 = vsel %vm4274, %v4223, %v4255
        %v4282 = vsel %vm4274, %v4225, %v4257
        %v4283 = vsel %vm4274, %v4227, %v4259
        %v4284 = vsel %vm4274, %v4229, %v4261
        %v4285 = vsel %vm4274, %v4231, %v4263
        %v4286 = vsel %vm4274, %v4233, %v4265
        %v4287 = vsel %vm4274, %v4235, %v4267
        %v4288 = vsel %vm4274, %v4237, %v4269
        %v4289 = vsel %vm4274, %v4239, %v4271
        %v4290 = vsel %vm4274, %v4241, %v4273
        %v4291 = vsel %vm4274, %v4243, %v4211
        %v4292 = vsel %vm4274, %v4245, %v4213
        %v4293 = vsel %vm4274, %v4247, %v4215
        %v4294 = vsel %vm4274, %v4249, %v4217
        %v4295 = vsel %vm4274, %v4251, %v4219
        %v4296 = vsel %vm4274, %v4253, %v4221
        %v4297 = vsel %vm4274, %v4255, %v4223
        %v4298 = vsel %vm4274, %v4257, %v4225
        %v4299 = vsel %vm4274, %v4259, %v4227
        %v4300 = vsel %vm4274, %v4261, %v4229
        %v4301 = vsel %vm4274, %v4263, %v4231
        %v4302 = vsel %vm4274, %v4265, %v4233
        %v4303 = vsel %vm4274, %v4267, %v4235
        %v4304 = vsel %vm4274, %v4269, %v4237
        %v4305 = vsel %vm4274, %v4271, %v4239
        %v4306 = vsel %vm4274, %v4273, %v4241
        %s4307 = scalar_lea.vmem [#allocation5], 14
        %v4308 = vld [vmem:[%s4307] sm:$0x3]
        %v4310 = vperm.slane %v4308, 0
        %v4311 = vperm.slane %v4308, 1
        %v4314 = vmul.f32 %v4275, %v4310
        %v4315 = vmul.f32 %v4291, %v4311
        %v4316 = vmul.f32 %v4276, %v4310
        %v4317 = vmul.f32 %v4292, %v4311
        %v4318 = vmul.f32 %v4277, %v4310
        %v4319 = vmul.f32 %v4293, %v4311
        %v4320 = vmul.f32 %v4278, %v4310
        %v4321 = vmul.f32 %v4294, %v4311
        %v4322 = vmul.f32 %v4279, %v4310
        %v4323 = vmul.f32 %v4295, %v4311
        %v4324 = vmul.f32 %v4280, %v4310
        %v4325 = vmul.f32 %v4296, %v4311
        %v4326 = vmul.f32 %v4281, %v4310
        %v4327 = vmul.f32 %v4297, %v4311
        %v4328 = vmul.f32 %v4282, %v4310
        %v4329 = vmul.f32 %v4298, %v4311
        %v4330 = vmul.f32 %v4283, %v4310
        %v4331 = vmul.f32 %v4299, %v4311
        %v4332 = vmul.f32 %v4284, %v4310
        %v4333 = vmul.f32 %v4300, %v4311
        %v4334 = vmul.f32 %v4285, %v4310
        %v4335 = vmul.f32 %v4301, %v4311
        %v4336 = vmul.f32 %v4286, %v4310
        %v4337 = vmul.f32 %v4302, %v4311
        %v4338 = vmul.f32 %v4287, %v4310
        %v4339 = vmul.f32 %v4303, %v4311
        %v4340 = vmul.f32 %v4288, %v4310
        %v4341 = vmul.f32 %v4304, %v4311
        %v4342 = vmul.f32 %v4289, %v4310
        %v4343 = vmul.f32 %v4305, %v4311
        %v4344 = vmul.f32 %v4290, %v4310
        %v4345 = vmul.f32 %v4306, %v4311
        %v4346 = vadd.f32 %v3885, %v4314
        %v4347 = vadd.f32 %v3886, %v4315
        %v4348 = vadd.f32 %v3887, %v4316
        %v4349 = vadd.f32 %v3888, %v4317
        %v4350 = vadd.f32 %v3889, %v4318
        %v4351 = vadd.f32 %v3890, %v4319
        %v4352 = vadd.f32 %v3891, %v4320
        %v4353 = vadd.f32 %v3892, %v4321
        %v4354 = vadd.f32 %v3893, %v4322
        %v4355 = vadd.f32 %v3894, %v4323
        %v4356 = vadd.f32 %v3895, %v4324
        %v4357 = vadd.f32 %v3896, %v4325
        %v4358 = vadd.f32 %v3897, %v4326
        %v4359 = vadd.f32 %v3898, %v4327
        %v4360 = vadd.f32 %v3899, %v4328
        %v4361 = vadd.f32 %v3900, %v4329
        %v4362 = vadd.f32 %v3901, %v4330
        %v4363 = vadd.f32 %v3902, %v4331
        %v4364 = vadd.f32 %v3903, %v4332
        %v4365 = vadd.f32 %v3904, %v4333
        %v4366 = vadd.f32 %v3905, %v4334
        %v4367 = vadd.f32 %v3906, %v4335
        %v4368 = vadd.f32 %v3907, %v4336
        %v4369 = vadd.f32 %v3908, %v4337
        %v4370 = vadd.f32 %v3909, %v4338
        %v4371 = vadd.f32 %v3910, %v4339
        %v4372 = vadd.f32 %v3911, %v4340
        %v4373 = vadd.f32 %v3912, %v4341
        %v4374 = vadd.f32 %v3913, %v4342
        %v4375 = vadd.f32 %v3914, %v4343
        %v4376 = vadd.f32 %v3915, %v4344
        %v4377 = vadd.f32 %v3916, %v4345
        %s4378 = scalar_lea.vmem [#allocation7], 1024
        %v4379 = vld [vmem:[%s4378] sm:$0xff]
        %v4380 = vld [vmem:[%s4378 + $0x8] sm:$0xff]
        %v4381 = vld [vmem:[%s4378 + $0x10] sm:$0xff]
        %v4382 = vld [vmem:[%s4378 + $0x18] sm:$0xff]
        %v4383 = vld [vmem:[%s4378 + $0x20] sm:$0xff]
        %v4384 = vld [vmem:[%s4378 + $0x28] sm:$0xff]
        %v4385 = vld [vmem:[%s4378 + $0x30] sm:$0xff]
        %v4386 = vld [vmem:[%s4378 + $0x38] sm:$0xff]
        %v4387 = vld [vmem:[%s4378 + $0x40] sm:$0xff]
        %v4388 = vld [vmem:[%s4378 + $0x48] sm:$0xff]
        %v4389 = vld [vmem:[%s4378 + $0x50] sm:$0xff]
        %v4390 = vld [vmem:[%s4378 + $0x58] sm:$0xff]
        %v4391 = vld [vmem:[%s4378 + $0x60] sm:$0xff]
        %v4392 = vld [vmem:[%s4378 + $0x68] sm:$0xff]
        %v4393 = vld [vmem:[%s4378 + $0x70] sm:$0xff]
        %v4394 = vld [vmem:[%s4378 + $0x78] sm:$0xff]
        %v4411 = vunpack.c.l.b16 %v4379
        %v4412 = vunpack.c.h.b16 %v4379
        %v4413 = vunpack.c.l.b16 %v4380
        %v4414 = vunpack.c.h.b16 %v4380
        %v4415 = vunpack.c.l.b16 %v4381
        %v4416 = vunpack.c.h.b16 %v4381
        %v4417 = vunpack.c.l.b16 %v4382
        %v4418 = vunpack.c.h.b16 %v4382
        %v4419 = vunpack.c.l.b16 %v4383
        %v4420 = vunpack.c.h.b16 %v4383
        %v4421 = vunpack.c.l.b16 %v4384
        %v4422 = vunpack.c.h.b16 %v4384
        %v4423 = vunpack.c.l.b16 %v4385
        %v4424 = vunpack.c.h.b16 %v4385
        %v4425 = vunpack.c.l.b16 %v4386
        %v4426 = vunpack.c.h.b16 %v4386
        %v4427 = vunpack.c.l.b16 %v4387
        %v4428 = vunpack.c.h.b16 %v4387
        %v4429 = vunpack.c.l.b16 %v4388
        %v4430 = vunpack.c.h.b16 %v4388
        %v4431 = vunpack.c.l.b16 %v4389
        %v4432 = vunpack.c.h.b16 %v4389
        %v4433 = vunpack.c.l.b16 %v4390
        %v4434 = vunpack.c.h.b16 %v4390
        %v4435 = vunpack.c.l.b16 %v4391
        %v4436 = vunpack.c.h.b16 %v4391
        %v4437 = vunpack.c.l.b16 %v4392
        %v4438 = vunpack.c.h.b16 %v4392
        %v4439 = vunpack.c.l.b16 %v4393
        %v4440 = vunpack.c.h.b16 %v4393
        %v4441 = vunpack.c.l.b16 %v4394
        %v4442 = vunpack.c.h.b16 %v4394
        %v4443 = vpack.c.b16 %v4413, %v4411
        %v4444 = vpack.c.b16 %v4414, %v4412
        %v4445 = vpack.c.b16 %v4417, %v4415
        %v4446 = vpack.c.b16 %v4418, %v4416
        %v4447 = vpack.c.b16 %v4421, %v4419
        %v4448 = vpack.c.b16 %v4422, %v4420
        %v4449 = vpack.c.b16 %v4425, %v4423
        %v4450 = vpack.c.b16 %v4426, %v4424
        %v4451 = vpack.c.b16 %v4429, %v4427
        %v4452 = vpack.c.b16 %v4430, %v4428
        %v4453 = vpack.c.b16 %v4433, %v4431
        %v4454 = vpack.c.b16 %v4434, %v4432
        %v4455 = vpack.c.b16 %v4437, %v4435
        %v4456 = vpack.c.b16 %v4438, %v4436
        %v4457 = vpack.c.b16 %v4441, %v4439
        %v4458 = vpack.c.b16 %v4442, %v4440
        %4475 = vmatpush.bf16.msra.mxu0 %v728
        %4476 = vmatpush.bf16.msra.mxu0 %v726
        %4477 = vmatpush.bf16.msra.mxu0 %v724
        %4478 = vmatpush.bf16.msra.mxu0 %v722
        %4479 = vmatpush.bf16.msra.mxu0 %v720
        %4480 = vmatpush.bf16.msra.mxu0 %v718
        %4481 = vmatpush.bf16.msra.mxu0 %v716
        %4482 = vmatpush.bf16.msra.mxu0 %v714
        %4483 = vmatmul.bf16.gmra.mxu0 %v4443
        %v4484 = vpop.f32.mrf.mxu0
        %v4485 = vadd.f32 0.0, %v4484
        %v4486 = vpop.f32.mrf.mxu0
        %v4487 = vadd.f32 0.0, %v4486
        %4488 = vmatmul.bf16.gmra.mxu0 %v4445
        %v4489 = vpop.f32.mrf.mxu0
        %v4490 = vadd.f32 0.0, %v4489
        %v4491 = vpop.f32.mrf.mxu0
        %v4492 = vadd.f32 0.0, %v4491
        %4493 = vmatmul.bf16.gmra.mxu0 %v4447
        %v4494 = vpop.f32.mrf.mxu0
        %v4495 = vadd.f32 0.0, %v4494
        %v4496 = vpop.f32.mrf.mxu0
        %v4497 = vadd.f32 0.0, %v4496
        %4498 = vmatmul.bf16.gmra.mxu0 %v4449
        %v4499 = vpop.f32.mrf.mxu0
        %v4500 = vadd.f32 0.0, %v4499
        %v4501 = vpop.f32.mrf.mxu0
        %v4502 = vadd.f32 0.0, %v4501
        %4503 = vmatmul.bf16.gmra.mxu0 %v4451
        %v4504 = vpop.f32.mrf.mxu0
        %v4505 = vadd.f32 0.0, %v4504
        %v4506 = vpop.f32.mrf.mxu0
        %v4507 = vadd.f32 0.0, %v4506
        %4508 = vmatmul.bf16.gmra.mxu0 %v4453
        %v4509 = vpop.f32.mrf.mxu0
        %v4510 = vadd.f32 0.0, %v4509
        %v4511 = vpop.f32.mrf.mxu0
        %v4512 = vadd.f32 0.0, %v4511
        %4513 = vmatmul.bf16.gmra.mxu0 %v4455
        %v4514 = vpop.f32.mrf.mxu0
        %v4515 = vadd.f32 0.0, %v4514
        %v4516 = vpop.f32.mrf.mxu0
        %v4517 = vadd.f32 0.0, %v4516
        %4518 = vmatmul.bf16.gmra.mxu0 %v4457
        %v4519 = vpop.f32.mrf.mxu0
        %v4520 = vadd.f32 0.0, %v4519
        %v4521 = vpop.f32.mrf.mxu0
        %v4522 = vadd.f32 0.0, %v4521
        %4523 = vdwg.mxu0
        %4524 = vmatpush.bf16.msra.mxu0 %v808
        %4525 = vmatpush.bf16.msra.mxu0 %v806
        %4526 = vmatpush.bf16.msra.mxu0 %v804
        %4527 = vmatpush.bf16.msra.mxu0 %v802
        %4528 = vmatpush.bf16.msra.mxu0 %v800
        %4529 = vmatpush.bf16.msra.mxu0 %v798
        %4530 = vmatpush.bf16.msra.mxu0 %v796
        %4531 = vmatpush.bf16.msra.mxu0 %v794
        %4532 = vmatmul.bf16.gmra.mxu0 %v4444
        %v4533 = vpop.f32.mrf.mxu0
        %v4534 = vadd.f32 %v4485, %v4533
        %v4535 = vpop.f32.mrf.mxu0
        %v4536 = vadd.f32 %v4487, %v4535
        %4537 = vmatmul.bf16.gmra.mxu0 %v4446
        %v4538 = vpop.f32.mrf.mxu0
        %v4539 = vadd.f32 %v4490, %v4538
        %v4540 = vpop.f32.mrf.mxu0
        %v4541 = vadd.f32 %v4492, %v4540
        %4542 = vmatmul.bf16.gmra.mxu0 %v4448
        %v4543 = vpop.f32.mrf.mxu0
        %v4544 = vadd.f32 %v4495, %v4543
        %v4545 = vpop.f32.mrf.mxu0
        %v4546 = vadd.f32 %v4497, %v4545
        %4547 = vmatmul.bf16.gmra.mxu0 %v4450
        %v4548 = vpop.f32.mrf.mxu0
        %v4549 = vadd.f32 %v4500, %v4548
        %v4550 = vpop.f32.mrf.mxu0
        %v4551 = vadd.f32 %v4502, %v4550
        %4552 = vmatmul.bf16.gmra.mxu0 %v4452
        %v4553 = vpop.f32.mrf.mxu0
        %v4554 = vadd.f32 %v4505, %v4553
        %v4555 = vpop.f32.mrf.mxu0
        %v4556 = vadd.f32 %v4507, %v4555
        %4557 = vmatmul.bf16.gmra.mxu0 %v4454
        %v4558 = vpop.f32.mrf.mxu0
        %v4559 = vadd.f32 %v4510, %v4558
        %v4560 = vpop.f32.mrf.mxu0
        %v4561 = vadd.f32 %v4512, %v4560
        %4562 = vmatmul.bf16.gmra.mxu0 %v4456
        %v4563 = vpop.f32.mrf.mxu0
        %v4564 = vadd.f32 %v4515, %v4563
        %v4565 = vpop.f32.mrf.mxu0
        %v4566 = vadd.f32 %v4517, %v4565
        %4567 = vmatmul.bf16.gmra.mxu0 %v4458
        %v4568 = vpop.f32.mrf.mxu0
        %v4569 = vadd.f32 %v4520, %v4568
        %v4570 = vpop.f32.mrf.mxu0
        %v4571 = vadd.f32 %v4522, %v4570
        %4572 = vdwg.mxu0
        %4573 = vmatpush.bf16.msra.mxu0 %v729
        %4574 = vmatpush.bf16.msra.mxu0 %v727
        %4575 = vmatpush.bf16.msra.mxu0 %v725
        %4576 = vmatpush.bf16.msra.mxu0 %v723
        %4577 = vmatpush.bf16.msra.mxu0 %v721
        %4578 = vmatpush.bf16.msra.mxu0 %v719
        %4579 = vmatpush.bf16.msra.mxu0 %v717
        %4580 = vmatpush.bf16.msra.mxu0 %v715
        %4581 = vmatmul.bf16.gmra.mxu0 %v4443
        %v4582 = vpop.f32.mrf.mxu0
        %v4583 = vadd.f32 0.0, %v4582
        %v4584 = vpop.f32.mrf.mxu0
        %v4585 = vadd.f32 0.0, %v4584
        %4586 = vmatmul.bf16.gmra.mxu0 %v4445
        %v4587 = vpop.f32.mrf.mxu0
        %v4588 = vadd.f32 0.0, %v4587
        %v4589 = vpop.f32.mrf.mxu0
        %v4590 = vadd.f32 0.0, %v4589
        %4591 = vmatmul.bf16.gmra.mxu0 %v4447
        %v4592 = vpop.f32.mrf.mxu0
        %v4593 = vadd.f32 0.0, %v4592
        %v4594 = vpop.f32.mrf.mxu0
        %v4595 = vadd.f32 0.0, %v4594
        %4596 = vmatmul.bf16.gmra.mxu0 %v4449
        %v4597 = vpop.f32.mrf.mxu0
        %v4598 = vadd.f32 0.0, %v4597
        %v4599 = vpop.f32.mrf.mxu0
        %v4600 = vadd.f32 0.0, %v4599
        %4601 = vmatmul.bf16.gmra.mxu0 %v4451
        %v4602 = vpop.f32.mrf.mxu0
        %v4603 = vadd.f32 0.0, %v4602
        %v4604 = vpop.f32.mrf.mxu0
        %v4605 = vadd.f32 0.0, %v4604
        %4606 = vmatmul.bf16.gmra.mxu0 %v4453
        %v4607 = vpop.f32.mrf.mxu0
        %v4608 = vadd.f32 0.0, %v4607
        %v4609 = vpop.f32.mrf.mxu0
        %v4610 = vadd.f32 0.0, %v4609
        %4611 = vmatmul.bf16.gmra.mxu0 %v4455
        %v4612 = vpop.f32.mrf.mxu0
        %v4613 = vadd.f32 0.0, %v4612
        %v4614 = vpop.f32.mrf.mxu0
        %v4615 = vadd.f32 0.0, %v4614
        %4616 = vmatmul.bf16.gmra.mxu0 %v4457
        %v4617 = vpop.f32.mrf.mxu0
        %v4618 = vadd.f32 0.0, %v4617
        %v4619 = vpop.f32.mrf.mxu0
        %v4620 = vadd.f32 0.0, %v4619
        %4621 = vdwg.mxu0
        %4622 = vmatpush.bf16.msra.mxu0 %v809
        %4623 = vmatpush.bf16.msra.mxu0 %v807
        %4624 = vmatpush.bf16.msra.mxu0 %v805
        %4625 = vmatpush.bf16.msra.mxu0 %v803
        %4626 = vmatpush.bf16.msra.mxu0 %v801
        %4627 = vmatpush.bf16.msra.mxu0 %v799
        %4628 = vmatpush.bf16.msra.mxu0 %v797
        %4629 = vmatpush.bf16.msra.mxu0 %v795
        %4630 = vmatmul.bf16.gmra.mxu0 %v4444
        %v4631 = vpop.f32.mrf.mxu0
        %v4632 = vadd.f32 %v4583, %v4631
        %v4633 = vpop.f32.mrf.mxu0
        %v4634 = vadd.f32 %v4585, %v4633
        %4635 = vmatmul.bf16.gmra.mxu0 %v4446
        %v4636 = vpop.f32.mrf.mxu0
        %v4637 = vadd.f32 %v4588, %v4636
        %v4638 = vpop.f32.mrf.mxu0
        %v4639 = vadd.f32 %v4590, %v4638
        %4640 = vmatmul.bf16.gmra.mxu0 %v4448
        %v4641 = vpop.f32.mrf.mxu0
        %v4642 = vadd.f32 %v4593, %v4641
        %v4643 = vpop.f32.mrf.mxu0
        %v4644 = vadd.f32 %v4595, %v4643
        %4645 = vmatmul.bf16.gmra.mxu0 %v4450
        %v4646 = vpop.f32.mrf.mxu0
        %v4647 = vadd.f32 %v4598, %v4646
        %v4648 = vpop.f32.mrf.mxu0
        %v4649 = vadd.f32 %v4600, %v4648
        %4650 = vmatmul.bf16.gmra.mxu0 %v4452
        %v4651 = vpop.f32.mrf.mxu0
        %v4652 = vadd.f32 %v4603, %v4651
        %v4653 = vpop.f32.mrf.mxu0
        %v4654 = vadd.f32 %v4605, %v4653
        %4655 = vmatmul.bf16.gmra.mxu0 %v4454
        %v4656 = vpop.f32.mrf.mxu0
        %v4657 = vadd.f32 %v4608, %v4656
        %v4658 = vpop.f32.mrf.mxu0
        %v4659 = vadd.f32 %v4610, %v4658
        %4660 = vmatmul.bf16.gmra.mxu0 %v4456
        %v4661 = vpop.f32.mrf.mxu0
        %v4662 = vadd.f32 %v4613, %v4661
        %v4663 = vpop.f32.mrf.mxu0
        %v4664 = vadd.f32 %v4615, %v4663
        %4665 = vmatmul.bf16.gmra.mxu0 %v4458
        %v4666 = vpop.f32.mrf.mxu0
        %v4667 = vadd.f32 %v4618, %v4666
        %v4668 = vpop.f32.mrf.mxu0
        %v4669 = vadd.f32 %v4620, %v4668
        %4670 = vdwg.mxu0
        %4671 = vrot.lane.b32.xlu0 %v4534, 111
        %v4672 = vpop.permute.xlu0 %4671
        %4673 = vrot.lane.b32.xlu0 %v4536, 111
        %v4674 = vpop.permute.xlu0 %4673
        %4675 = vrot.lane.b32.xlu0 %v4539, 111
        %v4676 = vpop.permute.xlu0 %4675
        %4677 = vrot.lane.b32.xlu0 %v4541, 111
        %v4678 = vpop.permute.xlu0 %4677
        %4679 = vrot.lane.b32.xlu0 %v4544, 111
        %v4680 = vpop.permute.xlu0 %4679
        %4681 = vrot.lane.b32.xlu0 %v4546, 111
        %v4682 = vpop.permute.xlu0 %4681
        %4683 = vrot.lane.b32.xlu0 %v4549, 111
        %v4684 = vpop.permute.xlu0 %4683
        %4685 = vrot.lane.b32.xlu0 %v4551, 111
        %v4686 = vpop.permute.xlu0 %4685
        %4687 = vrot.lane.b32.xlu0 %v4554, 111
        %v4688 = vpop.permute.xlu0 %4687
        %4689 = vrot.lane.b32.xlu0 %v4556, 111
        %v4690 = vpop.permute.xlu0 %4689
        %4691 = vrot.lane.b32.xlu0 %v4559, 111
        %v4692 = vpop.permute.xlu0 %4691
        %4693 = vrot.lane.b32.xlu0 %v4561, 111
        %v4694 = vpop.permute.xlu0 %4693
        %4695 = vrot.lane.b32.xlu0 %v4564, 111
        %v4696 = vpop.permute.xlu0 %4695
        %4697 = vrot.lane.b32.xlu0 %v4566, 111
        %v4698 = vpop.permute.xlu0 %4697
        %4699 = vrot.lane.b32.xlu0 %v4569, 111
        %v4700 = vpop.permute.xlu0 %4699
        %4701 = vrot.lane.b32.xlu0 %v4571, 111
        %v4702 = vpop.permute.xlu0 %4701
        %4703 = vrot.lane.b32.xlu0 %v4632, 111
        %v4704 = vpop.permute.xlu0 %4703
        %4705 = vrot.lane.b32.xlu0 %v4634, 111
        %v4706 = vpop.permute.xlu0 %4705
        %4707 = vrot.lane.b32.xlu0 %v4637, 111
        %v4708 = vpop.permute.xlu0 %4707
        %4709 = vrot.lane.b32.xlu0 %v4639, 111
        %v4710 = vpop.permute.xlu0 %4709
        %4711 = vrot.lane.b32.xlu0 %v4642, 111
        %v4712 = vpop.permute.xlu0 %4711
        %4713 = vrot.lane.b32.xlu0 %v4644, 111
        %v4714 = vpop.permute.xlu0 %4713
        %4715 = vrot.lane.b32.xlu0 %v4647, 111
        %v4716 = vpop.permute.xlu0 %4715
        %4717 = vrot.lane.b32.xlu0 %v4649, 111
        %v4718 = vpop.permute.xlu0 %4717
        %4719 = vrot.lane.b32.xlu0 %v4652, 111
        %v4720 = vpop.permute.xlu0 %4719
        %4721 = vrot.lane.b32.xlu0 %v4654, 111
        %v4722 = vpop.permute.xlu0 %4721
        %4723 = vrot.lane.b32.xlu0 %v4657, 111
        %v4724 = vpop.permute.xlu0 %4723
        %4725 = vrot.lane.b32.xlu0 %v4659, 111
        %v4726 = vpop.permute.xlu0 %4725
        %4727 = vrot.lane.b32.xlu0 %v4662, 111
        %v4728 = vpop.permute.xlu0 %4727
        %4729 = vrot.lane.b32.xlu0 %v4664, 111
        %v4730 = vpop.permute.xlu0 %4729
        %4731 = vrot.lane.b32.xlu0 %v4667, 111
        %v4732 = vpop.permute.xlu0 %4731
        %4733 = vrot.lane.b32.xlu0 %v4669, 111
        %v4734 = vpop.permute.xlu0 %4733
        %vm4735 = vcmp.lt.s32.totalorder %v1183, 111
        %v4736 = vsel %vm4735, %v4672, %v4704
        %v4737 = vsel %vm4735, %v4674, %v4706
        %v4738 = vsel %vm4735, %v4676, %v4708
        %v4739 = vsel %vm4735, %v4678, %v4710
        %v4740 = vsel %vm4735, %v4680, %v4712
        %v4741 = vsel %vm4735, %v4682, %v4714
        %v4742 = vsel %vm4735, %v4684, %v4716
        %v4743 = vsel %vm4735, %v4686, %v4718
        %v4744 = vsel %vm4735, %v4688, %v4720
        %v4745 = vsel %vm4735, %v4690, %v4722
        %v4746 = vsel %vm4735, %v4692, %v4724
        %v4747 = vsel %vm4735, %v4694, %v4726
        %v4748 = vsel %vm4735, %v4696, %v4728
        %v4749 = vsel %vm4735, %v4698, %v4730
        %v4750 = vsel %vm4735, %v4700, %v4732
        %v4751 = vsel %vm4735, %v4702, %v4734
        %v4752 = vsel %vm4735, %v4704, %v4672
        %v4753 = vsel %vm4735, %v4706, %v4674
        %v4754 = vsel %vm4735, %v4708, %v4676
        %v4755 = vsel %vm4735, %v4710, %v4678
        %v4756 = vsel %vm4735, %v4712, %v4680
        %v4757 = vsel %vm4735, %v4714, %v4682
        %v4758 = vsel %vm4735, %v4716, %v4684
        %v4759 = vsel %vm4735, %v4718, %v4686
        %v4760 = vsel %vm4735, %v4720, %v4688
        %v4761 = vsel %vm4735, %v4722, %v4690
        %v4762 = vsel %vm4735, %v4724, %v4692
        %v4763 = vsel %vm4735, %v4726, %v4694
        %v4764 = vsel %vm4735, %v4728, %v4696
        %v4765 = vsel %vm4735, %v4730, %v4698
        %v4766 = vsel %vm4735, %v4732, %v4700
        %v4767 = vsel %vm4735, %v4734, %v4702
        %s4768 = scalar_lea.vmem [#allocation5], 16
        %v4769 = vld [vmem:[%s4768] sm:$0x3]
        %v4771 = vperm.slane %v4769, 0
        %v4772 = vperm.slane %v4769, 1
        %v4775 = vmul.f32 %v4736, %v4771
        %v4776 = vmul.f32 %v4752, %v4772
        %v4777 = vmul.f32 %v4737, %v4771
        %v4778 = vmul.f32 %v4753, %v4772
        %v4779 = vmul.f32 %v4738, %v4771
        %v4780 = vmul.f32 %v4754, %v4772
        %v4781 = vmul.f32 %v4739, %v4771
        %v4782 = vmul.f32 %v4755, %v4772
        %v4783 = vmul.f32 %v4740, %v4771
        %v4784 = vmul.f32 %v4756, %v4772
        %v4785 = vmul.f32 %v4741, %v4771
        %v4786 = vmul.f32 %v4757, %v4772
        %v4787 = vmul.f32 %v4742, %v4771
        %v4788 = vmul.f32 %v4758, %v4772
        %v4789 = vmul.f32 %v4743, %v4771
        %v4790 = vmul.f32 %v4759, %v4772
        %v4791 = vmul.f32 %v4744, %v4771
        %v4792 = vmul.f32 %v4760, %v4772
        %v4793 = vmul.f32 %v4745, %v4771
        %v4794 = vmul.f32 %v4761, %v4772
        %v4795 = vmul.f32 %v4746, %v4771
        %v4796 = vmul.f32 %v4762, %v4772
        %v4797 = vmul.f32 %v4747, %v4771
        %v4798 = vmul.f32 %v4763, %v4772
        %v4799 = vmul.f32 %v4748, %v4771
        %v4800 = vmul.f32 %v4764, %v4772
        %v4801 = vmul.f32 %v4749, %v4771
        %v4802 = vmul.f32 %v4765, %v4772
        %v4803 = vmul.f32 %v4750, %v4771
        %v4804 = vmul.f32 %v4766, %v4772
        %v4805 = vmul.f32 %v4751, %v4771
        %v4806 = vmul.f32 %v4767, %v4772
        %v4807 = vadd.f32 %v4346, %v4775
        %v4808 = vadd.f32 %v4347, %v4776
        %v4809 = vadd.f32 %v4348, %v4777
        %v4810 = vadd.f32 %v4349, %v4778
        %v4811 = vadd.f32 %v4350, %v4779
        %v4812 = vadd.f32 %v4351, %v4780
        %v4813 = vadd.f32 %v4352, %v4781
        %v4814 = vadd.f32 %v4353, %v4782
        %v4815 = vadd.f32 %v4354, %v4783
        %v4816 = vadd.f32 %v4355, %v4784
        %v4817 = vadd.f32 %v4356, %v4785
        %v4818 = vadd.f32 %v4357, %v4786
        %v4819 = vadd.f32 %v4358, %v4787
        %v4820 = vadd.f32 %v4359, %v4788
        %v4821 = vadd.f32 %v4360, %v4789
        %v4822 = vadd.f32 %v4361, %v4790
        %v4823 = vadd.f32 %v4362, %v4791
        %v4824 = vadd.f32 %v4363, %v4792
        %v4825 = vadd.f32 %v4364, %v4793
        %v4826 = vadd.f32 %v4365, %v4794
        %v4827 = vadd.f32 %v4366, %v4795
        %v4828 = vadd.f32 %v4367, %v4796
        %v4829 = vadd.f32 %v4368, %v4797
        %v4830 = vadd.f32 %v4369, %v4798
        %v4831 = vadd.f32 %v4370, %v4799
        %v4832 = vadd.f32 %v4371, %v4800
        %v4833 = vadd.f32 %v4372, %v4801
        %v4834 = vadd.f32 %v4373, %v4802
        %v4835 = vadd.f32 %v4374, %v4803
        %v4836 = vadd.f32 %v4375, %v4804
        %v4837 = vadd.f32 %v4376, %v4805
        %v4838 = vadd.f32 %v4377, %v4806
        %v4839 = vld [vmem:[%s6] sm:$0xff]
        %v4840 = vld [vmem:[%s6 + $0x8] sm:$0xff]
        %v4841 = vld [vmem:[%s6 + $0x10] sm:$0xff]
        %v4842 = vld [vmem:[%s6 + $0x18] sm:$0xff]
        %v4843 = vld [vmem:[%s6 + $0x20] sm:$0xff]
        %v4844 = vld [vmem:[%s6 + $0x28] sm:$0xff]
        %v4845 = vld [vmem:[%s6 + $0x30] sm:$0xff]
        %v4846 = vld [vmem:[%s6 + $0x38] sm:$0xff]
        %v4847 = vld [vmem:[%s6 + $0x40] sm:$0xff]
        %v4848 = vld [vmem:[%s6 + $0x48] sm:$0xff]
        %v4849 = vld [vmem:[%s6 + $0x50] sm:$0xff]
        %v4850 = vld [vmem:[%s6 + $0x58] sm:$0xff]
        %v4851 = vld [vmem:[%s6 + $0x60] sm:$0xff]
        %v4852 = vld [vmem:[%s6 + $0x68] sm:$0xff]
        %v4853 = vld [vmem:[%s6 + $0x70] sm:$0xff]
        %v4854 = vld [vmem:[%s6 + $0x78] sm:$0xff]
        %4856 = vset.pattern.permute.xlu0 0
        %4857 = vperm.xlu0 %4856, %v4839
        %v4858 = vpop.permute.xlu0 %4857
        %4861 = vset.pattern.permute.xlu0 0
        %4862 = vperm.xlu0 %4861, %v4840
        %v4863 = vpop.permute.xlu0 %4862
        %4866 = vset.pattern.permute.xlu0 0
        %4867 = vperm.xlu0 %4866, %v4841
        %v4868 = vpop.permute.xlu0 %4867
        %4871 = vset.pattern.permute.xlu0 0
        %4872 = vperm.xlu0 %4871, %v4842
        %v4873 = vpop.permute.xlu0 %4872
        %4876 = vset.pattern.permute.xlu0 0
        %4877 = vperm.xlu0 %4876, %v4843
        %v4878 = vpop.permute.xlu0 %4877
        %4881 = vset.pattern.permute.xlu0 0
        %4882 = vperm.xlu0 %4881, %v4844
        %v4883 = vpop.permute.xlu0 %4882
        %4886 = vset.pattern.permute.xlu0 0
        %4887 = vperm.xlu0 %4886, %v4845
        %v4888 = vpop.permute.xlu0 %4887
        %4891 = vset.pattern.permute.xlu0 0
        %4892 = vperm.xlu0 %4891, %v4846
        %v4893 = vpop.permute.xlu0 %4892
        %4896 = vset.pattern.permute.xlu0 0
        %4897 = vperm.xlu0 %4896, %v4847
        %v4898 = vpop.permute.xlu0 %4897
        %4901 = vset.pattern.permute.xlu0 0
        %4902 = vperm.xlu0 %4901, %v4848
        %v4903 = vpop.permute.xlu0 %4902
        %4906 = vset.pattern.permute.xlu0 0
        %4907 = vperm.xlu0 %4906, %v4849
        %v4908 = vpop.permute.xlu0 %4907
        %4911 = vset.pattern.permute.xlu0 0
        %4912 = vperm.xlu0 %4911, %v4850
        %v4913 = vpop.permute.xlu0 %4912
        %4916 = vset.pattern.permute.xlu0 0
        %4917 = vperm.xlu0 %4916, %v4851
        %v4918 = vpop.permute.xlu0 %4917
        %4921 = vset.pattern.permute.xlu0 0
        %4922 = vperm.xlu0 %4921, %v4852
        %v4923 = vpop.permute.xlu0 %4922
        %4926 = vset.pattern.permute.xlu0 0
        %4927 = vperm.xlu0 %4926, %v4853
        %v4928 = vpop.permute.xlu0 %4927
        %4931 = vset.pattern.permute.xlu0 0
        %4932 = vperm.xlu0 %4931, %v4854
        %v4933 = vpop.permute.xlu0 %4932
        %v4935 = vadd.f32 %v4807, %v4858
        %v4936 = vadd.f32 %v4808, %v4858
        %v4937 = vadd.f32 %v4809, %v4863
        %v4938 = vadd.f32 %v4810, %v4863
        %v4939 = vadd.f32 %v4811, %v4868
        %v4940 = vadd.f32 %v4812, %v4868
        %v4941 = vadd.f32 %v4813, %v4873
        %v4942 = vadd.f32 %v4814, %v4873
        %v4943 = vadd.f32 %v4815, %v4878
        %v4944 = vadd.f32 %v4816, %v4878
        %v4945 = vadd.f32 %v4817, %v4883
        %v4946 = vadd.f32 %v4818, %v4883
        %v4947 = vadd.f32 %v4819, %v4888
        %v4948 = vadd.f32 %v4820, %v4888
        %v4949 = vadd.f32 %v4821, %v4893
        %v4950 = vadd.f32 %v4822, %v4893
        %v4951 = vadd.f32 %v4823, %v4898
        %v4952 = vadd.f32 %v4824, %v4898
        %v4953 = vadd.f32 %v4825, %v4903
        %v4954 = vadd.f32 %v4826, %v4903
        %v4955 = vadd.f32 %v4827, %v4908
        %v4956 = vadd.f32 %v4828, %v4908
        %v4957 = vadd.f32 %v4829, %v4913
        %v4958 = vadd.f32 %v4830, %v4913
        %v4959 = vadd.f32 %v4831, %v4918
        %v4960 = vadd.f32 %v4832, %v4918
        %v4961 = vadd.f32 %v4833, %v4923
        %v4962 = vadd.f32 %v4834, %v4923
        %v4963 = vadd.f32 %v4835, %v4928
        %v4964 = vadd.f32 %v4836, %v4928
        %v4965 = vadd.f32 %v4837, %v4933
        %v4966 = vadd.f32 %v4838, %v4933
        %v4967 = vmax.f32 %v4935, 0.0
        %v4968 = vmax.f32 %v4936, 0.0
        %v4969 = vmax.f32 %v4937, 0.0
        %v4970 = vmax.f32 %v4938, 0.0
        %v4971 = vmax.f32 %v4939, 0.0
        %v4972 = vmax.f32 %v4940, 0.0
        %v4973 = vmax.f32 %v4941, 0.0
        %v4974 = vmax.f32 %v4942, 0.0
        %v4975 = vmax.f32 %v4943, 0.0
        %v4976 = vmax.f32 %v4944, 0.0
        %v4977 = vmax.f32 %v4945, 0.0
        %v4978 = vmax.f32 %v4946, 0.0
        %v4979 = vmax.f32 %v4947, 0.0
        %v4980 = vmax.f32 %v4948, 0.0
        %v4981 = vmax.f32 %v4949, 0.0
        %v4982 = vmax.f32 %v4950, 0.0
        %v4983 = vmax.f32 %v4951, 0.0
        %v4984 = vmax.f32 %v4952, 0.0
        %v4985 = vmax.f32 %v4953, 0.0
        %v4986 = vmax.f32 %v4954, 0.0
        %v4987 = vmax.f32 %v4955, 0.0
        %v4988 = vmax.f32 %v4956, 0.0
        %v4989 = vmax.f32 %v4957, 0.0
        %v4990 = vmax.f32 %v4958, 0.0
        %v4991 = vmax.f32 %v4959, 0.0
        %v4992 = vmax.f32 %v4960, 0.0
        %v4993 = vmax.f32 %v4961, 0.0
        %v4994 = vmax.f32 %v4962, 0.0
        %v4995 = vmax.f32 %v4963, 0.0
        %v4996 = vmax.f32 %v4964, 0.0
        %v4997 = vmax.f32 %v4965, 0.0
        %v4998 = vmax.f32 %v4966, 0.0
        %v4999 = vpack.c.bf16 %v4969, %v4967
        %v5000 = vpack.c.bf16 %v4970, %v4968
        %v5001 = vpack.c.bf16 %v4973, %v4971
        %v5002 = vpack.c.bf16 %v4974, %v4972
        %v5003 = vpack.c.bf16 %v4977, %v4975
        %v5004 = vpack.c.bf16 %v4978, %v4976
        %v5005 = vpack.c.bf16 %v4981, %v4979
        %v5006 = vpack.c.bf16 %v4982, %v4980
        %v5007 = vpack.c.bf16 %v4985, %v4983
        %v5008 = vpack.c.bf16 %v4986, %v4984
        %v5009 = vpack.c.bf16 %v4989, %v4987
        %v5010 = vpack.c.bf16 %v4990, %v4988
        %v5011 = vpack.c.bf16 %v4993, %v4991
        %v5012 = vpack.c.bf16 %v4994, %v4992
        %v5013 = vpack.c.bf16 %v4997, %v4995
        %v5014 = vpack.c.bf16 %v4998, %v4996
        %v5015 = vld [vmem:[#allocation8] sm:$0xf]
        %v5016 = vld [vmem:[#allocation8 + $0x4] sm:$0xf]
        %v5017 = vld [vmem:[#allocation8 + $0x8] sm:$0xf]
        %v5018 = vld [vmem:[#allocation8 + $0xc] sm:$0xf]
        %v5019 = vld [vmem:[#allocation8 + $0x10] sm:$0xf]
        %v5020 = vld [vmem:[#allocation8 + $0x14] sm:$0xf]
        %v5021 = vld [vmem:[#allocation8 + $0x18] sm:$0xf]
        %v5022 = vld [vmem:[#allocation8 + $0x1c] sm:$0xf]
        %v5023 = vld [vmem:[#allocation8 + $0x20] sm:$0xf]
        %v5024 = vld [vmem:[#allocation8 + $0x24] sm:$0xf]
        %v5025 = vld [vmem:[#allocation8 + $0x28] sm:$0xf]
        %v5026 = vld [vmem:[#allocation8 + $0x2c] sm:$0xf]
        %v5027 = vld [vmem:[#allocation8 + $0x30] sm:$0xf]
        %v5028 = vld [vmem:[#allocation8 + $0x34] sm:$0xf]
        %v5029 = vld [vmem:[#allocation8 + $0x38] sm:$0xf]
        %v5030 = vld [vmem:[#allocation8 + $0x3c] sm:$0xf]
        %v5047 = vunpack.c.l.b16 %v5015
        %v5048 = vunpack.c.l.b16 %v5016
        %v5049 = vunpack.c.l.b16 %v5017
        %v5050 = vunpack.c.l.b16 %v5018
        %v5051 = vunpack.c.l.b16 %v5019
        %v5052 = vunpack.c.l.b16 %v5020
        %v5053 = vunpack.c.l.b16 %v5021
        %v5054 = vunpack.c.l.b16 %v5022
        %v5055 = vunpack.c.l.b16 %v5023
        %v5056 = vunpack.c.l.b16 %v5024
        %v5057 = vunpack.c.l.b16 %v5025
        %v5058 = vunpack.c.l.b16 %v5026
        %v5059 = vunpack.c.l.b16 %v5027
        %v5060 = vunpack.c.l.b16 %v5028
        %v5061 = vunpack.c.l.b16 %v5029
        %v5062 = vunpack.c.l.b16 %v5030
        %v5063 = vpack.c.b16 %v5048, %v5047
        %v5064 = vpack.c.b16 %v5050, %v5049
        %v5065 = vpack.c.b16 %v5052, %v5051
        %v5066 = vpack.c.b16 %v5054, %v5053
        %v5067 = vpack.c.b16 %v5056, %v5055
        %v5068 = vpack.c.b16 %v5058, %v5057
        %v5069 = vpack.c.b16 %v5060, %v5059
        %v5070 = vpack.c.b16 %v5062, %v5061
        %5079 = vmatpush.bf16.msra.mxu0 %v5013
        %5080 = vmatpush.bf16.msra.mxu0 %v5011
        %5081 = vmatpush.bf16.msra.mxu0 %v5009
        %5082 = vmatpush.bf16.msra.mxu0 %v5007
        %5083 = vmatpush.bf16.msra.mxu0 %v5005
        %5084 = vmatpush.bf16.msra.mxu0 %v5003
        %5085 = vmatpush.bf16.msra.mxu0 %v5001
        %5086 = vmatpush.bf16.msra.mxu0 %v4999
        %5087 = vmatmul.bf16.gmra.mxu0 %v5063
        %v5088 = vpop.f32.mrf.mxu0
        %v5089 = vadd.f32 0.0, %v5088
        %v5090 = vpop.f32.mrf.mxu0
        %v5091 = vadd.f32 0.0, %v5090
        %5092 = vmatmul.bf16.gmra.mxu0 %v5064
        %v5093 = vpop.f32.mrf.mxu0
        %v5094 = vadd.f32 0.0, %v5093
        %v5095 = vpop.f32.mrf.mxu0
        %v5096 = vadd.f32 0.0, %v5095
        %5097 = vmatmul.bf16.gmra.mxu0 %v5065
        %v5098 = vpop.f32.mrf.mxu0
        %v5099 = vadd.f32 0.0, %v5098
        %v5100 = vpop.f32.mrf.mxu0
        %v5101 = vadd.f32 0.0, %v5100
        %5102 = vmatmul.bf16.gmra.mxu0 %v5066
        %v5103 = vpop.f32.mrf.mxu0
        %v5104 = vadd.f32 0.0, %v5103
        %v5105 = vpop.f32.mrf.mxu0
        %v5106 = vadd.f32 0.0, %v5105
        %5107 = vmatmul.bf16.gmra.mxu0 %v5067
        %v5108 = vpop.f32.mrf.mxu0
        %v5109 = vadd.f32 0.0, %v5108
        %v5110 = vpop.f32.mrf.mxu0
        %v5111 = vadd.f32 0.0, %v5110
        %5112 = vmatmul.bf16.gmra.mxu0 %v5068
        %v5113 = vpop.f32.mrf.mxu0
        %v5114 = vadd.f32 0.0, %v5113
        %v5115 = vpop.f32.mrf.mxu0
        %v5116 = vadd.f32 0.0, %v5115
        %5117 = vmatmul.bf16.gmra.mxu0 %v5069
        %v5118 = vpop.f32.mrf.mxu0
        %v5119 = vadd.f32 0.0, %v5118
        %v5120 = vpop.f32.mrf.mxu0
        %v5121 = vadd.f32 0.0, %v5120
        %5122 = vmatmul.bf16.gmra.mxu0 %v5070
        %v5123 = vpop.f32.mrf.mxu0
        %v5124 = vadd.f32 0.0, %v5123
        %v5125 = vpop.f32.mrf.mxu0
        %v5126 = vadd.f32 0.0, %v5125
        %5127 = vdwg.mxu0
        %5128 = vmatpush.bf16.msra.mxu0 %v5014
        %5129 = vmatpush.bf16.msra.mxu0 %v5012
        %5130 = vmatpush.bf16.msra.mxu0 %v5010
        %5131 = vmatpush.bf16.msra.mxu0 %v5008
        %5132 = vmatpush.bf16.msra.mxu0 %v5006
        %5133 = vmatpush.bf16.msra.mxu0 %v5004
        %5134 = vmatpush.bf16.msra.mxu0 %v5002
        %5135 = vmatpush.bf16.msra.mxu0 %v5000
        %5136 = vmatmul.bf16.gmra.mxu0 %v5063
        %v5137 = vpop.f32.mrf.mxu0
        %v5138 = vadd.f32 0.0, %v5137
        %v5139 = vpop.f32.mrf.mxu0
        %v5140 = vadd.f32 0.0, %v5139
        %5141 = vmatmul.bf16.gmra.mxu0 %v5064
        %v5142 = vpop.f32.mrf.mxu0
        %v5143 = vadd.f32 0.0, %v5142
        %v5144 = vpop.f32.mrf.mxu0
        %v5145 = vadd.f32 0.0, %v5144
        %5146 = vmatmul.bf16.gmra.mxu0 %v5065
        %v5147 = vpop.f32.mrf.mxu0
        %v5148 = vadd.f32 0.0, %v5147
        %v5149 = vpop.f32.mrf.mxu0
        %v5150 = vadd.f32 0.0, %v5149
        %5151 = vmatmul.bf16.gmra.mxu0 %v5066
        %v5152 = vpop.f32.mrf.mxu0
        %v5153 = vadd.f32 0.0, %v5152
        %v5154 = vpop.f32.mrf.mxu0
        %v5155 = vadd.f32 0.0, %v5154
        %5156 = vmatmul.bf16.gmra.mxu0 %v5067
        %v5157 = vpop.f32.mrf.mxu0
        %v5158 = vadd.f32 0.0, %v5157
        %v5159 = vpop.f32.mrf.mxu0
        %v5160 = vadd.f32 0.0, %v5159
        %5161 = vmatmul.bf16.gmra.mxu0 %v5068
        %v5162 = vpop.f32.mrf.mxu0
        %v5163 = vadd.f32 0.0, %v5162
        %v5164 = vpop.f32.mrf.mxu0
        %v5165 = vadd.f32 0.0, %v5164
        %5166 = vmatmul.bf16.gmra.mxu0 %v5069
        %v5167 = vpop.f32.mrf.mxu0
        %v5168 = vadd.f32 0.0, %v5167
        %v5169 = vpop.f32.mrf.mxu0
        %v5170 = vadd.f32 0.0, %v5169
        %5171 = vmatmul.bf16.gmra.mxu0 %v5070
        %v5172 = vpop.f32.mrf.mxu0
        %v5173 = vadd.f32 0.0, %v5172
        %v5174 = vpop.f32.mrf.mxu0
        %v5175 = vadd.f32 0.0, %v5174
        %5176 = vdwg.mxu0
        %5177 = vrot.lane.b32.xlu0 %v5089, 17
        %v5178 = vpop.permute.xlu0 %5177
        %5179 = vrot.lane.b32.xlu0 %v5091, 17
        %v5180 = vpop.permute.xlu0 %5179
        %5181 = vrot.lane.b32.xlu0 %v5094, 17
        %v5182 = vpop.permute.xlu0 %5181
        %5183 = vrot.lane.b32.xlu0 %v5096, 17
        %v5184 = vpop.permute.xlu0 %5183
        %5185 = vrot.lane.b32.xlu0 %v5099, 17
        %v5186 = vpop.permute.xlu0 %5185
        %5187 = vrot.lane.b32.xlu0 %v5101, 17
        %v5188 = vpop.permute.xlu0 %5187
        %5189 = vrot.lane.b32.xlu0 %v5104, 17
        %v5190 = vpop.permute.xlu0 %5189
        %5191 = vrot.lane.b32.xlu0 %v5106, 17
        %v5192 = vpop.permute.xlu0 %5191
        %5193 = vrot.lane.b32.xlu0 %v5109, 17
        %v5194 = vpop.permute.xlu0 %5193
        %5195 = vrot.lane.b32.xlu0 %v5111, 17
        %v5196 = vpop.permute.xlu0 %5195
        %5197 = vrot.lane.b32.xlu0 %v5114, 17
        %v5198 = vpop.permute.xlu0 %5197
        %5199 = vrot.lane.b32.xlu0 %v5116, 17
        %v5200 = vpop.permute.xlu0 %5199
        %5201 = vrot.lane.b32.xlu0 %v5119, 17
        %v5202 = vpop.permute.xlu0 %5201
        %5203 = vrot.lane.b32.xlu0 %v5121, 17
        %v5204 = vpop.permute.xlu0 %5203
        %5205 = vrot.lane.b32.xlu0 %v5124, 17
        %v5206 = vpop.permute.xlu0 %5205
        %5207 = vrot.lane.b32.xlu0 %v5126, 17
        %v5208 = vpop.permute.xlu0 %5207
        %5209 = vrot.lane.b32.xlu0 %v5138, 17
        %v5210 = vpop.permute.xlu0 %5209
        %5211 = vrot.lane.b32.xlu0 %v5140, 17
        %v5212 = vpop.permute.xlu0 %5211
        %5213 = vrot.lane.b32.xlu0 %v5143, 17
        %v5214 = vpop.permute.xlu0 %5213
        %5215 = vrot.lane.b32.xlu0 %v5145, 17
        %v5216 = vpop.permute.xlu0 %5215
        %5217 = vrot.lane.b32.xlu0 %v5148, 17
        %v5218 = vpop.permute.xlu0 %5217
        %5219 = vrot.lane.b32.xlu0 %v5150, 17
        %v5220 = vpop.permute.xlu0 %5219
        %5221 = vrot.lane.b32.xlu0 %v5153, 17
        %v5222 = vpop.permute.xlu0 %5221
        %5223 = vrot.lane.b32.xlu0 %v5155, 17
        %v5224 = vpop.permute.xlu0 %5223
        %5225 = vrot.lane.b32.xlu0 %v5158, 17
        %v5226 = vpop.permute.xlu0 %5225
        %5227 = vrot.lane.b32.xlu0 %v5160, 17
        %v5228 = vpop.permute.xlu0 %5227
        %5229 = vrot.lane.b32.xlu0 %v5163, 17
        %v5230 = vpop.permute.xlu0 %5229
        %5231 = vrot.lane.b32.xlu0 %v5165, 17
        %v5232 = vpop.permute.xlu0 %5231
        %5233 = vrot.lane.b32.xlu0 %v5168, 17
        %v5234 = vpop.permute.xlu0 %5233
        %5235 = vrot.lane.b32.xlu0 %v5170, 17
        %v5236 = vpop.permute.xlu0 %5235
        %5237 = vrot.lane.b32.xlu0 %v5173, 17
        %v5238 = vpop.permute.xlu0 %5237
        %5239 = vrot.lane.b32.xlu0 %v5175, 17
        %v5240 = vpop.permute.xlu0 %5239
        %v5241 = vsel %vm1184, %v5178, %v5210
        %v5242 = vsel %vm1184, %v5180, %v5212
        %v5243 = vsel %vm1184, %v5182, %v5214
        %v5244 = vsel %vm1184, %v5184, %v5216
        %v5245 = vsel %vm1184, %v5186, %v5218
        %v5246 = vsel %vm1184, %v5188, %v5220
        %v5247 = vsel %vm1184, %v5190, %v5222
        %v5248 = vsel %vm1184, %v5192, %v5224
        %v5249 = vsel %vm1184, %v5194, %v5226
        %v5250 = vsel %vm1184, %v5196, %v5228
        %v5251 = vsel %vm1184, %v5198, %v5230
        %v5252 = vsel %vm1184, %v5200, %v5232
        %v5253 = vsel %vm1184, %v5202, %v5234
        %v5254 = vsel %vm1184, %v5204, %v5236
        %v5255 = vsel %vm1184, %v5206, %v5238
        %v5256 = vsel %vm1184, %v5208, %v5240
        %v5257 = vsel %vm1184, %v5210, %v5178
        %v5258 = vsel %vm1184, %v5212, %v5180
        %v5259 = vsel %vm1184, %v5214, %v5182
        %v5260 = vsel %vm1184, %v5216, %v5184
        %v5261 = vsel %vm1184, %v5218, %v5186
        %v5262 = vsel %vm1184, %v5220, %v5188
        %v5263 = vsel %vm1184, %v5222, %v5190
        %v5264 = vsel %vm1184, %v5224, %v5192
        %v5265 = vsel %vm1184, %v5226, %v5194
        %v5266 = vsel %vm1184, %v5228, %v5196
        %v5267 = vsel %vm1184, %v5230, %v5198
        %v5268 = vsel %vm1184, %v5232, %v5200
        %v5269 = vsel %vm1184, %v5234, %v5202
        %v5270 = vsel %vm1184, %v5236, %v5204
        %v5271 = vsel %vm1184, %v5238, %v5206
        %v5272 = vsel %vm1184, %v5240, %v5208
        %v5273 = vmul.f32 %v5257, %v1219
        %v5274 = vmul.f32 %v5241, %v1220
        %v5275 = vmul.f32 %v5258, %v1219
        %v5276 = vmul.f32 %v5242, %v1220
        %v5277 = vmul.f32 %v5259, %v1219
        %v5278 = vmul.f32 %v5243, %v1220
        %v5279 = vmul.f32 %v5260, %v1219
        %v5280 = vmul.f32 %v5244, %v1220
        %v5281 = vmul.f32 %v5261, %v1219
        %v5282 = vmul.f32 %v5245, %v1220
        %v5283 = vmul.f32 %v5262, %v1219
        %v5284 = vmul.f32 %v5246, %v1220
        %v5285 = vmul.f32 %v5263, %v1219
        %v5286 = vmul.f32 %v5247, %v1220
        %v5287 = vmul.f32 %v5264, %v1219
        %v5288 = vmul.f32 %v5248, %v1220
        %v5289 = vmul.f32 %v5265, %v1219
        %v5290 = vmul.f32 %v5249, %v1220
        %v5291 = vmul.f32 %v5266, %v1219
        %v5292 = vmul.f32 %v5250, %v1220
        %v5293 = vmul.f32 %v5267, %v1219
        %v5294 = vmul.f32 %v5251, %v1220
        %v5295 = vmul.f32 %v5268, %v1219
        %v5296 = vmul.f32 %v5252, %v1220
        %v5297 = vmul.f32 %v5269, %v1219
        %v5298 = vmul.f32 %v5253, %v1220
        %v5299 = vmul.f32 %v5270, %v1219
        %v5300 = vmul.f32 %v5254, %v1220
        %v5301 = vmul.f32 %v5271, %v1219
        %v5302 = vmul.f32 %v5255, %v1220
        %v5303 = vmul.f32 %v5272, %v1219
        %v5304 = vmul.f32 %v5256, %v1220
        %v5305 = vadd.f32 %v5273, 0.0
        %v5306 = vadd.f32 %v5274, 0.0
        %v5307 = vadd.f32 %v5275, 0.0
        %v5308 = vadd.f32 %v5276, 0.0
        %v5309 = vadd.f32 %v5277, 0.0
        %v5310 = vadd.f32 %v5278, 0.0
        %v5311 = vadd.f32 %v5279, 0.0
        %v5312 = vadd.f32 %v5280, 0.0
        %v5313 = vadd.f32 %v5281, 0.0
        %v5314 = vadd.f32 %v5282, 0.0
        %v5315 = vadd.f32 %v5283, 0.0
        %v5316 = vadd.f32 %v5284, 0.0
        %v5317 = vadd.f32 %v5285, 0.0
        %v5318 = vadd.f32 %v5286, 0.0
        %v5319 = vadd.f32 %v5287, 0.0
        %v5320 = vadd.f32 %v5288, 0.0
        %v5321 = vadd.f32 %v5289, 0.0
        %v5322 = vadd.f32 %v5290, 0.0
        %v5323 = vadd.f32 %v5291, 0.0
        %v5324 = vadd.f32 %v5292, 0.0
        %v5325 = vadd.f32 %v5293, 0.0
        %v5326 = vadd.f32 %v5294, 0.0
        %v5327 = vadd.f32 %v5295, 0.0
        %v5328 = vadd.f32 %v5296, 0.0
        %v5329 = vadd.f32 %v5297, 0.0
        %v5330 = vadd.f32 %v5298, 0.0
        %v5331 = vadd.f32 %v5299, 0.0
        %v5332 = vadd.f32 %v5300, 0.0
        %v5333 = vadd.f32 %v5301, 0.0
        %v5334 = vadd.f32 %v5302, 0.0
        %v5335 = vadd.f32 %v5303, 0.0
        %v5336 = vadd.f32 %v5304, 0.0
        %s5337 = scalar_lea.vmem [#allocation8], 64
        %v5338 = vld [vmem:[%s5337] sm:$0xf]
        %v5339 = vld [vmem:[%s5337 + $0x4] sm:$0xf]
        %v5340 = vld [vmem:[%s5337 + $0x8] sm:$0xf]
        %v5341 = vld [vmem:[%s5337 + $0xc] sm:$0xf]
        %v5342 = vld [vmem:[%s5337 + $0x10] sm:$0xf]
        %v5343 = vld [vmem:[%s5337 + $0x14] sm:$0xf]
        %v5344 = vld [vmem:[%s5337 + $0x18] sm:$0xf]
        %v5345 = vld [vmem:[%s5337 + $0x1c] sm:$0xf]
        %v5346 = vld [vmem:[%s5337 + $0x20] sm:$0xf]
        %v5347 = vld [vmem:[%s5337 + $0x24] sm:$0xf]
        %v5348 = vld [vmem:[%s5337 + $0x28] sm:$0xf]
        %v5349 = vld [vmem:[%s5337 + $0x2c] sm:$0xf]
        %v5350 = vld [vmem:[%s5337 + $0x30] sm:$0xf]
        %v5351 = vld [vmem:[%s5337 + $0x34] sm:$0xf]
        %v5352 = vld [vmem:[%s5337 + $0x38] sm:$0xf]
        %v5353 = vld [vmem:[%s5337 + $0x3c] sm:$0xf]
        %v5370 = vunpack.c.l.b16 %v5338
        %v5371 = vunpack.c.l.b16 %v5339
        %v5372 = vunpack.c.l.b16 %v5340
        %v5373 = vunpack.c.l.b16 %v5341
        %v5374 = vunpack.c.l.b16 %v5342
        %v5375 = vunpack.c.l.b16 %v5343
        %v5376 = vunpack.c.l.b16 %v5344
        %v5377 = vunpack.c.l.b16 %v5345
        %v5378 = vunpack.c.l.b16 %v5346
        %v5379 = vunpack.c.l.b16 %v5347
        %v5380 = vunpack.c.l.b16 %v5348
        %v5381 = vunpack.c.l.b16 %v5349
        %v5382 = vunpack.c.l.b16 %v5350
        %v5383 = vunpack.c.l.b16 %v5351
        %v5384 = vunpack.c.l.b16 %v5352
        %v5385 = vunpack.c.l.b16 %v5353
        %v5386 = vpack.c.b16 %v5371, %v5370
        %v5387 = vpack.c.b16 %v5373, %v5372
        %v5388 = vpack.c.b16 %v5375, %v5374
        %v5389 = vpack.c.b16 %v5377, %v5376
        %v5390 = vpack.c.b16 %v5379, %v5378
        %v5391 = vpack.c.b16 %v5381, %v5380
        %v5392 = vpack.c.b16 %v5383, %v5382
        %v5393 = vpack.c.b16 %v5385, %v5384
        %5402 = vmatpush.bf16.msra.mxu0 %v5013
        %5403 = vmatpush.bf16.msra.mxu0 %v5011
        %5404 = vmatpush.bf16.msra.mxu0 %v5009
        %5405 = vmatpush.bf16.msra.mxu0 %v5007
        %5406 = vmatpush.bf16.msra.mxu0 %v5005
        %5407 = vmatpush.bf16.msra.mxu0 %v5003
        %5408 = vmatpush.bf16.msra.mxu0 %v5001
        %5409 = vmatpush.bf16.msra.mxu0 %v4999
        %5410 = vmatmul.bf16.gmra.mxu0 %v5386
        %v5411 = vpop.f32.mrf.mxu0
        %v5412 = vadd.f32 0.0, %v5411
        %v5413 = vpop.f32.mrf.mxu0
        %v5414 = vadd.f32 0.0, %v5413
        %5415 = vmatmul.bf16.gmra.mxu0 %v5387
        %v5416 = vpop.f32.mrf.mxu0
        %v5417 = vadd.f32 0.0, %v5416
        %v5418 = vpop.f32.mrf.mxu0
        %v5419 = vadd.f32 0.0, %v5418
        %5420 = vmatmul.bf16.gmra.mxu0 %v5388
        %v5421 = vpop.f32.mrf.mxu0
        %v5422 = vadd.f32 0.0, %v5421
        %v5423 = vpop.f32.mrf.mxu0
        %v5424 = vadd.f32 0.0, %v5423
        %5425 = vmatmul.bf16.gmra.mxu0 %v5389
        %v5426 = vpop.f32.mrf.mxu0
        %v5427 = vadd.f32 0.0, %v5426
        %v5428 = vpop.f32.mrf.mxu0
        %v5429 = vadd.f32 0.0, %v5428
        %5430 = vmatmul.bf16.gmra.mxu0 %v5390
        %v5431 = vpop.f32.mrf.mxu0
        %v5432 = vadd.f32 0.0, %v5431
        %v5433 = vpop.f32.mrf.mxu0
        %v5434 = vadd.f32 0.0, %v5433
        %5435 = vmatmul.bf16.gmra.mxu0 %v5391
        %v5436 = vpop.f32.mrf.mxu0
        %v5437 = vadd.f32 0.0, %v5436
        %v5438 = vpop.f32.mrf.mxu0
        %v5439 = vadd.f32 0.0, %v5438
        %5440 = vmatmul.bf16.gmra.mxu0 %v5392
        %v5441 = vpop.f32.mrf.mxu0
        %v5442 = vadd.f32 0.0, %v5441
        %v5443 = vpop.f32.mrf.mxu0
        %v5444 = vadd.f32 0.0, %v5443
        %5445 = vmatmul.bf16.gmra.mxu0 %v5393
        %v5446 = vpop.f32.mrf.mxu0
        %v5447 = vadd.f32 0.0, %v5446
        %v5448 = vpop.f32.mrf.mxu0
        %v5449 = vadd.f32 0.0, %v5448
        %5450 = vdwg.mxu0
        %5451 = vmatpush.bf16.msra.mxu0 %v5014
        %5452 = vmatpush.bf16.msra.mxu0 %v5012
        %5453 = vmatpush.bf16.msra.mxu0 %v5010
        %5454 = vmatpush.bf16.msra.mxu0 %v5008
        %5455 = vmatpush.bf16.msra.mxu0 %v5006
        %5456 = vmatpush.bf16.msra.mxu0 %v5004
        %5457 = vmatpush.bf16.msra.mxu0 %v5002
        %5458 = vmatpush.bf16.msra.mxu0 %v5000
        %5459 = vmatmul.bf16.gmra.mxu0 %v5386
        %v5460 = vpop.f32.mrf.mxu0
        %v5461 = vadd.f32 0.0, %v5460
        %v5462 = vpop.f32.mrf.mxu0
        %v5463 = vadd.f32 0.0, %v5462
        %5464 = vmatmul.bf16.gmra.mxu0 %v5387
        %v5465 = vpop.f32.mrf.mxu0
        %v5466 = vadd.f32 0.0, %v5465
        %v5467 = vpop.f32.mrf.mxu0
        %v5468 = vadd.f32 0.0, %v5467
        %5469 = vmatmul.bf16.gmra.mxu0 %v5388
        %v5470 = vpop.f32.mrf.mxu0
        %v5471 = vadd.f32 0.0, %v5470
        %v5472 = vpop.f32.mrf.mxu0
        %v5473 = vadd.f32 0.0, %v5472
        %5474 = vmatmul.bf16.gmra.mxu0 %v5389
        %v5475 = vpop.f32.mrf.mxu0
        %v5476 = vadd.f32 0.0, %v5475
        %v5477 = vpop.f32.mrf.mxu0
        %v5478 = vadd.f32 0.0, %v5477
        %5479 = vmatmul.bf16.gmra.mxu0 %v5390
        %v5480 = vpop.f32.mrf.mxu0
        %v5481 = vadd.f32 0.0, %v5480
        %v5482 = vpop.f32.mrf.mxu0
        %v5483 = vadd.f32 0.0, %v5482
        %5484 = vmatmul.bf16.gmra.mxu0 %v5391
        %v5485 = vpop.f32.mrf.mxu0
        %v5486 = vadd.f32 0.0, %v5485
        %v5487 = vpop.f32.mrf.mxu0
        %v5488 = vadd.f32 0.0, %v5487
        %5489 = vmatmul.bf16.gmra.mxu0 %v5392
        %v5490 = vpop.f32.mrf.mxu0
        %v5491 = vadd.f32 0.0, %v5490
        %v5492 = vpop.f32.mrf.mxu0
        %v5493 = vadd.f32 0.0, %v5492
        %5494 = vmatmul.bf16.gmra.mxu0 %v5393
        %v5495 = vpop.f32.mrf.mxu0
        %v5496 = vadd.f32 0.0, %v5495
        %v5497 = vpop.f32.mrf.mxu0
        %v5498 = vadd.f32 0.0, %v5497
        %5499 = vdwg.mxu0
        %5500 = vrot.lane.b32.xlu0 %v5412, 16
        %v5501 = vpop.permute.xlu0 %5500
        %5502 = vrot.lane.b32.xlu0 %v5414, 16
        %v5503 = vpop.permute.xlu0 %5502
        %5504 = vrot.lane.b32.xlu0 %v5417, 16
        %v5505 = vpop.permute.xlu0 %5504
        %5506 = vrot.lane.b32.xlu0 %v5419, 16
        %v5507 = vpop.permute.xlu0 %5506
        %5508 = vrot.lane.b32.xlu0 %v5422, 16
        %v5509 = vpop.permute.xlu0 %5508
        %5510 = vrot.lane.b32.xlu0 %v5424, 16
        %v5511 = vpop.permute.xlu0 %5510
        %5512 = vrot.lane.b32.xlu0 %v5427, 16
        %v5513 = vpop.permute.xlu0 %5512
        %5514 = vrot.lane.b32.xlu0 %v5429, 16
        %v5515 = vpop.permute.xlu0 %5514
        %5516 = vrot.lane.b32.xlu0 %v5432, 16
        %v5517 = vpop.permute.xlu0 %5516
        %5518 = vrot.lane.b32.xlu0 %v5434, 16
        %v5519 = vpop.permute.xlu0 %5518
        %5520 = vrot.lane.b32.xlu0 %v5437, 16
        %v5521 = vpop.permute.xlu0 %5520
        %5522 = vrot.lane.b32.xlu0 %v5439, 16
        %v5523 = vpop.permute.xlu0 %5522
        %5524 = vrot.lane.b32.xlu0 %v5442, 16
        %v5525 = vpop.permute.xlu0 %5524
        %5526 = vrot.lane.b32.xlu0 %v5444, 16
        %v5527 = vpop.permute.xlu0 %5526
        %5528 = vrot.lane.b32.xlu0 %v5447, 16
        %v5529 = vpop.permute.xlu0 %5528
        %5530 = vrot.lane.b32.xlu0 %v5449, 16
        %v5531 = vpop.permute.xlu0 %5530
        %5532 = vrot.lane.b32.xlu0 %v5461, 16
        %v5533 = vpop.permute.xlu0 %5532
        %5534 = vrot.lane.b32.xlu0 %v5463, 16
        %v5535 = vpop.permute.xlu0 %5534
        %5536 = vrot.lane.b32.xlu0 %v5466, 16
        %v5537 = vpop.permute.xlu0 %5536
        %5538 = vrot.lane.b32.xlu0 %v5468, 16
        %v5539 = vpop.permute.xlu0 %5538
        %5540 = vrot.lane.b32.xlu0 %v5471, 16
        %v5541 = vpop.permute.xlu0 %5540
        %5542 = vrot.lane.b32.xlu0 %v5473, 16
        %v5543 = vpop.permute.xlu0 %5542
        %5544 = vrot.lane.b32.xlu0 %v5476, 16
        %v5545 = vpop.permute.xlu0 %5544
        %5546 = vrot.lane.b32.xlu0 %v5478, 16
        %v5547 = vpop.permute.xlu0 %5546
        %5548 = vrot.lane.b32.xlu0 %v5481, 16
        %v5549 = vpop.permute.xlu0 %5548
        %5550 = vrot.lane.b32.xlu0 %v5483, 16
        %v5551 = vpop.permute.xlu0 %5550
        %5552 = vrot.lane.b32.xlu0 %v5486, 16
        %v5553 = vpop.permute.xlu0 %5552
        %5554 = vrot.lane.b32.xlu0 %v5488, 16
        %v5555 = vpop.permute.xlu0 %5554
        %5556 = vrot.lane.b32.xlu0 %v5491, 16
        %v5557 = vpop.permute.xlu0 %5556
        %5558 = vrot.lane.b32.xlu0 %v5493, 16
        %v5559 = vpop.permute.xlu0 %5558
        %5560 = vrot.lane.b32.xlu0 %v5496, 16
        %v5561 = vpop.permute.xlu0 %5560
        %5562 = vrot.lane.b32.xlu0 %v5498, 16
        %v5563 = vpop.permute.xlu0 %5562
        %v5564 = vsel %vm1644, %v5501, %v5533
        %v5565 = vsel %vm1644, %v5503, %v5535
        %v5566 = vsel %vm1644, %v5505, %v5537
        %v5567 = vsel %vm1644, %v5507, %v5539
        %v5568 = vsel %vm1644, %v5509, %v5541
        %v5569 = vsel %vm1644, %v5511, %v5543
        %v5570 = vsel %vm1644, %v5513, %v5545
        %v5571 = vsel %vm1644, %v5515, %v5547
        %v5572 = vsel %vm1644, %v5517, %v5549
        %v5573 = vsel %vm1644, %v5519, %v5551
        %v5574 = vsel %vm1644, %v5521, %v5553
        %v5575 = vsel %vm1644, %v5523, %v5555
        %v5576 = vsel %vm1644, %v5525, %v5557
        %v5577 = vsel %vm1644, %v5527, %v5559
        %v5578 = vsel %vm1644, %v5529, %v5561
        %v5579 = vsel %vm1644, %v5531, %v5563
        %v5580 = vsel %vm1644, %v5533, %v5501
        %v5581 = vsel %vm1644, %v5535, %v5503
        %v5582 = vsel %vm1644, %v5537, %v5505
        %v5583 = vsel %vm1644, %v5539, %v5507
        %v5584 = vsel %vm1644, %v5541, %v5509
        %v5585 = vsel %vm1644, %v5543, %v5511
        %v5586 = vsel %vm1644, %v5545, %v5513
        %v5587 = vsel %vm1644, %v5547, %v5515
        %v5588 = vsel %vm1644, %v5549, %v5517
        %v5589 = vsel %vm1644, %v5551, %v5519
        %v5590 = vsel %vm1644, %v5553, %v5521
        %v5591 = vsel %vm1644, %v5555, %v5523
        %v5592 = vsel %vm1644, %v5557, %v5525
        %v5593 = vsel %vm1644, %v5559, %v5527
        %v5594 = vsel %vm1644, %v5561, %v5529
        %v5595 = vsel %vm1644, %v5563, %v5531
        %v5596 = vmul.f32 %v5580, %v1680
        %v5597 = vmul.f32 %v5564, %v1681
        %v5598 = vmul.f32 %v5581, %v1680
        %v5599 = vmul.f32 %v5565, %v1681
        %v5600 = vmul.f32 %v5582, %v1680
        %v5601 = vmul.f32 %v5566, %v1681
        %v5602 = vmul.f32 %v5583, %v1680
        %v5603 = vmul.f32 %v5567, %v1681
        %v5604 = vmul.f32 %v5584, %v1680
        %v5605 = vmul.f32 %v5568, %v1681
        %v5606 = vmul.f32 %v5585, %v1680
        %v5607 = vmul.f32 %v5569, %v1681
        %v5608 = vmul.f32 %v5586, %v1680
        %v5609 = vmul.f32 %v5570, %v1681
        %v5610 = vmul.f32 %v5587, %v1680
        %v5611 = vmul.f32 %v5571, %v1681
        %v5612 = vmul.f32 %v5588, %v1680
        %v5613 = vmul.f32 %v5572, %v1681
        %v5614 = vmul.f32 %v5589, %v1680
        %v5615 = vmul.f32 %v5573, %v1681
        %v5616 = vmul.f32 %v5590, %v1680
        %v5617 = vmul.f32 %v5574, %v1681
        %v5618 = vmul.f32 %v5591, %v1680
        %v5619 = vmul.f32 %v5575, %v1681
        %v5620 = vmul.f32 %v5592, %v1680
        %v5621 = vmul.f32 %v5576, %v1681
        %v5622 = vmul.f32 %v5593, %v1680
        %v5623 = vmul.f32 %v5577, %v1681
        %v5624 = vmul.f32 %v5594, %v1680
        %v5625 = vmul.f32 %v5578, %v1681
        %v5626 = vmul.f32 %v5595, %v1680
        %v5627 = vmul.f32 %v5579, %v1681
        %v5628 = vadd.f32 %v5305, %v5596
        %v5629 = vadd.f32 %v5306, %v5597
        %v5630 = vadd.f32 %v5307, %v5598
        %v5631 = vadd.f32 %v5308, %v5599
        %v5632 = vadd.f32 %v5309, %v5600
        %v5633 = vadd.f32 %v5310, %v5601
        %v5634 = vadd.f32 %v5311, %v5602
        %v5635 = vadd.f32 %v5312, %v5603
        %v5636 = vadd.f32 %v5313, %v5604
        %v5637 = vadd.f32 %v5314, %v5605
        %v5638 = vadd.f32 %v5315, %v5606
        %v5639 = vadd.f32 %v5316, %v5607
        %v5640 = vadd.f32 %v5317, %v5608
        %v5641 = vadd.f32 %v5318, %v5609
        %v5642 = vadd.f32 %v5319, %v5610
        %v5643 = vadd.f32 %v5320, %v5611
        %v5644 = vadd.f32 %v5321, %v5612
        %v5645 = vadd.f32 %v5322, %v5613
        %v5646 = vadd.f32 %v5323, %v5614
        %v5647 = vadd.f32 %v5324, %v5615
        %v5648 = vadd.f32 %v5325, %v5616
        %v5649 = vadd.f32 %v5326, %v5617
        %v5650 = vadd.f32 %v5327, %v5618
        %v5651 = vadd.f32 %v5328, %v5619
        %v5652 = vadd.f32 %v5329, %v5620
        %v5653 = vadd.f32 %v5330, %v5621
        %v5654 = vadd.f32 %v5331, %v5622
        %v5655 = vadd.f32 %v5332, %v5623
        %v5656 = vadd.f32 %v5333, %v5624
        %v5657 = vadd.f32 %v5334, %v5625
        %v5658 = vadd.f32 %v5335, %v5626
        %v5659 = vadd.f32 %v5336, %v5627
        %s5660 = scalar_lea.vmem [#allocation8], 128
        %v5661 = vld [vmem:[%s5660] sm:$0xf]
        %v5662 = vld [vmem:[%s5660 + $0x4] sm:$0xf]
        %v5663 = vld [vmem:[%s5660 + $0x8] sm:$0xf]
        %v5664 = vld [vmem:[%s5660 + $0xc] sm:$0xf]
        %v5665 = vld [vmem:[%s5660 + $0x10] sm:$0xf]
        %v5666 = vld [vmem:[%s5660 + $0x14] sm:$0xf]
        %v5667 = vld [vmem:[%s5660 + $0x18] sm:$0xf]
        %v5668 = vld [vmem:[%s5660 + $0x1c] sm:$0xf]
        %v5669 = vld [vmem:[%s5660 + $0x20] sm:$0xf]
        %v5670 = vld [vmem:[%s5660 + $0x24] sm:$0xf]
        %v5671 = vld [vmem:[%s5660 + $0x28] sm:$0xf]
        %v5672 = vld [vmem:[%s5660 + $0x2c] sm:$0xf]
        %v5673 = vld [vmem:[%s5660 + $0x30] sm:$0xf]
        %v5674 = vld [vmem:[%s5660 + $0x34] sm:$0xf]
        %v5675 = vld [vmem:[%s5660 + $0x38] sm:$0xf]
        %v5676 = vld [vmem:[%s5660 + $0x3c] sm:$0xf]
        %v5693 = vunpack.c.l.b16 %v5661
        %v5694 = vunpack.c.l.b16 %v5662
        %v5695 = vunpack.c.l.b16 %v5663
        %v5696 = vunpack.c.l.b16 %v5664
        %v5697 = vunpack.c.l.b16 %v5665
        %v5698 = vunpack.c.l.b16 %v5666
        %v5699 = vunpack.c.l.b16 %v5667
        %v5700 = vunpack.c.l.b16 %v5668
        %v5701 = vunpack.c.l.b16 %v5669
        %v5702 = vunpack.c.l.b16 %v5670
        %v5703 = vunpack.c.l.b16 %v5671
        %v5704 = vunpack.c.l.b16 %v5672
        %v5705 = vunpack.c.l.b16 %v5673
        %v5706 = vunpack.c.l.b16 %v5674
        %v5707 = vunpack.c.l.b16 %v5675
        %v5708 = vunpack.c.l.b16 %v5676
        %v5709 = vpack.c.b16 %v5694, %v5693
        %v5710 = vpack.c.b16 %v5696, %v5695
        %v5711 = vpack.c.b16 %v5698, %v5697
        %v5712 = vpack.c.b16 %v5700, %v5699
        %v5713 = vpack.c.b16 %v5702, %v5701
        %v5714 = vpack.c.b16 %v5704, %v5703
        %v5715 = vpack.c.b16 %v5706, %v5705
        %v5716 = vpack.c.b16 %v5708, %v5707
        %5725 = vmatpush.bf16.msra.mxu0 %v5013
        %5726 = vmatpush.bf16.msra.mxu0 %v5011
        %5727 = vmatpush.bf16.msra.mxu0 %v5009
        %5728 = vmatpush.bf16.msra.mxu0 %v5007
        %5729 = vmatpush.bf16.msra.mxu0 %v5005
        %5730 = vmatpush.bf16.msra.mxu0 %v5003
        %5731 = vmatpush.bf16.msra.mxu0 %v5001
        %5732 = vmatpush.bf16.msra.mxu0 %v4999
        %5733 = vmatmul.bf16.gmra.mxu0 %v5709
        %v5734 = vpop.f32.mrf.mxu0
        %v5735 = vadd.f32 0.0, %v5734
        %v5736 = vpop.f32.mrf.mxu0
        %v5737 = vadd.f32 0.0, %v5736
        %5738 = vmatmul.bf16.gmra.mxu0 %v5710
        %v5739 = vpop.f32.mrf.mxu0
        %v5740 = vadd.f32 0.0, %v5739
        %v5741 = vpop.f32.mrf.mxu0
        %v5742 = vadd.f32 0.0, %v5741
        %5743 = vmatmul.bf16.gmra.mxu0 %v5711
        %v5744 = vpop.f32.mrf.mxu0
        %v5745 = vadd.f32 0.0, %v5744
        %v5746 = vpop.f32.mrf.mxu0
        %v5747 = vadd.f32 0.0, %v5746
        %5748 = vmatmul.bf16.gmra.mxu0 %v5712
        %v5749 = vpop.f32.mrf.mxu0
        %v5750 = vadd.f32 0.0, %v5749
        %v5751 = vpop.f32.mrf.mxu0
        %v5752 = vadd.f32 0.0, %v5751
        %5753 = vmatmul.bf16.gmra.mxu0 %v5713
        %v5754 = vpop.f32.mrf.mxu0
        %v5755 = vadd.f32 0.0, %v5754
        %v5756 = vpop.f32.mrf.mxu0
        %v5757 = vadd.f32 0.0, %v5756
        %5758 = vmatmul.bf16.gmra.mxu0 %v5714
        %v5759 = vpop.f32.mrf.mxu0
        %v5760 = vadd.f32 0.0, %v5759
        %v5761 = vpop.f32.mrf.mxu0
        %v5762 = vadd.f32 0.0, %v5761
        %5763 = vmatmul.bf16.gmra.mxu0 %v5715
        %v5764 = vpop.f32.mrf.mxu0
        %v5765 = vadd.f32 0.0, %v5764
        %v5766 = vpop.f32.mrf.mxu0
        %v5767 = vadd.f32 0.0, %v5766
        %5768 = vmatmul.bf16.gmra.mxu0 %v5716
        %v5769 = vpop.f32.mrf.mxu0
        %v5770 = vadd.f32 0.0, %v5769
        %v5771 = vpop.f32.mrf.mxu0
        %v5772 = vadd.f32 0.0, %v5771
        %5773 = vdwg.mxu0
        %5774 = vmatpush.bf16.msra.mxu0 %v5014
        %5775 = vmatpush.bf16.msra.mxu0 %v5012
        %5776 = vmatpush.bf16.msra.mxu0 %v5010
        %5777 = vmatpush.bf16.msra.mxu0 %v5008
        %5778 = vmatpush.bf16.msra.mxu0 %v5006
        %5779 = vmatpush.bf16.msra.mxu0 %v5004
        %5780 = vmatpush.bf16.msra.mxu0 %v5002
        %5781 = vmatpush.bf16.msra.mxu0 %v5000
        %5782 = vmatmul.bf16.gmra.mxu0 %v5709
        %v5783 = vpop.f32.mrf.mxu0
        %v5784 = vadd.f32 0.0, %v5783
        %v5785 = vpop.f32.mrf.mxu0
        %v5786 = vadd.f32 0.0, %v5785
        %5787 = vmatmul.bf16.gmra.mxu0 %v5710
        %v5788 = vpop.f32.mrf.mxu0
        %v5789 = vadd.f32 0.0, %v5788
        %v5790 = vpop.f32.mrf.mxu0
        %v5791 = vadd.f32 0.0, %v5790
        %5792 = vmatmul.bf16.gmra.mxu0 %v5711
        %v5793 = vpop.f32.mrf.mxu0
        %v5794 = vadd.f32 0.0, %v5793
        %v5795 = vpop.f32.mrf.mxu0
        %v5796 = vadd.f32 0.0, %v5795
        %5797 = vmatmul.bf16.gmra.mxu0 %v5712
        %v5798 = vpop.f32.mrf.mxu0
        %v5799 = vadd.f32 0.0, %v5798
        %v5800 = vpop.f32.mrf.mxu0
        %v5801 = vadd.f32 0.0, %v5800
        %5802 = vmatmul.bf16.gmra.mxu0 %v5713
        %v5803 = vpop.f32.mrf.mxu0
        %v5804 = vadd.f32 0.0, %v5803
        %v5805 = vpop.f32.mrf.mxu0
        %v5806 = vadd.f32 0.0, %v5805
        %5807 = vmatmul.bf16.gmra.mxu0 %v5714
        %v5808 = vpop.f32.mrf.mxu0
        %v5809 = vadd.f32 0.0, %v5808
        %v5810 = vpop.f32.mrf.mxu0
        %v5811 = vadd.f32 0.0, %v5810
        %5812 = vmatmul.bf16.gmra.mxu0 %v5715
        %v5813 = vpop.f32.mrf.mxu0
        %v5814 = vadd.f32 0.0, %v5813
        %v5815 = vpop.f32.mrf.mxu0
        %v5816 = vadd.f32 0.0, %v5815
        %5817 = vmatmul.bf16.gmra.mxu0 %v5716
        %v5818 = vpop.f32.mrf.mxu0
        %v5819 = vadd.f32 0.0, %v5818
        %v5820 = vpop.f32.mrf.mxu0
        %v5821 = vadd.f32 0.0, %v5820
        %5822 = vdwg.mxu0
        %5823 = vrot.lane.b32.xlu0 %v5735, 15
        %v5824 = vpop.permute.xlu0 %5823
        %5825 = vrot.lane.b32.xlu0 %v5737, 15
        %v5826 = vpop.permute.xlu0 %5825
        %5827 = vrot.lane.b32.xlu0 %v5740, 15
        %v5828 = vpop.permute.xlu0 %5827
        %5829 = vrot.lane.b32.xlu0 %v5742, 15
        %v5830 = vpop.permute.xlu0 %5829
        %5831 = vrot.lane.b32.xlu0 %v5745, 15
        %v5832 = vpop.permute.xlu0 %5831
        %5833 = vrot.lane.b32.xlu0 %v5747, 15
        %v5834 = vpop.permute.xlu0 %5833
        %5835 = vrot.lane.b32.xlu0 %v5750, 15
        %v5836 = vpop.permute.xlu0 %5835
        %5837 = vrot.lane.b32.xlu0 %v5752, 15
        %v5838 = vpop.permute.xlu0 %5837
        %5839 = vrot.lane.b32.xlu0 %v5755, 15
        %v5840 = vpop.permute.xlu0 %5839
        %5841 = vrot.lane.b32.xlu0 %v5757, 15
        %v5842 = vpop.permute.xlu0 %5841
        %5843 = vrot.lane.b32.xlu0 %v5760, 15
        %v5844 = vpop.permute.xlu0 %5843
        %5845 = vrot.lane.b32.xlu0 %v5762, 15
        %v5846 = vpop.permute.xlu0 %5845
        %5847 = vrot.lane.b32.xlu0 %v5765, 15
        %v5848 = vpop.permute.xlu0 %5847
        %5849 = vrot.lane.b32.xlu0 %v5767, 15
        %v5850 = vpop.permute.xlu0 %5849
        %5851 = vrot.lane.b32.xlu0 %v5770, 15
        %v5852 = vpop.permute.xlu0 %5851
        %5853 = vrot.lane.b32.xlu0 %v5772, 15
        %v5854 = vpop.permute.xlu0 %5853
        %5855 = vrot.lane.b32.xlu0 %v5784, 15
        %v5856 = vpop.permute.xlu0 %5855
        %5857 = vrot.lane.b32.xlu0 %v5786, 15
        %v5858 = vpop.permute.xlu0 %5857
        %5859 = vrot.lane.b32.xlu0 %v5789, 15
        %v5860 = vpop.permute.xlu0 %5859
        %5861 = vrot.lane.b32.xlu0 %v5791, 15
        %v5862 = vpop.permute.xlu0 %5861
        %5863 = vrot.lane.b32.xlu0 %v5794, 15
        %v5864 = vpop.permute.xlu0 %5863
        %5865 = vrot.lane.b32.xlu0 %v5796, 15
        %v5866 = vpop.permute.xlu0 %5865
        %5867 = vrot.lane.b32.xlu0 %v5799, 15
        %v5868 = vpop.permute.xlu0 %5867
        %5869 = vrot.lane.b32.xlu0 %v5801, 15
        %v5870 = vpop.permute.xlu0 %5869
        %5871 = vrot.lane.b32.xlu0 %v5804, 15
        %v5872 = vpop.permute.xlu0 %5871
        %5873 = vrot.lane.b32.xlu0 %v5806, 15
        %v5874 = vpop.permute.xlu0 %5873
        %5875 = vrot.lane.b32.xlu0 %v5809, 15
        %v5876 = vpop.permute.xlu0 %5875
        %5877 = vrot.lane.b32.xlu0 %v5811, 15
        %v5878 = vpop.permute.xlu0 %5877
        %5879 = vrot.lane.b32.xlu0 %v5814, 15
        %v5880 = vpop.permute.xlu0 %5879
        %5881 = vrot.lane.b32.xlu0 %v5816, 15
        %v5882 = vpop.permute.xlu0 %5881
        %5883 = vrot.lane.b32.xlu0 %v5819, 15
        %v5884 = vpop.permute.xlu0 %5883
        %5885 = vrot.lane.b32.xlu0 %v5821, 15
        %v5886 = vpop.permute.xlu0 %5885
        %v5887 = vsel %vm2105, %v5824, %v5856
        %v5888 = vsel %vm2105, %v5826, %v5858
        %v5889 = vsel %vm2105, %v5828, %v5860
        %v5890 = vsel %vm2105, %v5830, %v5862
        %v5891 = vsel %vm2105, %v5832, %v5864
        %v5892 = vsel %vm2105, %v5834, %v5866
        %v5893 = vsel %vm2105, %v5836, %v5868
        %v5894 = vsel %vm2105, %v5838, %v5870
        %v5895 = vsel %vm2105, %v5840, %v5872
        %v5896 = vsel %vm2105, %v5842, %v5874
        %v5897 = vsel %vm2105, %v5844, %v5876
        %v5898 = vsel %vm2105, %v5846, %v5878
        %v5899 = vsel %vm2105, %v5848, %v5880
        %v5900 = vsel %vm2105, %v5850, %v5882
        %v5901 = vsel %vm2105, %v5852, %v5884
        %v5902 = vsel %vm2105, %v5854, %v5886
        %v5903 = vsel %vm2105, %v5856, %v5824
        %v5904 = vsel %vm2105, %v5858, %v5826
        %v5905 = vsel %vm2105, %v5860, %v5828
        %v5906 = vsel %vm2105, %v5862, %v5830
        %v5907 = vsel %vm2105, %v5864, %v5832
        %v5908 = vsel %vm2105, %v5866, %v5834
        %v5909 = vsel %vm2105, %v5868, %v5836
        %v5910 = vsel %vm2105, %v5870, %v5838
        %v5911 = vsel %vm2105, %v5872, %v5840
        %v5912 = vsel %vm2105, %v5874, %v5842
        %v5913 = vsel %vm2105, %v5876, %v5844
        %v5914 = vsel %vm2105, %v5878, %v5846
        %v5915 = vsel %vm2105, %v5880, %v5848
        %v5916 = vsel %vm2105, %v5882, %v5850
        %v5917 = vsel %vm2105, %v5884, %v5852
        %v5918 = vsel %vm2105, %v5886, %v5854
        %v5919 = vmul.f32 %v5903, %v2141
        %v5920 = vmul.f32 %v5887, %v2142
        %v5921 = vmul.f32 %v5904, %v2141
        %v5922 = vmul.f32 %v5888, %v2142
        %v5923 = vmul.f32 %v5905, %v2141
        %v5924 = vmul.f32 %v5889, %v2142
        %v5925 = vmul.f32 %v5906, %v2141
        %v5926 = vmul.f32 %v5890, %v2142
        %v5927 = vmul.f32 %v5907, %v2141
        %v5928 = vmul.f32 %v5891, %v2142
        %v5929 = vmul.f32 %v5908, %v2141
        %v5930 = vmul.f32 %v5892, %v2142
        %v5931 = vmul.f32 %v5909, %v2141
        %v5932 = vmul.f32 %v5893, %v2142
        %v5933 = vmul.f32 %v5910, %v2141
        %v5934 = vmul.f32 %v5894, %v2142
        %v5935 = vmul.f32 %v5911, %v2141
        %v5936 = vmul.f32 %v5895, %v2142
        %v5937 = vmul.f32 %v5912, %v2141
        %v5938 = vmul.f32 %v5896, %v2142
        %v5939 = vmul.f32 %v5913, %v2141
        %v5940 = vmul.f32 %v5897, %v2142
        %v5941 = vmul.f32 %v5914, %v2141
        %v5942 = vmul.f32 %v5898, %v2142
        %v5943 = vmul.f32 %v5915, %v2141
        %v5944 = vmul.f32 %v5899, %v2142
        %v5945 = vmul.f32 %v5916, %v2141
        %v5946 = vmul.f32 %v5900, %v2142
        %v5947 = vmul.f32 %v5917, %v2141
        %v5948 = vmul.f32 %v5901, %v2142
        %v5949 = vmul.f32 %v5918, %v2141
        %v5950 = vmul.f32 %v5902, %v2142
        %v5951 = vadd.f32 %v5628, %v5919
        %v5952 = vadd.f32 %v5629, %v5920
        %v5953 = vadd.f32 %v5630, %v5921
        %v5954 = vadd.f32 %v5631, %v5922
        %v5955 = vadd.f32 %v5632, %v5923
        %v5956 = vadd.f32 %v5633, %v5924
        %v5957 = vadd.f32 %v5634, %v5925
        %v5958 = vadd.f32 %v5635, %v5926
        %v5959 = vadd.f32 %v5636, %v5927
        %v5960 = vadd.f32 %v5637, %v5928
        %v5961 = vadd.f32 %v5638, %v5929
        %v5962 = vadd.f32 %v5639, %v5930
        %v5963 = vadd.f32 %v5640, %v5931
        %v5964 = vadd.f32 %v5641, %v5932
        %v5965 = vadd.f32 %v5642, %v5933
        %v5966 = vadd.f32 %v5643, %v5934
        %v5967 = vadd.f32 %v5644, %v5935
        %v5968 = vadd.f32 %v5645, %v5936
        %v5969 = vadd.f32 %v5646, %v5937
        %v5970 = vadd.f32 %v5647, %v5938
        %v5971 = vadd.f32 %v5648, %v5939
        %v5972 = vadd.f32 %v5649, %v5940
        %v5973 = vadd.f32 %v5650, %v5941
        %v5974 = vadd.f32 %v5651, %v5942
        %v5975 = vadd.f32 %v5652, %v5943
        %v5976 = vadd.f32 %v5653, %v5944
        %v5977 = vadd.f32 %v5654, %v5945
        %v5978 = vadd.f32 %v5655, %v5946
        %v5979 = vadd.f32 %v5656, %v5947
        %v5980 = vadd.f32 %v5657, %v5948
        %v5981 = vadd.f32 %v5658, %v5949
        %v5982 = vadd.f32 %v5659, %v5950
        %s5983 = scalar_lea.vmem [#allocation8], 192
        %v5984 = vld [vmem:[%s5983] sm:$0xf]
        %v5985 = vld [vmem:[%s5983 + $0x4] sm:$0xf]
        %v5986 = vld [vmem:[%s5983 + $0x8] sm:$0xf]
        %v5987 = vld [vmem:[%s5983 + $0xc] sm:$0xf]
        %v5988 = vld [vmem:[%s5983 + $0x10] sm:$0xf]
        %v5989 = vld [vmem:[%s5983 + $0x14] sm:$0xf]
        %v5990 = vld [vmem:[%s5983 + $0x18] sm:$0xf]
        %v5991 = vld [vmem:[%s5983 + $0x1c] sm:$0xf]
        %v5992 = vld [vmem:[%s5983 + $0x20] sm:$0xf]
        %v5993 = vld [vmem:[%s5983 + $0x24] sm:$0xf]
        %v5994 = vld [vmem:[%s5983 + $0x28] sm:$0xf]
        %v5995 = vld [vmem:[%s5983 + $0x2c] sm:$0xf]
        %v5996 = vld [vmem:[%s5983 + $0x30] sm:$0xf]
        %v5997 = vld [vmem:[%s5983 + $0x34] sm:$0xf]
        %v5998 = vld [vmem:[%s5983 + $0x38] sm:$0xf]
        %v5999 = vld [vmem:[%s5983 + $0x3c] sm:$0xf]
        %v6016 = vunpack.c.l.b16 %v5984
        %v6017 = vunpack.c.l.b16 %v5985
        %v6018 = vunpack.c.l.b16 %v5986
        %v6019 = vunpack.c.l.b16 %v5987
        %v6020 = vunpack.c.l.b16 %v5988
        %v6021 = vunpack.c.l.b16 %v5989
        %v6022 = vunpack.c.l.b16 %v5990
        %v6023 = vunpack.c.l.b16 %v5991
        %v6024 = vunpack.c.l.b16 %v5992
        %v6025 = vunpack.c.l.b16 %v5993
        %v6026 = vunpack.c.l.b16 %v5994
        %v6027 = vunpack.c.l.b16 %v5995
        %v6028 = vunpack.c.l.b16 %v5996
        %v6029 = vunpack.c.l.b16 %v5997
        %v6030 = vunpack.c.l.b16 %v5998
        %v6031 = vunpack.c.l.b16 %v5999
        %v6032 = vpack.c.b16 %v6017, %v6016
        %v6033 = vpack.c.b16 %v6019, %v6018
        %v6034 = vpack.c.b16 %v6021, %v6020
        %v6035 = vpack.c.b16 %v6023, %v6022
        %v6036 = vpack.c.b16 %v6025, %v6024
        %v6037 = vpack.c.b16 %v6027, %v6026
        %v6038 = vpack.c.b16 %v6029, %v6028
        %v6039 = vpack.c.b16 %v6031, %v6030
        %6048 = vmatpush.bf16.msra.mxu0 %v5013
        %6049 = vmatpush.bf16.msra.mxu0 %v5011
        %6050 = vmatpush.bf16.msra.mxu0 %v5009
        %6051 = vmatpush.bf16.msra.mxu0 %v5007
        %6052 = vmatpush.bf16.msra.mxu0 %v5005
        %6053 = vmatpush.bf16.msra.mxu0 %v5003
        %6054 = vmatpush.bf16.msra.mxu0 %v5001
        %6055 = vmatpush.bf16.msra.mxu0 %v4999
        %6056 = vmatmul.bf16.gmra.mxu0 %v6032
        %v6057 = vpop.f32.mrf.mxu0
        %v6058 = vadd.f32 0.0, %v6057
        %v6059 = vpop.f32.mrf.mxu0
        %v6060 = vadd.f32 0.0, %v6059
        %6061 = vmatmul.bf16.gmra.mxu0 %v6033
        %v6062 = vpop.f32.mrf.mxu0
        %v6063 = vadd.f32 0.0, %v6062
        %v6064 = vpop.f32.mrf.mxu0
        %v6065 = vadd.f32 0.0, %v6064
        %6066 = vmatmul.bf16.gmra.mxu0 %v6034
        %v6067 = vpop.f32.mrf.mxu0
        %v6068 = vadd.f32 0.0, %v6067
        %v6069 = vpop.f32.mrf.mxu0
        %v6070 = vadd.f32 0.0, %v6069
        %6071 = vmatmul.bf16.gmra.mxu0 %v6035
        %v6072 = vpop.f32.mrf.mxu0
        %v6073 = vadd.f32 0.0, %v6072
        %v6074 = vpop.f32.mrf.mxu0
        %v6075 = vadd.f32 0.0, %v6074
        %6076 = vmatmul.bf16.gmra.mxu0 %v6036
        %v6077 = vpop.f32.mrf.mxu0
        %v6078 = vadd.f32 0.0, %v6077
        %v6079 = vpop.f32.mrf.mxu0
        %v6080 = vadd.f32 0.0, %v6079
        %6081 = vmatmul.bf16.gmra.mxu0 %v6037
        %v6082 = vpop.f32.mrf.mxu0
        %v6083 = vadd.f32 0.0, %v6082
        %v6084 = vpop.f32.mrf.mxu0
        %v6085 = vadd.f32 0.0, %v6084
        %6086 = vmatmul.bf16.gmra.mxu0 %v6038
        %v6087 = vpop.f32.mrf.mxu0
        %v6088 = vadd.f32 0.0, %v6087
        %v6089 = vpop.f32.mrf.mxu0
        %v6090 = vadd.f32 0.0, %v6089
        %6091 = vmatmul.bf16.gmra.mxu0 %v6039
        %v6092 = vpop.f32.mrf.mxu0
        %v6093 = vadd.f32 0.0, %v6092
        %v6094 = vpop.f32.mrf.mxu0
        %v6095 = vadd.f32 0.0, %v6094
        %6096 = vdwg.mxu0
        %6097 = vmatpush.bf16.msra.mxu0 %v5014
        %6098 = vmatpush.bf16.msra.mxu0 %v5012
        %6099 = vmatpush.bf16.msra.mxu0 %v5010
        %6100 = vmatpush.bf16.msra.mxu0 %v5008
        %6101 = vmatpush.bf16.msra.mxu0 %v5006
        %6102 = vmatpush.bf16.msra.mxu0 %v5004
        %6103 = vmatpush.bf16.msra.mxu0 %v5002
        %6104 = vmatpush.bf16.msra.mxu0 %v5000
        %6105 = vmatmul.bf16.gmra.mxu0 %v6032
        %v6106 = vpop.f32.mrf.mxu0
        %v6107 = vadd.f32 0.0, %v6106
        %v6108 = vpop.f32.mrf.mxu0
        %v6109 = vadd.f32 0.0, %v6108
        %6110 = vmatmul.bf16.gmra.mxu0 %v6033
        %v6111 = vpop.f32.mrf.mxu0
        %v6112 = vadd.f32 0.0, %v6111
        %v6113 = vpop.f32.mrf.mxu0
        %v6114 = vadd.f32 0.0, %v6113
        %6115 = vmatmul.bf16.gmra.mxu0 %v6034
        %v6116 = vpop.f32.mrf.mxu0
        %v6117 = vadd.f32 0.0, %v6116
        %v6118 = vpop.f32.mrf.mxu0
        %v6119 = vadd.f32 0.0, %v6118
        %6120 = vmatmul.bf16.gmra.mxu0 %v6035
        %v6121 = vpop.f32.mrf.mxu0
        %v6122 = vadd.f32 0.0, %v6121
        %v6123 = vpop.f32.mrf.mxu0
        %v6124 = vadd.f32 0.0, %v6123
        %6125 = vmatmul.bf16.gmra.mxu0 %v6036
        %v6126 = vpop.f32.mrf.mxu0
        %v6127 = vadd.f32 0.0, %v6126
        %v6128 = vpop.f32.mrf.mxu0
        %v6129 = vadd.f32 0.0, %v6128
        %6130 = vmatmul.bf16.gmra.mxu0 %v6037
        %v6131 = vpop.f32.mrf.mxu0
        %v6132 = vadd.f32 0.0, %v6131
        %v6133 = vpop.f32.mrf.mxu0
        %v6134 = vadd.f32 0.0, %v6133
        %6135 = vmatmul.bf16.gmra.mxu0 %v6038
        %v6136 = vpop.f32.mrf.mxu0
        %v6137 = vadd.f32 0.0, %v6136
        %v6138 = vpop.f32.mrf.mxu0
        %v6139 = vadd.f32 0.0, %v6138
        %6140 = vmatmul.bf16.gmra.mxu0 %v6039
        %v6141 = vpop.f32.mrf.mxu0
        %v6142 = vadd.f32 0.0, %v6141
        %v6143 = vpop.f32.mrf.mxu0
        %v6144 = vadd.f32 0.0, %v6143
        %6145 = vdwg.mxu0
        %6146 = vrot.lane.b32.xlu0 %v6058, 1
        %v6147 = vpop.permute.xlu0 %6146
        %6148 = vrot.lane.b32.xlu0 %v6060, 1
        %v6149 = vpop.permute.xlu0 %6148
        %6150 = vrot.lane.b32.xlu0 %v6063, 1
        %v6151 = vpop.permute.xlu0 %6150
        %6152 = vrot.lane.b32.xlu0 %v6065, 1
        %v6153 = vpop.permute.xlu0 %6152
        %6154 = vrot.lane.b32.xlu0 %v6068, 1
        %v6155 = vpop.permute.xlu0 %6154
        %6156 = vrot.lane.b32.xlu0 %v6070, 1
        %v6157 = vpop.permute.xlu0 %6156
        %6158 = vrot.lane.b32.xlu0 %v6073, 1
        %v6159 = vpop.permute.xlu0 %6158
        %6160 = vrot.lane.b32.xlu0 %v6075, 1
        %v6161 = vpop.permute.xlu0 %6160
        %6162 = vrot.lane.b32.xlu0 %v6078, 1
        %v6163 = vpop.permute.xlu0 %6162
        %6164 = vrot.lane.b32.xlu0 %v6080, 1
        %v6165 = vpop.permute.xlu0 %6164
        %6166 = vrot.lane.b32.xlu0 %v6083, 1
        %v6167 = vpop.permute.xlu0 %6166
        %6168 = vrot.lane.b32.xlu0 %v6085, 1
        %v6169 = vpop.permute.xlu0 %6168
        %6170 = vrot.lane.b32.xlu0 %v6088, 1
        %v6171 = vpop.permute.xlu0 %6170
        %6172 = vrot.lane.b32.xlu0 %v6090, 1
        %v6173 = vpop.permute.xlu0 %6172
        %6174 = vrot.lane.b32.xlu0 %v6093, 1
        %v6175 = vpop.permute.xlu0 %6174
        %6176 = vrot.lane.b32.xlu0 %v6095, 1
        %v6177 = vpop.permute.xlu0 %6176
        %6178 = vrot.lane.b32.xlu0 %v6107, 1
        %v6179 = vpop.permute.xlu0 %6178
        %6180 = vrot.lane.b32.xlu0 %v6109, 1
        %v6181 = vpop.permute.xlu0 %6180
        %6182 = vrot.lane.b32.xlu0 %v6112, 1
        %v6183 = vpop.permute.xlu0 %6182
        %6184 = vrot.lane.b32.xlu0 %v6114, 1
        %v6185 = vpop.permute.xlu0 %6184
        %6186 = vrot.lane.b32.xlu0 %v6117, 1
        %v6187 = vpop.permute.xlu0 %6186
        %6188 = vrot.lane.b32.xlu0 %v6119, 1
        %v6189 = vpop.permute.xlu0 %6188
        %6190 = vrot.lane.b32.xlu0 %v6122, 1
        %v6191 = vpop.permute.xlu0 %6190
        %6192 = vrot.lane.b32.xlu0 %v6124, 1
        %v6193 = vpop.permute.xlu0 %6192
        %6194 = vrot.lane.b32.xlu0 %v6127, 1
        %v6195 = vpop.permute.xlu0 %6194
        %6196 = vrot.lane.b32.xlu0 %v6129, 1
        %v6197 = vpop.permute.xlu0 %6196
        %6198 = vrot.lane.b32.xlu0 %v6132, 1
        %v6199 = vpop.permute.xlu0 %6198
        %6200 = vrot.lane.b32.xlu0 %v6134, 1
        %v6201 = vpop.permute.xlu0 %6200
        %6202 = vrot.lane.b32.xlu0 %v6137, 1
        %v6203 = vpop.permute.xlu0 %6202
        %6204 = vrot.lane.b32.xlu0 %v6139, 1
        %v6205 = vpop.permute.xlu0 %6204
        %6206 = vrot.lane.b32.xlu0 %v6142, 1
        %v6207 = vpop.permute.xlu0 %6206
        %6208 = vrot.lane.b32.xlu0 %v6144, 1
        %v6209 = vpop.permute.xlu0 %6208
        %v6210 = vsel %vm2566, %v6147, %v6179
        %v6211 = vsel %vm2566, %v6149, %v6181
        %v6212 = vsel %vm2566, %v6151, %v6183
        %v6213 = vsel %vm2566, %v6153, %v6185
        %v6214 = vsel %vm2566, %v6155, %v6187
        %v6215 = vsel %vm2566, %v6157, %v6189
        %v6216 = vsel %vm2566, %v6159, %v6191
        %v6217 = vsel %vm2566, %v6161, %v6193
        %v6218 = vsel %vm2566, %v6163, %v6195
        %v6219 = vsel %vm2566, %v6165, %v6197
        %v6220 = vsel %vm2566, %v6167, %v6199
        %v6221 = vsel %vm2566, %v6169, %v6201
        %v6222 = vsel %vm2566, %v6171, %v6203
        %v6223 = vsel %vm2566, %v6173, %v6205
        %v6224 = vsel %vm2566, %v6175, %v6207
        %v6225 = vsel %vm2566, %v6177, %v6209
        %v6226 = vsel %vm2566, %v6179, %v6147
        %v6227 = vsel %vm2566, %v6181, %v6149
        %v6228 = vsel %vm2566, %v6183, %v6151
        %v6229 = vsel %vm2566, %v6185, %v6153
        %v6230 = vsel %vm2566, %v6187, %v6155
        %v6231 = vsel %vm2566, %v6189, %v6157
        %v6232 = vsel %vm2566, %v6191, %v6159
        %v6233 = vsel %vm2566, %v6193, %v6161
        %v6234 = vsel %vm2566, %v6195, %v6163
        %v6235 = vsel %vm2566, %v6197, %v6165
        %v6236 = vsel %vm2566, %v6199, %v6167
        %v6237 = vsel %vm2566, %v6201, %v6169
        %v6238 = vsel %vm2566, %v6203, %v6171
        %v6239 = vsel %vm2566, %v6205, %v6173
        %v6240 = vsel %vm2566, %v6207, %v6175
        %v6241 = vsel %vm2566, %v6209, %v6177
        %v6242 = vmul.f32 %v6226, %v2602
        %v6243 = vmul.f32 %v6210, %v2603
        %v6244 = vmul.f32 %v6227, %v2602
        %v6245 = vmul.f32 %v6211, %v2603
        %v6246 = vmul.f32 %v6228, %v2602
        %v6247 = vmul.f32 %v6212, %v2603
        %v6248 = vmul.f32 %v6229, %v2602
        %v6249 = vmul.f32 %v6213, %v2603
        %v6250 = vmul.f32 %v6230, %v2602
        %v6251 = vmul.f32 %v6214, %v2603
        %v6252 = vmul.f32 %v6231, %v2602
        %v6253 = vmul.f32 %v6215, %v2603
        %v6254 = vmul.f32 %v6232, %v2602
        %v6255 = vmul.f32 %v6216, %v2603
        %v6256 = vmul.f32 %v6233, %v2602
        %v6257 = vmul.f32 %v6217, %v2603
        %v6258 = vmul.f32 %v6234, %v2602
        %v6259 = vmul.f32 %v6218, %v2603
        %v6260 = vmul.f32 %v6235, %v2602
        %v6261 = vmul.f32 %v6219, %v2603
        %v6262 = vmul.f32 %v6236, %v2602
        %v6263 = vmul.f32 %v6220, %v2603
        %v6264 = vmul.f32 %v6237, %v2602
        %v6265 = vmul.f32 %v6221, %v2603
        %v6266 = vmul.f32 %v6238, %v2602
        %v6267 = vmul.f32 %v6222, %v2603
        %v6268 = vmul.f32 %v6239, %v2602
        %v6269 = vmul.f32 %v6223, %v2603
        %v6270 = vmul.f32 %v6240, %v2602
        %v6271 = vmul.f32 %v6224, %v2603
        %v6272 = vmul.f32 %v6241, %v2602
        %v6273 = vmul.f32 %v6225, %v2603
        %v6274 = vadd.f32 %v5951, %v6242
        %v6275 = vadd.f32 %v5952, %v6243
        %v6276 = vadd.f32 %v5953, %v6244
        %v6277 = vadd.f32 %v5954, %v6245
        %v6278 = vadd.f32 %v5955, %v6246
        %v6279 = vadd.f32 %v5956, %v6247
        %v6280 = vadd.f32 %v5957, %v6248
        %v6281 = vadd.f32 %v5958, %v6249
        %v6282 = vadd.f32 %v5959, %v6250
        %v6283 = vadd.f32 %v5960, %v6251
        %v6284 = vadd.f32 %v5961, %v6252
        %v6285 = vadd.f32 %v5962, %v6253
        %v6286 = vadd.f32 %v5963, %v6254
        %v6287 = vadd.f32 %v5964, %v6255
        %v6288 = vadd.f32 %v5965, %v6256
        %v6289 = vadd.f32 %v5966, %v6257
        %v6290 = vadd.f32 %v5967, %v6258
        %v6291 = vadd.f32 %v5968, %v6259
        %v6292 = vadd.f32 %v5969, %v6260
        %v6293 = vadd.f32 %v5970, %v6261
        %v6294 = vadd.f32 %v5971, %v6262
        %v6295 = vadd.f32 %v5972, %v6263
        %v6296 = vadd.f32 %v5973, %v6264
        %v6297 = vadd.f32 %v5974, %v6265
        %v6298 = vadd.f32 %v5975, %v6266
        %v6299 = vadd.f32 %v5976, %v6267
        %v6300 = vadd.f32 %v5977, %v6268
        %v6301 = vadd.f32 %v5978, %v6269
        %v6302 = vadd.f32 %v5979, %v6270
        %v6303 = vadd.f32 %v5980, %v6271
        %v6304 = vadd.f32 %v5981, %v6272
        %v6305 = vadd.f32 %v5982, %v6273
        %s6306 = scalar_lea.vmem [#allocation8], 256
        %v6307 = vld [vmem:[%s6306] sm:$0xf]
        %v6308 = vld [vmem:[%s6306 + $0x4] sm:$0xf]
        %v6309 = vld [vmem:[%s6306 + $0x8] sm:$0xf]
        %v6310 = vld [vmem:[%s6306 + $0xc] sm:$0xf]
        %v6311 = vld [vmem:[%s6306 + $0x10] sm:$0xf]
        %v6312 = vld [vmem:[%s6306 + $0x14] sm:$0xf]
        %v6313 = vld [vmem:[%s6306 + $0x18] sm:$0xf]
        %v6314 = vld [vmem:[%s6306 + $0x1c] sm:$0xf]
        %v6315 = vld [vmem:[%s6306 + $0x20] sm:$0xf]
        %v6316 = vld [vmem:[%s6306 + $0x24] sm:$0xf]
        %v6317 = vld [vmem:[%s6306 + $0x28] sm:$0xf]
        %v6318 = vld [vmem:[%s6306 + $0x2c] sm:$0xf]
        %v6319 = vld [vmem:[%s6306 + $0x30] sm:$0xf]
        %v6320 = vld [vmem:[%s6306 + $0x34] sm:$0xf]
        %v6321 = vld [vmem:[%s6306 + $0x38] sm:$0xf]
        %v6322 = vld [vmem:[%s6306 + $0x3c] sm:$0xf]
        %v6339 = vunpack.c.l.b16 %v6307
        %v6340 = vunpack.c.l.b16 %v6308
        %v6341 = vunpack.c.l.b16 %v6309
        %v6342 = vunpack.c.l.b16 %v6310
        %v6343 = vunpack.c.l.b16 %v6311
        %v6344 = vunpack.c.l.b16 %v6312
        %v6345 = vunpack.c.l.b16 %v6313
        %v6346 = vunpack.c.l.b16 %v6314
        %v6347 = vunpack.c.l.b16 %v6315
        %v6348 = vunpack.c.l.b16 %v6316
        %v6349 = vunpack.c.l.b16 %v6317
        %v6350 = vunpack.c.l.b16 %v6318
        %v6351 = vunpack.c.l.b16 %v6319
        %v6352 = vunpack.c.l.b16 %v6320
        %v6353 = vunpack.c.l.b16 %v6321
        %v6354 = vunpack.c.l.b16 %v6322
        %v6355 = vpack.c.b16 %v6340, %v6339
        %v6356 = vpack.c.b16 %v6342, %v6341
        %v6357 = vpack.c.b16 %v6344, %v6343
        %v6358 = vpack.c.b16 %v6346, %v6345
        %v6359 = vpack.c.b16 %v6348, %v6347
        %v6360 = vpack.c.b16 %v6350, %v6349
        %v6361 = vpack.c.b16 %v6352, %v6351
        %v6362 = vpack.c.b16 %v6354, %v6353
        %6371 = vmatpush.bf16.msra.mxu0 %v5013
        %6372 = vmatpush.bf16.msra.mxu0 %v5011
        %6373 = vmatpush.bf16.msra.mxu0 %v5009
        %6374 = vmatpush.bf16.msra.mxu0 %v5007
        %6375 = vmatpush.bf16.msra.mxu0 %v5005
        %6376 = vmatpush.bf16.msra.mxu0 %v5003
        %6377 = vmatpush.bf16.msra.mxu0 %v5001
        %6378 = vmatpush.bf16.msra.mxu0 %v4999
        %6379 = vmatmul.bf16.gmra.mxu0 %v6355
        %v6380 = vpop.f32.mrf.mxu0
        %v6381 = vadd.f32 0.0, %v6380
        %v6382 = vpop.f32.mrf.mxu0
        %v6383 = vadd.f32 0.0, %v6382
        %6384 = vmatmul.bf16.gmra.mxu0 %v6356
        %v6385 = vpop.f32.mrf.mxu0
        %v6386 = vadd.f32 0.0, %v6385
        %v6387 = vpop.f32.mrf.mxu0
        %v6388 = vadd.f32 0.0, %v6387
        %6389 = vmatmul.bf16.gmra.mxu0 %v6357
        %v6390 = vpop.f32.mrf.mxu0
        %v6391 = vadd.f32 0.0, %v6390
        %v6392 = vpop.f32.mrf.mxu0
        %v6393 = vadd.f32 0.0, %v6392
        %6394 = vmatmul.bf16.gmra.mxu0 %v6358
        %v6395 = vpop.f32.mrf.mxu0
        %v6396 = vadd.f32 0.0, %v6395
        %v6397 = vpop.f32.mrf.mxu0
        %v6398 = vadd.f32 0.0, %v6397
        %6399 = vmatmul.bf16.gmra.mxu0 %v6359
        %v6400 = vpop.f32.mrf.mxu0
        %v6401 = vadd.f32 0.0, %v6400
        %v6402 = vpop.f32.mrf.mxu0
        %v6403 = vadd.f32 0.0, %v6402
        %6404 = vmatmul.bf16.gmra.mxu0 %v6360
        %v6405 = vpop.f32.mrf.mxu0
        %v6406 = vadd.f32 0.0, %v6405
        %v6407 = vpop.f32.mrf.mxu0
        %v6408 = vadd.f32 0.0, %v6407
        %6409 = vmatmul.bf16.gmra.mxu0 %v6361
        %v6410 = vpop.f32.mrf.mxu0
        %v6411 = vadd.f32 0.0, %v6410
        %v6412 = vpop.f32.mrf.mxu0
        %v6413 = vadd.f32 0.0, %v6412
        %6414 = vmatmul.bf16.gmra.mxu0 %v6362
        %v6415 = vpop.f32.mrf.mxu0
        %v6416 = vadd.f32 0.0, %v6415
        %v6417 = vpop.f32.mrf.mxu0
        %v6418 = vadd.f32 0.0, %v6417
        %6419 = vdwg.mxu0
        %6420 = vmatpush.bf16.msra.mxu0 %v5014
        %6421 = vmatpush.bf16.msra.mxu0 %v5012
        %6422 = vmatpush.bf16.msra.mxu0 %v5010
        %6423 = vmatpush.bf16.msra.mxu0 %v5008
        %6424 = vmatpush.bf16.msra.mxu0 %v5006
        %6425 = vmatpush.bf16.msra.mxu0 %v5004
        %6426 = vmatpush.bf16.msra.mxu0 %v5002
        %6427 = vmatpush.bf16.msra.mxu0 %v5000
        %6428 = vmatmul.bf16.gmra.mxu0 %v6355
        %v6429 = vpop.f32.mrf.mxu0
        %v6430 = vadd.f32 0.0, %v6429
        %v6431 = vpop.f32.mrf.mxu0
        %v6432 = vadd.f32 0.0, %v6431
        %6433 = vmatmul.bf16.gmra.mxu0 %v6356
        %v6434 = vpop.f32.mrf.mxu0
        %v6435 = vadd.f32 0.0, %v6434
        %v6436 = vpop.f32.mrf.mxu0
        %v6437 = vadd.f32 0.0, %v6436
        %6438 = vmatmul.bf16.gmra.mxu0 %v6357
        %v6439 = vpop.f32.mrf.mxu0
        %v6440 = vadd.f32 0.0, %v6439
        %v6441 = vpop.f32.mrf.mxu0
        %v6442 = vadd.f32 0.0, %v6441
        %6443 = vmatmul.bf16.gmra.mxu0 %v6358
        %v6444 = vpop.f32.mrf.mxu0
        %v6445 = vadd.f32 0.0, %v6444
        %v6446 = vpop.f32.mrf.mxu0
        %v6447 = vadd.f32 0.0, %v6446
        %6448 = vmatmul.bf16.gmra.mxu0 %v6359
        %v6449 = vpop.f32.mrf.mxu0
        %v6450 = vadd.f32 0.0, %v6449
        %v6451 = vpop.f32.mrf.mxu0
        %v6452 = vadd.f32 0.0, %v6451
        %6453 = vmatmul.bf16.gmra.mxu0 %v6360
        %v6454 = vpop.f32.mrf.mxu0
        %v6455 = vadd.f32 0.0, %v6454
        %v6456 = vpop.f32.mrf.mxu0
        %v6457 = vadd.f32 0.0, %v6456
        %6458 = vmatmul.bf16.gmra.mxu0 %v6361
        %v6459 = vpop.f32.mrf.mxu0
        %v6460 = vadd.f32 0.0, %v6459
        %v6461 = vpop.f32.mrf.mxu0
        %v6462 = vadd.f32 0.0, %v6461
        %6463 = vmatmul.bf16.gmra.mxu0 %v6362
        %v6464 = vpop.f32.mrf.mxu0
        %v6465 = vadd.f32 0.0, %v6464
        %v6466 = vpop.f32.mrf.mxu0
        %v6467 = vadd.f32 0.0, %v6466
        %6468 = vdwg.mxu0
        %v6469 = vadd.f32 %v6274, %v6381
        %v6470 = vadd.f32 %v6275, %v6430
        %v6471 = vadd.f32 %v6276, %v6383
        %v6472 = vadd.f32 %v6277, %v6432
        %v6473 = vadd.f32 %v6278, %v6386
        %v6474 = vadd.f32 %v6279, %v6435
        %v6475 = vadd.f32 %v6280, %v6388
        %v6476 = vadd.f32 %v6281, %v6437
        %v6477 = vadd.f32 %v6282, %v6391
        %v6478 = vadd.f32 %v6283, %v6440
        %v6479 = vadd.f32 %v6284, %v6393
        %v6480 = vadd.f32 %v6285, %v6442
        %v6481 = vadd.f32 %v6286, %v6396
        %v6482 = vadd.f32 %v6287, %v6445
        %v6483 = vadd.f32 %v6288, %v6398
        %v6484 = vadd.f32 %v6289, %v6447
        %v6485 = vadd.f32 %v6290, %v6401
        %v6486 = vadd.f32 %v6291, %v6450
        %v6487 = vadd.f32 %v6292, %v6403
        %v6488 = vadd.f32 %v6293, %v6452
        %v6489 = vadd.f32 %v6294, %v6406
        %v6490 = vadd.f32 %v6295, %v6455
        %v6491 = vadd.f32 %v6296, %v6408
        %v6492 = vadd.f32 %v6297, %v6457
        %v6493 = vadd.f32 %v6298, %v6411
        %v6494 = vadd.f32 %v6299, %v6460
        %v6495 = vadd.f32 %v6300, %v6413
        %v6496 = vadd.f32 %v6301, %v6462
        %v6497 = vadd.f32 %v6302, %v6416
        %v6498 = vadd.f32 %v6303, %v6465
        %v6499 = vadd.f32 %v6304, %v6418
        %v6500 = vadd.f32 %v6305, %v6467
        %s6501 = scalar_lea.vmem [#allocation8], 320
        %v6502 = vld [vmem:[%s6501] sm:$0xf]
        %v6503 = vld [vmem:[%s6501 + $0x4] sm:$0xf]
        %v6504 = vld [vmem:[%s6501 + $0x8] sm:$0xf]
        %v6505 = vld [vmem:[%s6501 + $0xc] sm:$0xf]
        %v6506 = vld [vmem:[%s6501 + $0x10] sm:$0xf]
        %v6507 = vld [vmem:[%s6501 + $0x14] sm:$0xf]
        %v6508 = vld [vmem:[%s6501 + $0x18] sm:$0xf]
        %v6509 = vld [vmem:[%s6501 + $0x1c] sm:$0xf]
        %v6510 = vld [vmem:[%s6501 + $0x20] sm:$0xf]
        %v6511 = vld [vmem:[%s6501 + $0x24] sm:$0xf]
        %v6512 = vld [vmem:[%s6501 + $0x28] sm:$0xf]
        %v6513 = vld [vmem:[%s6501 + $0x2c] sm:$0xf]
        %v6514 = vld [vmem:[%s6501 + $0x30] sm:$0xf]
        %v6515 = vld [vmem:[%s6501 + $0x34] sm:$0xf]
        %v6516 = vld [vmem:[%s6501 + $0x38] sm:$0xf]
        %v6517 = vld [vmem:[%s6501 + $0x3c] sm:$0xf]
        %v6534 = vunpack.c.l.b16 %v6502
        %v6535 = vunpack.c.l.b16 %v6503
        %v6536 = vunpack.c.l.b16 %v6504
        %v6537 = vunpack.c.l.b16 %v6505
        %v6538 = vunpack.c.l.b16 %v6506
        %v6539 = vunpack.c.l.b16 %v6507
        %v6540 = vunpack.c.l.b16 %v6508
        %v6541 = vunpack.c.l.b16 %v6509
        %v6542 = vunpack.c.l.b16 %v6510
        %v6543 = vunpack.c.l.b16 %v6511
        %v6544 = vunpack.c.l.b16 %v6512
        %v6545 = vunpack.c.l.b16 %v6513
        %v6546 = vunpack.c.l.b16 %v6514
        %v6547 = vunpack.c.l.b16 %v6515
        %v6548 = vunpack.c.l.b16 %v6516
        %v6549 = vunpack.c.l.b16 %v6517
        %v6550 = vpack.c.b16 %v6535, %v6534
        %v6551 = vpack.c.b16 %v6537, %v6536
        %v6552 = vpack.c.b16 %v6539, %v6538
        %v6553 = vpack.c.b16 %v6541, %v6540
        %v6554 = vpack.c.b16 %v6543, %v6542
        %v6555 = vpack.c.b16 %v6545, %v6544
        %v6556 = vpack.c.b16 %v6547, %v6546
        %v6557 = vpack.c.b16 %v6549, %v6548
        %6566 = vmatpush.bf16.msra.mxu0 %v5013
        %6567 = vmatpush.bf16.msra.mxu0 %v5011
        %6568 = vmatpush.bf16.msra.mxu0 %v5009
        %6569 = vmatpush.bf16.msra.mxu0 %v5007
        %6570 = vmatpush.bf16.msra.mxu0 %v5005
        %6571 = vmatpush.bf16.msra.mxu0 %v5003
        %6572 = vmatpush.bf16.msra.mxu0 %v5001
        %6573 = vmatpush.bf16.msra.mxu0 %v4999
        %6574 = vmatmul.bf16.gmra.mxu0 %v6550
        %v6575 = vpop.f32.mrf.mxu0
        %v6576 = vadd.f32 0.0, %v6575
        %v6577 = vpop.f32.mrf.mxu0
        %v6578 = vadd.f32 0.0, %v6577
        %6579 = vmatmul.bf16.gmra.mxu0 %v6551
        %v6580 = vpop.f32.mrf.mxu0
        %v6581 = vadd.f32 0.0, %v6580
        %v6582 = vpop.f32.mrf.mxu0
        %v6583 = vadd.f32 0.0, %v6582
        %6584 = vmatmul.bf16.gmra.mxu0 %v6552
        %v6585 = vpop.f32.mrf.mxu0
        %v6586 = vadd.f32 0.0, %v6585
        %v6587 = vpop.f32.mrf.mxu0
        %v6588 = vadd.f32 0.0, %v6587
        %6589 = vmatmul.bf16.gmra.mxu0 %v6553
        %v6590 = vpop.f32.mrf.mxu0
        %v6591 = vadd.f32 0.0, %v6590
        %v6592 = vpop.f32.mrf.mxu0
        %v6593 = vadd.f32 0.0, %v6592
        %6594 = vmatmul.bf16.gmra.mxu0 %v6554
        %v6595 = vpop.f32.mrf.mxu0
        %v6596 = vadd.f32 0.0, %v6595
        %v6597 = vpop.f32.mrf.mxu0
        %v6598 = vadd.f32 0.0, %v6597
        %6599 = vmatmul.bf16.gmra.mxu0 %v6555
        %v6600 = vpop.f32.mrf.mxu0
        %v6601 = vadd.f32 0.0, %v6600
        %v6602 = vpop.f32.mrf.mxu0
        %v6603 = vadd.f32 0.0, %v6602
        %6604 = vmatmul.bf16.gmra.mxu0 %v6556
        %v6605 = vpop.f32.mrf.mxu0
        %v6606 = vadd.f32 0.0, %v6605
        %v6607 = vpop.f32.mrf.mxu0
        %v6608 = vadd.f32 0.0, %v6607
        %6609 = vmatmul.bf16.gmra.mxu0 %v6557
        %v6610 = vpop.f32.mrf.mxu0
        %v6611 = vadd.f32 0.0, %v6610
        %v6612 = vpop.f32.mrf.mxu0
        %v6613 = vadd.f32 0.0, %v6612
        %6614 = vdwg.mxu0
        %6615 = vmatpush.bf16.msra.mxu0 %v5014
        %6616 = vmatpush.bf16.msra.mxu0 %v5012
        %6617 = vmatpush.bf16.msra.mxu0 %v5010
        %6618 = vmatpush.bf16.msra.mxu0 %v5008
        %6619 = vmatpush.bf16.msra.mxu0 %v5006
        %6620 = vmatpush.bf16.msra.mxu0 %v5004
        %6621 = vmatpush.bf16.msra.mxu0 %v5002
        %6622 = vmatpush.bf16.msra.mxu0 %v5000
        %6623 = vmatmul.bf16.gmra.mxu0 %v6550
        %v6624 = vpop.f32.mrf.mxu0
        %v6625 = vadd.f32 0.0, %v6624
        %v6626 = vpop.f32.mrf.mxu0
        %v6627 = vadd.f32 0.0, %v6626
        %6628 = vmatmul.bf16.gmra.mxu0 %v6551
        %v6629 = vpop.f32.mrf.mxu0
        %v6630 = vadd.f32 0.0, %v6629
        %v6631 = vpop.f32.mrf.mxu0
        %v6632 = vadd.f32 0.0, %v6631
        %6633 = vmatmul.bf16.gmra.mxu0 %v6552
        %v6634 = vpop.f32.mrf.mxu0
        %v6635 = vadd.f32 0.0, %v6634
        %v6636 = vpop.f32.mrf.mxu0
        %v6637 = vadd.f32 0.0, %v6636
        %6638 = vmatmul.bf16.gmra.mxu0 %v6553
        %v6639 = vpop.f32.mrf.mxu0
        %v6640 = vadd.f32 0.0, %v6639
        %v6641 = vpop.f32.mrf.mxu0
        %v6642 = vadd.f32 0.0, %v6641
        %6643 = vmatmul.bf16.gmra.mxu0 %v6554
        %v6644 = vpop.f32.mrf.mxu0
        %v6645 = vadd.f32 0.0, %v6644
        %v6646 = vpop.f32.mrf.mxu0
        %v6647 = vadd.f32 0.0, %v6646
        %6648 = vmatmul.bf16.gmra.mxu0 %v6555
        %v6649 = vpop.f32.mrf.mxu0
        %v6650 = vadd.f32 0.0, %v6649
        %v6651 = vpop.f32.mrf.mxu0
        %v6652 = vadd.f32 0.0, %v6651
        %6653 = vmatmul.bf16.gmra.mxu0 %v6556
        %v6654 = vpop.f32.mrf.mxu0
        %v6655 = vadd.f32 0.0, %v6654
        %v6656 = vpop.f32.mrf.mxu0
        %v6657 = vadd.f32 0.0, %v6656
        %6658 = vmatmul.bf16.gmra.mxu0 %v6557
        %v6659 = vpop.f32.mrf.mxu0
        %v6660 = vadd.f32 0.0, %v6659
        %v6661 = vpop.f32.mrf.mxu0
        %v6662 = vadd.f32 0.0, %v6661
        %6663 = vdwg.mxu0
        %6664 = vrot.lane.b32.xlu0 %v6576, 127
        %v6665 = vpop.permute.xlu0 %6664
        %6666 = vrot.lane.b32.xlu0 %v6578, 127
        %v6667 = vpop.permute.xlu0 %6666
        %6668 = vrot.lane.b32.xlu0 %v6581, 127
        %v6669 = vpop.permute.xlu0 %6668
        %6670 = vrot.lane.b32.xlu0 %v6583, 127
        %v6671 = vpop.permute.xlu0 %6670
        %6672 = vrot.lane.b32.xlu0 %v6586, 127
        %v6673 = vpop.permute.xlu0 %6672
        %6674 = vrot.lane.b32.xlu0 %v6588, 127
        %v6675 = vpop.permute.xlu0 %6674
        %6676 = vrot.lane.b32.xlu0 %v6591, 127
        %v6677 = vpop.permute.xlu0 %6676
        %6678 = vrot.lane.b32.xlu0 %v6593, 127
        %v6679 = vpop.permute.xlu0 %6678
        %6680 = vrot.lane.b32.xlu0 %v6596, 127
        %v6681 = vpop.permute.xlu0 %6680
        %6682 = vrot.lane.b32.xlu0 %v6598, 127
        %v6683 = vpop.permute.xlu0 %6682
        %6684 = vrot.lane.b32.xlu0 %v6601, 127
        %v6685 = vpop.permute.xlu0 %6684
        %6686 = vrot.lane.b32.xlu0 %v6603, 127
        %v6687 = vpop.permute.xlu0 %6686
        %6688 = vrot.lane.b32.xlu0 %v6606, 127
        %v6689 = vpop.permute.xlu0 %6688
        %6690 = vrot.lane.b32.xlu0 %v6608, 127
        %v6691 = vpop.permute.xlu0 %6690
        %6692 = vrot.lane.b32.xlu0 %v6611, 127
        %v6693 = vpop.permute.xlu0 %6692
        %6694 = vrot.lane.b32.xlu0 %v6613, 127
        %v6695 = vpop.permute.xlu0 %6694
        %6696 = vrot.lane.b32.xlu0 %v6625, 127
        %v6697 = vpop.permute.xlu0 %6696
        %6698 = vrot.lane.b32.xlu0 %v6627, 127
        %v6699 = vpop.permute.xlu0 %6698
        %6700 = vrot.lane.b32.xlu0 %v6630, 127
        %v6701 = vpop.permute.xlu0 %6700
        %6702 = vrot.lane.b32.xlu0 %v6632, 127
        %v6703 = vpop.permute.xlu0 %6702
        %6704 = vrot.lane.b32.xlu0 %v6635, 127
        %v6705 = vpop.permute.xlu0 %6704
        %6706 = vrot.lane.b32.xlu0 %v6637, 127
        %v6707 = vpop.permute.xlu0 %6706
        %6708 = vrot.lane.b32.xlu0 %v6640, 127
        %v6709 = vpop.permute.xlu0 %6708
        %6710 = vrot.lane.b32.xlu0 %v6642, 127
        %v6711 = vpop.permute.xlu0 %6710
        %6712 = vrot.lane.b32.xlu0 %v6645, 127
        %v6713 = vpop.permute.xlu0 %6712
        %6714 = vrot.lane.b32.xlu0 %v6647, 127
        %v6715 = vpop.permute.xlu0 %6714
        %6716 = vrot.lane.b32.xlu0 %v6650, 127
        %v6717 = vpop.permute.xlu0 %6716
        %6718 = vrot.lane.b32.xlu0 %v6652, 127
        %v6719 = vpop.permute.xlu0 %6718
        %6720 = vrot.lane.b32.xlu0 %v6655, 127
        %v6721 = vpop.permute.xlu0 %6720
        %6722 = vrot.lane.b32.xlu0 %v6657, 127
        %v6723 = vpop.permute.xlu0 %6722
        %6724 = vrot.lane.b32.xlu0 %v6660, 127
        %v6725 = vpop.permute.xlu0 %6724
        %6726 = vrot.lane.b32.xlu0 %v6662, 127
        %v6727 = vpop.permute.xlu0 %6726
        %v6728 = vsel %vm3352, %v6665, %v6697
        %v6729 = vsel %vm3352, %v6667, %v6699
        %v6730 = vsel %vm3352, %v6669, %v6701
        %v6731 = vsel %vm3352, %v6671, %v6703
        %v6732 = vsel %vm3352, %v6673, %v6705
        %v6733 = vsel %vm3352, %v6675, %v6707
        %v6734 = vsel %vm3352, %v6677, %v6709
        %v6735 = vsel %vm3352, %v6679, %v6711
        %v6736 = vsel %vm3352, %v6681, %v6713
        %v6737 = vsel %vm3352, %v6683, %v6715
        %v6738 = vsel %vm3352, %v6685, %v6717
        %v6739 = vsel %vm3352, %v6687, %v6719
        %v6740 = vsel %vm3352, %v6689, %v6721
        %v6741 = vsel %vm3352, %v6691, %v6723
        %v6742 = vsel %vm3352, %v6693, %v6725
        %v6743 = vsel %vm3352, %v6695, %v6727
        %v6744 = vsel %vm3352, %v6697, %v6665
        %v6745 = vsel %vm3352, %v6699, %v6667
        %v6746 = vsel %vm3352, %v6701, %v6669
        %v6747 = vsel %vm3352, %v6703, %v6671
        %v6748 = vsel %vm3352, %v6705, %v6673
        %v6749 = vsel %vm3352, %v6707, %v6675
        %v6750 = vsel %vm3352, %v6709, %v6677
        %v6751 = vsel %vm3352, %v6711, %v6679
        %v6752 = vsel %vm3352, %v6713, %v6681
        %v6753 = vsel %vm3352, %v6715, %v6683
        %v6754 = vsel %vm3352, %v6717, %v6685
        %v6755 = vsel %vm3352, %v6719, %v6687
        %v6756 = vsel %vm3352, %v6721, %v6689
        %v6757 = vsel %vm3352, %v6723, %v6691
        %v6758 = vsel %vm3352, %v6725, %v6693
        %v6759 = vsel %vm3352, %v6727, %v6695
        %v6760 = vmul.f32 %v6728, %v3388
        %v6761 = vmul.f32 %v6744, %v3389
        %v6762 = vmul.f32 %v6729, %v3388
        %v6763 = vmul.f32 %v6745, %v3389
        %v6764 = vmul.f32 %v6730, %v3388
        %v6765 = vmul.f32 %v6746, %v3389
        %v6766 = vmul.f32 %v6731, %v3388
        %v6767 = vmul.f32 %v6747, %v3389
        %v6768 = vmul.f32 %v6732, %v3388
        %v6769 = vmul.f32 %v6748, %v3389
        %v6770 = vmul.f32 %v6733, %v3388
        %v6771 = vmul.f32 %v6749, %v3389
        %v6772 = vmul.f32 %v6734, %v3388
        %v6773 = vmul.f32 %v6750, %v3389
        %v6774 = vmul.f32 %v6735, %v3388
        %v6775 = vmul.f32 %v6751, %v3389
        %v6776 = vmul.f32 %v6736, %v3388
        %v6777 = vmul.f32 %v6752, %v3389
        %v6778 = vmul.f32 %v6737, %v3388
        %v6779 = vmul.f32 %v6753, %v3389
        %v6780 = vmul.f32 %v6738, %v3388
        %v6781 = vmul.f32 %v6754, %v3389
        %v6782 = vmul.f32 %v6739, %v3388
        %v6783 = vmul.f32 %v6755, %v3389
        %v6784 = vmul.f32 %v6740, %v3388
        %v6785 = vmul.f32 %v6756, %v3389
        %v6786 = vmul.f32 %v6741, %v3388
        %v6787 = vmul.f32 %v6757, %v3389
        %v6788 = vmul.f32 %v6742, %v3388
        %v6789 = vmul.f32 %v6758, %v3389
        %v6790 = vmul.f32 %v6743, %v3388
        %v6791 = vmul.f32 %v6759, %v3389
        %v6792 = vadd.f32 %v6469, %v6760
        %v6793 = vadd.f32 %v6470, %v6761
        %v6794 = vadd.f32 %v6471, %v6762
        %v6795 = vadd.f32 %v6472, %v6763
        %v6796 = vadd.f32 %v6473, %v6764
        %v6797 = vadd.f32 %v6474, %v6765
        %v6798 = vadd.f32 %v6475, %v6766
        %v6799 = vadd.f32 %v6476, %v6767
        %v6800 = vadd.f32 %v6477, %v6768
        %v6801 = vadd.f32 %v6478, %v6769
        %v6802 = vadd.f32 %v6479, %v6770
        %v6803 = vadd.f32 %v6480, %v6771
        %v6804 = vadd.f32 %v6481, %v6772
        %v6805 = vadd.f32 %v6482, %v6773
        %v6806 = vadd.f32 %v6483, %v6774
        %v6807 = vadd.f32 %v6484, %v6775
        %v6808 = vadd.f32 %v6485, %v6776
        %v6809 = vadd.f32 %v6486, %v6777
        %v6810 = vadd.f32 %v6487, %v6778
        %v6811 = vadd.f32 %v6488, %v6779
        %v6812 = vadd.f32 %v6489, %v6780
        %v6813 = vadd.f32 %v6490, %v6781
        %v6814 = vadd.f32 %v6491, %v6782
        %v6815 = vadd.f32 %v6492, %v6783
        %v6816 = vadd.f32 %v6493, %v6784
        %v6817 = vadd.f32 %v6494, %v6785
        %v6818 = vadd.f32 %v6495, %v6786
        %v6819 = vadd.f32 %v6496, %v6787
        %v6820 = vadd.f32 %v6497, %v6788
        %v6821 = vadd.f32 %v6498, %v6789
        %v6822 = vadd.f32 %v6499, %v6790
        %v6823 = vadd.f32 %v6500, %v6791
        %s6824 = scalar_lea.vmem [#allocation8], 384
        %v6825 = vld [vmem:[%s6824] sm:$0xf]
        %v6826 = vld [vmem:[%s6824 + $0x4] sm:$0xf]
        %v6827 = vld [vmem:[%s6824 + $0x8] sm:$0xf]
        %v6828 = vld [vmem:[%s6824 + $0xc] sm:$0xf]
        %v6829 = vld [vmem:[%s6824 + $0x10] sm:$0xf]
        %v6830 = vld [vmem:[%s6824 + $0x14] sm:$0xf]
        %v6831 = vld [vmem:[%s6824 + $0x18] sm:$0xf]
        %v6832 = vld [vmem:[%s6824 + $0x1c] sm:$0xf]
        %v6833 = vld [vmem:[%s6824 + $0x20] sm:$0xf]
        %v6834 = vld [vmem:[%s6824 + $0x24] sm:$0xf]
        %v6835 = vld [vmem:[%s6824 + $0x28] sm:$0xf]
        %v6836 = vld [vmem:[%s6824 + $0x2c] sm:$0xf]
        %v6837 = vld [vmem:[%s6824 + $0x30] sm:$0xf]
        %v6838 = vld [vmem:[%s6824 + $0x34] sm:$0xf]
        %v6839 = vld [vmem:[%s6824 + $0x38] sm:$0xf]
        %v6840 = vld [vmem:[%s6824 + $0x3c] sm:$0xf]
        %v6857 = vunpack.c.l.b16 %v6825
        %v6858 = vunpack.c.l.b16 %v6826
        %v6859 = vunpack.c.l.b16 %v6827
        %v6860 = vunpack.c.l.b16 %v6828
        %v6861 = vunpack.c.l.b16 %v6829
        %v6862 = vunpack.c.l.b16 %v6830
        %v6863 = vunpack.c.l.b16 %v6831
        %v6864 = vunpack.c.l.b16 %v6832
        %v6865 = vunpack.c.l.b16 %v6833
        %v6866 = vunpack.c.l.b16 %v6834
        %v6867 = vunpack.c.l.b16 %v6835
        %v6868 = vunpack.c.l.b16 %v6836
        %v6869 = vunpack.c.l.b16 %v6837
        %v6870 = vunpack.c.l.b16 %v6838
        %v6871 = vunpack.c.l.b16 %v6839
        %v6872 = vunpack.c.l.b16 %v6840
        %v6873 = vpack.c.b16 %v6858, %v6857
        %v6874 = vpack.c.b16 %v6860, %v6859
        %v6875 = vpack.c.b16 %v6862, %v6861
        %v6876 = vpack.c.b16 %v6864, %v6863
        %v6877 = vpack.c.b16 %v6866, %v6865
        %v6878 = vpack.c.b16 %v6868, %v6867
        %v6879 = vpack.c.b16 %v6870, %v6869
        %v6880 = vpack.c.b16 %v6872, %v6871
        %6889 = vmatpush.bf16.msra.mxu0 %v5013
        %6890 = vmatpush.bf16.msra.mxu0 %v5011
        %6891 = vmatpush.bf16.msra.mxu0 %v5009
        %6892 = vmatpush.bf16.msra.mxu0 %v5007
        %6893 = vmatpush.bf16.msra.mxu0 %v5005
        %6894 = vmatpush.bf16.msra.mxu0 %v5003
        %6895 = vmatpush.bf16.msra.mxu0 %v5001
        %6896 = vmatpush.bf16.msra.mxu0 %v4999
        %6897 = vmatmul.bf16.gmra.mxu0 %v6873
        %v6898 = vpop.f32.mrf.mxu0
        %v6899 = vadd.f32 0.0, %v6898
        %v6900 = vpop.f32.mrf.mxu0
        %v6901 = vadd.f32 0.0, %v6900
        %6902 = vmatmul.bf16.gmra.mxu0 %v6874
        %v6903 = vpop.f32.mrf.mxu0
        %v6904 = vadd.f32 0.0, %v6903
        %v6905 = vpop.f32.mrf.mxu0
        %v6906 = vadd.f32 0.0, %v6905
        %6907 = vmatmul.bf16.gmra.mxu0 %v6875
        %v6908 = vpop.f32.mrf.mxu0
        %v6909 = vadd.f32 0.0, %v6908
        %v6910 = vpop.f32.mrf.mxu0
        %v6911 = vadd.f32 0.0, %v6910
        %6912 = vmatmul.bf16.gmra.mxu0 %v6876
        %v6913 = vpop.f32.mrf.mxu0
        %v6914 = vadd.f32 0.0, %v6913
        %v6915 = vpop.f32.mrf.mxu0
        %v6916 = vadd.f32 0.0, %v6915
        %6917 = vmatmul.bf16.gmra.mxu0 %v6877
        %v6918 = vpop.f32.mrf.mxu0
        %v6919 = vadd.f32 0.0, %v6918
        %v6920 = vpop.f32.mrf.mxu0
        %v6921 = vadd.f32 0.0, %v6920
        %6922 = vmatmul.bf16.gmra.mxu0 %v6878
        %v6923 = vpop.f32.mrf.mxu0
        %v6924 = vadd.f32 0.0, %v6923
        %v6925 = vpop.f32.mrf.mxu0
        %v6926 = vadd.f32 0.0, %v6925
        %6927 = vmatmul.bf16.gmra.mxu0 %v6879
        %v6928 = vpop.f32.mrf.mxu0
        %v6929 = vadd.f32 0.0, %v6928
        %v6930 = vpop.f32.mrf.mxu0
        %v6931 = vadd.f32 0.0, %v6930
        %6932 = vmatmul.bf16.gmra.mxu0 %v6880
        %v6933 = vpop.f32.mrf.mxu0
        %v6934 = vadd.f32 0.0, %v6933
        %v6935 = vpop.f32.mrf.mxu0
        %v6936 = vadd.f32 0.0, %v6935
        %6937 = vdwg.mxu0
        %6938 = vmatpush.bf16.msra.mxu0 %v5014
        %6939 = vmatpush.bf16.msra.mxu0 %v5012
        %6940 = vmatpush.bf16.msra.mxu0 %v5010
        %6941 = vmatpush.bf16.msra.mxu0 %v5008
        %6942 = vmatpush.bf16.msra.mxu0 %v5006
        %6943 = vmatpush.bf16.msra.mxu0 %v5004
        %6944 = vmatpush.bf16.msra.mxu0 %v5002
        %6945 = vmatpush.bf16.msra.mxu0 %v5000
        %6946 = vmatmul.bf16.gmra.mxu0 %v6873
        %v6947 = vpop.f32.mrf.mxu0
        %v6948 = vadd.f32 0.0, %v6947
        %v6949 = vpop.f32.mrf.mxu0
        %v6950 = vadd.f32 0.0, %v6949
        %6951 = vmatmul.bf16.gmra.mxu0 %v6874
        %v6952 = vpop.f32.mrf.mxu0
        %v6953 = vadd.f32 0.0, %v6952
        %v6954 = vpop.f32.mrf.mxu0
        %v6955 = vadd.f32 0.0, %v6954
        %6956 = vmatmul.bf16.gmra.mxu0 %v6875
        %v6957 = vpop.f32.mrf.mxu0
        %v6958 = vadd.f32 0.0, %v6957
        %v6959 = vpop.f32.mrf.mxu0
        %v6960 = vadd.f32 0.0, %v6959
        %6961 = vmatmul.bf16.gmra.mxu0 %v6876
        %v6962 = vpop.f32.mrf.mxu0
        %v6963 = vadd.f32 0.0, %v6962
        %v6964 = vpop.f32.mrf.mxu0
        %v6965 = vadd.f32 0.0, %v6964
        %6966 = vmatmul.bf16.gmra.mxu0 %v6877
        %v6967 = vpop.f32.mrf.mxu0
        %v6968 = vadd.f32 0.0, %v6967
        %v6969 = vpop.f32.mrf.mxu0
        %v6970 = vadd.f32 0.0, %v6969
        %6971 = vmatmul.bf16.gmra.mxu0 %v6878
        %v6972 = vpop.f32.mrf.mxu0
        %v6973 = vadd.f32 0.0, %v6972
        %v6974 = vpop.f32.mrf.mxu0
        %v6975 = vadd.f32 0.0, %v6974
        %6976 = vmatmul.bf16.gmra.mxu0 %v6879
        %v6977 = vpop.f32.mrf.mxu0
        %v6978 = vadd.f32 0.0, %v6977
        %v6979 = vpop.f32.mrf.mxu0
        %v6980 = vadd.f32 0.0, %v6979
        %6981 = vmatmul.bf16.gmra.mxu0 %v6880
        %v6982 = vpop.f32.mrf.mxu0
        %v6983 = vadd.f32 0.0, %v6982
        %v6984 = vpop.f32.mrf.mxu0
        %v6985 = vadd.f32 0.0, %v6984
        %6986 = vdwg.mxu0
        %6987 = vrot.lane.b32.xlu0 %v6899, 113
        %v6988 = vpop.permute.xlu0 %6987
        %6989 = vrot.lane.b32.xlu0 %v6901, 113
        %v6990 = vpop.permute.xlu0 %6989
        %6991 = vrot.lane.b32.xlu0 %v6904, 113
        %v6992 = vpop.permute.xlu0 %6991
        %6993 = vrot.lane.b32.xlu0 %v6906, 113
        %v6994 = vpop.permute.xlu0 %6993
        %6995 = vrot.lane.b32.xlu0 %v6909, 113
        %v6996 = vpop.permute.xlu0 %6995
        %6997 = vrot.lane.b32.xlu0 %v6911, 113
        %v6998 = vpop.permute.xlu0 %6997
        %6999 = vrot.lane.b32.xlu0 %v6914, 113
        %v7000 = vpop.permute.xlu0 %6999
        %7001 = vrot.lane.b32.xlu0 %v6916, 113
        %v7002 = vpop.permute.xlu0 %7001
        %7003 = vrot.lane.b32.xlu0 %v6919, 113
        %v7004 = vpop.permute.xlu0 %7003
        %7005 = vrot.lane.b32.xlu0 %v6921, 113
        %v7006 = vpop.permute.xlu0 %7005
        %7007 = vrot.lane.b32.xlu0 %v6924, 113
        %v7008 = vpop.permute.xlu0 %7007
        %7009 = vrot.lane.b32.xlu0 %v6926, 113
        %v7010 = vpop.permute.xlu0 %7009
        %7011 = vrot.lane.b32.xlu0 %v6929, 113
        %v7012 = vpop.permute.xlu0 %7011
        %7013 = vrot.lane.b32.xlu0 %v6931, 113
        %v7014 = vpop.permute.xlu0 %7013
        %7015 = vrot.lane.b32.xlu0 %v6934, 113
        %v7016 = vpop.permute.xlu0 %7015
        %7017 = vrot.lane.b32.xlu0 %v6936, 113
        %v7018 = vpop.permute.xlu0 %7017
        %7019 = vrot.lane.b32.xlu0 %v6948, 113
        %v7020 = vpop.permute.xlu0 %7019
        %7021 = vrot.lane.b32.xlu0 %v6950, 113
        %v7022 = vpop.permute.xlu0 %7021
        %7023 = vrot.lane.b32.xlu0 %v6953, 113
        %v7024 = vpop.permute.xlu0 %7023
        %7025 = vrot.lane.b32.xlu0 %v6955, 113
        %v7026 = vpop.permute.xlu0 %7025
        %7027 = vrot.lane.b32.xlu0 %v6958, 113
        %v7028 = vpop.permute.xlu0 %7027
        %7029 = vrot.lane.b32.xlu0 %v6960, 113
        %v7030 = vpop.permute.xlu0 %7029
        %7031 = vrot.lane.b32.xlu0 %v6963, 113
        %v7032 = vpop.permute.xlu0 %7031
        %7033 = vrot.lane.b32.xlu0 %v6965, 113
        %v7034 = vpop.permute.xlu0 %7033
        %7035 = vrot.lane.b32.xlu0 %v6968, 113
        %v7036 = vpop.permute.xlu0 %7035
        %7037 = vrot.lane.b32.xlu0 %v6970, 113
        %v7038 = vpop.permute.xlu0 %7037
        %7039 = vrot.lane.b32.xlu0 %v6973, 113
        %v7040 = vpop.permute.xlu0 %7039
        %7041 = vrot.lane.b32.xlu0 %v6975, 113
        %v7042 = vpop.permute.xlu0 %7041
        %7043 = vrot.lane.b32.xlu0 %v6978, 113
        %v7044 = vpop.permute.xlu0 %7043
        %7045 = vrot.lane.b32.xlu0 %v6980, 113
        %v7046 = vpop.permute.xlu0 %7045
        %7047 = vrot.lane.b32.xlu0 %v6983, 113
        %v7048 = vpop.permute.xlu0 %7047
        %7049 = vrot.lane.b32.xlu0 %v6985, 113
        %v7050 = vpop.permute.xlu0 %7049
        %v7051 = vsel %vm3813, %v6988, %v7020
        %v7052 = vsel %vm3813, %v6990, %v7022
        %v7053 = vsel %vm3813, %v6992, %v7024
        %v7054 = vsel %vm3813, %v6994, %v7026
        %v7055 = vsel %vm3813, %v6996, %v7028
        %v7056 = vsel %vm3813, %v6998, %v7030
        %v7057 = vsel %vm3813, %v7000, %v7032
        %v7058 = vsel %vm3813, %v7002, %v7034
        %v7059 = vsel %vm3813, %v7004, %v7036
        %v7060 = vsel %vm3813, %v7006, %v7038
        %v7061 = vsel %vm3813, %v7008, %v7040
        %v7062 = vsel %vm3813, %v7010, %v7042
        %v7063 = vsel %vm3813, %v7012, %v7044
        %v7064 = vsel %vm3813, %v7014, %v7046
        %v7065 = vsel %vm3813, %v7016, %v7048
        %v7066 = vsel %vm3813, %v7018, %v7050
        %v7067 = vsel %vm3813, %v7020, %v6988
        %v7068 = vsel %vm3813, %v7022, %v6990
        %v7069 = vsel %vm3813, %v7024, %v6992
        %v7070 = vsel %vm3813, %v7026, %v6994
        %v7071 = vsel %vm3813, %v7028, %v6996
        %v7072 = vsel %vm3813, %v7030, %v6998
        %v7073 = vsel %vm3813, %v7032, %v7000
        %v7074 = vsel %vm3813, %v7034, %v7002
        %v7075 = vsel %vm3813, %v7036, %v7004
        %v7076 = vsel %vm3813, %v7038, %v7006
        %v7077 = vsel %vm3813, %v7040, %v7008
        %v7078 = vsel %vm3813, %v7042, %v7010
        %v7079 = vsel %vm3813, %v7044, %v7012
        %v7080 = vsel %vm3813, %v7046, %v7014
        %v7081 = vsel %vm3813, %v7048, %v7016
        %v7082 = vsel %vm3813, %v7050, %v7018
        %v7083 = vmul.f32 %v7051, %v3849
        %v7084 = vmul.f32 %v7067, %v3850
        %v7085 = vmul.f32 %v7052, %v3849
        %v7086 = vmul.f32 %v7068, %v3850
        %v7087 = vmul.f32 %v7053, %v3849
        %v7088 = vmul.f32 %v7069, %v3850
        %v7089 = vmul.f32 %v7054, %v3849
        %v7090 = vmul.f32 %v7070, %v3850
        %v7091 = vmul.f32 %v7055, %v3849
        %v7092 = vmul.f32 %v7071, %v3850
        %v7093 = vmul.f32 %v7056, %v3849
        %v7094 = vmul.f32 %v7072, %v3850
        %v7095 = vmul.f32 %v7057, %v3849
        %v7096 = vmul.f32 %v7073, %v3850
        %v7097 = vmul.f32 %v7058, %v3849
        %v7098 = vmul.f32 %v7074, %v3850
        %v7099 = vmul.f32 %v7059, %v3849
        %v7100 = vmul.f32 %v7075, %v3850
        %v7101 = vmul.f32 %v7060, %v3849
        %v7102 = vmul.f32 %v7076, %v3850
        %v7103 = vmul.f32 %v7061, %v3849
        %v7104 = vmul.f32 %v7077, %v3850
        %v7105 = vmul.f32 %v7062, %v3849
        %v7106 = vmul.f32 %v7078, %v3850
        %v7107 = vmul.f32 %v7063, %v3849
        %v7108 = vmul.f32 %v7079, %v3850
        %v7109 = vmul.f32 %v7064, %v3849
        %v7110 = vmul.f32 %v7080, %v3850
        %v7111 = vmul.f32 %v7065, %v3849
        %v7112 = vmul.f32 %v7081, %v3850
        %v7113 = vmul.f32 %v7066, %v3849
        %v7114 = vmul.f32 %v7082, %v3850
        %v7115 = vadd.f32 %v6792, %v7083
        %v7116 = vadd.f32 %v6793, %v7084
        %v7117 = vadd.f32 %v6794, %v7085
        %v7118 = vadd.f32 %v6795, %v7086
        %v7119 = vadd.f32 %v6796, %v7087
        %v7120 = vadd.f32 %v6797, %v7088
        %v7121 = vadd.f32 %v6798, %v7089
        %v7122 = vadd.f32 %v6799, %v7090
        %v7123 = vadd.f32 %v6800, %v7091
        %v7124 = vadd.f32 %v6801, %v7092
        %v7125 = vadd.f32 %v6802, %v7093
        %v7126 = vadd.f32 %v6803, %v7094
        %v7127 = vadd.f32 %v6804, %v7095
        %v7128 = vadd.f32 %v6805, %v7096
        %v7129 = vadd.f32 %v6806, %v7097
        %v7130 = vadd.f32 %v6807, %v7098
        %v7131 = vadd.f32 %v6808, %v7099
        %v7132 = vadd.f32 %v6809, %v7100
        %v7133 = vadd.f32 %v6810, %v7101
        %v7134 = vadd.f32 %v6811, %v7102
        %v7135 = vadd.f32 %v6812, %v7103
        %v7136 = vadd.f32 %v6813, %v7104
        %v7137 = vadd.f32 %v6814, %v7105
        %v7138 = vadd.f32 %v6815, %v7106
        %v7139 = vadd.f32 %v6816, %v7107
        %v7140 = vadd.f32 %v6817, %v7108
        %v7141 = vadd.f32 %v6818, %v7109
        %v7142 = vadd.f32 %v6819, %v7110
        %v7143 = vadd.f32 %v6820, %v7111
        %v7144 = vadd.f32 %v6821, %v7112
        %v7145 = vadd.f32 %v6822, %v7113
        %v7146 = vadd.f32 %v6823, %v7114
        %s7147 = scalar_lea.vmem [#allocation8], 448
        %v7148 = vld [vmem:[%s7147] sm:$0xf]
        %v7149 = vld [vmem:[%s7147 + $0x4] sm:$0xf]
        %v7150 = vld [vmem:[%s7147 + $0x8] sm:$0xf]
        %v7151 = vld [vmem:[%s7147 + $0xc] sm:$0xf]
        %v7152 = vld [vmem:[%s7147 + $0x10] sm:$0xf]
        %v7153 = vld [vmem:[%s7147 + $0x14] sm:$0xf]
        %v7154 = vld [vmem:[%s7147 + $0x18] sm:$0xf]
        %v7155 = vld [vmem:[%s7147 + $0x1c] sm:$0xf]
        %v7156 = vld [vmem:[%s7147 + $0x20] sm:$0xf]
        %v7157 = vld [vmem:[%s7147 + $0x24] sm:$0xf]
        %v7158 = vld [vmem:[%s7147 + $0x28] sm:$0xf]
        %v7159 = vld [vmem:[%s7147 + $0x2c] sm:$0xf]
        %v7160 = vld [vmem:[%s7147 + $0x30] sm:$0xf]
        %v7161 = vld [vmem:[%s7147 + $0x34] sm:$0xf]
        %v7162 = vld [vmem:[%s7147 + $0x38] sm:$0xf]
        %v7163 = vld [vmem:[%s7147 + $0x3c] sm:$0xf]
        %v7180 = vunpack.c.l.b16 %v7148
        %v7181 = vunpack.c.l.b16 %v7149
        %v7182 = vunpack.c.l.b16 %v7150
        %v7183 = vunpack.c.l.b16 %v7151
        %v7184 = vunpack.c.l.b16 %v7152
        %v7185 = vunpack.c.l.b16 %v7153
        %v7186 = vunpack.c.l.b16 %v7154
        %v7187 = vunpack.c.l.b16 %v7155
        %v7188 = vunpack.c.l.b16 %v7156
        %v7189 = vunpack.c.l.b16 %v7157
        %v7190 = vunpack.c.l.b16 %v7158
        %v7191 = vunpack.c.l.b16 %v7159
        %v7192 = vunpack.c.l.b16 %v7160
        %v7193 = vunpack.c.l.b16 %v7161
        %v7194 = vunpack.c.l.b16 %v7162
        %v7195 = vunpack.c.l.b16 %v7163
        %v7196 = vpack.c.b16 %v7181, %v7180
        %v7197 = vpack.c.b16 %v7183, %v7182
        %v7198 = vpack.c.b16 %v7185, %v7184
        %v7199 = vpack.c.b16 %v7187, %v7186
        %v7200 = vpack.c.b16 %v7189, %v7188
        %v7201 = vpack.c.b16 %v7191, %v7190
        %v7202 = vpack.c.b16 %v7193, %v7192
        %v7203 = vpack.c.b16 %v7195, %v7194
        %7212 = vmatpush.bf16.msra.mxu0 %v5013
        %7213 = vmatpush.bf16.msra.mxu0 %v5011
        %7214 = vmatpush.bf16.msra.mxu0 %v5009
        %7215 = vmatpush.bf16.msra.mxu0 %v5007
        %7216 = vmatpush.bf16.msra.mxu0 %v5005
        %7217 = vmatpush.bf16.msra.mxu0 %v5003
        %7218 = vmatpush.bf16.msra.mxu0 %v5001
        %7219 = vmatpush.bf16.msra.mxu0 %v4999
        %7220 = vmatmul.bf16.gmra.mxu0 %v7196
        %v7221 = vpop.f32.mrf.mxu0
        %v7222 = vadd.f32 0.0, %v7221
        %v7223 = vpop.f32.mrf.mxu0
        %v7224 = vadd.f32 0.0, %v7223
        %7225 = vmatmul.bf16.gmra.mxu0 %v7197
        %v7226 = vpop.f32.mrf.mxu0
        %v7227 = vadd.f32 0.0, %v7226
        %v7228 = vpop.f32.mrf.mxu0
        %v7229 = vadd.f32 0.0, %v7228
        %7230 = vmatmul.bf16.gmra.mxu0 %v7198
        %v7231 = vpop.f32.mrf.mxu0
        %v7232 = vadd.f32 0.0, %v7231
        %v7233 = vpop.f32.mrf.mxu0
        %v7234 = vadd.f32 0.0, %v7233
        %7235 = vmatmul.bf16.gmra.mxu0 %v7199
        %v7236 = vpop.f32.mrf.mxu0
        %v7237 = vadd.f32 0.0, %v7236
        %v7238 = vpop.f32.mrf.mxu0
        %v7239 = vadd.f32 0.0, %v7238
        %7240 = vmatmul.bf16.gmra.mxu0 %v7200
        %v7241 = vpop.f32.mrf.mxu0
        %v7242 = vadd.f32 0.0, %v7241
        %v7243 = vpop.f32.mrf.mxu0
        %v7244 = vadd.f32 0.0, %v7243
        %7245 = vmatmul.bf16.gmra.mxu0 %v7201
        %v7246 = vpop.f32.mrf.mxu0
        %v7247 = vadd.f32 0.0, %v7246
        %v7248 = vpop.f32.mrf.mxu0
        %v7249 = vadd.f32 0.0, %v7248
        %7250 = vmatmul.bf16.gmra.mxu0 %v7202
        %v7251 = vpop.f32.mrf.mxu0
        %v7252 = vadd.f32 0.0, %v7251
        %v7253 = vpop.f32.mrf.mxu0
        %v7254 = vadd.f32 0.0, %v7253
        %7255 = vmatmul.bf16.gmra.mxu0 %v7203
        %v7256 = vpop.f32.mrf.mxu0
        %v7257 = vadd.f32 0.0, %v7256
        %v7258 = vpop.f32.mrf.mxu0
        %v7259 = vadd.f32 0.0, %v7258
        %7260 = vdwg.mxu0
        %7261 = vmatpush.bf16.msra.mxu0 %v5014
        %7262 = vmatpush.bf16.msra.mxu0 %v5012
        %7263 = vmatpush.bf16.msra.mxu0 %v5010
        %7264 = vmatpush.bf16.msra.mxu0 %v5008
        %7265 = vmatpush.bf16.msra.mxu0 %v5006
        %7266 = vmatpush.bf16.msra.mxu0 %v5004
        %7267 = vmatpush.bf16.msra.mxu0 %v5002
        %7268 = vmatpush.bf16.msra.mxu0 %v5000
        %7269 = vmatmul.bf16.gmra.mxu0 %v7196
        %v7270 = vpop.f32.mrf.mxu0
        %v7271 = vadd.f32 0.0, %v7270
        %v7272 = vpop.f32.mrf.mxu0
        %v7273 = vadd.f32 0.0, %v7272
        %7274 = vmatmul.bf16.gmra.mxu0 %v7197
        %v7275 = vpop.f32.mrf.mxu0
        %v7276 = vadd.f32 0.0, %v7275
        %v7277 = vpop.f32.mrf.mxu0
        %v7278 = vadd.f32 0.0, %v7277
        %7279 = vmatmul.bf16.gmra.mxu0 %v7198
        %v7280 = vpop.f32.mrf.mxu0
        %v7281 = vadd.f32 0.0, %v7280
        %v7282 = vpop.f32.mrf.mxu0
        %v7283 = vadd.f32 0.0, %v7282
        %7284 = vmatmul.bf16.gmra.mxu0 %v7199
        %v7285 = vpop.f32.mrf.mxu0
        %v7286 = vadd.f32 0.0, %v7285
        %v7287 = vpop.f32.mrf.mxu0
        %v7288 = vadd.f32 0.0, %v7287
        %7289 = vmatmul.bf16.gmra.mxu0 %v7200
        %v7290 = vpop.f32.mrf.mxu0
        %v7291 = vadd.f32 0.0, %v7290
        %v7292 = vpop.f32.mrf.mxu0
        %v7293 = vadd.f32 0.0, %v7292
        %7294 = vmatmul.bf16.gmra.mxu0 %v7201
        %v7295 = vpop.f32.mrf.mxu0
        %v7296 = vadd.f32 0.0, %v7295
        %v7297 = vpop.f32.mrf.mxu0
        %v7298 = vadd.f32 0.0, %v7297
        %7299 = vmatmul.bf16.gmra.mxu0 %v7202
        %v7300 = vpop.f32.mrf.mxu0
        %v7301 = vadd.f32 0.0, %v7300
        %v7302 = vpop.f32.mrf.mxu0
        %v7303 = vadd.f32 0.0, %v7302
        %7304 = vmatmul.bf16.gmra.mxu0 %v7203
        %v7305 = vpop.f32.mrf.mxu0
        %v7306 = vadd.f32 0.0, %v7305
        %v7307 = vpop.f32.mrf.mxu0
        %v7308 = vadd.f32 0.0, %v7307
        %7309 = vdwg.mxu0
        %7310 = vrot.lane.b32.xlu0 %v7222, 112
        %v7311 = vpop.permute.xlu0 %7310
        %7312 = vrot.lane.b32.xlu0 %v7224, 112
        %v7313 = vpop.permute.xlu0 %7312
        %7314 = vrot.lane.b32.xlu0 %v7227, 112
        %v7315 = vpop.permute.xlu0 %7314
        %7316 = vrot.lane.b32.xlu0 %v7229, 112
        %v7317 = vpop.permute.xlu0 %7316
        %7318 = vrot.lane.b32.xlu0 %v7232, 112
        %v7319 = vpop.permute.xlu0 %7318
        %7320 = vrot.lane.b32.xlu0 %v7234, 112
        %v7321 = vpop.permute.xlu0 %7320
        %7322 = vrot.lane.b32.xlu0 %v7237, 112
        %v7323 = vpop.permute.xlu0 %7322
        %7324 = vrot.lane.b32.xlu0 %v7239, 112
        %v7325 = vpop.permute.xlu0 %7324
        %7326 = vrot.lane.b32.xlu0 %v7242, 112
        %v7327 = vpop.permute.xlu0 %7326
        %7328 = vrot.lane.b32.xlu0 %v7244, 112
        %v7329 = vpop.permute.xlu0 %7328
        %7330 = vrot.lane.b32.xlu0 %v7247, 112
        %v7331 = vpop.permute.xlu0 %7330
        %7332 = vrot.lane.b32.xlu0 %v7249, 112
        %v7333 = vpop.permute.xlu0 %7332
        %7334 = vrot.lane.b32.xlu0 %v7252, 112
        %v7335 = vpop.permute.xlu0 %7334
        %7336 = vrot.lane.b32.xlu0 %v7254, 112
        %v7337 = vpop.permute.xlu0 %7336
        %7338 = vrot.lane.b32.xlu0 %v7257, 112
        %v7339 = vpop.permute.xlu0 %7338
        %7340 = vrot.lane.b32.xlu0 %v7259, 112
        %v7341 = vpop.permute.xlu0 %7340
        %7342 = vrot.lane.b32.xlu0 %v7271, 112
        %v7343 = vpop.permute.xlu0 %7342
        %7344 = vrot.lane.b32.xlu0 %v7273, 112
        %v7345 = vpop.permute.xlu0 %7344
        %7346 = vrot.lane.b32.xlu0 %v7276, 112
        %v7347 = vpop.permute.xlu0 %7346
        %7348 = vrot.lane.b32.xlu0 %v7278, 112
        %v7349 = vpop.permute.xlu0 %7348
        %7350 = vrot.lane.b32.xlu0 %v7281, 112
        %v7351 = vpop.permute.xlu0 %7350
        %7352 = vrot.lane.b32.xlu0 %v7283, 112
        %v7353 = vpop.permute.xlu0 %7352
        %7354 = vrot.lane.b32.xlu0 %v7286, 112
        %v7355 = vpop.permute.xlu0 %7354
        %7356 = vrot.lane.b32.xlu0 %v7288, 112
        %v7357 = vpop.permute.xlu0 %7356
        %7358 = vrot.lane.b32.xlu0 %v7291, 112
        %v7359 = vpop.permute.xlu0 %7358
        %7360 = vrot.lane.b32.xlu0 %v7293, 112
        %v7361 = vpop.permute.xlu0 %7360
        %7362 = vrot.lane.b32.xlu0 %v7296, 112
        %v7363 = vpop.permute.xlu0 %7362
        %7364 = vrot.lane.b32.xlu0 %v7298, 112
        %v7365 = vpop.permute.xlu0 %7364
        %7366 = vrot.lane.b32.xlu0 %v7301, 112
        %v7367 = vpop.permute.xlu0 %7366
        %7368 = vrot.lane.b32.xlu0 %v7303, 112
        %v7369 = vpop.permute.xlu0 %7368
        %7370 = vrot.lane.b32.xlu0 %v7306, 112
        %v7371 = vpop.permute.xlu0 %7370
        %7372 = vrot.lane.b32.xlu0 %v7308, 112
        %v7373 = vpop.permute.xlu0 %7372
        %v7374 = vsel %vm4274, %v7311, %v7343
        %v7375 = vsel %vm4274, %v7313, %v7345
        %v7376 = vsel %vm4274, %v7315, %v7347
        %v7377 = vsel %vm4274, %v7317, %v7349
        %v7378 = vsel %vm4274, %v7319, %v7351
        %v7379 = vsel %vm4274, %v7321, %v7353
        %v7380 = vsel %vm4274, %v7323, %v7355
        %v7381 = vsel %vm4274, %v7325, %v7357
        %v7382 = vsel %vm4274, %v7327, %v7359
        %v7383 = vsel %vm4274, %v7329, %v7361
        %v7384 = vsel %vm4274, %v7331, %v7363
        %v7385 = vsel %vm4274, %v7333, %v7365
        %v7386 = vsel %vm4274, %v7335, %v7367
        %v7387 = vsel %vm4274, %v7337, %v7369
        %v7388 = vsel %vm4274, %v7339, %v7371
        %v7389 = vsel %vm4274, %v7341, %v7373
        %v7390 = vsel %vm4274, %v7343, %v7311
        %v7391 = vsel %vm4274, %v7345, %v7313
        %v7392 = vsel %vm4274, %v7347, %v7315
        %v7393 = vsel %vm4274, %v7349, %v7317
        %v7394 = vsel %vm4274, %v7351, %v7319
        %v7395 = vsel %vm4274, %v7353, %v7321
        %v7396 = vsel %vm4274, %v7355, %v7323
        %v7397 = vsel %vm4274, %v7357, %v7325
        %v7398 = vsel %vm4274, %v7359, %v7327
        %v7399 = vsel %vm4274, %v7361, %v7329
        %v7400 = vsel %vm4274, %v7363, %v7331
        %v7401 = vsel %vm4274, %v7365, %v7333
        %v7402 = vsel %vm4274, %v7367, %v7335
        %v7403 = vsel %vm4274, %v7369, %v7337
        %v7404 = vsel %vm4274, %v7371, %v7339
        %v7405 = vsel %vm4274, %v7373, %v7341
        %v7406 = vmul.f32 %v7374, %v4310
        %v7407 = vmul.f32 %v7390, %v4311
        %v7408 = vmul.f32 %v7375, %v4310
        %v7409 = vmul.f32 %v7391, %v4311
        %v7410 = vmul.f32 %v7376, %v4310
        %v7411 = vmul.f32 %v7392, %v4311
        %v7412 = vmul.f32 %v7377, %v4310
        %v7413 = vmul.f32 %v7393, %v4311
        %v7414 = vmul.f32 %v7378, %v4310
        %v7415 = vmul.f32 %v7394, %v4311
        %v7416 = vmul.f32 %v7379, %v4310
        %v7417 = vmul.f32 %v7395, %v4311
        %v7418 = vmul.f32 %v7380, %v4310
        %v7419 = vmul.f32 %v7396, %v4311
        %v7420 = vmul.f32 %v7381, %v4310
        %v7421 = vmul.f32 %v7397, %v4311
        %v7422 = vmul.f32 %v7382, %v4310
        %v7423 = vmul.f32 %v7398, %v4311
        %v7424 = vmul.f32 %v7383, %v4310
        %v7425 = vmul.f32 %v7399, %v4311
        %v7426 = vmul.f32 %v7384, %v4310
        %v7427 = vmul.f32 %v7400, %v4311
        %v7428 = vmul.f32 %v7385, %v4310
        %v7429 = vmul.f32 %v7401, %v4311
        %v7430 = vmul.f32 %v7386, %v4310
        %v7431 = vmul.f32 %v7402, %v4311
        %v7432 = vmul.f32 %v7387, %v4310
        %v7433 = vmul.f32 %v7403, %v4311
        %v7434 = vmul.f32 %v7388, %v4310
        %v7435 = vmul.f32 %v7404, %v4311
        %v7436 = vmul.f32 %v7389, %v4310
        %v7437 = vmul.f32 %v7405, %v4311
        %v7438 = vadd.f32 %v7115, %v7406
        %v7439 = vadd.f32 %v7116, %v7407
        %v7440 = vadd.f32 %v7117, %v7408
        %v7441 = vadd.f32 %v7118, %v7409
        %v7442 = vadd.f32 %v7119, %v7410
        %v7443 = vadd.f32 %v7120, %v7411
        %v7444 = vadd.f32 %v7121, %v7412
        %v7445 = vadd.f32 %v7122, %v7413
        %v7446 = vadd.f32 %v7123, %v7414
        %v7447 = vadd.f32 %v7124, %v7415
        %v7448 = vadd.f32 %v7125, %v7416
        %v7449 = vadd.f32 %v7126, %v7417
        %v7450 = vadd.f32 %v7127, %v7418
        %v7451 = vadd.f32 %v7128, %v7419
        %v7452 = vadd.f32 %v7129, %v7420
        %v7453 = vadd.f32 %v7130, %v7421
        %v7454 = vadd.f32 %v7131, %v7422
        %v7455 = vadd.f32 %v7132, %v7423
        %v7456 = vadd.f32 %v7133, %v7424
        %v7457 = vadd.f32 %v7134, %v7425
        %v7458 = vadd.f32 %v7135, %v7426
        %v7459 = vadd.f32 %v7136, %v7427
        %v7460 = vadd.f32 %v7137, %v7428
        %v7461 = vadd.f32 %v7138, %v7429
        %v7462 = vadd.f32 %v7139, %v7430
        %v7463 = vadd.f32 %v7140, %v7431
        %v7464 = vadd.f32 %v7141, %v7432
        %v7465 = vadd.f32 %v7142, %v7433
        %v7466 = vadd.f32 %v7143, %v7434
        %v7467 = vadd.f32 %v7144, %v7435
        %v7468 = vadd.f32 %v7145, %v7436
        %v7469 = vadd.f32 %v7146, %v7437
        %s7470 = scalar_lea.vmem [#allocation8], 512
        %v7471 = vld [vmem:[%s7470] sm:$0xf]
        %v7472 = vld [vmem:[%s7470 + $0x4] sm:$0xf]
        %v7473 = vld [vmem:[%s7470 + $0x8] sm:$0xf]
        %v7474 = vld [vmem:[%s7470 + $0xc] sm:$0xf]
        %v7475 = vld [vmem:[%s7470 + $0x10] sm:$0xf]
        %v7476 = vld [vmem:[%s7470 + $0x14] sm:$0xf]
        %v7477 = vld [vmem:[%s7470 + $0x18] sm:$0xf]
        %v7478 = vld [vmem:[%s7470 + $0x1c] sm:$0xf]
        %v7479 = vld [vmem:[%s7470 + $0x20] sm:$0xf]
        %v7480 = vld [vmem:[%s7470 + $0x24] sm:$0xf]
        %v7481 = vld [vmem:[%s7470 + $0x28] sm:$0xf]
        %v7482 = vld [vmem:[%s7470 + $0x2c] sm:$0xf]
        %v7483 = vld [vmem:[%s7470 + $0x30] sm:$0xf]
        %v7484 = vld [vmem:[%s7470 + $0x34] sm:$0xf]
        %v7485 = vld [vmem:[%s7470 + $0x38] sm:$0xf]
        %v7486 = vld [vmem:[%s7470 + $0x3c] sm:$0xf]
        %v7503 = vunpack.c.l.b16 %v7471
        %v7504 = vunpack.c.l.b16 %v7472
        %v7505 = vunpack.c.l.b16 %v7473
        %v7506 = vunpack.c.l.b16 %v7474
        %v7507 = vunpack.c.l.b16 %v7475
        %v7508 = vunpack.c.l.b16 %v7476
        %v7509 = vunpack.c.l.b16 %v7477
        %v7510 = vunpack.c.l.b16 %v7478
        %v7511 = vunpack.c.l.b16 %v7479
        %v7512 = vunpack.c.l.b16 %v7480
        %v7513 = vunpack.c.l.b16 %v7481
        %v7514 = vunpack.c.l.b16 %v7482
        %v7515 = vunpack.c.l.b16 %v7483
        %v7516 = vunpack.c.l.b16 %v7484
        %v7517 = vunpack.c.l.b16 %v7485
        %v7518 = vunpack.c.l.b16 %v7486
        %v7519 = vpack.c.b16 %v7504, %v7503
        %v7520 = vpack.c.b16 %v7506, %v7505
        %v7521 = vpack.c.b16 %v7508, %v7507
        %v7522 = vpack.c.b16 %v7510, %v7509
        %v7523 = vpack.c.b16 %v7512, %v7511
        %v7524 = vpack.c.b16 %v7514, %v7513
        %v7525 = vpack.c.b16 %v7516, %v7515
        %v7526 = vpack.c.b16 %v7518, %v7517
        %7535 = vmatpush.bf16.msra.mxu0 %v5013
        %7536 = vmatpush.bf16.msra.mxu0 %v5011
        %7537 = vmatpush.bf16.msra.mxu0 %v5009
        %7538 = vmatpush.bf16.msra.mxu0 %v5007
        %7539 = vmatpush.bf16.msra.mxu0 %v5005
        %7540 = vmatpush.bf16.msra.mxu0 %v5003
        %7541 = vmatpush.bf16.msra.mxu0 %v5001
        %7542 = vmatpush.bf16.msra.mxu0 %v4999
        %7543 = vmatmul.bf16.gmra.mxu0 %v7519
        %v7544 = vpop.f32.mrf.mxu0
        %v7545 = vadd.f32 0.0, %v7544
        %v7546 = vpop.f32.mrf.mxu0
        %v7547 = vadd.f32 0.0, %v7546
        %7548 = vmatmul.bf16.gmra.mxu0 %v7520
        %v7549 = vpop.f32.mrf.mxu0
        %v7550 = vadd.f32 0.0, %v7549
        %v7551 = vpop.f32.mrf.mxu0
        %v7552 = vadd.f32 0.0, %v7551
        %7553 = vmatmul.bf16.gmra.mxu0 %v7521
        %v7554 = vpop.f32.mrf.mxu0
        %v7555 = vadd.f32 0.0, %v7554
        %v7556 = vpop.f32.mrf.mxu0
        %v7557 = vadd.f32 0.0, %v7556
        %7558 = vmatmul.bf16.gmra.mxu0 %v7522
        %v7559 = vpop.f32.mrf.mxu0
        %v7560 = vadd.f32 0.0, %v7559
        %v7561 = vpop.f32.mrf.mxu0
        %v7562 = vadd.f32 0.0, %v7561
        %7563 = vmatmul.bf16.gmra.mxu0 %v7523
        %v7564 = vpop.f32.mrf.mxu0
        %v7565 = vadd.f32 0.0, %v7564
        %v7566 = vpop.f32.mrf.mxu0
        %v7567 = vadd.f32 0.0, %v7566
        %7568 = vmatmul.bf16.gmra.mxu0 %v7524
        %v7569 = vpop.f32.mrf.mxu0
        %v7570 = vadd.f32 0.0, %v7569
        %v7571 = vpop.f32.mrf.mxu0
        %v7572 = vadd.f32 0.0, %v7571
        %7573 = vmatmul.bf16.gmra.mxu0 %v7525
        %v7574 = vpop.f32.mrf.mxu0
        %v7575 = vadd.f32 0.0, %v7574
        %v7576 = vpop.f32.mrf.mxu0
        %v7577 = vadd.f32 0.0, %v7576
        %7578 = vmatmul.bf16.gmra.mxu0 %v7526
        %v7579 = vpop.f32.mrf.mxu0
        %v7580 = vadd.f32 0.0, %v7579
        %v7581 = vpop.f32.mrf.mxu0
        %v7582 = vadd.f32 0.0, %v7581
        %7583 = vdwg.mxu0
        %7584 = vmatpush.bf16.msra.mxu0 %v5014
        %7585 = vmatpush.bf16.msra.mxu0 %v5012
        %7586 = vmatpush.bf16.msra.mxu0 %v5010
        %7587 = vmatpush.bf16.msra.mxu0 %v5008
        %7588 = vmatpush.bf16.msra.mxu0 %v5006
        %7589 = vmatpush.bf16.msra.mxu0 %v5004
        %7590 = vmatpush.bf16.msra.mxu0 %v5002
        %7591 = vmatpush.bf16.msra.mxu0 %v5000
        %7592 = vmatmul.bf16.gmra.mxu0 %v7519
        %v7593 = vpop.f32.mrf.mxu0
        %v7594 = vadd.f32 0.0, %v7593
        %v7595 = vpop.f32.mrf.mxu0
        %v7596 = vadd.f32 0.0, %v7595
        %7597 = vmatmul.bf16.gmra.mxu0 %v7520
        %v7598 = vpop.f32.mrf.mxu0
        %v7599 = vadd.f32 0.0, %v7598
        %v7600 = vpop.f32.mrf.mxu0
        %v7601 = vadd.f32 0.0, %v7600
        %7602 = vmatmul.bf16.gmra.mxu0 %v7521
        %v7603 = vpop.f32.mrf.mxu0
        %v7604 = vadd.f32 0.0, %v7603
        %v7605 = vpop.f32.mrf.mxu0
        %v7606 = vadd.f32 0.0, %v7605
        %7607 = vmatmul.bf16.gmra.mxu0 %v7522
        %v7608 = vpop.f32.mrf.mxu0
        %v7609 = vadd.f32 0.0, %v7608
        %v7610 = vpop.f32.mrf.mxu0
        %v7611 = vadd.f32 0.0, %v7610
        %7612 = vmatmul.bf16.gmra.mxu0 %v7523
        %v7613 = vpop.f32.mrf.mxu0
        %v7614 = vadd.f32 0.0, %v7613
        %v7615 = vpop.f32.mrf.mxu0
        %v7616 = vadd.f32 0.0, %v7615
        %7617 = vmatmul.bf16.gmra.mxu0 %v7524
        %v7618 = vpop.f32.mrf.mxu0
        %v7619 = vadd.f32 0.0, %v7618
        %v7620 = vpop.f32.mrf.mxu0
        %v7621 = vadd.f32 0.0, %v7620
        %7622 = vmatmul.bf16.gmra.mxu0 %v7525
        %v7623 = vpop.f32.mrf.mxu0
        %v7624 = vadd.f32 0.0, %v7623
        %v7625 = vpop.f32.mrf.mxu0
        %v7626 = vadd.f32 0.0, %v7625
        %7627 = vmatmul.bf16.gmra.mxu0 %v7526
        %v7628 = vpop.f32.mrf.mxu0
        %v7629 = vadd.f32 0.0, %v7628
        %v7630 = vpop.f32.mrf.mxu0
        %v7631 = vadd.f32 0.0, %v7630
        %7632 = vdwg.mxu0
        %7633 = vrot.lane.b32.xlu0 %v7545, 111
        %v7634 = vpop.permute.xlu0 %7633
        %7635 = vrot.lane.b32.xlu0 %v7547, 111
        %v7636 = vpop.permute.xlu0 %7635
        %7637 = vrot.lane.b32.xlu0 %v7550, 111
        %v7638 = vpop.permute.xlu0 %7637
        %7639 = vrot.lane.b32.xlu0 %v7552, 111
        %v7640 = vpop.permute.xlu0 %7639
        %7641 = vrot.lane.b32.xlu0 %v7555, 111
        %v7642 = vpop.permute.xlu0 %7641
        %7643 = vrot.lane.b32.xlu0 %v7557, 111
        %v7644 = vpop.permute.xlu0 %7643
        %7645 = vrot.lane.b32.xlu0 %v7560, 111
        %v7646 = vpop.permute.xlu0 %7645
        %7647 = vrot.lane.b32.xlu0 %v7562, 111
        %v7648 = vpop.permute.xlu0 %7647
        %7649 = vrot.lane.b32.xlu0 %v7565, 111
        %v7650 = vpop.permute.xlu0 %7649
        %7651 = vrot.lane.b32.xlu0 %v7567, 111
        %v7652 = vpop.permute.xlu0 %7651
        %7653 = vrot.lane.b32.xlu0 %v7570, 111
        %v7654 = vpop.permute.xlu0 %7653
        %7655 = vrot.lane.b32.xlu0 %v7572, 111
        %v7656 = vpop.permute.xlu0 %7655
        %7657 = vrot.lane.b32.xlu0 %v7575, 111
        %v7658 = vpop.permute.xlu0 %7657
        %7659 = vrot.lane.b32.xlu0 %v7577, 111
        %v7660 = vpop.permute.xlu0 %7659
        %7661 = vrot.lane.b32.xlu0 %v7580, 111
        %v7662 = vpop.permute.xlu0 %7661
        %7663 = vrot.lane.b32.xlu0 %v7582, 111
        %v7664 = vpop.permute.xlu0 %7663
        %7665 = vrot.lane.b32.xlu0 %v7594, 111
        %v7666 = vpop.permute.xlu0 %7665
        %7667 = vrot.lane.b32.xlu0 %v7596, 111
        %v7668 = vpop.permute.xlu0 %7667
        %7669 = vrot.lane.b32.xlu0 %v7599, 111
        %v7670 = vpop.permute.xlu0 %7669
        %7671 = vrot.lane.b32.xlu0 %v7601, 111
        %v7672 = vpop.permute.xlu0 %7671
        %7673 = vrot.lane.b32.xlu0 %v7604, 111
        %v7674 = vpop.permute.xlu0 %7673
        %7675 = vrot.lane.b32.xlu0 %v7606, 111
        %v7676 = vpop.permute.xlu0 %7675
        %7677 = vrot.lane.b32.xlu0 %v7609, 111
        %v7678 = vpop.permute.xlu0 %7677
        %7679 = vrot.lane.b32.xlu0 %v7611, 111
        %v7680 = vpop.permute.xlu0 %7679
        %7681 = vrot.lane.b32.xlu0 %v7614, 111
        %v7682 = vpop.permute.xlu0 %7681
        %7683 = vrot.lane.b32.xlu0 %v7616, 111
        %v7684 = vpop.permute.xlu0 %7683
        %7685 = vrot.lane.b32.xlu0 %v7619, 111
        %v7686 = vpop.permute.xlu0 %7685
        %7687 = vrot.lane.b32.xlu0 %v7621, 111
        %v7688 = vpop.permute.xlu0 %7687
        %7689 = vrot.lane.b32.xlu0 %v7624, 111
        %v7690 = vpop.permute.xlu0 %7689
        %7691 = vrot.lane.b32.xlu0 %v7626, 111
        %v7692 = vpop.permute.xlu0 %7691
        %7693 = vrot.lane.b32.xlu0 %v7629, 111
        %v7694 = vpop.permute.xlu0 %7693
        %7695 = vrot.lane.b32.xlu0 %v7631, 111
        %v7696 = vpop.permute.xlu0 %7695
        %v7697 = vsel %vm4735, %v7634, %v7666
        %v7698 = vsel %vm4735, %v7636, %v7668
        %v7699 = vsel %vm4735, %v7638, %v7670
        %v7700 = vsel %vm4735, %v7640, %v7672
        %v7701 = vsel %vm4735, %v7642, %v7674
        %v7702 = vsel %vm4735, %v7644, %v7676
        %v7703 = vsel %vm4735, %v7646, %v7678
        %v7704 = vsel %vm4735, %v7648, %v7680
        %v7705 = vsel %vm4735, %v7650, %v7682
        %v7706 = vsel %vm4735, %v7652, %v7684
        %v7707 = vsel %vm4735, %v7654, %v7686
        %v7708 = vsel %vm4735, %v7656, %v7688
        %v7709 = vsel %vm4735, %v7658, %v7690
        %v7710 = vsel %vm4735, %v7660, %v7692
        %v7711 = vsel %vm4735, %v7662, %v7694
        %v7712 = vsel %vm4735, %v7664, %v7696
        %v7713 = vsel %vm4735, %v7666, %v7634
        %v7714 = vsel %vm4735, %v7668, %v7636
        %v7715 = vsel %vm4735, %v7670, %v7638
        %v7716 = vsel %vm4735, %v7672, %v7640
        %v7717 = vsel %vm4735, %v7674, %v7642
        %v7718 = vsel %vm4735, %v7676, %v7644
        %v7719 = vsel %vm4735, %v7678, %v7646
        %v7720 = vsel %vm4735, %v7680, %v7648
        %v7721 = vsel %vm4735, %v7682, %v7650
        %v7722 = vsel %vm4735, %v7684, %v7652
        %v7723 = vsel %vm4735, %v7686, %v7654
        %v7724 = vsel %vm4735, %v7688, %v7656
        %v7725 = vsel %vm4735, %v7690, %v7658
        %v7726 = vsel %vm4735, %v7692, %v7660
        %v7727 = vsel %vm4735, %v7694, %v7662
        %v7728 = vsel %vm4735, %v7696, %v7664
        %v7729 = vmul.f32 %v7697, %v4771
        %v7730 = vmul.f32 %v7713, %v4772
        %v7731 = vmul.f32 %v7698, %v4771
        %v7732 = vmul.f32 %v7714, %v4772
        %v7733 = vmul.f32 %v7699, %v4771
        %v7734 = vmul.f32 %v7715, %v4772
        %v7735 = vmul.f32 %v7700, %v4771
        %v7736 = vmul.f32 %v7716, %v4772
        %v7737 = vmul.f32 %v7701, %v4771
        %v7738 = vmul.f32 %v7717, %v4772
        %v7739 = vmul.f32 %v7702, %v4771
        %v7740 = vmul.f32 %v7718, %v4772
        %v7741 = vmul.f32 %v7703, %v4771
        %v7742 = vmul.f32 %v7719, %v4772
        %v7743 = vmul.f32 %v7704, %v4771
        %v7744 = vmul.f32 %v7720, %v4772
        %v7745 = vmul.f32 %v7705, %v4771
        %v7746 = vmul.f32 %v7721, %v4772
        %v7747 = vmul.f32 %v7706, %v4771
        %v7748 = vmul.f32 %v7722, %v4772
        %v7749 = vmul.f32 %v7707, %v4771
        %v7750 = vmul.f32 %v7723, %v4772
        %v7751 = vmul.f32 %v7708, %v4771
        %v7752 = vmul.f32 %v7724, %v4772
        %v7753 = vmul.f32 %v7709, %v4771
        %v7754 = vmul.f32 %v7725, %v4772
        %v7755 = vmul.f32 %v7710, %v4771
        %v7756 = vmul.f32 %v7726, %v4772
        %v7757 = vmul.f32 %v7711, %v4771
        %v7758 = vmul.f32 %v7727, %v4772
        %v7759 = vmul.f32 %v7712, %v4771
        %v7760 = vmul.f32 %v7728, %v4772
        %v7761 = vadd.f32 %v7438, %v7729
        %v7762 = vadd.f32 %v7439, %v7730
        %v7763 = vadd.f32 %v7440, %v7731
        %v7764 = vadd.f32 %v7441, %v7732
        %v7765 = vadd.f32 %v7442, %v7733
        %v7766 = vadd.f32 %v7443, %v7734
        %v7767 = vadd.f32 %v7444, %v7735
        %v7768 = vadd.f32 %v7445, %v7736
        %v7769 = vadd.f32 %v7446, %v7737
        %v7770 = vadd.f32 %v7447, %v7738
        %v7771 = vadd.f32 %v7448, %v7739
        %v7772 = vadd.f32 %v7449, %v7740
        %v7773 = vadd.f32 %v7450, %v7741
        %v7774 = vadd.f32 %v7451, %v7742
        %v7775 = vadd.f32 %v7452, %v7743
        %v7776 = vadd.f32 %v7453, %v7744
        %v7777 = vadd.f32 %v7454, %v7745
        %v7778 = vadd.f32 %v7455, %v7746
        %v7779 = vadd.f32 %v7456, %v7747
        %v7780 = vadd.f32 %v7457, %v7748
        %v7781 = vadd.f32 %v7458, %v7749
        %v7782 = vadd.f32 %v7459, %v7750
        %v7783 = vadd.f32 %v7460, %v7751
        %v7784 = vadd.f32 %v7461, %v7752
        %v7785 = vadd.f32 %v7462, %v7753
        %v7786 = vadd.f32 %v7463, %v7754
        %v7787 = vadd.f32 %v7464, %v7755
        %v7788 = vadd.f32 %v7465, %v7756
        %v7789 = vadd.f32 %v7466, %v7757
        %v7790 = vadd.f32 %v7467, %v7758
        %v7791 = vadd.f32 %v7468, %v7759
        %v7792 = vadd.f32 %v7469, %v7760
        %v7793 = vld [vmem:[%s7] sm:$0xff]
        %v7794 = vld [vmem:[%s7 + $0x8] sm:$0xff]
        %v7795 = vld [vmem:[%s7 + $0x10] sm:$0xff]
        %v7796 = vld [vmem:[%s7 + $0x18] sm:$0xff]
        %v7797 = vld [vmem:[%s7 + $0x20] sm:$0xff]
        %v7798 = vld [vmem:[%s7 + $0x28] sm:$0xff]
        %v7799 = vld [vmem:[%s7 + $0x30] sm:$0xff]
        %v7800 = vld [vmem:[%s7 + $0x38] sm:$0xff]
        %v7801 = vld [vmem:[%s7 + $0x40] sm:$0xff]
        %v7802 = vld [vmem:[%s7 + $0x48] sm:$0xff]
        %v7803 = vld [vmem:[%s7 + $0x50] sm:$0xff]
        %v7804 = vld [vmem:[%s7 + $0x58] sm:$0xff]
        %v7805 = vld [vmem:[%s7 + $0x60] sm:$0xff]
        %v7806 = vld [vmem:[%s7 + $0x68] sm:$0xff]
        %v7807 = vld [vmem:[%s7 + $0x70] sm:$0xff]
        %v7808 = vld [vmem:[%s7 + $0x78] sm:$0xff]
        %7810 = vset.pattern.permute.xlu0 0
        %7811 = vperm.xlu0 %7810, %v7793
        %v7812 = vpop.permute.xlu0 %7811
        %7815 = vset.pattern.permute.xlu0 0
        %7816 = vperm.xlu0 %7815, %v7794
        %v7817 = vpop.permute.xlu0 %7816
        %7820 = vset.pattern.permute.xlu0 0
        %7821 = vperm.xlu0 %7820, %v7795
        %v7822 = vpop.permute.xlu0 %7821
        %7825 = vset.pattern.permute.xlu0 0
        %7826 = vperm.xlu0 %7825, %v7796
        %v7827 = vpop.permute.xlu0 %7826
        %7830 = vset.pattern.permute.xlu0 0
        %7831 = vperm.xlu0 %7830, %v7797
        %v7832 = vpop.permute.xlu0 %7831
        %7835 = vset.pattern.permute.xlu0 0
        %7836 = vperm.xlu0 %7835, %v7798
        %v7837 = vpop.permute.xlu0 %7836
        %7840 = vset.pattern.permute.xlu0 0
        %7841 = vperm.xlu0 %7840, %v7799
        %v7842 = vpop.permute.xlu0 %7841
        %7845 = vset.pattern.permute.xlu0 0
        %7846 = vperm.xlu0 %7845, %v7800
        %v7847 = vpop.permute.xlu0 %7846
        %7850 = vset.pattern.permute.xlu0 0
        %7851 = vperm.xlu0 %7850, %v7801
        %v7852 = vpop.permute.xlu0 %7851
        %7855 = vset.pattern.permute.xlu0 0
        %7856 = vperm.xlu0 %7855, %v7802
        %v7857 = vpop.permute.xlu0 %7856
        %7860 = vset.pattern.permute.xlu0 0
        %7861 = vperm.xlu0 %7860, %v7803
        %v7862 = vpop.permute.xlu0 %7861
        %7865 = vset.pattern.permute.xlu0 0
        %7866 = vperm.xlu0 %7865, %v7804
        %v7867 = vpop.permute.xlu0 %7866
        %7870 = vset.pattern.permute.xlu0 0
        %7871 = vperm.xlu0 %7870, %v7805
        %v7872 = vpop.permute.xlu0 %7871
        %7875 = vset.pattern.permute.xlu0 0
        %7876 = vperm.xlu0 %7875, %v7806
        %v7877 = vpop.permute.xlu0 %7876
        %7880 = vset.pattern.permute.xlu0 0
        %7881 = vperm.xlu0 %7880, %v7807
        %v7882 = vpop.permute.xlu0 %7881
        %7885 = vset.pattern.permute.xlu0 0
        %7886 = vperm.xlu0 %7885, %v7808
        %v7887 = vpop.permute.xlu0 %7886
        %v7889 = vadd.f32 %v7761, %v7812
        %v7890 = vadd.f32 %v7762, %v7812
        %v7891 = vadd.f32 %v7763, %v7817
        %v7892 = vadd.f32 %v7764, %v7817
        %v7893 = vadd.f32 %v7765, %v7822
        %v7894 = vadd.f32 %v7766, %v7822
        %v7895 = vadd.f32 %v7767, %v7827
        %v7896 = vadd.f32 %v7768, %v7827
        %v7897 = vadd.f32 %v7769, %v7832
        %v7898 = vadd.f32 %v7770, %v7832
        %v7899 = vadd.f32 %v7771, %v7837
        %v7900 = vadd.f32 %v7772, %v7837
        %v7901 = vadd.f32 %v7773, %v7842
        %v7902 = vadd.f32 %v7774, %v7842
        %v7903 = vadd.f32 %v7775, %v7847
        %v7904 = vadd.f32 %v7776, %v7847
        %v7905 = vadd.f32 %v7777, %v7852
        %v7906 = vadd.f32 %v7778, %v7852
        %v7907 = vadd.f32 %v7779, %v7857
        %v7908 = vadd.f32 %v7780, %v7857
        %v7909 = vadd.f32 %v7781, %v7862
        %v7910 = vadd.f32 %v7782, %v7862
        %v7911 = vadd.f32 %v7783, %v7867
        %v7912 = vadd.f32 %v7784, %v7867
        %v7913 = vadd.f32 %v7785, %v7872
        %v7914 = vadd.f32 %v7786, %v7872
        %v7915 = vadd.f32 %v7787, %v7877
        %v7916 = vadd.f32 %v7788, %v7877
        %v7917 = vadd.f32 %v7789, %v7882
        %v7918 = vadd.f32 %v7790, %v7882
        %v7919 = vadd.f32 %v7791, %v7887
        %v7920 = vadd.f32 %v7792, %v7887
        %v7921 = vmax.f32 %v7889, 0.0
        %v7922 = vmax.f32 %v7890, 0.0
        %v7923 = vmax.f32 %v7891, 0.0
        %v7924 = vmax.f32 %v7892, 0.0
        %v7925 = vmax.f32 %v7893, 0.0
        %v7926 = vmax.f32 %v7894, 0.0
        %v7927 = vmax.f32 %v7895, 0.0
        %v7928 = vmax.f32 %v7896, 0.0
        %v7929 = vmax.f32 %v7897, 0.0
        %v7930 = vmax.f32 %v7898, 0.0
        %v7931 = vmax.f32 %v7899, 0.0
        %v7932 = vmax.f32 %v7900, 0.0
        %v7933 = vmax.f32 %v7901, 0.0
        %v7934 = vmax.f32 %v7902, 0.0
        %v7935 = vmax.f32 %v7903, 0.0
        %v7936 = vmax.f32 %v7904, 0.0
        %v7937 = vmax.f32 %v7905, 0.0
        %v7938 = vmax.f32 %v7906, 0.0
        %v7939 = vmax.f32 %v7907, 0.0
        %v7940 = vmax.f32 %v7908, 0.0
        %v7941 = vmax.f32 %v7909, 0.0
        %v7942 = vmax.f32 %v7910, 0.0
        %v7943 = vmax.f32 %v7911, 0.0
        %v7944 = vmax.f32 %v7912, 0.0
        %v7945 = vmax.f32 %v7913, 0.0
        %v7946 = vmax.f32 %v7914, 0.0
        %v7947 = vmax.f32 %v7915, 0.0
        %v7948 = vmax.f32 %v7916, 0.0
        %v7949 = vmax.f32 %v7917, 0.0
        %v7950 = vmax.f32 %v7918, 0.0
        %v7951 = vmax.f32 %v7919, 0.0
        %v7952 = vmax.f32 %v7920, 0.0
        %7953 = vst [vmem:[%s380] sm:$0xff] %v7921
        %7954 = vst [vmem:[%s380 + $0x8] sm:$0xff] %v7922
        %7955 = vst [vmem:[%s380 + $0x10] sm:$0xff] %v7923
        %7956 = vst [vmem:[%s380 + $0x18] sm:$0xff] %v7924
        %7957 = vst [vmem:[%s380 + $0x20] sm:$0xff] %v7925
        %7958 = vst [vmem:[%s380 + $0x28] sm:$0xff] %v7926
        %7959 = vst [vmem:[%s380 + $0x30] sm:$0xff] %v7927
        %7960 = vst [vmem:[%s380 + $0x38] sm:$0xff] %v7928
        %7961 = vst [vmem:[%s380 + $0x40] sm:$0xff] %v7929
        %7962 = vst [vmem:[%s380 + $0x48] sm:$0xff] %v7930
        %7963 = vst [vmem:[%s380 + $0x50] sm:$0xff] %v7931
        %7964 = vst [vmem:[%s380 + $0x58] sm:$0xff] %v7932
        %7965 = vst [vmem:[%s380 + $0x60] sm:$0xff] %v7933
        %7966 = vst [vmem:[%s380 + $0x68] sm:$0xff] %v7934
        %7967 = vst [vmem:[%s380 + $0x70] sm:$0xff] %v7935
        %7968 = vst [vmem:[%s380 + $0x78] sm:$0xff] %v7936
        %7969 = vst [vmem:[%s380 + $0x80] sm:$0xff] %v7937
        %7970 = vst [vmem:[%s380 + $0x88] sm:$0xff] %v7938
        %7971 = vst [vmem:[%s380 + $0x90] sm:$0xff] %v7939
        %7972 = vst [vmem:[%s380 + $0x98] sm:$0xff] %v7940
        %7973 = vst [vmem:[%s380 + $0xa0] sm:$0xff] %v7941
        %7974 = vst [vmem:[%s380 + $0xa8] sm:$0xff] %v7942
        %7975 = vst [vmem:[%s380 + $0xb0] sm:$0xff] %v7943
        %7976 = vst [vmem:[%s380 + $0xb8] sm:$0xff] %v7944
        %7977 = vst [vmem:[%s380 + $0xc0] sm:$0xff] %v7945
        %7978 = vst [vmem:[%s380 + $0xc8] sm:$0xff] %v7946
        %7979 = vst [vmem:[%s380 + $0xd0] sm:$0xff] %v7947
        %7980 = vst [vmem:[%s380 + $0xd8] sm:$0xff] %v7948
        %7981 = vst [vmem:[%s380 + $0xe0] sm:$0xff] %v7949
        %7982 = vst [vmem:[%s380 + $0xe8] sm:$0xff] %v7950
        %7983 = vst [vmem:[%s380 + $0xf0] sm:$0xff] %v7951
        %7984 = vst [vmem:[%s380 + $0xf8] sm:$0xff] %v7952
        %s7985 = sand.u32 %s211, 1
        %s7986 = scalar_lea.sflag [#allocation4], %s7985
        %s7987 = sand.u32 %s211, 1
        %s7988 = smul.addr %s7987, 256
        %s7989 = scalar_lea.vmem [#allocation10], %s7988
        // Predicated region
        $region69: #{tpu_custom_call.1} parent=51 // pred_check
          %p7990 = pneg %p221
        $region70: #{tpu_custom_call.1} parent=51 // pred_check_branch
          %7992 = sbr.rel (%p7990) target = $region72
        $region71: #{tpu_custom_call.1} parent=51 // pred_region
          %7994 = vsyncadd %s7986, 0
          %s7995 = smul.addr %s25, 32
          %s7996 = smul.addr %s7995, 8
          %s7997 = scalar_lea.hbm %s8, %s7996
          %s7998 = sshll.u32 %s7989, 4
          %s7999 = int_to_ptr.vmem [resolvable:$true] %s7998
          %s8000 = sshll.u32 %s7997, 4
          %s8001 = int_to_ptr.hbm [resolvable:$true] %s8000
          %8006 = dma.vmem_to_hbm [thread:$0]  %s7999, 4096, %s8001, %s7986, 256, 256, 16
        $region72: #{tpu_custom_call.1} parent=51 // pred_fallthru
          _
      $region52: #{tpu_custom_call.1} parent=5 // pred_fallthru
        _
      %p8007 = scmp.le.s32.totalorder 2, %s20
      // Predicated region
      $region73: #{tpu_custom_call.1} parent=5 // pred_check
        %p8008 = pneg %p8007
      $region74: #{tpu_custom_call.1} parent=5 // pred_check_branch
        %8010 = sbr.rel (%p8008) target = $region76
      $region75: #{tpu_custom_call.1} parent=5 // pred_region
        %s8011 = ssub.s32 %s20, 2
        // Predicated region
        $region77: #{tpu_custom_call.1} parent=75 // pred_check
          %p8012 = pneg %p227
        $region78: #{tpu_custom_call.1} parent=75 // pred_check_branch
          %8014 = sbr.rel (%p8012) target = $region80
        $region79: #{tpu_custom_call.1} parent=75 // pred_region
          %s8015 = sand.u32 %s212, 1
          %s8016 = scalar_lea.sflag [#allocation4], %s8015
          %s8017 = sand.u32 %s212, 1
          %s8018 = smul.addr %s8017, 256
          %s8019 = scalar_lea.vmem [#allocation10], %s8018
          %8021 = dma.done %s8016, 4096
        $region80: #{tpu_custom_call.1} parent=75 // pred_fallthru
          _
      $region76: #{tpu_custom_call.1} parent=5 // pred_fallthru
        _
    $region6: #{tpu_custom_call.1} parent=1 // loop_footer
      %s24 = sadd.s32 1, %s20
    $region7: #{tpu_custom_call.1} parent=1 // loop_footer_branch
      %19 = sbr.rel target = $region3
    $region8: #{tpu_custom_call.1} parent=1 // loop_exit
      _
    %8022 = vsyncpa [#allocation3], 1
    %s8023 = scalar_lea.sflag [#allocation3], 1
    %8024 = vsyncpa %s8023, 1
    %8025 = vsyncpa [#allocation6], 1
    %8026 = vsyncpa [#allocation9], 1
    %8027 = vsyncpa [#allocation4], 1
    %s8028 = scalar_lea.sflag [#allocation4], 1
    %8029 = vsyncpa %s8028, 1

</llo_original>
